<compile_context>
chip_gen: v5e
topology: v5e:2x2
jax: 0.10.0
libtpu: 0.0.40
codegen_flags: <defaults>
</compile_context>

<pallas_src>
import functools

import jax
import jax.numpy as jnp
from jax.experimental import pallas as pl
from jax.experimental.pallas import tpu as pltpu


def _round_up(x, m):
    return (x + m - 1) // m * m


# ----------------------------------------------------------------------------
# Fused Pallas kernel: avg_pool -> conv0(1x1)+BN+ReLU -> conv1(5x5)+BN+ReLU -> fc
# Single grid point; every intermediate stays on-chip.
# ----------------------------------------------------------------------------
def _fused_kernel(x_ref, pt_ref, w0_ref, b0_ref, w1_hbm, b1_ref, wf_ref, bfc_ref,
                  o_ref, w1_vmem, w1_sem):
    n_batch = x_ref.shape[0]          # static
    n_pos = w1_vmem.shape[0]          # 25 taps of the 5x5 conv1 kernel
    c1 = w1_vmem.shape[2]             # 768

    # Prefetch conv1 weights (largest tensor): overlap its HBM->VMEM DMA with
    # the pool + conv0 compute below.
    w1_copy = pltpu.make_async_copy(w1_hbm, w1_vmem, w1_sem)
    w1_copy.start()

    pt = pt_ref[...]                  # (PP, HWp) bf16, exact 0/1 pooling taps
    w0 = w0_ref[...]                  # (C, 128) bf16, BN + 1/25 folded in
    b0 = b0_ref[...]                  # (1, 128) f32

    # --- avg_pool (GEMM vs 0/1 taps) + conv0 1x1 + BN + ReLU, per image -------
    h0_list = []
    for n in range(n_batch):          # static unroll; batch is tiny
        xn = x_ref[n]                                                   # (HWp, C) bf16
        pooled = jnp.dot(pt, xn, preferred_element_type=jnp.float32)   # (PP, C) f32
        h0 = jnp.dot(pooled.astype(jnp.bfloat16), w0,
                     preferred_element_type=jnp.float32)                # (PP, 128) f32
        h0 = jnp.maximum(h0 + b0, 0.0)
        h0_list.append(h0.astype(jnp.bfloat16))
    h0_all = jnp.stack(h0_list, axis=0)                                 # (N, PP, 128) bf16

    # --- conv1 5x5 (consumes the whole 5x5 map) + BN + ReLU -------------------
    w1_copy.wait()                    # conv1 weights now resident in VMEM
    acc = jnp.zeros((n_batch, c1), jnp.float32)
    for p in range(n_pos):            # 25 static MXU taps, f32 accumulation
        acc = acc + jnp.dot(h0_all[:, p, :], w1_vmem[p],
                            preferred_element_type=jnp.float32)
    h1 = jnp.maximum(acc + b1_ref[...], 0.0).astype(jnp.bfloat16)       # (N, 768)

    # --- fc --------------------------------------------------------------------
    out = jnp.dot(h1, wf_ref[...], preferred_element_type=jnp.float32) + bfc_ref[...]
    o_ref[...] = out


# ----------------------------------------------------------------------------
# Parameter preparation (ONCE, outside the jitted forward): BN folding, kernel
# reshapes to GEMM layout, 0/1 pool taps, padding, f32->bf16 weight cast.
# ----------------------------------------------------------------------------
def _fold_bn(w, gamma, beta, mean, var, eps=1e-3):
    """Fold inference-mode BatchNorm2d into the preceding bias-free conv."""
    scale = gamma / jnp.sqrt(var + eps)
    return w * scale[:, None, None, None], beta - mean * scale


def _pool_matrix_01(h, w, k=5, s=3, p=1):
    """(h*w, ho*wo) 0/1 matrix of avg_pool2d(k,s,p) memberships (no 1/25 scale)."""
    ho = (h + 2 * p - k) // s + 1
    wo = (w + 2 * p - k) // s + 1
    r = jnp.arange(h)[:, None]
    c = jnp.arange(w)[:, None]
    i = jnp.arange(ho)[None, :]
    j = jnp.arange(wo)[None, :]
    rin = (r >= i * s - p) & (r < i * s - p + k)          # (h, ho)
    cin = (c >= j * s - p) & (c < j * s - p + k)          # (w, wo)
    m = rin[:, None, :, None] & cin[None, :, None, :]     # (h, w, ho, wo)
    return m.reshape(h * w, ho * wo).astype(jnp.float32), ho, wo


def prepare_params(raw, h, w):
    pmat01, ho, wo = _pool_matrix_01(h, w)
    assert (ho, wo) == (5, 5), "fc expects 768 features -> pooled map must be 5x5"
    hw = h * w
    hwp = _round_up(hw, 128)          # lane-aligned K for the pooling GEMM
    n_pos = ho * wo                   # 25
    pp = _round_up(n_pos, 16)         # bf16 sublane-aligned tap-count dim

    w0f, b0f = _fold_bn(raw["w0"], raw["g0"], raw["be0"], raw["m0"], raw["v0"])
    w1f, b1f = _fold_bn(raw["w1"], raw["g1"], raw["be1"], raw["m1"], raw["v1"])
    cin = w0f.shape[1]

    params = {}
    # Exact 0/1 taps, transposed to (taps, H*W); padding is zeros -> no effect.
    params["pool_t"] = jnp.pad(
        pmat01.T, ((0, pp - n_pos), (0, hwp - hw))).astype(jnp.bfloat16)
    # conv0 as (Cin, 128) with the 1/25 average folded in (in f32, then bf16).
    params["w0"] = (w0f.reshape(128, cin).T * (1.0 / 25.0)).astype(jnp.bfloat16)
    params["b0"] = b0f.reshape(1, 128).astype(jnp.float32)
    # conv1 as (25 taps, 128 cin, 768 cout) matching h0's (p, c) layout.
    params["w1"] = jnp.transpose(w1f, (2, 3, 1, 0)).reshape(
        n_pos, 128, 768).astype(jnp.bfloat16)
    params["b1"] = b1f.reshape(1, 768).astype(jnp.float32)
    # fc, output features padded to a lane-dense multiple of 128.
    out_f = raw["wf"].shape[0]
    outp = _round_up(out_f, 128)
    params["wf"] = jnp.pad(raw["wf"].T, ((0, 0), (0, outp - out_f))).astype(jnp.bfloat16)
    params["bf"] = jnp.pad(raw["bf"], (0, outp - out_f)).reshape(1, outp).astype(jnp.float32)
    return params


# ----------------------------------------------------------------------------
# InceptionAux forward (input_sample=640 branch: conv1 kernel is 5x5).
# ----------------------------------------------------------------------------
def forward(params, x, *, output_size):
    n, c, h, w = x.shape
    pt = params["pool_t"]
    pp, hwp = pt.shape
    w1 = params["w1"]
    n_pos, c0, c1 = w1.shape
    wf = params["wf"]
    outp = wf.shape[1]

    # One-time input layout glue (tiny, ~40 KB): channel-last, pad H*W to the
    # lane-aligned pooling width, single bf16 cast.
    x_hwc = jnp.transpose(x, (0, 2, 3, 1)).reshape(n, h * w, c)
    x_hwc = jnp.pad(x_hwc, ((0, 0), (0, hwp - h * w), (0, 0))).astype(jnp.bfloat16)

    out = pl.pallas_call(
        _fused_kernel,
        out_shape=jax.ShapeDtypeStruct((n, outp), jnp.float32),
        grid_spec=pltpu.PrefetchScalarGridSpec(
            num_scalar_prefetch=0,
            grid=(1,),
            in_specs=[
                pl.BlockSpec((n, hwp, c), lambda i: (0, 0, 0)),   # x (channel-last)
                pl.BlockSpec((pp, hwp), lambda i: (0, 0)),        # pooling taps
                pl.BlockSpec((c, c0), lambda i: (0, 0)),          # conv0 weight
                pl.BlockSpec((1, c0), lambda i: (0, 0)),          # conv0 bias
                pl.BlockSpec(memory_space=pl.ANY),                # conv1 weight (HBM)
                pl.BlockSpec((1, c1), lambda i: (0, 0)),          # conv1 bias
                pl.BlockSpec((c1, outp), lambda i: (0, 0)),       # fc weight
                pl.BlockSpec((1, outp), lambda i: (0, 0)),        # fc bias
            ],
            out_specs=pl.BlockSpec((n, outp), lambda i: (0, 0)),
            scratch_shapes=[
                pltpu.VMEM((n_pos, c0, c1), jnp.bfloat16),        # conv1 weight buffer
                pltpu.SemaphoreType.DMA(()),                      # its DMA semaphore
            ],
        ),
        compiler_params=pltpu.CompilerParams(
            dimension_semantics=("arbitrary",),
            vmem_limit_bytes=32 * 1024 * 1024,
        ),
    )(x_hwc, pt, params["w0"], params["b0"], w1, params["b1"], wf, params["bf"])
    return out[:, :output_size]


# ----------------------------------------------------------------------------
# Pure-JAX f32 reference (same folded-BN semantics) for validation.
# ----------------------------------------------------------------------------
def reference_forward(raw, x, output_size):
    n, c, h, w = x.shape
    pmat01, ho, wo = _pool_matrix_01(h, w)
    pooled = (x.reshape(n * c, h * w) @ (pmat01 / 25.0)).reshape(n, c, ho * wo)
    w0f, b0f = _fold_bn(raw["w0"], raw["g0"], raw["be0"], raw["m0"], raw["v0"])
    h0 = jnp.maximum(jnp.einsum("ncp,oc->npo", pooled, w0f.reshape(128, c)) + b0f, 0.0)
    w1f, b1f = _fold_bn(raw["w1"], raw["g1"], raw["be1"], raw["m1"], raw["v1"])
    h1 = jnp.maximum(
        jnp.einsum("npc,dcp->nd", h0, w1f.reshape(768, 128, ho * wo)) + b1f, 0.0)
    out = h1 @ raw["wf"].T + raw["bf"]
    return out[:, :output_size]


def init_raw_params(key, in_channels, output_size):
    ks = jax.random.split(key, 10)
    return {
        # conv0: BasicConv2d(in_channels, 128, kernel_size=1)
        "w0": 0.1 * jax.random.normal(ks[0], (128, in_channels, 1, 1), jnp.float32),
        "g0": 1.0 + 0.1 * jax.random.normal(ks[1], (128,), jnp.float32),
        "be0": 0.1 * jax.random.normal(ks[2], (128,), jnp.float32),
        "m0": 0.05 * jax.random.normal(ks[3], (128,), jnp.float32),
        "v0": 1.0 + 0.1 * jax.random.uniform(ks[4], (128,), jnp.float32),
        # conv1: BasicConv2d(128, 768, kernel_size=5), stddev=0.01 in the reference
        "w1": 0.01 * jax.random.normal(ks[5], (768, 128, 5, 5), jnp.float32),
        "g1": 1.0 + 0.1 * jax.random.normal(ks[6], (768,), jnp.float32),
        "be1": 0.1 * jax.random.normal(ks[7], (768,), jnp.float32),
        "m1": jnp.zeros((768,), jnp.float32),
        "v1": jnp.ones((768,), jnp.float32),
        # fc: nn.Linear(768, output_size), stddev=0.001 in the reference
        "wf": 0.001 * jax.random.normal(ks[8], (output_size, 768), jnp.float32),
        "bf": 0.01 * jax.random.normal(ks[9], (output_size,), jnp.float32),
    }


if __name__ == "__main__":
    key = jax.random.PRNGKey(0)
    kx, kp = jax.random.split(key)

    # batch=2, in_channels=16, 17x17 spatial (the canonical aux-head input:
    # avg_pool(k5,s3,p1) -> 5x5, which conv1's 5x5 kernel consumes so that fc
    # sees exactly 768 features), output_size=10.
    N, Cin, H, W = 2, 16, 17, 17
    output_size = 10

    x = jax.random.normal(kx, (N, Cin, H, W), jnp.float32)
    raw = init_raw_params(kp, Cin, output_size)
    params = prepare_params(raw, H, W)   # one-time: BN fold, reshape, pad, bf16 cast

    fwd = jax.jit(functools.partial(forward, output_size=output_size))
    out = jax.block_until_ready(fwd(params, x))

    assert out.shape == (N, output_size), out.shape
    assert bool(jnp.all(jnp.isfinite(out)))

    ref = reference_forward(raw, x, output_size)
    max_err = float(jnp.max(jnp.abs(out - ref)))
    assert max_err < 5e-3, f"mismatch vs f32 reference: max_err={max_err}"
    print("KERNEL_OK")
</pallas_src>

<mosaic_0001>
module attributes {stable_mosaic.version = 11 : i64} {
  func.func @_fused_kernel(%arg0: i32, %arg1: memref<2x384x16xbf16, #tpu.memory_space<vmem>>, %arg2: memref<32x384xbf16, #tpu.memory_space<vmem>>, %arg3: memref<16x128xbf16, #tpu.memory_space<vmem>>, %arg4: memref<1x128xf32, #tpu.memory_space<vmem>>, %arg5: memref<25x128x768xbf16, #tpu.memory_space<any>>, %arg6: memref<1x768xf32, #tpu.memory_space<vmem>>, %arg7: memref<768x128xbf16, #tpu.memory_space<vmem>>, %arg8: memref<1x128xf32, #tpu.memory_space<vmem>>, %arg9: memref<2x128xf32, #tpu.memory_space<vmem>>, %arg10: memref<25x128x768xbf16, #tpu.memory_space<vmem>>, %arg11: memref<!tpu.dma_semaphore, #tpu.memory_space<semaphore_mem>>) attributes {dimension_semantics = [#tpu.dimension_semantics<arbitrary>], iteration_bounds = array<i64: 1>, scalar_prefetch = 0 : i64, scratch_operands = 2 : i64, tpu.core_type = #tpu.core_type<tc>, window_params = [{pipeline_mode = #tpu.pipeline_mode<synchronous>, transform_indices = @transform_0, window_bounds = array<i64: 2, 384, 16>}, {pipeline_mode = #tpu.pipeline_mode<synchronous>, transform_indices = @transform_1, window_bounds = array<i64: 32, 384>}, {pipeline_mode = #tpu.pipeline_mode<synchronous>, transform_indices = @transform_2, window_bounds = array<i64: 16, 128>}, {pipeline_mode = #tpu.pipeline_mode<synchronous>, transform_indices = @transform_3, window_bounds = array<i64: 1, 128>}, {}, {pipeline_mode = #tpu.pipeline_mode<synchronous>, transform_indices = @transform_5, window_bounds = array<i64: 1, 768>}, {pipeline_mode = #tpu.pipeline_mode<synchronous>, transform_indices = @transform_6, window_bounds = array<i64: 768, 128>}, {pipeline_mode = #tpu.pipeline_mode<synchronous>, transform_indices = @transform_7, window_bounds = array<i64: 1, 128>}, {pipeline_mode = #tpu.pipeline_mode<synchronous>, transform_indices = @transform_8, window_bounds = array<i64: 2, 128>}]} {
    tpu.enqueue_dma source(%arg5 : memref<25x128x768xbf16, #tpu.memory_space<any>>) target(%arg10 : memref<25x128x768xbf16, #tpu.memory_space<vmem>>) target_semaphore(%arg11 : memref<!tpu.dma_semaphore, #tpu.memory_space<semaphore_mem>>)
    %c0 = arith.constant 0 : index
    %c0_0 = arith.constant 0 : index
    %0 = vector.load %arg2[%c0, %c0_0] : memref<32x384xbf16, #tpu.memory_space<vmem>>, vector<32x384xbf16>
    %c0_1 = arith.constant 0 : index
    %c0_2 = arith.constant 0 : index
    %1 = vector.load %arg3[%c0_1, %c0_2] : memref<16x128xbf16, #tpu.memory_space<vmem>>, vector<16x128xbf16>
    %c0_3 = arith.constant 0 : index
    %c0_4 = arith.constant 0 : index
    %2 = vector.load %arg4[%c0_3, %c0_4] : memref<1x128xf32, #tpu.memory_space<vmem>>, vector<1x128xf32>
    %c0_5 = arith.constant 0 : index
    %c0_6 = arith.constant 0 : index
    %c0_7 = arith.constant 0 : index
    %3 = vector.load %arg1[%c0_5, %c0_6, %c0_7] : memref<2x384x16xbf16, #tpu.memory_space<vmem>>, vector<1x384x16xbf16>
    %4 = vector.shape_cast %3 : vector<1x384x16xbf16> to vector<384x16xbf16>
    %cst = arith.constant dense<0.000000e+00> : vector<32x16xf32>
    %5 = tpu.matmul %0, %4, %cst {dimension_numbers = #tpu.dot_dimension_numbers<[1], [0], [0], [1], [0, 0, 1, 1], [], []>} : vector<32x384xbf16>, vector<384x16xbf16>, vector<32x16xf32> -> vector<32x16xf32>
    %6 = arith.truncf %5 : vector<32x16xf32> to vector<32x16xbf16>
    %cst_8 = arith.constant dense<0.000000e+00> : vector<32x128xf32>
    %7 = tpu.matmul %6, %1, %cst_8 {dimension_numbers = #tpu.dot_dimension_numbers<[1], [0], [0], [1], [0, 0, 1, 1], [], []>} : vector<32x16xbf16>, vector<16x128xbf16>, vector<32x128xf32> -> vector<32x128xf32>
    %8 = vector.broadcast %2 : vector<1x128xf32> to vector<32x128xf32>
    %9 = arith.addf %7, %8 : vector<32x128xf32>
    %cst_9 = arith.constant 0.000000e+00 : f32
    %10 = vector.broadcast %cst_9 : f32 to vector<32x128xf32>
    %11 = arith.maximumf %9, %10 : vector<32x128xf32>
    %12 = arith.truncf %11 : vector<32x128xf32> to vector<32x128xbf16>
    %c1 = arith.constant 1 : index
    %c0_10 = arith.constant 0 : index
    %c0_11 = arith.constant 0 : index
    %13 = vector.load %arg1[%c1, %c0_10, %c0_11] : memref<2x384x16xbf16, #tpu.memory_space<vmem>>, vector<1x384x16xbf16>
    %14 = vector.shape_cast %13 : vector<1x384x16xbf16> to vector<384x16xbf16>
    %cst_12 = arith.constant dense<0.000000e+00> : vector<32x16xf32>
    %15 = tpu.matmul %0, %14, %cst_12 {dimension_numbers = #tpu.dot_dimension_numbers<[1], [0], [0], [1], [0, 0, 1, 1], [], []>} : vector<32x384xbf16>, vector<384x16xbf16>, vector<32x16xf32> -> vector<32x16xf32>
    %16 = arith.truncf %15 : vector<32x16xf32> to vector<32x16xbf16>
    %cst_13 = arith.constant dense<0.000000e+00> : vector<32x128xf32>
    %17 = tpu.matmul %16, %1, %cst_13 {dimension_numbers = #tpu.dot_dimension_numbers<[1], [0], [0], [1], [0, 0, 1, 1], [], []>} : vector<32x16xbf16>, vector<16x128xbf16>, vector<32x128xf32> -> vector<32x128xf32>
    %18 = vector.broadcast %2 : vector<1x128xf32> to vector<32x128xf32>
    %19 = arith.addf %17, %18 : vector<32x128xf32>
    %cst_14 = arith.constant 0.000000e+00 : f32
    %20 = vector.broadcast %cst_14 : f32 to vector<32x128xf32>
    %21 = arith.maximumf %19, %20 : vector<32x128xf32>
    %22 = arith.truncf %21 : vector<32x128xf32> to vector<32x128xbf16>
    %23 = vector.shape_cast %12 : vector<32x128xbf16> to vector<1x32x128xbf16>
    %24 = vector.shape_cast %22 : vector<32x128xbf16> to vector<1x32x128xbf16>
    %25 = tpu.concatenate %23, %24 in 0 : vector<1x32x128xbf16>, vector<1x32x128xbf16> -> vector<2x32x128xbf16>
    tpu.wait_dma2 semaphore(%arg11 : memref<!tpu.dma_semaphore, #tpu.memory_space<semaphore_mem>>) src(%arg5 : memref<25x128x768xbf16, #tpu.memory_space<any>>) dst(%arg10 : memref<25x128x768xbf16, #tpu.memory_space<vmem>>)
    %cst_15 = arith.constant 0.000000e+00 : f32
    %26 = vector.broadcast %cst_15 : f32 to vector<2x768xf32>
    %27 = vector.extract_strided_slice %25 {offsets = [0, 0, 0], sizes = [2, 1, 128], strides = [1, 1, 1]} : vector<2x32x128xbf16> to vector<2x1x128xbf16>
    %28 = vector.shape_cast %27 : vector<2x1x128xbf16> to vector<2x128xbf16>
    %c0_16 = arith.constant 0 : index
    %c0_17 = arith.constant 0 : index
    %c0_18 = arith.constant 0 : index
    %29 = vector.load %arg10[%c0_16, %c0_17, %c0_18] : memref<25x128x768xbf16, #tpu.memory_space<vmem>>, vector<1x128x768xbf16>
    %30 = vector.shape_cast %29 : vector<1x128x768xbf16> to vector<128x768xbf16>
    %cst_19 = arith.constant dense<0.000000e+00> : vector<2x768xf32>
    %31 = tpu.matmul %28, %30, %cst_19 {dimension_numbers = #tpu.dot_dimension_numbers<[1], [0], [0], [1], [0, 0, 1, 1], [], []>} : vector<2x128xbf16>, vector<128x768xbf16>, vector<2x768xf32> -> vector<2x768xf32>
    %32 = arith.addf %26, %31 : vector<2x768xf32>
    %33 = vector.extract_strided_slice %25 {offsets = [0, 1, 0], sizes = [2, 1, 128], strides = [1, 1, 1]} : vector<2x32x128xbf16> to vector<2x1x128xbf16>
    %34 = vector.shape_cast %33 : vector<2x1x128xbf16> to vector<2x128xbf16>
    %c1_20 = arith.constant 1 : index
    %c0_21 = arith.constant 0 : index
    %c0_22 = arith.constant 0 : index
    %35 = vector.load %arg10[%c1_20, %c0_21, %c0_22] : memref<25x128x768xbf16, #tpu.memory_space<vmem>>, vector<1x128x768xbf16>
    %36 = vector.shape_cast %35 : vector<1x128x768xbf16> to vector<128x768xbf16>
    %cst_23 = arith.constant dense<0.000000e+00> : vector<2x768xf32>
    %37 = tpu.matmul %34, %36, %cst_23 {dimension_numbers = #tpu.dot_dimension_numbers<[1], [0], [0], [1], [0, 0, 1, 1], [], []>} : vector<2x128xbf16>, vector<128x768xbf16>, vector<2x768xf32> -> vector<2x768xf32>
    %38 = arith.addf %32, %37 : vector<2x768xf32>
    %39 = vector.extract_strided_slice %25 {offsets = [0, 2, 0], sizes = [2, 1, 128], strides = [1, 1, 1]} : vector<2x32x128xbf16> to vector<2x1x128xbf16>
    %40 = vector.shape_cast %39 : vector<2x1x128xbf16> to vector<2x128xbf16>
    %c2 = arith.constant 2 : index
    %c0_24 = arith.constant 0 : index
    %c0_25 = arith.constant 0 : index
    %41 = vector.load %arg10[%c2, %c0_24, %c0_25] : memref<25x128x768xbf16, #tpu.memory_space<vmem>>, vector<1x128x768xbf16>
    %42 = vector.shape_cast %41 : vector<1x128x768xbf16> to vector<128x768xbf16>
    %cst_26 = arith.constant dense<0.000000e+00> : vector<2x768xf32>
    %43 = tpu.matmul %40, %42, %cst_26 {dimension_numbers = #tpu.dot_dimension_numbers<[1], [0], [0], [1], [0, 0, 1, 1], [], []>} : vector<2x128xbf16>, vector<128x768xbf16>, vector<2x768xf32> -> vector<2x768xf32>
    %44 = arith.addf %38, %43 : vector<2x768xf32>
    %45 = vector.extract_strided_slice %25 {offsets = [0, 3, 0], sizes = [2, 1, 128], strides = [1, 1, 1]} : vector<2x32x128xbf16> to vector<2x1x128xbf16>
    %46 = vector.shape_cast %45 : vector<2x1x128xbf16> to vector<2x128xbf16>
    %c3 = arith.constant 3 : index
    %c0_27 = arith.constant 0 : index
    %c0_28 = arith.constant 0 : index
    %47 = vector.load %arg10[%c3, %c0_27, %c0_28] : memref<25x128x768xbf16, #tpu.memory_space<vmem>>, vector<1x128x768xbf16>
    %48 = vector.shape_cast %47 : vector<1x128x768xbf16> to vector<128x768xbf16>
    %cst_29 = arith.constant dense<0.000000e+00> : vector<2x768xf32>
    %49 = tpu.matmul %46, %48, %cst_29 {dimension_numbers = #tpu.dot_dimension_numbers<[1], [0], [0], [1], [0, 0, 1, 1], [], []>} : vector<2x128xbf16>, vector<128x768xbf16>, vector<2x768xf32> -> vector<2x768xf32>
    %50 = arith.addf %44, %49 : vector<2x768xf32>
    %51 = vector.extract_strided_slice %25 {offsets = [0, 4, 0], sizes = [2, 1, 128], strides = [1, 1, 1]} : vector<2x32x128xbf16> to vector<2x1x128xbf16>
    %52 = vector.shape_cast %51 : vector<2x1x128xbf16> to vector<2x128xbf16>
    %c4 = arith.constant 4 : index
    %c0_30 = arith.constant 0 : index
    %c0_31 = arith.constant 0 : index
    %53 = vector.load %arg10[%c4, %c0_30, %c0_31] : memref<25x128x768xbf16, #tpu.memory_space<vmem>>, vector<1x128x768xbf16>
    %54 = vector.shape_cast %53 : vector<1x128x768xbf16> to vector<128x768xbf16>
    %cst_32 = arith.constant dense<0.000000e+00> : vector<2x768xf32>
    %55 = tpu.matmul %52, %54, %cst_32 {dimension_numbers = #tpu.dot_dimension_numbers<[1], [0], [0], [1], [0, 0, 1, 1], [], []>} : vector<2x128xbf16>, vector<128x768xbf16>, vector<2x768xf32> -> vector<2x768xf32>
    %56 = arith.addf %50, %55 : vector<2x768xf32>
    %57 = vector.extract_strided_slice %25 {offsets = [0, 5, 0], sizes = [2, 1, 128], strides = [1, 1, 1]} : vector<2x32x128xbf16> to vector<2x1x128xbf16>
    %58 = vector.shape_cast %57 : vector<2x1x128xbf16> to vector<2x128xbf16>
    %c5 = arith.constant 5 : index
    %c0_33 = arith.constant 0 : index
    %c0_34 = arith.constant 0 : index
    %59 = vector.load %arg10[%c5, %c0_33, %c0_34] : memref<25x128x768xbf16, #tpu.memory_space<vmem>>, vector<1x128x768xbf16>
    %60 = vector.shape_cast %59 : vector<1x128x768xbf16> to vector<128x768xbf16>
    %cst_35 = arith.constant dense<0.000000e+00> : vector<2x768xf32>
    %61 = tpu.matmul %58, %60, %cst_35 {dimension_numbers = #tpu.dot_dimension_numbers<[1], [0], [0], [1], [0, 0, 1, 1], [], []>} : vector<2x128xbf16>, vector<128x768xbf16>, vector<2x768xf32> -> vector<2x768xf32>
    %62 = arith.addf %56, %61 : vector<2x768xf32>
    %63 = vector.extract_strided_slice %25 {offsets = [0, 6, 0], sizes = [2, 1, 128], strides = [1, 1, 1]} : vector<2x32x128xbf16> to vector<2x1x128xbf16>
    %64 = vector.shape_cast %63 : vector<2x1x128xbf16> to vector<2x128xbf16>
    %c6 = arith.constant 6 : index
    %c0_36 = arith.constant 0 : index
    %c0_37 = arith.constant 0 : index
    %65 = vector.load %arg10[%c6, %c0_36, %c0_37] : memref<25x128x768xbf16, #tpu.memory_space<vmem>>, vector<1x128x768xbf16>
    %66 = vector.shape_cast %65 : vector<1x128x768xbf16> to vector<128x768xbf16>
    %cst_38 = arith.constant dense<0.000000e+00> : vector<2x768xf32>
    %67 = tpu.matmul %64, %66, %cst_38 {dimension_numbers = #tpu.dot_dimension_numbers<[1], [0], [0], [1], [0, 0, 1, 1], [], []>} : vector<2x128xbf16>, vector<128x768xbf16>, vector<2x768xf32> -> vector<2x768xf32>
    %68 = arith.addf %62, %67 : vector<2x768xf32>
    %69 = vector.extract_strided_slice %25 {offsets = [0, 7, 0], sizes = [2, 1, 128], strides = [1, 1, 1]} : vector<2x32x128xbf16> to vector<2x1x128xbf16>
    %70 = vector.shape_cast %69 : vector<2x1x128xbf16> to vector<2x128xbf16>
    %c7 = arith.constant 7 : index
    %c0_39 = arith.constant 0 : index
    %c0_40 = arith.constant 0 : index
    %71 = vector.load %arg10[%c7, %c0_39, %c0_40] : memref<25x128x768xbf16, #tpu.memory_space<vmem>>, vector<1x128x768xbf16>
    %72 = vector.shape_cast %71 : vector<1x128x768xbf16> to vector<128x768xbf16>
    %cst_41 = arith.constant dense<0.000000e+00> : vector<2x768xf32>
    %73 = tpu.matmul %70, %72, %cst_41 {dimension_numbers = #tpu.dot_dimension_numbers<[1], [0], [0], [1], [0, 0, 1, 1], [], []>} : vector<2x128xbf16>, vector<128x768xbf16>, vector<2x768xf32> -> vector<2x768xf32>
    %74 = arith.addf %68, %73 : vector<2x768xf32>
    %75 = vector.extract_strided_slice %25 {offsets = [0, 8, 0], sizes = [2, 1, 128], strides = [1, 1, 1]} : vector<2x32x128xbf16> to vector<2x1x128xbf16>
    %76 = vector.shape_cast %75 : vector<2x1x128xbf16> to vector<2x128xbf16>
    %c8 = arith.constant 8 : index
    %c0_42 = arith.constant 0 : index
    %c0_43 = arith.constant 0 : index
    %77 = vector.load %arg10[%c8, %c0_42, %c0_43] : memref<25x128x768xbf16, #tpu.memory_space<vmem>>, vector<1x128x768xbf16>
    %78 = vector.shape_cast %77 : vector<1x128x768xbf16> to vector<128x768xbf16>
    %cst_44 = arith.constant dense<0.000000e+00> : vector<2x768xf32>
    %79 = tpu.matmul %76, %78, %cst_44 {dimension_numbers = #tpu.dot_dimension_numbers<[1], [0], [0], [1], [0, 0, 1, 1], [], []>} : vector<2x128xbf16>, vector<128x768xbf16>, vector<2x768xf32> -> vector<2x768xf32>
    %80 = arith.addf %74, %79 : vector<2x768xf32>
    %81 = vector.extract_strided_slice %25 {offsets = [0, 9, 0], sizes = [2, 1, 128], strides = [1, 1, 1]} : vector<2x32x128xbf16> to vector<2x1x128xbf16>
    %82 = vector.shape_cast %81 : vector<2x1x128xbf16> to vector<2x128xbf16>
    %c9 = arith.constant 9 : index
    %c0_45 = arith.constant 0 : index
    %c0_46 = arith.constant 0 : index
    %83 = vector.load %arg10[%c9, %c0_45, %c0_46] : memref<25x128x768xbf16, #tpu.memory_space<vmem>>, vector<1x128x768xbf16>
    %84 = vector.shape_cast %83 : vector<1x128x768xbf16> to vector<128x768xbf16>
    %cst_47 = arith.constant dense<0.000000e+00> : vector<2x768xf32>
    %85 = tpu.matmul %82, %84, %cst_47 {dimension_numbers = #tpu.dot_dimension_numbers<[1], [0], [0], [1], [0, 0, 1, 1], [], []>} : vector<2x128xbf16>, vector<128x768xbf16>, vector<2x768xf32> -> vector<2x768xf32>
    %86 = arith.addf %80, %85 : vector<2x768xf32>
    %87 = vector.extract_strided_slice %25 {offsets = [0, 10, 0], sizes = [2, 1, 128], strides = [1, 1, 1]} : vector<2x32x128xbf16> to vector<2x1x128xbf16>
    %88 = vector.shape_cast %87 : vector<2x1x128xbf16> to vector<2x128xbf16>
    %c10 = arith.constant 10 : index
    %c0_48 = arith.constant 0 : index
    %c0_49 = arith.constant 0 : index
    %89 = vector.load %arg10[%c10, %c0_48, %c0_49] : memref<25x128x768xbf16, #tpu.memory_space<vmem>>, vector<1x128x768xbf16>
    %90 = vector.shape_cast %89 : vector<1x128x768xbf16> to vector<128x768xbf16>
    %cst_50 = arith.constant dense<0.000000e+00> : vector<2x768xf32>
    %91 = tpu.matmul %88, %90, %cst_50 {dimension_numbers = #tpu.dot_dimension_numbers<[1], [0], [0], [1], [0, 0, 1, 1], [], []>} : vector<2x128xbf16>, vector<128x768xbf16>, vector<2x768xf32> -> vector<2x768xf32>
    %92 = arith.addf %86, %91 : vector<2x768xf32>
    %93 = vector.extract_strided_slice %25 {offsets = [0, 11, 0], sizes = [2, 1, 128], strides = [1, 1, 1]} : vector<2x32x128xbf16> to vector<2x1x128xbf16>
    %94 = vector.shape_cast %93 : vector<2x1x128xbf16> to vector<2x128xbf16>
    %c11 = arith.constant 11 : index
    %c0_51 = arith.constant 0 : index
    %c0_52 = arith.constant 0 : index
    %95 = vector.load %arg10[%c11, %c0_51, %c0_52] : memref<25x128x768xbf16, #tpu.memory_space<vmem>>, vector<1x128x768xbf16>
    %96 = vector.shape_cast %95 : vector<1x128x768xbf16> to vector<128x768xbf16>
    %cst_53 = arith.constant dense<0.000000e+00> : vector<2x768xf32>
    %97 = tpu.matmul %94, %96, %cst_53 {dimension_numbers = #tpu.dot_dimension_numbers<[1], [0], [0], [1], [0, 0, 1, 1], [], []>} : vector<2x128xbf16>, vector<128x768xbf16>, vector<2x768xf32> -> vector<2x768xf32>
    %98 = arith.addf %92, %97 : vector<2x768xf32>
    %99 = vector.extract_strided_slice %25 {offsets = [0, 12, 0], sizes = [2, 1, 128], strides = [1, 1, 1]} : vector<2x32x128xbf16> to vector<2x1x128xbf16>
    %100 = vector.shape_cast %99 : vector<2x1x128xbf16> to vector<2x128xbf16>
    %c12 = arith.constant 12 : index
    %c0_54 = arith.constant 0 : index
    %c0_55 = arith.constant 0 : index
    %101 = vector.load %arg10[%c12, %c0_54, %c0_55] : memref<25x128x768xbf16, #tpu.memory_space<vmem>>, vector<1x128x768xbf16>
    %102 = vector.shape_cast %101 : vector<1x128x768xbf16> to vector<128x768xbf16>
    %cst_56 = arith.constant dense<0.000000e+00> : vector<2x768xf32>
    %103 = tpu.matmul %100, %102, %cst_56 {dimension_numbers = #tpu.dot_dimension_numbers<[1], [0], [0], [1], [0, 0, 1, 1], [], []>} : vector<2x128xbf16>, vector<128x768xbf16>, vector<2x768xf32> -> vector<2x768xf32>
    %104 = arith.addf %98, %103 : vector<2x768xf32>
    %105 = vector.extract_strided_slice %25 {offsets = [0, 13, 0], sizes = [2, 1, 128], strides = [1, 1, 1]} : vector<2x32x128xbf16> to vector<2x1x128xbf16>
    %106 = vector.shape_cast %105 : vector<2x1x128xbf16> to vector<2x128xbf16>
    %c13 = arith.constant 13 : index
    %c0_57 = arith.constant 0 : index
    %c0_58 = arith.constant 0 : index
    %107 = vector.load %arg10[%c13, %c0_57, %c0_58] : memref<25x128x768xbf16, #tpu.memory_space<vmem>>, vector<1x128x768xbf16>
    %108 = vector.shape_cast %107 : vector<1x128x768xbf16> to vector<128x768xbf16>
    %cst_59 = arith.constant dense<0.000000e+00> : vector<2x768xf32>
    %109 = tpu.matmul %106, %108, %cst_59 {dimension_numbers = #tpu.dot_dimension_numbers<[1], [0], [0], [1], [0, 0, 1, 1], [], []>} : vector<2x128xbf16>, vector<128x768xbf16>, vector<2x768xf32> -> vector<2x768xf32>
    %110 = arith.addf %104, %109 : vector<2x768xf32>
    %111 = vector.extract_strided_slice %25 {offsets = [0, 14, 0], sizes = [2, 1, 128], strides = [1, 1, 1]} : vector<2x32x128xbf16> to vector<2x1x128xbf16>
    %112 = vector.shape_cast %111 : vector<2x1x128xbf16> to vector<2x128xbf16>
    %c14 = arith.constant 14 : index
    %c0_60 = arith.constant 0 : index
    %c0_61 = arith.constant 0 : index
    %113 = vector.load %arg10[%c14, %c0_60, %c0_61] : memref<25x128x768xbf16, #tpu.memory_space<vmem>>, vector<1x128x768xbf16>
    %114 = vector.shape_cast %113 : vector<1x128x768xbf16> to vector<128x768xbf16>
    %cst_62 = arith.constant dense<0.000000e+00> : vector<2x768xf32>
    %115 = tpu.matmul %112, %114, %cst_62 {dimension_numbers = #tpu.dot_dimension_numbers<[1], [0], [0], [1], [0, 0, 1, 1], [], []>} : vector<2x128xbf16>, vector<128x768xbf16>, vector<2x768xf32> -> vector<2x768xf32>
    %116 = arith.addf %110, %115 : vector<2x768xf32>
    %117 = vector.extract_strided_slice %25 {offsets = [0, 15, 0], sizes = [2, 1, 128], strides = [1, 1, 1]} : vector<2x32x128xbf16> to vector<2x1x128xbf16>
    %118 = vector.shape_cast %117 : vector<2x1x128xbf16> to vector<2x128xbf16>
    %c15 = arith.constant 15 : index
    %c0_63 = arith.constant 0 : index
    %c0_64 = arith.constant 0 : index
    %119 = vector.load %arg10[%c15, %c0_63, %c0_64] : memref<25x128x768xbf16, #tpu.memory_space<vmem>>, vector<1x128x768xbf16>
    %120 = vector.shape_cast %119 : vector<1x128x768xbf16> to vector<128x768xbf16>
    %cst_65 = arith.constant dense<0.000000e+00> : vector<2x768xf32>
    %121 = tpu.matmul %118, %120, %cst_65 {dimension_numbers = #tpu.dot_dimension_numbers<[1], [0], [0], [1], [0, 0, 1, 1], [], []>} : vector<2x128xbf16>, vector<128x768xbf16>, vector<2x768xf32> -> vector<2x768xf32>
    %122 = arith.addf %116, %121 : vector<2x768xf32>
    %123 = vector.extract_strided_slice %25 {offsets = [0, 16, 0], sizes = [2, 1, 128], strides = [1, 1, 1]} : vector<2x32x128xbf16> to vector<2x1x128xbf16>
    %124 = vector.shape_cast %123 : vector<2x1x128xbf16> to vector<2x128xbf16>
    %c16 = arith.constant 16 : index
    %c0_66 = arith.constant 0 : index
    %c0_67 = arith.constant 0 : index
    %125 = vector.load %arg10[%c16, %c0_66, %c0_67] : memref<25x128x768xbf16, #tpu.memory_space<vmem>>, vector<1x128x768xbf16>
    %126 = vector.shape_cast %125 : vector<1x128x768xbf16> to vector<128x768xbf16>
    %cst_68 = arith.constant dense<0.000000e+00> : vector<2x768xf32>
    %127 = tpu.matmul %124, %126, %cst_68 {dimension_numbers = #tpu.dot_dimension_numbers<[1], [0], [0], [1], [0, 0, 1, 1], [], []>} : vector<2x128xbf16>, vector<128x768xbf16>, vector<2x768xf32> -> vector<2x768xf32>
    %128 = arith.addf %122, %127 : vector<2x768xf32>
    %129 = vector.extract_strided_slice %25 {offsets = [0, 17, 0], sizes = [2, 1, 128], strides = [1, 1, 1]} : vector<2x32x128xbf16> to vector<2x1x128xbf16>
    %130 = vector.shape_cast %129 : vector<2x1x128xbf16> to vector<2x128xbf16>
    %c17 = arith.constant 17 : index
    %c0_69 = arith.constant 0 : index
    %c0_70 = arith.constant 0 : index
    %131 = vector.load %arg10[%c17, %c0_69, %c0_70] : memref<25x128x768xbf16, #tpu.memory_space<vmem>>, vector<1x128x768xbf16>
    %132 = vector.shape_cast %131 : vector<1x128x768xbf16> to vector<128x768xbf16>
    %cst_71 = arith.constant dense<0.000000e+00> : vector<2x768xf32>
    %133 = tpu.matmul %130, %132, %cst_71 {dimension_numbers = #tpu.dot_dimension_numbers<[1], [0], [0], [1], [0, 0, 1, 1], [], []>} : vector<2x128xbf16>, vector<128x768xbf16>, vector<2x768xf32> -> vector<2x768xf32>
    %134 = arith.addf %128, %133 : vector<2x768xf32>
    %135 = vector.extract_strided_slice %25 {offsets = [0, 18, 0], sizes = [2, 1, 128], strides = [1, 1, 1]} : vector<2x32x128xbf16> to vector<2x1x128xbf16>
    %136 = vector.shape_cast %135 : vector<2x1x128xbf16> to vector<2x128xbf16>
    %c18 = arith.constant 18 : index
    %c0_72 = arith.constant 0 : index
    %c0_73 = arith.constant 0 : index
    %137 = vector.load %arg10[%c18, %c0_72, %c0_73] : memref<25x128x768xbf16, #tpu.memory_space<vmem>>, vector<1x128x768xbf16>
    %138 = vector.shape_cast %137 : vector<1x128x768xbf16> to vector<128x768xbf16>
    %cst_74 = arith.constant dense<0.000000e+00> : vector<2x768xf32>
    %139 = tpu.matmul %136, %138, %cst_74 {dimension_numbers = #tpu.dot_dimension_numbers<[1], [0], [0], [1], [0, 0, 1, 1], [], []>} : vector<2x128xbf16>, vector<128x768xbf16>, vector<2x768xf32> -> vector<2x768xf32>
    %140 = arith.addf %134, %139 : vector<2x768xf32>
    %141 = vector.extract_strided_slice %25 {offsets = [0, 19, 0], sizes = [2, 1, 128], strides = [1, 1, 1]} : vector<2x32x128xbf16> to vector<2x1x128xbf16>
    %142 = vector.shape_cast %141 : vector<2x1x128xbf16> to vector<2x128xbf16>
    %c19 = arith.constant 19 : index
    %c0_75 = arith.constant 0 : index
    %c0_76 = arith.constant 0 : index
    %143 = vector.load %arg10[%c19, %c0_75, %c0_76] : memref<25x128x768xbf16, #tpu.memory_space<vmem>>, vector<1x128x768xbf16>
    %144 = vector.shape_cast %143 : vector<1x128x768xbf16> to vector<128x768xbf16>
    %cst_77 = arith.constant dense<0.000000e+00> : vector<2x768xf32>
    %145 = tpu.matmul %142, %144, %cst_77 {dimension_numbers = #tpu.dot_dimension_numbers<[1], [0], [0], [1], [0, 0, 1, 1], [], []>} : vector<2x128xbf16>, vector<128x768xbf16>, vector<2x768xf32> -> vector<2x768xf32>
    %146 = arith.addf %140, %145 : vector<2x768xf32>
    %147 = vector.extract_strided_slice %25 {offsets = [0, 20, 0], sizes = [2, 1, 128], strides = [1, 1, 1]} : vector<2x32x128xbf16> to vector<2x1x128xbf16>
    %148 = vector.shape_cast %147 : vector<2x1x128xbf16> to vector<2x128xbf16>
    %c20 = arith.constant 20 : index
    %c0_78 = arith.constant 0 : index
    %c0_79 = arith.constant 0 : index
    %149 = vector.load %arg10[%c20, %c0_78, %c0_79] : memref<25x128x768xbf16, #tpu.memory_space<vmem>>, vector<1x128x768xbf16>
    %150 = vector.shape_cast %149 : vector<1x128x768xbf16> to vector<128x768xbf16>
    %cst_80 = arith.constant dense<0.000000e+00> : vector<2x768xf32>
    %151 = tpu.matmul %148, %150, %cst_80 {dimension_numbers = #tpu.dot_dimension_numbers<[1], [0], [0], [1], [0, 0, 1, 1], [], []>} : vector<2x128xbf16>, vector<128x768xbf16>, vector<2x768xf32> -> vector<2x768xf32>
    %152 = arith.addf %146, %151 : vector<2x768xf32>
    %153 = vector.extract_strided_slice %25 {offsets = [0, 21, 0], sizes = [2, 1, 128], strides = [1, 1, 1]} : vector<2x32x128xbf16> to vector<2x1x128xbf16>
    %154 = vector.shape_cast %153 : vector<2x1x128xbf16> to vector<2x128xbf16>
    %c21 = arith.constant 21 : index
    %c0_81 = arith.constant 0 : index
    %c0_82 = arith.constant 0 : index
    %155 = vector.load %arg10[%c21, %c0_81, %c0_82] : memref<25x128x768xbf16, #tpu.memory_space<vmem>>, vector<1x128x768xbf16>
    %156 = vector.shape_cast %155 : vector<1x128x768xbf16> to vector<128x768xbf16>
    %cst_83 = arith.constant dense<0.000000e+00> : vector<2x768xf32>
    %157 = tpu.matmul %154, %156, %cst_83 {dimension_numbers = #tpu.dot_dimension_numbers<[1], [0], [0], [1], [0, 0, 1, 1], [], []>} : vector<2x128xbf16>, vector<128x768xbf16>, vector<2x768xf32> -> vector<2x768xf32>
    %158 = arith.addf %152, %157 : vector<2x768xf32>
    %159 = vector.extract_strided_slice %25 {offsets = [0, 22, 0], sizes = [2, 1, 128], strides = [1, 1, 1]} : vector<2x32x128xbf16> to vector<2x1x128xbf16>
    %160 = vector.shape_cast %159 : vector<2x1x128xbf16> to vector<2x128xbf16>
    %c22 = arith.constant 22 : index
    %c0_84 = arith.constant 0 : index
    %c0_85 = arith.constant 0 : index
    %161 = vector.load %arg10[%c22, %c0_84, %c0_85] : memref<25x128x768xbf16, #tpu.memory_space<vmem>>, vector<1x128x768xbf16>
    %162 = vector.shape_cast %161 : vector<1x128x768xbf16> to vector<128x768xbf16>
    %cst_86 = arith.constant dense<0.000000e+00> : vector<2x768xf32>
    %163 = tpu.matmul %160, %162, %cst_86 {dimension_numbers = #tpu.dot_dimension_numbers<[1], [0], [0], [1], [0, 0, 1, 1], [], []>} : vector<2x128xbf16>, vector<128x768xbf16>, vector<2x768xf32> -> vector<2x768xf32>
    %164 = arith.addf %158, %163 : vector<2x768xf32>
    %165 = vector.extract_strided_slice %25 {offsets = [0, 23, 0], sizes = [2, 1, 128], strides = [1, 1, 1]} : vector<2x32x128xbf16> to vector<2x1x128xbf16>
    %166 = vector.shape_cast %165 : vector<2x1x128xbf16> to vector<2x128xbf16>
    %c23 = arith.constant 23 : index
    %c0_87 = arith.constant 0 : index
    %c0_88 = arith.constant 0 : index
    %167 = vector.load %arg10[%c23, %c0_87, %c0_88] : memref<25x128x768xbf16, #tpu.memory_space<vmem>>, vector<1x128x768xbf16>
    %168 = vector.shape_cast %167 : vector<1x128x768xbf16> to vector<128x768xbf16>
    %cst_89 = arith.constant dense<0.000000e+00> : vector<2x768xf32>
    %169 = tpu.matmul %166, %168, %cst_89 {dimension_numbers = #tpu.dot_dimension_numbers<[1], [0], [0], [1], [0, 0, 1, 1], [], []>} : vector<2x128xbf16>, vector<128x768xbf16>, vector<2x768xf32> -> vector<2x768xf32>
    %170 = arith.addf %164, %169 : vector<2x768xf32>
    %171 = vector.extract_strided_slice %25 {offsets = [0, 24, 0], sizes = [2, 1, 128], strides = [1, 1, 1]} : vector<2x32x128xbf16> to vector<2x1x128xbf16>
    %172 = vector.shape_cast %171 : vector<2x1x128xbf16> to vector<2x128xbf16>
    %c24 = arith.constant 24 : index
    %c0_90 = arith.constant 0 : index
    %c0_91 = arith.constant 0 : index
    %173 = vector.load %arg10[%c24, %c0_90, %c0_91] : memref<25x128x768xbf16, #tpu.memory_space<vmem>>, vector<1x128x768xbf16>
    %174 = vector.shape_cast %173 : vector<1x128x768xbf16> to vector<128x768xbf16>
    %cst_92 = arith.constant dense<0.000000e+00> : vector<2x768xf32>
    %175 = tpu.matmul %172, %174, %cst_92 {dimension_numbers = #tpu.dot_dimension_numbers<[1], [0], [0], [1], [0, 0, 1, 1], [], []>} : vector<2x128xbf16>, vector<128x768xbf16>, vector<2x768xf32> -> vector<2x768xf32>
    %176 = arith.addf %170, %175 : vector<2x768xf32>
    %c0_93 = arith.constant 0 : index
    %c0_94 = arith.constant 0 : index
    %177 = vector.load %arg6[%c0_93, %c0_94] : memref<1x768xf32, #tpu.memory_space<vmem>>, vector<1x768xf32>
    %178 = vector.broadcast %177 : vector<1x768xf32> to vector<2x768xf32>
    %179 = arith.addf %176, %178 : vector<2x768xf32>
    %cst_95 = arith.constant 0.000000e+00 : f32
    %180 = vector.broadcast %cst_95 : f32 to vector<2x768xf32>
    %181 = arith.maximumf %179, %180 : vector<2x768xf32>
    %182 = arith.truncf %181 : vector<2x768xf32> to vector<2x768xbf16>
    %c0_96 = arith.constant 0 : index
    %c0_97 = arith.constant 0 : index
    %183 = vector.load %arg7[%c0_96, %c0_97] : memref<768x128xbf16, #tpu.memory_space<vmem>>, vector<768x128xbf16>
    %cst_98 = arith.constant dense<0.000000e+00> : vector<2x128xf32>
    %184 = tpu.matmul %182, %183, %cst_98 {dimension_numbers = #tpu.dot_dimension_numbers<[1], [0], [0], [1], [0, 0, 1, 1], [], []>} : vector<2x768xbf16>, vector<768x128xbf16>, vector<2x128xf32> -> vector<2x128xf32>
    %c0_99 = arith.constant 0 : index
    %c0_100 = arith.constant 0 : index
    %185 = vector.load %arg8[%c0_99, %c0_100] : memref<1x128xf32, #tpu.memory_space<vmem>>, vector<1x128xf32>
    %186 = vector.broadcast %185 : vector<1x128xf32> to vector<2x128xf32>
    %187 = arith.addf %184, %186 : vector<2x128xf32>
    %c0_101 = arith.constant 0 : index
    %c0_102 = arith.constant 0 : index
    %188 = vector.load %arg9[%c0_101, %c0_102] : memref<2x128xf32, #tpu.memory_space<vmem>>, vector<2x128xf32>
    tpu.vector_store %arg9[%c0_101, %c0_102], %187 {strides = array<i32>} : memref<2x128xf32, #tpu.memory_space<vmem>>, vector<2x128xf32>,
    return
  }
  func.func @transform_0(%arg0: i32) -> (i32, i32, i32) {
    %c0_i32 = arith.constant 0 : i32
    %c0_i32_0 = arith.constant 0 : i32
    %c0_i32_1 = arith.constant 0 : i32
    %c0_i32_2 = arith.constant 0 : i32
    return %c0_i32, %c0_i32_0, %c0_i32_1 : i32, i32, i32
  }
  func.func @transform_1(%arg0: i32) -> (i32, i32) {
    %c0_i32 = arith.constant 0 : i32
    %c0_i32_0 = arith.constant 0 : i32
    %c0_i32_1 = arith.constant 0 : i32
    return %c0_i32, %c0_i32_0 : i32, i32
  }
  func.func @transform_2(%arg0: i32) -> (i32, i32) {
    %c0_i32 = arith.constant 0 : i32
    %c0_i32_0 = arith.constant 0 : i32
    %c0_i32_1 = arith.constant 0 : i32
    return %c0_i32, %c0_i32_0 : i32, i32
  }
  func.func @transform_3(%arg0: i32) -> (i32, i32) {
    %c0_i32 = arith.constant 0 : i32
    %c0_i32_0 = arith.constant 0 : i32
    %c0_i32_1 = arith.constant 0 : i32
    return %c0_i32, %c0_i32_0 : i32, i32
  }
  func.func @transform_5(%arg0: i32) -> (i32, i32) {
    %c0_i32 = arith.constant 0 : i32
    %c0_i32_0 = arith.constant 0 : i32
    %c0_i32_1 = arith.constant 0 : i32
    return %c0_i32, %c0_i32_0 : i32, i32
  }
  func.func @transform_6(%arg0: i32) -> (i32, i32) {
    %c0_i32 = arith.constant 0 : i32
    %c0_i32_0 = arith.constant 0 : i32
    %c0_i32_1 = arith.constant 0 : i32
    return %c0_i32, %c0_i32_0 : i32, i32
  }
  func.func @transform_7(%arg0: i32) -> (i32, i32) {
    %c0_i32 = arith.constant 0 : i32
    %c0_i32_0 = arith.constant 0 : i32
    %c0_i32_1 = arith.constant 0 : i32
    return %c0_i32, %c0_i32_0 : i32, i32
  }
  func.func @transform_8(%arg0: i32) -> (i32, i32) {
    %c0_i32 = arith.constant 0 : i32
    %c0_i32_0 = arith.constant 0 : i32
    %c0_i32_1 = arith.constant 0 : i32
    return %c0_i32, %c0_i32_0 : i32, i32
  }
}

</mosaic_0001>

<llo_original>
// kernel: forward.1
$region0: #{forward.1}
  #allocation0 [shape = 'u32[]', space=smem, size = 0x4, offset = 0x4, fixed_abs, tag = 'smem constant byte address 0x4 - core index']
  #allocation1 [shape = 'u32[72,128]{1,0:T(1,128)}', space=vmem, size = 0x9000, scoped, tag = 'internal scratch']
  #allocation2 [shape = 'bf16[25,128,768]{2,1,0:T(8,128)(2,1)}', space=vmem, size = 0x4b0000, scoped, tag = 'scratch operand']
  #allocation3 [shape = 's32[1]{0}', space=sflag, size = 0x4, scoped, tag = 'scratch operand']
  #allocation16 [shape = 's32[]', space=sflag, size = 0x4, offset = 0, fixed_abs, tag = 'sflag constant byte address 0x0 - dummy sync flag']
  #allocation17 [shape = 's32[]', space=sflag, size = 0x4, offset = 0, fixed_abs, tag = 'sflag constant byte address 0x0 - dummy sync flag']
  #allocation18 [shape = 'u32[]', space=smem, size = 0x4, offset = 0x44, fixed_abs, tag = 'smem constant byte address 0x44 - assertion arg 0']
  #allocation19 [shape = 'u32[]', space=smem, size = 0x4, offset = 0x48, fixed_abs, tag = 'smem constant byte address 0x48 - assertion arg 1']
  %s0 = inlined_call_operand.vmem [shape: bf16[2,384,16], index: 0, kind: input, shape index: {}]
  %s1 = inlined_call_operand.hbm [shape: bf16[32,384], index: 1, kind: input, shape index: {}]
  %s2 = inlined_call_operand.hbm [shape: bf16[16,128], index: 2, kind: input, shape index: {}]
  %s3 = inlined_call_operand.hbm [shape: f32[1,128], index: 3, kind: input, shape index: {}]
  %s4 = inlined_call_operand.hbm [shape: bf16[25,128,768], index: 4, kind: input, shape index: {}]
  %s5 = inlined_call_operand.hbm [shape: f32[1,768], index: 5, kind: input, shape index: {}]
  %s6 = inlined_call_operand.hbm [shape: bf16[768,128], index: 6, kind: input, shape index: {}]
  %s7 = inlined_call_operand.hbm [shape: f32[1,128], index: 7, kind: input, shape index: {}]
  %s8 = inlined_call_operand.hbm [shape: f32[2,128], index: 8, kind: output, shape index: {}]
  %s9 = sld [smem:[#allocation0]]
  $region66: #{forward.1} parent=0
    _
  %s11 = ssub.s32 1, %s9
  %s12 = scalar_select 0, %s11, %s9
  $region1: #{forward.1} parent=0
    #allocation4 [shape = 'u8[24576]{0}', space=vmem, size = 0x6000, scoped, tag = 'input window, operand 1, single buffered']
    #allocation5 [shape = 's32[1]{0}', space=sflag, size = 0x4, scoped, tag = 'scoped memory for forward.1']
    #allocation6 [shape = 's32[1]{0}', space=sflag, size = 0x4, scoped, tag = 'scoped memory for forward.1']
    #allocation7 [shape = 'u8[4096]{0}', space=vmem, size = 0x1000, scoped, tag = 'input window, operand 2, single buffered']
    #allocation8 [shape = 's32[1]{0}', space=sflag, size = 0x4, scoped, tag = 'scoped memory for forward.1']
    #allocation9 [shape = 'u8[512]{0}', space=vmem, size = 0x400, scoped, tag = 'input window, operand 3, single buffered']
    #allocation10 [shape = 'u8[3072]{0}', space=vmem, size = 0xc00, scoped, tag = 'input window, operand 5, single buffered']
    #allocation11 [shape = 's32[1]{0}', space=sflag, size = 0x4, scoped, tag = 'scoped memory for forward.1']
    #allocation12 [shape = 'u8[196608]{0}', space=vmem, size = 0x30000, scoped, tag = 'input window, operand 6, single buffered']
    #allocation13 [shape = 'u8[512]{0}', space=vmem, size = 0x400, scoped, tag = 'input window, operand 7, single buffered']
    #allocation14 [shape = 's32[1]{0}', space=sflag, size = 0x4, scoped, tag = 'scoped memory for forward.1']
    #allocation15 [shape = 'u8[1024]{0}', space=vmem, size = 0x400, scoped, tag = 'output window, operand 0, single buffered']
    %13 = vsyncpa [#allocation5], 0
    %14 = vsyncpa [#allocation8], 0
    %15 = vsyncpa [#allocation11], 0
    %16 = vsyncpa [#allocation14], 0
    %17 = vsyncpa [#allocation6], 0
    // Predicated region
    $region2: #{forward.1} parent=1 // pred_check
      _
    $region3: #{forward.1} parent=1 // pred_check_branch
      %19 = sbr.rel (0) target = $region5
    $region4: #{forward.1} parent=1 // pred_region
      _
    $region5: #{forward.1} parent=1 // pred_fallthru
      _
    // Predicated region
    $region6: #{forward.1} parent=1 // pred_check
      _
    $region7: #{forward.1} parent=1 // pred_check_branch
      %21 = sbr.rel (0) target = $region9
    $region8: #{forward.1} parent=1 // pred_region
      %23 = vsyncadd [#allocation5], 0
      %s24 = sshll.u32 %s1, 4
      %s25 = int_to_ptr.hbm [resolvable:$true] %s24
      %s26 = sshll.u32 [#allocation4], 4
      %s27 = int_to_ptr.vmem [resolvable:$true] %s26
      %32 = dma.hbm_to_vmem [thread:$0]  %s25, 768, %s27, [#allocation5], 192, 192, 12
    $region9: #{forward.1} parent=1 // pred_fallthru
      _
    // Predicated region
    $region10: #{forward.1} parent=1 // pred_check
      _
    $region11: #{forward.1} parent=1 // pred_check_branch
      %34 = sbr.rel (0) target = $region13
    $region12: #{forward.1} parent=1 // pred_region
      %36 = vsyncadd [#allocation8], 0
      %s37 = sshll.u32 %s2, 4
      %s38 = int_to_ptr.hbm [resolvable:$true] %s37
      %s39 = sshll.u32 [#allocation7], 4
      %s40 = int_to_ptr.vmem [resolvable:$true] %s39
      %45 = dma.hbm_to_vmem [thread:$0]  %s38, 128, %s40, [#allocation8], 64, 64, 4
    $region13: #{forward.1} parent=1 // pred_fallthru
      _
    // Predicated region
    $region14: #{forward.1} parent=1 // pred_check
      _
    $region15: #{forward.1} parent=1 // pred_check_branch
      %47 = sbr.rel (0) target = $region17
    $region16: #{forward.1} parent=1 // pred_region
      %49 = vsyncadd [#allocation8], 0
      %s51 = sshll.u32 %s3, 4
      %s52 = int_to_ptr.hbm [resolvable:$true] %s51
      %s53 = sshll.u32 [#allocation9], 4
      %s54 = int_to_ptr.vmem [resolvable:$true] %s53
      %56 = dma.hbm_to_vmem [thread:$0]  %s52, 16, %s54, [#allocation8]
    $region17: #{forward.1} parent=1 // pred_fallthru
      _
    // Predicated region
    $region18: #{forward.1} parent=1 // pred_check
      _
    $region19: #{forward.1} parent=1 // pred_check_branch
      %58 = sbr.rel (0) target = $region21
    $region20: #{forward.1} parent=1 // pred_region
      %60 = vsyncadd [#allocation11], 0
      %s62 = sshll.u32 %s5, 4
      %s63 = int_to_ptr.hbm [resolvable:$true] %s62
      %s64 = sshll.u32 [#allocation10], 4
      %s65 = int_to_ptr.vmem [resolvable:$true] %s64
      %67 = dma.hbm_to_vmem [thread:$0]  %s63, 96, %s65, [#allocation11]
    $region21: #{forward.1} parent=1 // pred_fallthru
      _
    // Predicated region
    $region22: #{forward.1} parent=1 // pred_check
      _
    $region23: #{forward.1} parent=1 // pred_check_branch
      %69 = sbr.rel (0) target = $region25
    $region24: #{forward.1} parent=1 // pred_region
      %71 = vsyncadd [#allocation11], 0
      %s72 = sshll.u32 %s6, 4
      %s73 = int_to_ptr.hbm [resolvable:$true] %s72
      %s74 = sshll.u32 [#allocation12], 4
      %s75 = int_to_ptr.vmem [resolvable:$true] %s74
      %80 = dma.hbm_to_vmem [thread:$0]  %s73, 6144, %s75, [#allocation11], 64, 64, 4
    $region25: #{forward.1} parent=1 // pred_fallthru
      _
    // Predicated region
    $region26: #{forward.1} parent=1 // pred_check
      _
    $region27: #{forward.1} parent=1 // pred_check_branch
      %82 = sbr.rel (0) target = $region29
    $region28: #{forward.1} parent=1 // pred_region
      %84 = vsyncadd [#allocation14], 0
      %s86 = sshll.u32 %s7, 4
      %s87 = int_to_ptr.hbm [resolvable:$true] %s86
      %s88 = sshll.u32 [#allocation13], 4
      %s89 = int_to_ptr.vmem [resolvable:$true] %s88
      %91 = dma.hbm_to_vmem [thread:$0]  %s87, 16, %s89, [#allocation14]
    $region29: #{forward.1} parent=1 // pred_fallthru
      _
    // Predicated region
    $region30: #{forward.1} parent=1 // pred_check
      _
    $region31: #{forward.1} parent=1 // pred_check_branch
      %93 = sbr.rel (0) target = $region33
    $region32: #{forward.1} parent=1 // pred_region
      %95 = dma.done [#allocation5], 768
    $region33: #{forward.1} parent=1 // pred_fallthru
      _
    // Predicated region
    $region34: #{forward.1} parent=1 // pred_check
      _
    $region35: #{forward.1} parent=1 // pred_check_branch
      %97 = sbr.rel (0) target = $region37
    $region36: #{forward.1} parent=1 // pred_region
      %99 = dma.done [#allocation8], 128
    $region37: #{forward.1} parent=1 // pred_fallthru
      _
    // Predicated region
    $region38: #{forward.1} parent=1 // pred_check
      _
    $region39: #{forward.1} parent=1 // pred_check_branch
      %101 = sbr.rel (0) target = $region41
    $region40: #{forward.1} parent=1 // pred_region
      %103 = dma.done [#allocation8], 16
    $region41: #{forward.1} parent=1 // pred_fallthru
      _
    // Predicated region
    $region42: #{forward.1} parent=1 // pred_check
      _
    $region43: #{forward.1} parent=1 // pred_check_branch
      %105 = sbr.rel (0) target = $region45
    $region44: #{forward.1} parent=1 // pred_region
      %107 = dma.done [#allocation11], 96
    $region45: #{forward.1} parent=1 // pred_fallthru
      _
    // Predicated region
    $region46: #{forward.1} parent=1 // pred_check
      _
    $region47: #{forward.1} parent=1 // pred_check_branch
      %109 = sbr.rel (0) target = $region49
    $region48: #{forward.1} parent=1 // pred_region
      %111 = dma.done [#allocation11], 6144
    $region49: #{forward.1} parent=1 // pred_fallthru
      _
    // Predicated region
    $region50: #{forward.1} parent=1 // pred_check
      _
    $region51: #{forward.1} parent=1 // pred_check_branch
      %113 = sbr.rel (0) target = $region53
    $region52: #{forward.1} parent=1 // pred_region
      %115 = dma.done [#allocation14], 16
    $region53: #{forward.1} parent=1 // pred_fallthru
      _
    // Predicated region
    $region54: #{forward.1} parent=1 // pred_check
      _
    $region55: #{forward.1} parent=1 // pred_check_branch
      %118 = sbr.rel target = $region57
    $region56: #{forward.1} parent=1 // pred_region
      %119 = sst [smem:[#allocation18]] [#allocation17]
      %120 = sst [smem:[#allocation19]] [#allocation16]
    $region57: #{forward.1} parent=1 // pred_fallthru
      _
    %122 = shalt.err (0)
    %s124 = sshll.u32 %s4, 4
    %s125 = int_to_ptr.hbm [resolvable:$true] %s124
    %s126 = sshll.u32 [#allocation2], 4
    %s127 = int_to_ptr.vmem [resolvable:$true] %s126
    %129 = dma.hbm_to_vmem [thread:$0]  %s125, 153600, %s127, [#allocation3]
    %v130 = vld [vmem:[#allocation4] sm:$0xff]
    %v131 = vld [vmem:[#allocation4 + $0x8] sm:$0xf]
    %v132 = vld [vmem:[#allocation4 + $0xc] sm:$0xff]
    %v133 = vld [vmem:[#allocation4 + $0x14] sm:$0xf]
    %v134 = vld [vmem:[#allocation4 + $0x18] sm:$0xff]
    %v135 = vld [vmem:[#allocation4 + $0x20] sm:$0xf]
    %v136 = vld [vmem:[#allocation4 + $0x24] sm:$0xff]
    %v137 = vld [vmem:[#allocation4 + $0x2c] sm:$0xf]
    %v138 = vld [vmem:[#allocation7] sm:$0xf]
    %v139 = vld [vmem:[#allocation7 + $0x4] sm:$0xf]
    %v140 = vld [vmem:[#allocation9] sm:$0x1]
    %v141 = vld [vmem:[%s0] sm:$0xf]
    %v142 = vld [vmem:[%s0 + $0x4] sm:$0xf]
    %v143 = vld [vmem:[%s0 + $0x8] sm:$0xf]
    %v144 = vld [vmem:[%s0 + $0xc] sm:$0xf]
    %v145 = vld [vmem:[%s0 + $0x10] sm:$0xf]
    %v146 = vld [vmem:[%s0 + $0x14] sm:$0xf]
    %v147 = vld [vmem:[%s0 + $0x18] sm:$0xf]
    %v148 = vld [vmem:[%s0 + $0x1c] sm:$0xf]
    %v149 = vld [vmem:[%s0 + $0x20] sm:$0xf]
    %v150 = vld [vmem:[%s0 + $0x24] sm:$0xf]
    %v151 = vld [vmem:[%s0 + $0x28] sm:$0xf]
    %v152 = vld [vmem:[%s0 + $0x2c] sm:$0xf]
    %v153 = vld [vmem:[%s0 + $0x30] sm:$0xf]
    %v154 = vld [vmem:[%s0 + $0x34] sm:$0xf]
    %v155 = vld [vmem:[%s0 + $0x38] sm:$0xf]
    %v156 = vld [vmem:[%s0 + $0x3c] sm:$0xf]
    %v157 = vld [vmem:[%s0 + $0x40] sm:$0xf]
    %v158 = vld [vmem:[%s0 + $0x44] sm:$0xf]
    %v159 = vld [vmem:[%s0 + $0x48] sm:$0xf]
    %v160 = vld [vmem:[%s0 + $0x4c] sm:$0xf]
    %v161 = vld [vmem:[%s0 + $0x50] sm:$0xf]
    %v162 = vld [vmem:[%s0 + $0x54] sm:$0xf]
    %v163 = vld [vmem:[%s0 + $0x58] sm:$0xf]
    %v164 = vld [vmem:[%s0 + $0x5c] sm:$0xf]
    %v165 = vld [vmem:[%s0 + $0x60] sm:$0xf]
    %v166 = vld [vmem:[%s0 + $0x64] sm:$0xf]
    %v167 = vld [vmem:[%s0 + $0x68] sm:$0xf]
    %v168 = vld [vmem:[%s0 + $0x6c] sm:$0xf]
    %v169 = vld [vmem:[%s0 + $0x70] sm:$0xf]
    %v170 = vld [vmem:[%s0 + $0x74] sm:$0xf]
    %v171 = vld [vmem:[%s0 + $0x78] sm:$0xf]
    %v172 = vld [vmem:[%s0 + $0x7c] sm:$0xf]
    %v173 = vld [vmem:[%s0 + $0x80] sm:$0xf]
    %v174 = vld [vmem:[%s0 + $0x84] sm:$0xf]
    %v175 = vld [vmem:[%s0 + $0x88] sm:$0xf]
    %v176 = vld [vmem:[%s0 + $0x8c] sm:$0xf]
    %v177 = vld [vmem:[%s0 + $0x90] sm:$0xf]
    %v178 = vld [vmem:[%s0 + $0x94] sm:$0xf]
    %v179 = vld [vmem:[%s0 + $0x98] sm:$0xf]
    %v180 = vld [vmem:[%s0 + $0x9c] sm:$0xf]
    %v181 = vld [vmem:[%s0 + $0xa0] sm:$0xf]
    %v182 = vld [vmem:[%s0 + $0xa4] sm:$0xf]
    %v183 = vld [vmem:[%s0 + $0xa8] sm:$0xf]
    %v184 = vld [vmem:[%s0 + $0xac] sm:$0xf]
    %v185 = vld [vmem:[%s0 + $0xb0] sm:$0xf]
    %v186 = vld [vmem:[%s0 + $0xb4] sm:$0xf]
    %v187 = vld [vmem:[%s0 + $0xb8] sm:$0xf]
    %v188 = vld [vmem:[%s0 + $0xbc] sm:$0xf]
    %v197 = vunpack.c.l.b16 %v130
    %v198 = vunpack.c.h.b16 %v130
    %v199 = vunpack.c.l.b16 %v131
    %v200 = vunpack.c.l.b16 %v132
    %v201 = vunpack.c.h.b16 %v132
    %v202 = vunpack.c.l.b16 %v133
    %v203 = vunpack.c.l.b16 %v134
    %v204 = vunpack.c.h.b16 %v134
    %v205 = vunpack.c.l.b16 %v135
    %v206 = vunpack.c.l.b16 %v136
    %v207 = vunpack.c.h.b16 %v136
    %v208 = vunpack.c.l.b16 %v137
    %v209 = vpack.c.b16 %v200, %v197
    %v210 = vpack.c.b16 %v201, %v198
    %v211 = vpack.c.b16 %v202, %v199
    %v212 = vpack.c.b16 %v206, %v203
    %v213 = vpack.c.b16 %v207, %v204
    %v214 = vpack.c.b16 %v208, %v205
    %v269 = vunpack.c.l.b16 %v141
    %v270 = vunpack.c.l.b16 %v142
    %v271 = vunpack.c.l.b16 %v143
    %v272 = vunpack.c.l.b16 %v144
    %v273 = vunpack.c.l.b16 %v145
    %v274 = vunpack.c.l.b16 %v146
    %v275 = vunpack.c.l.b16 %v147
    %v276 = vunpack.c.l.b16 %v148
    %v277 = vunpack.c.l.b16 %v149
    %v278 = vunpack.c.l.b16 %v150
    %v279 = vunpack.c.l.b16 %v151
    %v280 = vunpack.c.l.b16 %v152
    %v281 = vunpack.c.l.b16 %v153
    %v282 = vunpack.c.l.b16 %v154
    %v283 = vunpack.c.l.b16 %v155
    %v284 = vunpack.c.l.b16 %v156
    %v285 = vunpack.c.l.b16 %v157
    %v286 = vunpack.c.l.b16 %v158
    %v287 = vunpack.c.l.b16 %v159
    %v288 = vunpack.c.l.b16 %v160
    %v289 = vunpack.c.l.b16 %v161
    %v290 = vunpack.c.l.b16 %v162
    %v291 = vunpack.c.l.b16 %v163
    %v292 = vunpack.c.l.b16 %v164
    %v293 = vunpack.c.l.b16 %v165
    %v294 = vunpack.c.l.b16 %v166
    %v295 = vunpack.c.l.b16 %v167
    %v296 = vunpack.c.l.b16 %v168
    %v297 = vunpack.c.l.b16 %v169
    %v298 = vunpack.c.l.b16 %v170
    %v299 = vunpack.c.l.b16 %v171
    %v300 = vunpack.c.l.b16 %v172
    %v301 = vunpack.c.l.b16 %v173
    %v302 = vunpack.c.l.b16 %v174
    %v303 = vunpack.c.l.b16 %v175
    %v304 = vunpack.c.l.b16 %v176
    %v305 = vunpack.c.l.b16 %v177
    %v306 = vunpack.c.l.b16 %v178
    %v307 = vunpack.c.l.b16 %v179
    %v308 = vunpack.c.l.b16 %v180
    %v309 = vunpack.c.l.b16 %v181
    %v310 = vunpack.c.l.b16 %v182
    %v311 = vunpack.c.l.b16 %v183
    %v312 = vunpack.c.l.b16 %v184
    %v313 = vunpack.c.l.b16 %v185
    %v314 = vunpack.c.l.b16 %v186
    %v315 = vunpack.c.l.b16 %v187
    %v316 = vunpack.c.l.b16 %v188
    %v317 = vpack.c.b16 %v270, %v269
    %v318 = vpack.c.b16 %v272, %v271
    %v319 = vpack.c.b16 %v274, %v273
    %v320 = vpack.c.b16 %v276, %v275
    %v321 = vpack.c.b16 %v278, %v277
    %v322 = vpack.c.b16 %v280, %v279
    %v323 = vpack.c.b16 %v282, %v281
    %v324 = vpack.c.b16 %v284, %v283
    %v325 = vpack.c.b16 %v286, %v285
    %v326 = vpack.c.b16 %v288, %v287
    %v327 = vpack.c.b16 %v290, %v289
    %v328 = vpack.c.b16 %v292, %v291
    %v329 = vpack.c.b16 %v294, %v293
    %v330 = vpack.c.b16 %v296, %v295
    %v331 = vpack.c.b16 %v298, %v297
    %v332 = vpack.c.b16 %v300, %v299
    %v333 = vpack.c.b16 %v302, %v301
    %v334 = vpack.c.b16 %v304, %v303
    %v335 = vpack.c.b16 %v306, %v305
    %v336 = vpack.c.b16 %v308, %v307
    %v337 = vpack.c.b16 %v310, %v309
    %v338 = vpack.c.b16 %v312, %v311
    %v339 = vpack.c.b16 %v314, %v313
    %v340 = vpack.c.b16 %v316, %v315
    %365 = vmatpush.bf16.msra.mxu0 %v324
    %366 = vmatpush.bf16.msra.mxu0 %v323
    %367 = vmatpush.bf16.msra.mxu0 %v322
    %368 = vmatpush.bf16.msra.mxu0 %v321
    %369 = vmatpush.bf16.msra.mxu0 %v320
    %370 = vmatpush.bf16.msra.mxu0 %v319
    %371 = vmatpush.bf16.msra.mxu0 %v318
    %372 = vmatpush.bf16.msra.mxu0 %v317
    %373 = vmatmul.bf16.gmra.mxu0 %v209
    %v374 = vpop.f32.mrf.mxu0
    %v375 = vadd.f32 0.0, %v374
    %v376 = vpop.f32.mrf.mxu0
    %v377 = vadd.f32 0.0, %v376
    %378 = vmatmul.bf16.gmra.mxu0 %v212
    %v379 = vpop.f32.mrf.mxu0
    %v380 = vadd.f32 0.0, %v379
    %v381 = vpop.f32.mrf.mxu0
    %v382 = vadd.f32 0.0, %v381
    %383 = vdwg.mxu0
    %384 = vmatpush.bf16.msra.mxu0 %v332
    %385 = vmatpush.bf16.msra.mxu0 %v331
    %386 = vmatpush.bf16.msra.mxu0 %v330
    %387 = vmatpush.bf16.msra.mxu0 %v329
    %388 = vmatpush.bf16.msra.mxu0 %v328
    %389 = vmatpush.bf16.msra.mxu0 %v327
    %390 = vmatpush.bf16.msra.mxu0 %v326
    %391 = vmatpush.bf16.msra.mxu0 %v325
    %392 = vmatmul.bf16.gmra.mxu0 %v210
    %v393 = vpop.f32.mrf.mxu0
    %v394 = vadd.f32 %v375, %v393
    %v395 = vpop.f32.mrf.mxu0
    %v396 = vadd.f32 %v377, %v395
    %397 = vmatmul.bf16.gmra.mxu0 %v213
    %v398 = vpop.f32.mrf.mxu0
    %v399 = vadd.f32 %v380, %v398
    %v400 = vpop.f32.mrf.mxu0
    %v401 = vadd.f32 %v382, %v400
    %402 = vdwg.mxu0
    %403 = vmatpush.bf16.msra.mxu0 %v340
    %404 = vmatpush.bf16.msra.mxu0 %v339
    %405 = vmatpush.bf16.msra.mxu0 %v338
    %406 = vmatpush.bf16.msra.mxu0 %v337
    %407 = vmatpush.bf16.msra.mxu0 %v336
    %408 = vmatpush.bf16.msra.mxu0 %v335
    %409 = vmatpush.bf16.msra.mxu0 %v334
    %410 = vmatpush.bf16.msra.mxu0 %v333
    %411 = vmatmul.bf16.gmra.mxu0 %v211
    %v412 = vpop.f32.mrf.mxu0
    %v413 = vadd.f32 %v394, %v412
    %v414 = vpop.f32.mrf.mxu0
    %v415 = vadd.f32 %v396, %v414
    %416 = vmatmul.bf16.gmra.mxu0 %v214
    %v417 = vpop.f32.mrf.mxu0
    %v418 = vadd.f32 %v399, %v417
    %v419 = vpop.f32.mrf.mxu0
    %v420 = vadd.f32 %v401, %v419
    %421 = vdwg.mxu0
    %v422 = vpack.c.bf16 %v415, %v413
    %v423 = vpack.c.bf16 %v420, %v418
    %v425 = vperm.slane %v140, 0
    %v429 = vunpack.c.l.b16 %v138
    %v430 = vunpack.c.l.b16 %v139
    %v431 = vpack.c.b16 %v430, %v429
    %vm433 = vcmask 130048
    %v435 = vsel %vm433, %v422, 0
    %v438 = vsel %vm433, %v423, 0
    %440 = vmatpush.bf16.msra.mxu0 0
    %441 = vmatpush.bf16.msra.mxu0 0
    %442 = vmatpush.bf16.msra.mxu0 0
    %443 = vmatpush.bf16.msra.mxu0 0
    %444 = vmatpush.bf16.msra.mxu0 0
    %445 = vmatpush.bf16.msra.mxu0 0
    %446 = vmatpush.bf16.msra.mxu0 0
    %447 = vmatpush.bf16.msra.mxu0 %v431
    %448 = vmatmul.bf16.gmra.mxu0 %v435
    %v449 = vpop.f32.mrf.mxu0
    %v450 = vadd.f32 %v425, %v449
    %v451 = vpop.f32.mrf.mxu0
    %v452 = vadd.f32 %v425, %v451
    %453 = vmatmul.bf16.gmra.mxu0 %v438
    %v454 = vpop.f32.mrf.mxu0
    %v455 = vadd.f32 %v425, %v454
    %v456 = vpop.f32.mrf.mxu0
    %v457 = vadd.f32 %v425, %v456
    %458 = vdwg.mxu0
    %v459 = vmax.f32 %v450, 0.0
    %v460 = vmax.f32 %v452, 0.0
    %v461 = vmax.f32 %v455, 0.0
    %v462 = vmax.f32 %v457, 0.0
    %v463 = vpack.c.bf16 %v459, %v459
    %v464 = vpack.c.bf16 %v460, %v460
    %v465 = vpack.c.bf16 %v461, %v461
    %v466 = vpack.c.bf16 %v462, %v462
    %s467 = scalar_lea.vmem %s0, 192
    %v468 = vld [vmem:[%s467] sm:$0xf]
    %v469 = vld [vmem:[%s467 + $0x4] sm:$0xf]
    %v470 = vld [vmem:[%s467 + $0x8] sm:$0xf]
    %v471 = vld [vmem:[%s467 + $0xc] sm:$0xf]
    %v472 = vld [vmem:[%s467 + $0x10] sm:$0xf]
    %v473 = vld [vmem:[%s467 + $0x14] sm:$0xf]
    %v474 = vld [vmem:[%s467 + $0x18] sm:$0xf]
    %v475 = vld [vmem:[%s467 + $0x1c] sm:$0xf]
    %v476 = vld [vmem:[%s467 + $0x20] sm:$0xf]
    %v477 = vld [vmem:[%s467 + $0x24] sm:$0xf]
    %v478 = vld [vmem:[%s467 + $0x28] sm:$0xf]
    %v479 = vld [vmem:[%s467 + $0x2c] sm:$0xf]
    %v480 = vld [vmem:[%s467 + $0x30] sm:$0xf]
    %v481 = vld [vmem:[%s467 + $0x34] sm:$0xf]
    %v482 = vld [vmem:[%s467 + $0x38] sm:$0xf]
    %v483 = vld [vmem:[%s467 + $0x3c] sm:$0xf]
    %v484 = vld [vmem:[%s467 + $0x40] sm:$0xf]
    %v485 = vld [vmem:[%s467 + $0x44] sm:$0xf]
    %v486 = vld [vmem:[%s467 + $0x48] sm:$0xf]
    %v487 = vld [vmem:[%s467 + $0x4c] sm:$0xf]
    %v488 = vld [vmem:[%s467 + $0x50] sm:$0xf]
    %v489 = vld [vmem:[%s467 + $0x54] sm:$0xf]
    %v490 = vld [vmem:[%s467 + $0x58] sm:$0xf]
    %v491 = vld [vmem:[%s467 + $0x5c] sm:$0xf]
    %v492 = vld [vmem:[%s467 + $0x60] sm:$0xf]
    %v493 = vld [vmem:[%s467 + $0x64] sm:$0xf]
    %v494 = vld [vmem:[%s467 + $0x68] sm:$0xf]
    %v495 = vld [vmem:[%s467 + $0x6c] sm:$0xf]
    %v496 = vld [vmem:[%s467 + $0x70] sm:$0xf]
    %v497 = vld [vmem:[%s467 + $0x74] sm:$0xf]
    %v498 = vld [vmem:[%s467 + $0x78] sm:$0xf]
    %v499 = vld [vmem:[%s467 + $0x7c] sm:$0xf]
    %v500 = vld [vmem:[%s467 + $0x80] sm:$0xf]
    %v501 = vld [vmem:[%s467 + $0x84] sm:$0xf]
    %v502 = vld [vmem:[%s467 + $0x88] sm:$0xf]
    %v503 = vld [vmem:[%s467 + $0x8c] sm:$0xf]
    %v504 = vld [vmem:[%s467 + $0x90] sm:$0xf]
    %v505 = vld [vmem:[%s467 + $0x94] sm:$0xf]
    %v506 = vld [vmem:[%s467 + $0x98] sm:$0xf]
    %v507 = vld [vmem:[%s467 + $0x9c] sm:$0xf]
    %v508 = vld [vmem:[%s467 + $0xa0] sm:$0xf]
    %v509 = vld [vmem:[%s467 + $0xa4] sm:$0xf]
    %v510 = vld [vmem:[%s467 + $0xa8] sm:$0xf]
    %v511 = vld [vmem:[%s467 + $0xac] sm:$0xf]
    %v512 = vld [vmem:[%s467 + $0xb0] sm:$0xf]
    %v513 = vld [vmem:[%s467 + $0xb4] sm:$0xf]
    %v514 = vld [vmem:[%s467 + $0xb8] sm:$0xf]
    %v515 = vld [vmem:[%s467 + $0xbc] sm:$0xf]
    %v564 = vunpack.c.l.b16 %v468
    %v565 = vunpack.c.l.b16 %v469
    %v566 = vunpack.c.l.b16 %v470
    %v567 = vunpack.c.l.b16 %v471
    %v568 = vunpack.c.l.b16 %v472
    %v569 = vunpack.c.l.b16 %v473
    %v570 = vunpack.c.l.b16 %v474
    %v571 = vunpack.c.l.b16 %v475
    %v572 = vunpack.c.l.b16 %v476
    %v573 = vunpack.c.l.b16 %v477
    %v574 = vunpack.c.l.b16 %v478
    %v575 = vunpack.c.l.b16 %v479
    %v576 = vunpack.c.l.b16 %v480
    %v577 = vunpack.c.l.b16 %v481
    %v578 = vunpack.c.l.b16 %v482
    %v579 = vunpack.c.l.b16 %v483
    %v580 = vunpack.c.l.b16 %v484
    %v581 = vunpack.c.l.b16 %v485
    %v582 = vunpack.c.l.b16 %v486
    %v583 = vunpack.c.l.b16 %v487
    %v584 = vunpack.c.l.b16 %v488
    %v585 = vunpack.c.l.b16 %v489
    %v586 = vunpack.c.l.b16 %v490
    %v587 = vunpack.c.l.b16 %v491
    %v588 = vunpack.c.l.b16 %v492
    %v589 = vunpack.c.l.b16 %v493
    %v590 = vunpack.c.l.b16 %v494
    %v591 = vunpack.c.l.b16 %v495
    %v592 = vunpack.c.l.b16 %v496
    %v593 = vunpack.c.l.b16 %v497
    %v594 = vunpack.c.l.b16 %v498
    %v595 = vunpack.c.l.b16 %v499
    %v596 = vunpack.c.l.b16 %v500
    %v597 = vunpack.c.l.b16 %v501
    %v598 = vunpack.c.l.b16 %v502
    %v599 = vunpack.c.l.b16 %v503
    %v600 = vunpack.c.l.b16 %v504
    %v601 = vunpack.c.l.b16 %v505
    %v602 = vunpack.c.l.b16 %v506
    %v603 = vunpack.c.l.b16 %v507
    %v604 = vunpack.c.l.b16 %v508
    %v605 = vunpack.c.l.b16 %v509
    %v606 = vunpack.c.l.b16 %v510
    %v607 = vunpack.c.l.b16 %v511
    %v608 = vunpack.c.l.b16 %v512
    %v609 = vunpack.c.l.b16 %v513
    %v610 = vunpack.c.l.b16 %v514
    %v611 = vunpack.c.l.b16 %v515
    %v612 = vpack.c.b16 %v565, %v564
    %v613 = vpack.c.b16 %v567, %v566
    %v614 = vpack.c.b16 %v569, %v568
    %v615 = vpack.c.b16 %v571, %v570
    %v616 = vpack.c.b16 %v573, %v572
    %v617 = vpack.c.b16 %v575, %v574
    %v618 = vpack.c.b16 %v577, %v576
    %v619 = vpack.c.b16 %v579, %v578
    %v620 = vpack.c.b16 %v581, %v580
    %v621 = vpack.c.b16 %v583, %v582
    %v622 = vpack.c.b16 %v585, %v584
    %v623 = vpack.c.b16 %v587, %v586
    %v624 = vpack.c.b16 %v589, %v588
    %v625 = vpack.c.b16 %v591, %v590
    %v626 = vpack.c.b16 %v593, %v592
    %v627 = vpack.c.b16 %v595, %v594
    %v628 = vpack.c.b16 %v597, %v596
    %v629 = vpack.c.b16 %v599, %v598
    %v630 = vpack.c.b16 %v601, %v600
    %v631 = vpack.c.b16 %v603, %v602
    %v632 = vpack.c.b16 %v605, %v604
    %v633 = vpack.c.b16 %v607, %v606
    %v634 = vpack.c.b16 %v609, %v608
    %v635 = vpack.c.b16 %v611, %v610
    %660 = vmatpush.bf16.msra.mxu0 %v619
    %661 = vmatpush.bf16.msra.mxu0 %v618
    %662 = vmatpush.bf16.msra.mxu0 %v617
    %663 = vmatpush.bf16.msra.mxu0 %v616
    %664 = vmatpush.bf16.msra.mxu0 %v615
    %665 = vmatpush.bf16.msra.mxu0 %v614
    %666 = vmatpush.bf16.msra.mxu0 %v613
    %667 = vmatpush.bf16.msra.mxu0 %v612
    %668 = vmatmul.bf16.gmra.mxu0 %v209
    %v669 = vpop.f32.mrf.mxu0
    %v670 = vadd.f32 0.0, %v669
    %v671 = vpop.f32.mrf.mxu0
    %v672 = vadd.f32 0.0, %v671
    %673 = vmatmul.bf16.gmra.mxu0 %v212
    %v674 = vpop.f32.mrf.mxu0
    %v675 = vadd.f32 0.0, %v674
    %v676 = vpop.f32.mrf.mxu0
    %v677 = vadd.f32 0.0, %v676
    %678 = vdwg.mxu0
    %679 = vmatpush.bf16.msra.mxu0 %v627
    %680 = vmatpush.bf16.msra.mxu0 %v626
    %681 = vmatpush.bf16.msra.mxu0 %v625
    %682 = vmatpush.bf16.msra.mxu0 %v624
    %683 = vmatpush.bf16.msra.mxu0 %v623
    %684 = vmatpush.bf16.msra.mxu0 %v622
    %685 = vmatpush.bf16.msra.mxu0 %v621
    %686 = vmatpush.bf16.msra.mxu0 %v620
    %687 = vmatmul.bf16.gmra.mxu0 %v210
    %v688 = vpop.f32.mrf.mxu0
    %v689 = vadd.f32 %v670, %v688
    %v690 = vpop.f32.mrf.mxu0
    %v691 = vadd.f32 %v672, %v690
    %692 = vmatmul.bf16.gmra.mxu0 %v213
    %v693 = vpop.f32.mrf.mxu0
    %v694 = vadd.f32 %v675, %v693
    %v695 = vpop.f32.mrf.mxu0
    %v696 = vadd.f32 %v677, %v695
    %697 = vdwg.mxu0
    %698 = vmatpush.bf16.msra.mxu0 %v635
    %699 = vmatpush.bf16.msra.mxu0 %v634
    %700 = vmatpush.bf16.msra.mxu0 %v633
    %701 = vmatpush.bf16.msra.mxu0 %v632
    %702 = vmatpush.bf16.msra.mxu0 %v631
    %703 = vmatpush.bf16.msra.mxu0 %v630
    %704 = vmatpush.bf16.msra.mxu0 %v629
    %705 = vmatpush.bf16.msra.mxu0 %v628
    %706 = vmatmul.bf16.gmra.mxu0 %v211
    %v707 = vpop.f32.mrf.mxu0
    %v708 = vadd.f32 %v689, %v707
    %v709 = vpop.f32.mrf.mxu0
    %v710 = vadd.f32 %v691, %v709
    %711 = vmatmul.bf16.gmra.mxu0 %v214
    %v712 = vpop.f32.mrf.mxu0
    %v713 = vadd.f32 %v694, %v712
    %v714 = vpop.f32.mrf.mxu0
    %v715 = vadd.f32 %v696, %v714
    %716 = vdwg.mxu0
    %v717 = vpack.c.bf16 %v710, %v708
    %v718 = vpack.c.bf16 %v715, %v713
    %v720 = vsel %vm433, %v717, 0
    %v723 = vsel %vm433, %v718, 0
    %725 = vmatpush.bf16.msra.mxu0 0
    %726 = vmatpush.bf16.msra.mxu0 0
    %727 = vmatpush.bf16.msra.mxu0 0
    %728 = vmatpush.bf16.msra.mxu0 0
    %729 = vmatpush.bf16.msra.mxu0 0
    %730 = vmatpush.bf16.msra.mxu0 0
    %731 = vmatpush.bf16.msra.mxu0 0
    %732 = vmatpush.bf16.msra.mxu0 %v431
    %733 = vmatmul.bf16.gmra.mxu0 %v720
    %v734 = vpop.f32.mrf.mxu0
    %v735 = vadd.f32 %v425, %v734
    %v736 = vpop.f32.mrf.mxu0
    %v737 = vadd.f32 %v425, %v736
    %738 = vmatmul.bf16.gmra.mxu0 %v723
    %v739 = vpop.f32.mrf.mxu0
    %v740 = vadd.f32 %v425, %v739
    %v741 = vpop.f32.mrf.mxu0
    %v742 = vadd.f32 %v425, %v741
    %743 = vdwg.mxu0
    %v744 = vmax.f32 %v735, 0.0
    %v745 = vmax.f32 %v737, 0.0
    %v746 = vmax.f32 %v740, 0.0
    %v747 = vmax.f32 %v742, 0.0
    %v748 = vpack.c.bf16 %v744, %v744
    %v749 = vpack.c.bf16 %v745, %v745
    %v750 = vpack.c.bf16 %v746, %v746
    %v751 = vpack.c.bf16 %v747, %v747
    %s752 = smul.u32 4, 25
    %s753 = smul.u32 %s752, 16
    %s754 = smul.u32 %s753, 6
    %s755 = sshll.u32 %s754, 4
    %756 = dma.done [#allocation3], %s755
    %v757 = vld [vmem:[#allocation2] sm:$0xff]
    %v758 = vld [vmem:[#allocation2 + $0x8] sm:$0xff]
    %v759 = vld [vmem:[#allocation2 + $0x10] sm:$0xff]
    %v760 = vld [vmem:[#allocation2 + $0x18] sm:$0xff]
    %v761 = vld [vmem:[#allocation2 + $0x20] sm:$0xff]
    %v762 = vld [vmem:[#allocation2 + $0x28] sm:$0xff]
    %v763 = vld [vmem:[#allocation2 + $0x30] sm:$0xff]
    %v764 = vld [vmem:[#allocation2 + $0x38] sm:$0xff]
    %v765 = vld [vmem:[#allocation2 + $0x40] sm:$0xff]
    %v766 = vld [vmem:[#allocation2 + $0x48] sm:$0xff]
    %v767 = vld [vmem:[#allocation2 + $0x50] sm:$0xff]
    %v768 = vld [vmem:[#allocation2 + $0x58] sm:$0xff]
    %v769 = vld [vmem:[#allocation2 + $0x60] sm:$0xff]
    %v770 = vld [vmem:[#allocation2 + $0x68] sm:$0xff]
    %v771 = vld [vmem:[#allocation2 + $0x70] sm:$0xff]
    %v772 = vld [vmem:[#allocation2 + $0x78] sm:$0xff]
    %v773 = vld [vmem:[#allocation2 + $0x80] sm:$0xff]
    %v774 = vld [vmem:[#allocation2 + $0x88] sm:$0xff]
    %v775 = vld [vmem:[#allocation2 + $0x90] sm:$0xff]
    %v776 = vld [vmem:[#allocation2 + $0x98] sm:$0xff]
    %v777 = vld [vmem:[#allocation2 + $0xa0] sm:$0xff]
    %v778 = vld [vmem:[#allocation2 + $0xa8] sm:$0xff]
    %v779 = vld [vmem:[#allocation2 + $0xb0] sm:$0xff]
    %v780 = vld [vmem:[#allocation2 + $0xb8] sm:$0xff]
    %v781 = vld [vmem:[#allocation2 + $0xc0] sm:$0xff]
    %v782 = vld [vmem:[#allocation2 + $0xc8] sm:$0xff]
    %v783 = vld [vmem:[#allocation2 + $0xd0] sm:$0xff]
    %v784 = vld [vmem:[#allocation2 + $0xd8] sm:$0xff]
    %v785 = vld [vmem:[#allocation2 + $0xe0] sm:$0xff]
    %v786 = vld [vmem:[#allocation2 + $0xe8] sm:$0xff]
    %v787 = vld [vmem:[#allocation2 + $0xf0] sm:$0xff]
    %v788 = vld [vmem:[#allocation2 + $0xf8] sm:$0xff]
    %v789 = vld [vmem:[#allocation2 + $0x100] sm:$0xff]
    %v790 = vld [vmem:[#allocation2 + $0x108] sm:$0xff]
    %v791 = vld [vmem:[#allocation2 + $0x110] sm:$0xff]
    %v792 = vld [vmem:[#allocation2 + $0x118] sm:$0xff]
    %v793 = vld [vmem:[#allocation2 + $0x120] sm:$0xff]
    %v794 = vld [vmem:[#allocation2 + $0x128] sm:$0xff]
    %v795 = vld [vmem:[#allocation2 + $0x130] sm:$0xff]
    %v796 = vld [vmem:[#allocation2 + $0x138] sm:$0xff]
    %v797 = vld [vmem:[#allocation2 + $0x140] sm:$0xff]
    %v798 = vld [vmem:[#allocation2 + $0x148] sm:$0xff]
    %v799 = vld [vmem:[#allocation2 + $0x150] sm:$0xff]
    %v800 = vld [vmem:[#allocation2 + $0x158] sm:$0xff]
    %v801 = vld [vmem:[#allocation2 + $0x160] sm:$0xff]
    %v802 = vld [vmem:[#allocation2 + $0x168] sm:$0xff]
    %v803 = vld [vmem:[#allocation2 + $0x170] sm:$0xff]
    %v804 = vld [vmem:[#allocation2 + $0x178] sm:$0xff]
    %s805 = scalar_lea.vmem [#allocation2], 384
    %v806 = vld [vmem:[%s805] sm:$0xff]
    %v807 = vld [vmem:[%s805 + $0x8] sm:$0xff]
    %v808 = vld [vmem:[%s805 + $0x10] sm:$0xff]
    %v809 = vld [vmem:[%s805 + $0x18] sm:$0xff]
    %v810 = vld [vmem:[%s805 + $0x20] sm:$0xff]
    %v811 = vld [vmem:[%s805 + $0x28] sm:$0xff]
    %v812 = vld [vmem:[%s805 + $0x30] sm:$0xff]
    %v813 = vld [vmem:[%s805 + $0x38] sm:$0xff]
    %v814 = vld [vmem:[%s805 + $0x40] sm:$0xff]
    %v815 = vld [vmem:[%s805 + $0x48] sm:$0xff]
    %v816 = vld [vmem:[%s805 + $0x50] sm:$0xff]
    %v817 = vld [vmem:[%s805 + $0x58] sm:$0xff]
    %v818 = vld [vmem:[%s805 + $0x60] sm:$0xff]
    %v819 = vld [vmem:[%s805 + $0x68] sm:$0xff]
    %v820 = vld [vmem:[%s805 + $0x70] sm:$0xff]
    %v821 = vld [vmem:[%s805 + $0x78] sm:$0xff]
    %v822 = vld [vmem:[%s805 + $0x80] sm:$0xff]
    %v823 = vld [vmem:[%s805 + $0x88] sm:$0xff]
    %v824 = vld [vmem:[%s805 + $0x90] sm:$0xff]
    %v825 = vld [vmem:[%s805 + $0x98] sm:$0xff]
    %v826 = vld [vmem:[%s805 + $0xa0] sm:$0xff]
    %v827 = vld [vmem:[%s805 + $0xa8] sm:$0xff]
    %v828 = vld [vmem:[%s805 + $0xb0] sm:$0xff]
    %v829 = vld [vmem:[%s805 + $0xb8] sm:$0xff]
    %v830 = vld [vmem:[%s805 + $0xc0] sm:$0xff]
    %v831 = vld [vmem:[%s805 + $0xc8] sm:$0xff]
    %v832 = vld [vmem:[%s805 + $0xd0] sm:$0xff]
    %v833 = vld [vmem:[%s805 + $0xd8] sm:$0xff]
    %v834 = vld [vmem:[%s805 + $0xe0] sm:$0xff]
    %v835 = vld [vmem:[%s805 + $0xe8] sm:$0xff]
    %v836 = vld [vmem:[%s805 + $0xf0] sm:$0xff]
    %v837 = vld [vmem:[%s805 + $0xf8] sm:$0xff]
    %v838 = vld [vmem:[%s805 + $0x100] sm:$0xff]
    %v839 = vld [vmem:[%s805 + $0x108] sm:$0xff]
    %v840 = vld [vmem:[%s805 + $0x110] sm:$0xff]
    %v841 = vld [vmem:[%s805 + $0x118] sm:$0xff]
    %v842 = vld [vmem:[%s805 + $0x120] sm:$0xff]
    %v843 = vld [vmem:[%s805 + $0x128] sm:$0xff]
    %v844 = vld [vmem:[%s805 + $0x130] sm:$0xff]
    %v845 = vld [vmem:[%s805 + $0x138] sm:$0xff]
    %v846 = vld [vmem:[%s805 + $0x140] sm:$0xff]
    %v847 = vld [vmem:[%s805 + $0x148] sm:$0xff]
    %v848 = vld [vmem:[%s805 + $0x150] sm:$0xff]
    %v849 = vld [vmem:[%s805 + $0x158] sm:$0xff]
    %v850 = vld [vmem:[%s805 + $0x160] sm:$0xff]
    %v851 = vld [vmem:[%s805 + $0x168] sm:$0xff]
    %v852 = vld [vmem:[%s805 + $0x170] sm:$0xff]
    %v853 = vld [vmem:[%s805 + $0x178] sm:$0xff]
    %v856 = vunpack.c.l.b16 %v463
    %v857 = vunpack.c.l.b16 %v748
    %v858 = vpack.c.b16 %v856, %v856
    %v859 = vpack.c.b16 %v857, %v857
    %v860 = vunpack.c.l.b16 %v858
    %v861 = vunpack.c.l.b16 %v859
    %v862 = vrot.slane %v860, 1
    %vm863 = vcmask 1041409
    %v864 = vsel %vm863, %v861, %v862
    %v865 = vpack.c.b16 %v864, %v864
    %v915 = vunpack.c.l.b16 %v806
    %v916 = vunpack.c.h.b16 %v806
    %v917 = vunpack.c.l.b16 %v807
    %v918 = vunpack.c.h.b16 %v807
    %v919 = vunpack.c.l.b16 %v808
    %v920 = vunpack.c.h.b16 %v808
    %v921 = vunpack.c.l.b16 %v809
    %v922 = vunpack.c.h.b16 %v809
    %v923 = vunpack.c.l.b16 %v810
    %v924 = vunpack.c.h.b16 %v810
    %v925 = vunpack.c.l.b16 %v811
    %v926 = vunpack.c.h.b16 %v811
    %v927 = vunpack.c.l.b16 %v812
    %v928 = vunpack.c.h.b16 %v812
    %v929 = vunpack.c.l.b16 %v813
    %v930 = vunpack.c.h.b16 %v813
    %v931 = vunpack.c.l.b16 %v814
    %v932 = vunpack.c.h.b16 %v814
    %v933 = vunpack.c.l.b16 %v815
    %v934 = vunpack.c.h.b16 %v815
    %v935 = vunpack.c.l.b16 %v816
    %v936 = vunpack.c.h.b16 %v816
    %v937 = vunpack.c.l.b16 %v817
    %v938 = vunpack.c.h.b16 %v817
    %v939 = vunpack.c.l.b16 %v818
    %v940 = vunpack.c.h.b16 %v818
    %v941 = vunpack.c.l.b16 %v819
    %v942 = vunpack.c.h.b16 %v819
    %v943 = vunpack.c.l.b16 %v820
    %v944 = vunpack.c.h.b16 %v820
    %v945 = vunpack.c.l.b16 %v821
    %v946 = vunpack.c.h.b16 %v821
    %v947 = vunpack.c.l.b16 %v822
    %v948 = vunpack.c.h.b16 %v822
    %v949 = vunpack.c.l.b16 %v823
    %v950 = vunpack.c.h.b16 %v823
    %v951 = vunpack.c.l.b16 %v824
    %v952 = vunpack.c.h.b16 %v824
    %v953 = vunpack.c.l.b16 %v825
    %v954 = vunpack.c.h.b16 %v825
    %v955 = vunpack.c.l.b16 %v826
    %v956 = vunpack.c.h.b16 %v826
    %v957 = vunpack.c.l.b16 %v827
    %v958 = vunpack.c.h.b16 %v827
    %v959 = vunpack.c.l.b16 %v828
    %v960 = vunpack.c.h.b16 %v828
    %v961 = vunpack.c.l.b16 %v829
    %v962 = vunpack.c.h.b16 %v829
    %v963 = vunpack.c.l.b16 %v830
    %v964 = vunpack.c.h.b16 %v830
    %v965 = vunpack.c.l.b16 %v831
    %v966 = vunpack.c.h.b16 %v831
    %v967 = vunpack.c.l.b16 %v832
    %v968 = vunpack.c.h.b16 %v832
    %v969 = vunpack.c.l.b16 %v833
    %v970 = vunpack.c.h.b16 %v833
    %v971 = vunpack.c.l.b16 %v834
    %v972 = vunpack.c.h.b16 %v834
    %v973 = vunpack.c.l.b16 %v835
    %v974 = vunpack.c.h.b16 %v835
    %v975 = vunpack.c.l.b16 %v836
    %v976 = vunpack.c.h.b16 %v836
    %v977 = vunpack.c.l.b16 %v837
    %v978 = vunpack.c.h.b16 %v837
    %v979 = vunpack.c.l.b16 %v838
    %v980 = vunpack.c.h.b16 %v838
    %v981 = vunpack.c.l.b16 %v839
    %v982 = vunpack.c.h.b16 %v839
    %v983 = vunpack.c.l.b16 %v840
    %v984 = vunpack.c.h.b16 %v840
    %v985 = vunpack.c.l.b16 %v841
    %v986 = vunpack.c.h.b16 %v841
    %v987 = vunpack.c.l.b16 %v842
    %v988 = vunpack.c.h.b16 %v842
    %v989 = vunpack.c.l.b16 %v843
    %v990 = vunpack.c.h.b16 %v843
    %v991 = vunpack.c.l.b16 %v844
    %v992 = vunpack.c.h.b16 %v844
    %v993 = vunpack.c.l.b16 %v845
    %v994 = vunpack.c.h.b16 %v845
    %v995 = vunpack.c.l.b16 %v846
    %v996 = vunpack.c.h.b16 %v846
    %v997 = vunpack.c.l.b16 %v847
    %v998 = vunpack.c.h.b16 %v847
    %v999 = vunpack.c.l.b16 %v848
    %v1000 = vunpack.c.h.b16 %v848
    %v1001 = vunpack.c.l.b16 %v849
    %v1002 = vunpack.c.h.b16 %v849
    %v1003 = vunpack.c.l.b16 %v850
    %v1004 = vunpack.c.h.b16 %v850
    %v1005 = vunpack.c.l.b16 %v851
    %v1006 = vunpack.c.h.b16 %v851
    %v1007 = vunpack.c.l.b16 %v852
    %v1008 = vunpack.c.h.b16 %v852
    %v1009 = vunpack.c.l.b16 %v853
    %v1010 = vunpack.c.h.b16 %v853
    %v1011 = vpack.c.b16 %v921, %v915
    %v1012 = vpack.c.b16 %v922, %v916
    %v1013 = vpack.c.b16 %v923, %v917
    %v1014 = vpack.c.b16 %v924, %v918
    %v1015 = vpack.c.b16 %v925, %v919
    %v1016 = vpack.c.b16 %v926, %v920
    %v1017 = vpack.c.b16 %v933, %v927
    %v1018 = vpack.c.b16 %v934, %v928
    %v1019 = vpack.c.b16 %v935, %v929
    %v1020 = vpack.c.b16 %v936, %v930
    %v1021 = vpack.c.b16 %v937, %v931
    %v1022 = vpack.c.b16 %v938, %v932
    %v1023 = vpack.c.b16 %v945, %v939
    %v1024 = vpack.c.b16 %v946, %v940
    %v1025 = vpack.c.b16 %v947, %v941
    %v1026 = vpack.c.b16 %v948, %v942
    %v1027 = vpack.c.b16 %v949, %v943
    %v1028 = vpack.c.b16 %v950, %v944
    %v1029 = vpack.c.b16 %v957, %v951
    %v1030 = vpack.c.b16 %v958, %v952
    %v1031 = vpack.c.b16 %v959, %v953
    %v1032 = vpack.c.b16 %v960, %v954
    %v1033 = vpack.c.b16 %v961, %v955
    %v1034 = vpack.c.b16 %v962, %v956
    %v1035 = vpack.c.b16 %v969, %v963
    %v1036 = vpack.c.b16 %v970, %v964
    %v1037 = vpack.c.b16 %v971, %v965
    %v1038 = vpack.c.b16 %v972, %v966
    %v1039 = vpack.c.b16 %v973, %v967
    %v1040 = vpack.c.b16 %v974, %v968
    %v1041 = vpack.c.b16 %v981, %v975
    %v1042 = vpack.c.b16 %v982, %v976
    %v1043 = vpack.c.b16 %v983, %v977
    %v1044 = vpack.c.b16 %v984, %v978
    %v1045 = vpack.c.b16 %v985, %v979
    %v1046 = vpack.c.b16 %v986, %v980
    %v1047 = vpack.c.b16 %v993, %v987
    %v1048 = vpack.c.b16 %v994, %v988
    %v1049 = vpack.c.b16 %v995, %v989
    %v1050 = vpack.c.b16 %v996, %v990
    %v1051 = vpack.c.b16 %v997, %v991
    %v1052 = vpack.c.b16 %v998, %v992
    %v1053 = vpack.c.b16 %v1005, %v999
    %v1054 = vpack.c.b16 %v1006, %v1000
    %v1055 = vpack.c.b16 %v1007, %v1001
    %v1056 = vpack.c.b16 %v1008, %v1002
    %v1057 = vpack.c.b16 %v1009, %v1003
    %v1058 = vpack.c.b16 %v1010, %v1004
    %1107 = vmatpush.bf16.msra.mxu0 %v1053
    %1108 = vmatpush.bf16.msra.mxu0 %v1047
    %1109 = vmatpush.bf16.msra.mxu0 %v1041
    %1110 = vmatpush.bf16.msra.mxu0 %v1035
    %1111 = vmatpush.bf16.msra.mxu0 %v1029
    %1112 = vmatpush.bf16.msra.mxu0 %v1023
    %1113 = vmatpush.bf16.msra.mxu0 %v1017
    %1114 = vmatpush.bf16.msra.mxu0 %v1011
    %1115 = vmatmul.bf16.gmra.mxu0 %v865
    %v1116 = vpop.f32.mrf.mxu0
    %v1117 = vadd.f32 0.0, %v1116
    %v1118 = vpop.f32.mrf.mxu0
    %1119 = vdwg.mxu0
    %1120 = vmatpush.bf16.msra.mxu0 %v1054
    %1121 = vmatpush.bf16.msra.mxu0 %v1048
    %1122 = vmatpush.bf16.msra.mxu0 %v1042
    %1123 = vmatpush.bf16.msra.mxu0 %v1036
    %1124 = vmatpush.bf16.msra.mxu0 %v1030
    %1125 = vmatpush.bf16.msra.mxu0 %v1024
    %1126 = vmatpush.bf16.msra.mxu0 %v1018
    %1127 = vmatpush.bf16.msra.mxu0 %v1012
    %1128 = vmatmul.bf16.gmra.mxu0 %v865
    %v1129 = vpop.f32.mrf.mxu0
    %v1130 = vadd.f32 0.0, %v1129
    %v1131 = vpop.f32.mrf.mxu0
    %1132 = vdwg.mxu0
    %1133 = vmatpush.bf16.msra.mxu0 %v1055
    %1134 = vmatpush.bf16.msra.mxu0 %v1049
    %1135 = vmatpush.bf16.msra.mxu0 %v1043
    %1136 = vmatpush.bf16.msra.mxu0 %v1037
    %1137 = vmatpush.bf16.msra.mxu0 %v1031
    %1138 = vmatpush.bf16.msra.mxu0 %v1025
    %1139 = vmatpush.bf16.msra.mxu0 %v1019
    %1140 = vmatpush.bf16.msra.mxu0 %v1013
    %1141 = vmatmul.bf16.gmra.mxu0 %v865
    %v1142 = vpop.f32.mrf.mxu0
    %v1143 = vadd.f32 0.0, %v1142
    %v1144 = vpop.f32.mrf.mxu0
    %1145 = vdwg.mxu0
    %1146 = vmatpush.bf16.msra.mxu0 %v1056
    %1147 = vmatpush.bf16.msra.mxu0 %v1050
    %1148 = vmatpush.bf16.msra.mxu0 %v1044
    %1149 = vmatpush.bf16.msra.mxu0 %v1038
    %1150 = vmatpush.bf16.msra.mxu0 %v1032
    %1151 = vmatpush.bf16.msra.mxu0 %v1026
    %1152 = vmatpush.bf16.msra.mxu0 %v1020
    %1153 = vmatpush.bf16.msra.mxu0 %v1014
    %1154 = vmatmul.bf16.gmra.mxu0 %v865
    %v1155 = vpop.f32.mrf.mxu0
    %v1156 = vadd.f32 0.0, %v1155
    %v1157 = vpop.f32.mrf.mxu0
    %1158 = vdwg.mxu0
    %1159 = vmatpush.bf16.msra.mxu0 %v1057
    %1160 = vmatpush.bf16.msra.mxu0 %v1051
    %1161 = vmatpush.bf16.msra.mxu0 %v1045
    %1162 = vmatpush.bf16.msra.mxu0 %v1039
    %1163 = vmatpush.bf16.msra.mxu0 %v1033
    %1164 = vmatpush.bf16.msra.mxu0 %v1027
    %1165 = vmatpush.bf16.msra.mxu0 %v1021
    %1166 = vmatpush.bf16.msra.mxu0 %v1015
    %1167 = vmatmul.bf16.gmra.mxu0 %v865
    %v1168 = vpop.f32.mrf.mxu0
    %v1169 = vadd.f32 0.0, %v1168
    %v1170 = vpop.f32.mrf.mxu0
    %1171 = vdwg.mxu0
    %1172 = vmatpush.bf16.msra.mxu0 %v1058
    %1173 = vmatpush.bf16.msra.mxu0 %v1052
    %1174 = vmatpush.bf16.msra.mxu0 %v1046
    %1175 = vmatpush.bf16.msra.mxu0 %v1040
    %1176 = vmatpush.bf16.msra.mxu0 %v1034
    %1177 = vmatpush.bf16.msra.mxu0 %v1028
    %1178 = vmatpush.bf16.msra.mxu0 %v1022
    %1179 = vmatpush.bf16.msra.mxu0 %v1016
    %1180 = vmatmul.bf16.gmra.mxu0 %v865
    %v1181 = vpop.f32.mrf.mxu0
    %v1182 = vadd.f32 0.0, %v1181
    %v1183 = vpop.f32.mrf.mxu0
    %1184 = vdwg.mxu0
    %v1185 = vrot.slane %v861, 7
    %v1186 = vsel %vm863, %v1185, %v860
    %v1187 = vpack.c.b16 %v1186, %v1186
    %v1237 = vunpack.c.l.b16 %v757
    %v1238 = vunpack.c.h.b16 %v757
    %v1239 = vunpack.c.l.b16 %v758
    %v1240 = vunpack.c.h.b16 %v758
    %v1241 = vunpack.c.l.b16 %v759
    %v1242 = vunpack.c.h.b16 %v759
    %v1243 = vunpack.c.l.b16 %v760
    %v1244 = vunpack.c.h.b16 %v760
    %v1245 = vunpack.c.l.b16 %v761
    %v1246 = vunpack.c.h.b16 %v761
    %v1247 = vunpack.c.l.b16 %v762
    %v1248 = vunpack.c.h.b16 %v762
    %v1249 = vunpack.c.l.b16 %v763
    %v1250 = vunpack.c.h.b16 %v763
    %v1251 = vunpack.c.l.b16 %v764
    %v1252 = vunpack.c.h.b16 %v764
    %v1253 = vunpack.c.l.b16 %v765
    %v1254 = vunpack.c.h.b16 %v765
    %v1255 = vunpack.c.l.b16 %v766
    %v1256 = vunpack.c.h.b16 %v766
    %v1257 = vunpack.c.l.b16 %v767
    %v1258 = vunpack.c.h.b16 %v767
    %v1259 = vunpack.c.l.b16 %v768
    %v1260 = vunpack.c.h.b16 %v768
    %v1261 = vunpack.c.l.b16 %v769
    %v1262 = vunpack.c.h.b16 %v769
    %v1263 = vunpack.c.l.b16 %v770
    %v1264 = vunpack.c.h.b16 %v770
    %v1265 = vunpack.c.l.b16 %v771
    %v1266 = vunpack.c.h.b16 %v771
    %v1267 = vunpack.c.l.b16 %v772
    %v1268 = vunpack.c.h.b16 %v772
    %v1269 = vunpack.c.l.b16 %v773
    %v1270 = vunpack.c.h.b16 %v773
    %v1271 = vunpack.c.l.b16 %v774
    %v1272 = vunpack.c.h.b16 %v774
    %v1273 = vunpack.c.l.b16 %v775
    %v1274 = vunpack.c.h.b16 %v775
    %v1275 = vunpack.c.l.b16 %v776
    %v1276 = vunpack.c.h.b16 %v776
    %v1277 = vunpack.c.l.b16 %v777
    %v1278 = vunpack.c.h.b16 %v777
    %v1279 = vunpack.c.l.b16 %v778
    %v1280 = vunpack.c.h.b16 %v778
    %v1281 = vunpack.c.l.b16 %v779
    %v1282 = vunpack.c.h.b16 %v779
    %v1283 = vunpack.c.l.b16 %v780
    %v1284 = vunpack.c.h.b16 %v780
    %v1285 = vunpack.c.l.b16 %v781
    %v1286 = vunpack.c.h.b16 %v781
    %v1287 = vunpack.c.l.b16 %v782
    %v1288 = vunpack.c.h.b16 %v782
    %v1289 = vunpack.c.l.b16 %v783
    %v1290 = vunpack.c.h.b16 %v783
    %v1291 = vunpack.c.l.b16 %v784
    %v1292 = vunpack.c.h.b16 %v784
    %v1293 = vunpack.c.l.b16 %v785
    %v1294 = vunpack.c.h.b16 %v785
    %v1295 = vunpack.c.l.b16 %v786
    %v1296 = vunpack.c.h.b16 %v786
    %v1297 = vunpack.c.l.b16 %v787
    %v1298 = vunpack.c.h.b16 %v787
    %v1299 = vunpack.c.l.b16 %v788
    %v1300 = vunpack.c.h.b16 %v788
    %v1301 = vunpack.c.l.b16 %v789
    %v1302 = vunpack.c.h.b16 %v789
    %v1303 = vunpack.c.l.b16 %v790
    %v1304 = vunpack.c.h.b16 %v790
    %v1305 = vunpack.c.l.b16 %v791
    %v1306 = vunpack.c.h.b16 %v791
    %v1307 = vunpack.c.l.b16 %v792
    %v1308 = vunpack.c.h.b16 %v792
    %v1309 = vunpack.c.l.b16 %v793
    %v1310 = vunpack.c.h.b16 %v793
    %v1311 = vunpack.c.l.b16 %v794
    %v1312 = vunpack.c.h.b16 %v794
    %v1313 = vunpack.c.l.b16 %v795
    %v1314 = vunpack.c.h.b16 %v795
    %v1315 = vunpack.c.l.b16 %v796
    %v1316 = vunpack.c.h.b16 %v796
    %v1317 = vunpack.c.l.b16 %v797
    %v1318 = vunpack.c.h.b16 %v797
    %v1319 = vunpack.c.l.b16 %v798
    %v1320 = vunpack.c.h.b16 %v798
    %v1321 = vunpack.c.l.b16 %v799
    %v1322 = vunpack.c.h.b16 %v799
    %v1323 = vunpack.c.l.b16 %v800
    %v1324 = vunpack.c.h.b16 %v800
    %v1325 = vunpack.c.l.b16 %v801
    %v1326 = vunpack.c.h.b16 %v801
    %v1327 = vunpack.c.l.b16 %v802
    %v1328 = vunpack.c.h.b16 %v802
    %v1329 = vunpack.c.l.b16 %v803
    %v1330 = vunpack.c.h.b16 %v803
    %v1331 = vunpack.c.l.b16 %v804
    %v1332 = vunpack.c.h.b16 %v804
    %v1333 = vpack.c.b16 %v1243, %v1237
    %v1334 = vpack.c.b16 %v1244, %v1238
    %v1335 = vpack.c.b16 %v1245, %v1239
    %v1336 = vpack.c.b16 %v1246, %v1240
    %v1337 = vpack.c.b16 %v1247, %v1241
    %v1338 = vpack.c.b16 %v1248, %v1242
    %v1339 = vpack.c.b16 %v1255, %v1249
    %v1340 = vpack.c.b16 %v1256, %v1250
    %v1341 = vpack.c.b16 %v1257, %v1251
    %v1342 = vpack.c.b16 %v1258, %v1252
    %v1343 = vpack.c.b16 %v1259, %v1253
    %v1344 = vpack.c.b16 %v1260, %v1254
    %v1345 = vpack.c.b16 %v1267, %v1261
    %v1346 = vpack.c.b16 %v1268, %v1262
    %v1347 = vpack.c.b16 %v1269, %v1263
    %v1348 = vpack.c.b16 %v1270, %v1264
    %v1349 = vpack.c.b16 %v1271, %v1265
    %v1350 = vpack.c.b16 %v1272, %v1266
    %v1351 = vpack.c.b16 %v1279, %v1273
    %v1352 = vpack.c.b16 %v1280, %v1274
    %v1353 = vpack.c.b16 %v1281, %v1275
    %v1354 = vpack.c.b16 %v1282, %v1276
    %v1355 = vpack.c.b16 %v1283, %v1277
    %v1356 = vpack.c.b16 %v1284, %v1278
    %v1357 = vpack.c.b16 %v1291, %v1285
    %v1358 = vpack.c.b16 %v1292, %v1286
    %v1359 = vpack.c.b16 %v1293, %v1287
    %v1360 = vpack.c.b16 %v1294, %v1288
    %v1361 = vpack.c.b16 %v1295, %v1289
    %v1362 = vpack.c.b16 %v1296, %v1290
    %v1363 = vpack.c.b16 %v1303, %v1297
    %v1364 = vpack.c.b16 %v1304, %v1298
    %v1365 = vpack.c.b16 %v1305, %v1299
    %v1366 = vpack.c.b16 %v1306, %v1300
    %v1367 = vpack.c.b16 %v1307, %v1301
    %v1368 = vpack.c.b16 %v1308, %v1302
    %v1369 = vpack.c.b16 %v1315, %v1309
    %v1370 = vpack.c.b16 %v1316, %v1310
    %v1371 = vpack.c.b16 %v1317, %v1311
    %v1372 = vpack.c.b16 %v1318, %v1312
    %v1373 = vpack.c.b16 %v1319, %v1313
    %v1374 = vpack.c.b16 %v1320, %v1314
    %v1375 = vpack.c.b16 %v1327, %v1321
    %v1376 = vpack.c.b16 %v1328, %v1322
    %v1377 = vpack.c.b16 %v1329, %v1323
    %v1378 = vpack.c.b16 %v1330, %v1324
    %v1379 = vpack.c.b16 %v1331, %v1325
    %v1380 = vpack.c.b16 %v1332, %v1326
    %1429 = vmatpush.bf16.msra.mxu0 %v1375
    %1430 = vmatpush.bf16.msra.mxu0 %v1369
    %1431 = vmatpush.bf16.msra.mxu0 %v1363
    %1432 = vmatpush.bf16.msra.mxu0 %v1357
    %1433 = vmatpush.bf16.msra.mxu0 %v1351
    %1434 = vmatpush.bf16.msra.mxu0 %v1345
    %1435 = vmatpush.bf16.msra.mxu0 %v1339
    %1436 = vmatpush.bf16.msra.mxu0 %v1333
    %1437 = vmatmul.bf16.gmra.mxu0 %v1187
    %v1438 = vpop.f32.mrf.mxu0
    %v1439 = vadd.f32 %v1117, %v1438
    %v1440 = vpop.f32.mrf.mxu0
    %1441 = vdwg.mxu0
    %1442 = vmatpush.bf16.msra.mxu0 %v1376
    %1443 = vmatpush.bf16.msra.mxu0 %v1370
    %1444 = vmatpush.bf16.msra.mxu0 %v1364
    %1445 = vmatpush.bf16.msra.mxu0 %v1358
    %1446 = vmatpush.bf16.msra.mxu0 %v1352
    %1447 = vmatpush.bf16.msra.mxu0 %v1346
    %1448 = vmatpush.bf16.msra.mxu0 %v1340
    %1449 = vmatpush.bf16.msra.mxu0 %v1334
    %1450 = vmatmul.bf16.gmra.mxu0 %v1187
    %v1451 = vpop.f32.mrf.mxu0
    %v1452 = vadd.f32 %v1130, %v1451
    %v1453 = vpop.f32.mrf.mxu0
    %1454 = vdwg.mxu0
    %1455 = vmatpush.bf16.msra.mxu0 %v1377
    %1456 = vmatpush.bf16.msra.mxu0 %v1371
    %1457 = vmatpush.bf16.msra.mxu0 %v1365
    %1458 = vmatpush.bf16.msra.mxu0 %v1359
    %1459 = vmatpush.bf16.msra.mxu0 %v1353
    %1460 = vmatpush.bf16.msra.mxu0 %v1347
    %1461 = vmatpush.bf16.msra.mxu0 %v1341
    %1462 = vmatpush.bf16.msra.mxu0 %v1335
    %1463 = vmatmul.bf16.gmra.mxu0 %v1187
    %v1464 = vpop.f32.mrf.mxu0
    %v1465 = vadd.f32 %v1143, %v1464
    %v1466 = vpop.f32.mrf.mxu0
    %1467 = vdwg.mxu0
    %1468 = vmatpush.bf16.msra.mxu0 %v1378
    %1469 = vmatpush.bf16.msra.mxu0 %v1372
    %1470 = vmatpush.bf16.msra.mxu0 %v1366
    %1471 = vmatpush.bf16.msra.mxu0 %v1360
    %1472 = vmatpush.bf16.msra.mxu0 %v1354
    %1473 = vmatpush.bf16.msra.mxu0 %v1348
    %1474 = vmatpush.bf16.msra.mxu0 %v1342
    %1475 = vmatpush.bf16.msra.mxu0 %v1336
    %1476 = vmatmul.bf16.gmra.mxu0 %v1187
    %v1477 = vpop.f32.mrf.mxu0
    %v1478 = vadd.f32 %v1156, %v1477
    %v1479 = vpop.f32.mrf.mxu0
    %1480 = vdwg.mxu0
    %1481 = vmatpush.bf16.msra.mxu0 %v1379
    %1482 = vmatpush.bf16.msra.mxu0 %v1373
    %1483 = vmatpush.bf16.msra.mxu0 %v1367
    %1484 = vmatpush.bf16.msra.mxu0 %v1361
    %1485 = vmatpush.bf16.msra.mxu0 %v1355
    %1486 = vmatpush.bf16.msra.mxu0 %v1349
    %1487 = vmatpush.bf16.msra.mxu0 %v1343
    %1488 = vmatpush.bf16.msra.mxu0 %v1337
    %1489 = vmatmul.bf16.gmra.mxu0 %v1187
    %v1490 = vpop.f32.mrf.mxu0
    %v1491 = vadd.f32 %v1169, %v1490
    %v1492 = vpop.f32.mrf.mxu0
    %1493 = vdwg.mxu0
    %1494 = vmatpush.bf16.msra.mxu0 %v1380
    %1495 = vmatpush.bf16.msra.mxu0 %v1374
    %1496 = vmatpush.bf16.msra.mxu0 %v1368
    %1497 = vmatpush.bf16.msra.mxu0 %v1362
    %1498 = vmatpush.bf16.msra.mxu0 %v1356
    %1499 = vmatpush.bf16.msra.mxu0 %v1350
    %1500 = vmatpush.bf16.msra.mxu0 %v1344
    %1501 = vmatpush.bf16.msra.mxu0 %v1338
    %1502 = vmatmul.bf16.gmra.mxu0 %v1187
    %v1503 = vpop.f32.mrf.mxu0
    %v1504 = vadd.f32 %v1182, %v1503
    %v1505 = vpop.f32.mrf.mxu0
    %1506 = vdwg.mxu0
    %s1507 = scalar_lea.vmem [#allocation2], 768
    %v1508 = vld [vmem:[%s1507] sm:$0xff]
    %v1509 = vld [vmem:[%s1507 + $0x8] sm:$0xff]
    %v1510 = vld [vmem:[%s1507 + $0x10] sm:$0xff]
    %v1511 = vld [vmem:[%s1507 + $0x18] sm:$0xff]
    %v1512 = vld [vmem:[%s1507 + $0x20] sm:$0xff]
    %v1513 = vld [vmem:[%s1507 + $0x28] sm:$0xff]
    %v1514 = vld [vmem:[%s1507 + $0x30] sm:$0xff]
    %v1515 = vld [vmem:[%s1507 + $0x38] sm:$0xff]
    %v1516 = vld [vmem:[%s1507 + $0x40] sm:$0xff]
    %v1517 = vld [vmem:[%s1507 + $0x48] sm:$0xff]
    %v1518 = vld [vmem:[%s1507 + $0x50] sm:$0xff]
    %v1519 = vld [vmem:[%s1507 + $0x58] sm:$0xff]
    %v1520 = vld [vmem:[%s1507 + $0x60] sm:$0xff]
    %v1521 = vld [vmem:[%s1507 + $0x68] sm:$0xff]
    %v1522 = vld [vmem:[%s1507 + $0x70] sm:$0xff]
    %v1523 = vld [vmem:[%s1507 + $0x78] sm:$0xff]
    %v1524 = vld [vmem:[%s1507 + $0x80] sm:$0xff]
    %v1525 = vld [vmem:[%s1507 + $0x88] sm:$0xff]
    %v1526 = vld [vmem:[%s1507 + $0x90] sm:$0xff]
    %v1527 = vld [vmem:[%s1507 + $0x98] sm:$0xff]
    %v1528 = vld [vmem:[%s1507 + $0xa0] sm:$0xff]
    %v1529 = vld [vmem:[%s1507 + $0xa8] sm:$0xff]
    %v1530 = vld [vmem:[%s1507 + $0xb0] sm:$0xff]
    %v1531 = vld [vmem:[%s1507 + $0xb8] sm:$0xff]
    %v1532 = vld [vmem:[%s1507 + $0xc0] sm:$0xff]
    %v1533 = vld [vmem:[%s1507 + $0xc8] sm:$0xff]
    %v1534 = vld [vmem:[%s1507 + $0xd0] sm:$0xff]
    %v1535 = vld [vmem:[%s1507 + $0xd8] sm:$0xff]
    %v1536 = vld [vmem:[%s1507 + $0xe0] sm:$0xff]
    %v1537 = vld [vmem:[%s1507 + $0xe8] sm:$0xff]
    %v1538 = vld [vmem:[%s1507 + $0xf0] sm:$0xff]
    %v1539 = vld [vmem:[%s1507 + $0xf8] sm:$0xff]
    %v1540 = vld [vmem:[%s1507 + $0x100] sm:$0xff]
    %v1541 = vld [vmem:[%s1507 + $0x108] sm:$0xff]
    %v1542 = vld [vmem:[%s1507 + $0x110] sm:$0xff]
    %v1543 = vld [vmem:[%s1507 + $0x118] sm:$0xff]
    %v1544 = vld [vmem:[%s1507 + $0x120] sm:$0xff]
    %v1545 = vld [vmem:[%s1507 + $0x128] sm:$0xff]
    %v1546 = vld [vmem:[%s1507 + $0x130] sm:$0xff]
    %v1547 = vld [vmem:[%s1507 + $0x138] sm:$0xff]
    %v1548 = vld [vmem:[%s1507 + $0x140] sm:$0xff]
    %v1549 = vld [vmem:[%s1507 + $0x148] sm:$0xff]
    %v1550 = vld [vmem:[%s1507 + $0x150] sm:$0xff]
    %v1551 = vld [vmem:[%s1507 + $0x158] sm:$0xff]
    %v1552 = vld [vmem:[%s1507 + $0x160] sm:$0xff]
    %v1553 = vld [vmem:[%s1507 + $0x168] sm:$0xff]
    %v1554 = vld [vmem:[%s1507 + $0x170] sm:$0xff]
    %v1555 = vld [vmem:[%s1507 + $0x178] sm:$0xff]
    %v1556 = vrot.slane %v860, 2
    %v1557 = vrot.slane %v861, 1
    %v1558 = vsel %vm863, %v1557, %v1556
    %v1559 = vpack.c.b16 %v1558, %v1558
    %v1609 = vunpack.c.l.b16 %v1508
    %v1610 = vunpack.c.h.b16 %v1508
    %v1611 = vunpack.c.l.b16 %v1509
    %v1612 = vunpack.c.h.b16 %v1509
    %v1613 = vunpack.c.l.b16 %v1510
    %v1614 = vunpack.c.h.b16 %v1510
    %v1615 = vunpack.c.l.b16 %v1511
    %v1616 = vunpack.c.h.b16 %v1511
    %v1617 = vunpack.c.l.b16 %v1512
    %v1618 = vunpack.c.h.b16 %v1512
    %v1619 = vunpack.c.l.b16 %v1513
    %v1620 = vunpack.c.h.b16 %v1513
    %v1621 = vunpack.c.l.b16 %v1514
    %v1622 = vunpack.c.h.b16 %v1514
    %v1623 = vunpack.c.l.b16 %v1515
    %v1624 = vunpack.c.h.b16 %v1515
    %v1625 = vunpack.c.l.b16 %v1516
    %v1626 = vunpack.c.h.b16 %v1516
    %v1627 = vunpack.c.l.b16 %v1517
    %v1628 = vunpack.c.h.b16 %v1517
    %v1629 = vunpack.c.l.b16 %v1518
    %v1630 = vunpack.c.h.b16 %v1518
    %v1631 = vunpack.c.l.b16 %v1519
    %v1632 = vunpack.c.h.b16 %v1519
    %v1633 = vunpack.c.l.b16 %v1520
    %v1634 = vunpack.c.h.b16 %v1520
    %v1635 = vunpack.c.l.b16 %v1521
    %v1636 = vunpack.c.h.b16 %v1521
    %v1637 = vunpack.c.l.b16 %v1522
    %v1638 = vunpack.c.h.b16 %v1522
    %v1639 = vunpack.c.l.b16 %v1523
    %v1640 = vunpack.c.h.b16 %v1523
    %v1641 = vunpack.c.l.b16 %v1524
    %v1642 = vunpack.c.h.b16 %v1524
    %v1643 = vunpack.c.l.b16 %v1525
    %v1644 = vunpack.c.h.b16 %v1525
    %v1645 = vunpack.c.l.b16 %v1526
    %v1646 = vunpack.c.h.b16 %v1526
    %v1647 = vunpack.c.l.b16 %v1527
    %v1648 = vunpack.c.h.b16 %v1527
    %v1649 = vunpack.c.l.b16 %v1528
    %v1650 = vunpack.c.h.b16 %v1528
    %v1651 = vunpack.c.l.b16 %v1529
    %v1652 = vunpack.c.h.b16 %v1529
    %v1653 = vunpack.c.l.b16 %v1530
    %v1654 = vunpack.c.h.b16 %v1530
    %v1655 = vunpack.c.l.b16 %v1531
    %v1656 = vunpack.c.h.b16 %v1531
    %v1657 = vunpack.c.l.b16 %v1532
    %v1658 = vunpack.c.h.b16 %v1532
    %v1659 = vunpack.c.l.b16 %v1533
    %v1660 = vunpack.c.h.b16 %v1533
    %v1661 = vunpack.c.l.b16 %v1534
    %v1662 = vunpack.c.h.b16 %v1534
    %v1663 = vunpack.c.l.b16 %v1535
    %v1664 = vunpack.c.h.b16 %v1535
    %v1665 = vunpack.c.l.b16 %v1536
    %v1666 = vunpack.c.h.b16 %v1536
    %v1667 = vunpack.c.l.b16 %v1537
    %v1668 = vunpack.c.h.b16 %v1537
    %v1669 = vunpack.c.l.b16 %v1538
    %v1670 = vunpack.c.h.b16 %v1538
    %v1671 = vunpack.c.l.b16 %v1539
    %v1672 = vunpack.c.h.b16 %v1539
    %v1673 = vunpack.c.l.b16 %v1540
    %v1674 = vunpack.c.h.b16 %v1540
    %v1675 = vunpack.c.l.b16 %v1541
    %v1676 = vunpack.c.h.b16 %v1541
    %v1677 = vunpack.c.l.b16 %v1542
    %v1678 = vunpack.c.h.b16 %v1542
    %v1679 = vunpack.c.l.b16 %v1543
    %v1680 = vunpack.c.h.b16 %v1543
    %v1681 = vunpack.c.l.b16 %v1544
    %v1682 = vunpack.c.h.b16 %v1544
    %v1683 = vunpack.c.l.b16 %v1545
    %v1684 = vunpack.c.h.b16 %v1545
    %v1685 = vunpack.c.l.b16 %v1546
    %v1686 = vunpack.c.h.b16 %v1546
    %v1687 = vunpack.c.l.b16 %v1547
    %v1688 = vunpack.c.h.b16 %v1547
    %v1689 = vunpack.c.l.b16 %v1548
    %v1690 = vunpack.c.h.b16 %v1548
    %v1691 = vunpack.c.l.b16 %v1549
    %v1692 = vunpack.c.h.b16 %v1549
    %v1693 = vunpack.c.l.b16 %v1550
    %v1694 = vunpack.c.h.b16 %v1550
    %v1695 = vunpack.c.l.b16 %v1551
    %v1696 = vunpack.c.h.b16 %v1551
    %v1697 = vunpack.c.l.b16 %v1552
    %v1698 = vunpack.c.h.b16 %v1552
    %v1699 = vunpack.c.l.b16 %v1553
    %v1700 = vunpack.c.h.b16 %v1553
    %v1701 = vunpack.c.l.b16 %v1554
    %v1702 = vunpack.c.h.b16 %v1554
    %v1703 = vunpack.c.l.b16 %v1555
    %v1704 = vunpack.c.h.b16 %v1555
    %v1705 = vpack.c.b16 %v1615, %v1609
    %v1706 = vpack.c.b16 %v1616, %v1610
    %v1707 = vpack.c.b16 %v1617, %v1611
    %v1708 = vpack.c.b16 %v1618, %v1612
    %v1709 = vpack.c.b16 %v1619, %v1613
    %v1710 = vpack.c.b16 %v1620, %v1614
    %v1711 = vpack.c.b16 %v1627, %v1621
    %v1712 = vpack.c.b16 %v1628, %v1622
    %v1713 = vpack.c.b16 %v1629, %v1623
    %v1714 = vpack.c.b16 %v1630, %v1624
    %v1715 = vpack.c.b16 %v1631, %v1625
    %v1716 = vpack.c.b16 %v1632, %v1626
    %v1717 = vpack.c.b16 %v1639, %v1633
    %v1718 = vpack.c.b16 %v1640, %v1634
    %v1719 = vpack.c.b16 %v1641, %v1635
    %v1720 = vpack.c.b16 %v1642, %v1636
    %v1721 = vpack.c.b16 %v1643, %v1637
    %v1722 = vpack.c.b16 %v1644, %v1638
    %v1723 = vpack.c.b16 %v1651, %v1645
    %v1724 = vpack.c.b16 %v1652, %v1646
    %v1725 = vpack.c.b16 %v1653, %v1647
    %v1726 = vpack.c.b16 %v1654, %v1648
    %v1727 = vpack.c.b16 %v1655, %v1649
    %v1728 = vpack.c.b16 %v1656, %v1650
    %v1729 = vpack.c.b16 %v1663, %v1657
    %v1730 = vpack.c.b16 %v1664, %v1658
    %v1731 = vpack.c.b16 %v1665, %v1659
    %v1732 = vpack.c.b16 %v1666, %v1660
    %v1733 = vpack.c.b16 %v1667, %v1661
    %v1734 = vpack.c.b16 %v1668, %v1662
    %v1735 = vpack.c.b16 %v1675, %v1669
    %v1736 = vpack.c.b16 %v1676, %v1670
    %v1737 = vpack.c.b16 %v1677, %v1671
    %v1738 = vpack.c.b16 %v1678, %v1672
    %v1739 = vpack.c.b16 %v1679, %v1673
    %v1740 = vpack.c.b16 %v1680, %v1674
    %v1741 = vpack.c.b16 %v1687, %v1681
    %v1742 = vpack.c.b16 %v1688, %v1682
    %v1743 = vpack.c.b16 %v1689, %v1683
    %v1744 = vpack.c.b16 %v1690, %v1684
    %v1745 = vpack.c.b16 %v1691, %v1685
    %v1746 = vpack.c.b16 %v1692, %v1686
    %v1747 = vpack.c.b16 %v1699, %v1693
    %v1748 = vpack.c.b16 %v1700, %v1694
    %v1749 = vpack.c.b16 %v1701, %v1695
    %v1750 = vpack.c.b16 %v1702, %v1696
    %v1751 = vpack.c.b16 %v1703, %v1697
    %v1752 = vpack.c.b16 %v1704, %v1698
    %1801 = vmatpush.bf16.msra.mxu0 %v1747
    %1802 = vmatpush.bf16.msra.mxu0 %v1741
    %1803 = vmatpush.bf16.msra.mxu0 %v1735
    %1804 = vmatpush.bf16.msra.mxu0 %v1729
    %1805 = vmatpush.bf16.msra.mxu0 %v1723
    %1806 = vmatpush.bf16.msra.mxu0 %v1717
    %1807 = vmatpush.bf16.msra.mxu0 %v1711
    %1808 = vmatpush.bf16.msra.mxu0 %v1705
    %1809 = vmatmul.bf16.gmra.mxu0 %v1559
    %v1810 = vpop.f32.mrf.mxu0
    %v1811 = vadd.f32 0.0, %v1810
    %v1812 = vpop.f32.mrf.mxu0
    %1813 = vdwg.mxu0
    %1814 = vmatpush.bf16.msra.mxu0 %v1748
    %1815 = vmatpush.bf16.msra.mxu0 %v1742
    %1816 = vmatpush.bf16.msra.mxu0 %v1736
    %1817 = vmatpush.bf16.msra.mxu0 %v1730
    %1818 = vmatpush.bf16.msra.mxu0 %v1724
    %1819 = vmatpush.bf16.msra.mxu0 %v1718
    %1820 = vmatpush.bf16.msra.mxu0 %v1712
    %1821 = vmatpush.bf16.msra.mxu0 %v1706
    %1822 = vmatmul.bf16.gmra.mxu0 %v1559
    %v1823 = vpop.f32.mrf.mxu0
    %v1824 = vadd.f32 0.0, %v1823
    %v1825 = vpop.f32.mrf.mxu0
    %1826 = vdwg.mxu0
    %1827 = vmatpush.bf16.msra.mxu0 %v1749
    %1828 = vmatpush.bf16.msra.mxu0 %v1743
    %1829 = vmatpush.bf16.msra.mxu0 %v1737
    %1830 = vmatpush.bf16.msra.mxu0 %v1731
    %1831 = vmatpush.bf16.msra.mxu0 %v1725
    %1832 = vmatpush.bf16.msra.mxu0 %v1719
    %1833 = vmatpush.bf16.msra.mxu0 %v1713
    %1834 = vmatpush.bf16.msra.mxu0 %v1707
    %1835 = vmatmul.bf16.gmra.mxu0 %v1559
    %v1836 = vpop.f32.mrf.mxu0
    %v1837 = vadd.f32 0.0, %v1836
    %v1838 = vpop.f32.mrf.mxu0
    %1839 = vdwg.mxu0
    %1840 = vmatpush.bf16.msra.mxu0 %v1750
    %1841 = vmatpush.bf16.msra.mxu0 %v1744
    %1842 = vmatpush.bf16.msra.mxu0 %v1738
    %1843 = vmatpush.bf16.msra.mxu0 %v1732
    %1844 = vmatpush.bf16.msra.mxu0 %v1726
    %1845 = vmatpush.bf16.msra.mxu0 %v1720
    %1846 = vmatpush.bf16.msra.mxu0 %v1714
    %1847 = vmatpush.bf16.msra.mxu0 %v1708
    %1848 = vmatmul.bf16.gmra.mxu0 %v1559
    %v1849 = vpop.f32.mrf.mxu0
    %v1850 = vadd.f32 0.0, %v1849
    %v1851 = vpop.f32.mrf.mxu0
    %1852 = vdwg.mxu0
    %1853 = vmatpush.bf16.msra.mxu0 %v1751
    %1854 = vmatpush.bf16.msra.mxu0 %v1745
    %1855 = vmatpush.bf16.msra.mxu0 %v1739
    %1856 = vmatpush.bf16.msra.mxu0 %v1733
    %1857 = vmatpush.bf16.msra.mxu0 %v1727
    %1858 = vmatpush.bf16.msra.mxu0 %v1721
    %1859 = vmatpush.bf16.msra.mxu0 %v1715
    %1860 = vmatpush.bf16.msra.mxu0 %v1709
    %1861 = vmatmul.bf16.gmra.mxu0 %v1559
    %v1862 = vpop.f32.mrf.mxu0
    %v1863 = vadd.f32 0.0, %v1862
    %v1864 = vpop.f32.mrf.mxu0
    %1865 = vdwg.mxu0
    %1866 = vmatpush.bf16.msra.mxu0 %v1752
    %1867 = vmatpush.bf16.msra.mxu0 %v1746
    %1868 = vmatpush.bf16.msra.mxu0 %v1740
    %1869 = vmatpush.bf16.msra.mxu0 %v1734
    %1870 = vmatpush.bf16.msra.mxu0 %v1728
    %1871 = vmatpush.bf16.msra.mxu0 %v1722
    %1872 = vmatpush.bf16.msra.mxu0 %v1716
    %1873 = vmatpush.bf16.msra.mxu0 %v1710
    %1874 = vmatmul.bf16.gmra.mxu0 %v1559
    %v1875 = vpop.f32.mrf.mxu0
    %v1876 = vadd.f32 0.0, %v1875
    %v1877 = vpop.f32.mrf.mxu0
    %1878 = vdwg.mxu0
    %v1879 = vadd.f32 %v1439, %v1811
    %v1880 = vadd.f32 %v1452, %v1824
    %v1881 = vadd.f32 %v1465, %v1837
    %v1882 = vadd.f32 %v1478, %v1850
    %v1883 = vadd.f32 %v1491, %v1863
    %v1884 = vadd.f32 %v1504, %v1876
    %s1885 = scalar_lea.vmem [#allocation2], 1152
    %v1886 = vld [vmem:[%s1885] sm:$0xff]
    %v1887 = vld [vmem:[%s1885 + $0x8] sm:$0xff]
    %v1888 = vld [vmem:[%s1885 + $0x10] sm:$0xff]
    %v1889 = vld [vmem:[%s1885 + $0x18] sm:$0xff]
    %v1890 = vld [vmem:[%s1885 + $0x20] sm:$0xff]
    %v1891 = vld [vmem:[%s1885 + $0x28] sm:$0xff]
    %v1892 = vld [vmem:[%s1885 + $0x30] sm:$0xff]
    %v1893 = vld [vmem:[%s1885 + $0x38] sm:$0xff]
    %v1894 = vld [vmem:[%s1885 + $0x40] sm:$0xff]
    %v1895 = vld [vmem:[%s1885 + $0x48] sm:$0xff]
    %v1896 = vld [vmem:[%s1885 + $0x50] sm:$0xff]
    %v1897 = vld [vmem:[%s1885 + $0x58] sm:$0xff]
    %v1898 = vld [vmem:[%s1885 + $0x60] sm:$0xff]
    %v1899 = vld [vmem:[%s1885 + $0x68] sm:$0xff]
    %v1900 = vld [vmem:[%s1885 + $0x70] sm:$0xff]
    %v1901 = vld [vmem:[%s1885 + $0x78] sm:$0xff]
    %v1902 = vld [vmem:[%s1885 + $0x80] sm:$0xff]
    %v1903 = vld [vmem:[%s1885 + $0x88] sm:$0xff]
    %v1904 = vld [vmem:[%s1885 + $0x90] sm:$0xff]
    %v1905 = vld [vmem:[%s1885 + $0x98] sm:$0xff]
    %v1906 = vld [vmem:[%s1885 + $0xa0] sm:$0xff]
    %v1907 = vld [vmem:[%s1885 + $0xa8] sm:$0xff]
    %v1908 = vld [vmem:[%s1885 + $0xb0] sm:$0xff]
    %v1909 = vld [vmem:[%s1885 + $0xb8] sm:$0xff]
    %v1910 = vld [vmem:[%s1885 + $0xc0] sm:$0xff]
    %v1911 = vld [vmem:[%s1885 + $0xc8] sm:$0xff]
    %v1912 = vld [vmem:[%s1885 + $0xd0] sm:$0xff]
    %v1913 = vld [vmem:[%s1885 + $0xd8] sm:$0xff]
    %v1914 = vld [vmem:[%s1885 + $0xe0] sm:$0xff]
    %v1915 = vld [vmem:[%s1885 + $0xe8] sm:$0xff]
    %v1916 = vld [vmem:[%s1885 + $0xf0] sm:$0xff]
    %v1917 = vld [vmem:[%s1885 + $0xf8] sm:$0xff]
    %v1918 = vld [vmem:[%s1885 + $0x100] sm:$0xff]
    %v1919 = vld [vmem:[%s1885 + $0x108] sm:$0xff]
    %v1920 = vld [vmem:[%s1885 + $0x110] sm:$0xff]
    %v1921 = vld [vmem:[%s1885 + $0x118] sm:$0xff]
    %v1922 = vld [vmem:[%s1885 + $0x120] sm:$0xff]
    %v1923 = vld [vmem:[%s1885 + $0x128] sm:$0xff]
    %v1924 = vld [vmem:[%s1885 + $0x130] sm:$0xff]
    %v1925 = vld [vmem:[%s1885 + $0x138] sm:$0xff]
    %v1926 = vld [vmem:[%s1885 + $0x140] sm:$0xff]
    %v1927 = vld [vmem:[%s1885 + $0x148] sm:$0xff]
    %v1928 = vld [vmem:[%s1885 + $0x150] sm:$0xff]
    %v1929 = vld [vmem:[%s1885 + $0x158] sm:$0xff]
    %v1930 = vld [vmem:[%s1885 + $0x160] sm:$0xff]
    %v1931 = vld [vmem:[%s1885 + $0x168] sm:$0xff]
    %v1932 = vld [vmem:[%s1885 + $0x170] sm:$0xff]
    %v1933 = vld [vmem:[%s1885 + $0x178] sm:$0xff]
    %v1934 = vrot.slane %v860, 3
    %v1935 = vrot.slane %v861, 2
    %v1936 = vsel %vm863, %v1935, %v1934
    %v1937 = vpack.c.b16 %v1936, %v1936
    %v1987 = vunpack.c.l.b16 %v1886
    %v1988 = vunpack.c.h.b16 %v1886
    %v1989 = vunpack.c.l.b16 %v1887
    %v1990 = vunpack.c.h.b16 %v1887
    %v1991 = vunpack.c.l.b16 %v1888
    %v1992 = vunpack.c.h.b16 %v1888
    %v1993 = vunpack.c.l.b16 %v1889
    %v1994 = vunpack.c.h.b16 %v1889
    %v1995 = vunpack.c.l.b16 %v1890
    %v1996 = vunpack.c.h.b16 %v1890
    %v1997 = vunpack.c.l.b16 %v1891
    %v1998 = vunpack.c.h.b16 %v1891
    %v1999 = vunpack.c.l.b16 %v1892
    %v2000 = vunpack.c.h.b16 %v1892
    %v2001 = vunpack.c.l.b16 %v1893
    %v2002 = vunpack.c.h.b16 %v1893
    %v2003 = vunpack.c.l.b16 %v1894
    %v2004 = vunpack.c.h.b16 %v1894
    %v2005 = vunpack.c.l.b16 %v1895
    %v2006 = vunpack.c.h.b16 %v1895
    %v2007 = vunpack.c.l.b16 %v1896
    %v2008 = vunpack.c.h.b16 %v1896
    %v2009 = vunpack.c.l.b16 %v1897
    %v2010 = vunpack.c.h.b16 %v1897
    %v2011 = vunpack.c.l.b16 %v1898
    %v2012 = vunpack.c.h.b16 %v1898
    %v2013 = vunpack.c.l.b16 %v1899
    %v2014 = vunpack.c.h.b16 %v1899
    %v2015 = vunpack.c.l.b16 %v1900
    %v2016 = vunpack.c.h.b16 %v1900
    %v2017 = vunpack.c.l.b16 %v1901
    %v2018 = vunpack.c.h.b16 %v1901
    %v2019 = vunpack.c.l.b16 %v1902
    %v2020 = vunpack.c.h.b16 %v1902
    %v2021 = vunpack.c.l.b16 %v1903
    %v2022 = vunpack.c.h.b16 %v1903
    %v2023 = vunpack.c.l.b16 %v1904
    %v2024 = vunpack.c.h.b16 %v1904
    %v2025 = vunpack.c.l.b16 %v1905
    %v2026 = vunpack.c.h.b16 %v1905
    %v2027 = vunpack.c.l.b16 %v1906
    %v2028 = vunpack.c.h.b16 %v1906
    %v2029 = vunpack.c.l.b16 %v1907
    %v2030 = vunpack.c.h.b16 %v1907
    %v2031 = vunpack.c.l.b16 %v1908
    %v2032 = vunpack.c.h.b16 %v1908
    %v2033 = vunpack.c.l.b16 %v1909
    %v2034 = vunpack.c.h.b16 %v1909
    %v2035 = vunpack.c.l.b16 %v1910
    %v2036 = vunpack.c.h.b16 %v1910
    %v2037 = vunpack.c.l.b16 %v1911
    %v2038 = vunpack.c.h.b16 %v1911
    %v2039 = vunpack.c.l.b16 %v1912
    %v2040 = vunpack.c.h.b16 %v1912
    %v2041 = vunpack.c.l.b16 %v1913
    %v2042 = vunpack.c.h.b16 %v1913
    %v2043 = vunpack.c.l.b16 %v1914
    %v2044 = vunpack.c.h.b16 %v1914
    %v2045 = vunpack.c.l.b16 %v1915
    %v2046 = vunpack.c.h.b16 %v1915
    %v2047 = vunpack.c.l.b16 %v1916
    %v2048 = vunpack.c.h.b16 %v1916
    %v2049 = vunpack.c.l.b16 %v1917
    %v2050 = vunpack.c.h.b16 %v1917
    %v2051 = vunpack.c.l.b16 %v1918
    %v2052 = vunpack.c.h.b16 %v1918
    %v2053 = vunpack.c.l.b16 %v1919
    %v2054 = vunpack.c.h.b16 %v1919
    %v2055 = vunpack.c.l.b16 %v1920
    %v2056 = vunpack.c.h.b16 %v1920
    %v2057 = vunpack.c.l.b16 %v1921
    %v2058 = vunpack.c.h.b16 %v1921
    %v2059 = vunpack.c.l.b16 %v1922
    %v2060 = vunpack.c.h.b16 %v1922
    %v2061 = vunpack.c.l.b16 %v1923
    %v2062 = vunpack.c.h.b16 %v1923
    %v2063 = vunpack.c.l.b16 %v1924
    %v2064 = vunpack.c.h.b16 %v1924
    %v2065 = vunpack.c.l.b16 %v1925
    %v2066 = vunpack.c.h.b16 %v1925
    %v2067 = vunpack.c.l.b16 %v1926
    %v2068 = vunpack.c.h.b16 %v1926
    %v2069 = vunpack.c.l.b16 %v1927
    %v2070 = vunpack.c.h.b16 %v1927
    %v2071 = vunpack.c.l.b16 %v1928
    %v2072 = vunpack.c.h.b16 %v1928
    %v2073 = vunpack.c.l.b16 %v1929
    %v2074 = vunpack.c.h.b16 %v1929
    %v2075 = vunpack.c.l.b16 %v1930
    %v2076 = vunpack.c.h.b16 %v1930
    %v2077 = vunpack.c.l.b16 %v1931
    %v2078 = vunpack.c.h.b16 %v1931
    %v2079 = vunpack.c.l.b16 %v1932
    %v2080 = vunpack.c.h.b16 %v1932
    %v2081 = vunpack.c.l.b16 %v1933
    %v2082 = vunpack.c.h.b16 %v1933
    %v2083 = vpack.c.b16 %v1993, %v1987
    %v2084 = vpack.c.b16 %v1994, %v1988
    %v2085 = vpack.c.b16 %v1995, %v1989
    %v2086 = vpack.c.b16 %v1996, %v1990
    %v2087 = vpack.c.b16 %v1997, %v1991
    %v2088 = vpack.c.b16 %v1998, %v1992
    %v2089 = vpack.c.b16 %v2005, %v1999
    %v2090 = vpack.c.b16 %v2006, %v2000
    %v2091 = vpack.c.b16 %v2007, %v2001
    %v2092 = vpack.c.b16 %v2008, %v2002
    %v2093 = vpack.c.b16 %v2009, %v2003
    %v2094 = vpack.c.b16 %v2010, %v2004
    %v2095 = vpack.c.b16 %v2017, %v2011
    %v2096 = vpack.c.b16 %v2018, %v2012
    %v2097 = vpack.c.b16 %v2019, %v2013
    %v2098 = vpack.c.b16 %v2020, %v2014
    %v2099 = vpack.c.b16 %v2021, %v2015
    %v2100 = vpack.c.b16 %v2022, %v2016
    %v2101 = vpack.c.b16 %v2029, %v2023
    %v2102 = vpack.c.b16 %v2030, %v2024
    %v2103 = vpack.c.b16 %v2031, %v2025
    %v2104 = vpack.c.b16 %v2032, %v2026
    %v2105 = vpack.c.b16 %v2033, %v2027
    %v2106 = vpack.c.b16 %v2034, %v2028
    %v2107 = vpack.c.b16 %v2041, %v2035
    %v2108 = vpack.c.b16 %v2042, %v2036
    %v2109 = vpack.c.b16 %v2043, %v2037
    %v2110 = vpack.c.b16 %v2044, %v2038
    %v2111 = vpack.c.b16 %v2045, %v2039
    %v2112 = vpack.c.b16 %v2046, %v2040
    %v2113 = vpack.c.b16 %v2053, %v2047
    %v2114 = vpack.c.b16 %v2054, %v2048
    %v2115 = vpack.c.b16 %v2055, %v2049
    %v2116 = vpack.c.b16 %v2056, %v2050
    %v2117 = vpack.c.b16 %v2057, %v2051
    %v2118 = vpack.c.b16 %v2058, %v2052
    %v2119 = vpack.c.b16 %v2065, %v2059
    %v2120 = vpack.c.b16 %v2066, %v2060
    %v2121 = vpack.c.b16 %v2067, %v2061
    %v2122 = vpack.c.b16 %v2068, %v2062
    %v2123 = vpack.c.b16 %v2069, %v2063
    %v2124 = vpack.c.b16 %v2070, %v2064
    %v2125 = vpack.c.b16 %v2077, %v2071
    %v2126 = vpack.c.b16 %v2078, %v2072
    %v2127 = vpack.c.b16 %v2079, %v2073
    %v2128 = vpack.c.b16 %v2080, %v2074
    %v2129 = vpack.c.b16 %v2081, %v2075
    %v2130 = vpack.c.b16 %v2082, %v2076
    %2179 = vmatpush.bf16.msra.mxu0 %v2125
    %2180 = vmatpush.bf16.msra.mxu0 %v2119
    %2181 = vmatpush.bf16.msra.mxu0 %v2113
    %2182 = vmatpush.bf16.msra.mxu0 %v2107
    %2183 = vmatpush.bf16.msra.mxu0 %v2101
    %2184 = vmatpush.bf16.msra.mxu0 %v2095
    %2185 = vmatpush.bf16.msra.mxu0 %v2089
    %2186 = vmatpush.bf16.msra.mxu0 %v2083
    %2187 = vmatmul.bf16.gmra.mxu0 %v1937
    %v2188 = vpop.f32.mrf.mxu0
    %v2189 = vadd.f32 0.0, %v2188
    %v2190 = vpop.f32.mrf.mxu0
    %2191 = vdwg.mxu0
    %2192 = vmatpush.bf16.msra.mxu0 %v2126
    %2193 = vmatpush.bf16.msra.mxu0 %v2120
    %2194 = vmatpush.bf16.msra.mxu0 %v2114
    %2195 = vmatpush.bf16.msra.mxu0 %v2108
    %2196 = vmatpush.bf16.msra.mxu0 %v2102
    %2197 = vmatpush.bf16.msra.mxu0 %v2096
    %2198 = vmatpush.bf16.msra.mxu0 %v2090
    %2199 = vmatpush.bf16.msra.mxu0 %v2084
    %2200 = vmatmul.bf16.gmra.mxu0 %v1937
    %v2201 = vpop.f32.mrf.mxu0
    %v2202 = vadd.f32 0.0, %v2201
    %v2203 = vpop.f32.mrf.mxu0
    %2204 = vdwg.mxu0
    %2205 = vmatpush.bf16.msra.mxu0 %v2127
    %2206 = vmatpush.bf16.msra.mxu0 %v2121
    %2207 = vmatpush.bf16.msra.mxu0 %v2115
    %2208 = vmatpush.bf16.msra.mxu0 %v2109
    %2209 = vmatpush.bf16.msra.mxu0 %v2103
    %2210 = vmatpush.bf16.msra.mxu0 %v2097
    %2211 = vmatpush.bf16.msra.mxu0 %v2091
    %2212 = vmatpush.bf16.msra.mxu0 %v2085
    %2213 = vmatmul.bf16.gmra.mxu0 %v1937
    %v2214 = vpop.f32.mrf.mxu0
    %v2215 = vadd.f32 0.0, %v2214
    %v2216 = vpop.f32.mrf.mxu0
    %2217 = vdwg.mxu0
    %2218 = vmatpush.bf16.msra.mxu0 %v2128
    %2219 = vmatpush.bf16.msra.mxu0 %v2122
    %2220 = vmatpush.bf16.msra.mxu0 %v2116
    %2221 = vmatpush.bf16.msra.mxu0 %v2110
    %2222 = vmatpush.bf16.msra.mxu0 %v2104
    %2223 = vmatpush.bf16.msra.mxu0 %v2098
    %2224 = vmatpush.bf16.msra.mxu0 %v2092
    %2225 = vmatpush.bf16.msra.mxu0 %v2086
    %2226 = vmatmul.bf16.gmra.mxu0 %v1937
    %v2227 = vpop.f32.mrf.mxu0
    %v2228 = vadd.f32 0.0, %v2227
    %v2229 = vpop.f32.mrf.mxu0
    %2230 = vdwg.mxu0
    %2231 = vmatpush.bf16.msra.mxu0 %v2129
    %2232 = vmatpush.bf16.msra.mxu0 %v2123
    %2233 = vmatpush.bf16.msra.mxu0 %v2117
    %2234 = vmatpush.bf16.msra.mxu0 %v2111
    %2235 = vmatpush.bf16.msra.mxu0 %v2105
    %2236 = vmatpush.bf16.msra.mxu0 %v2099
    %2237 = vmatpush.bf16.msra.mxu0 %v2093
    %2238 = vmatpush.bf16.msra.mxu0 %v2087
    %2239 = vmatmul.bf16.gmra.mxu0 %v1937
    %v2240 = vpop.f32.mrf.mxu0
    %v2241 = vadd.f32 0.0, %v2240
    %v2242 = vpop.f32.mrf.mxu0
    %2243 = vdwg.mxu0
    %2244 = vmatpush.bf16.msra.mxu0 %v2130
    %2245 = vmatpush.bf16.msra.mxu0 %v2124
    %2246 = vmatpush.bf16.msra.mxu0 %v2118
    %2247 = vmatpush.bf16.msra.mxu0 %v2112
    %2248 = vmatpush.bf16.msra.mxu0 %v2106
    %2249 = vmatpush.bf16.msra.mxu0 %v2100
    %2250 = vmatpush.bf16.msra.mxu0 %v2094
    %2251 = vmatpush.bf16.msra.mxu0 %v2088
    %2252 = vmatmul.bf16.gmra.mxu0 %v1937
    %v2253 = vpop.f32.mrf.mxu0
    %v2254 = vadd.f32 0.0, %v2253
    %v2255 = vpop.f32.mrf.mxu0
    %2256 = vdwg.mxu0
    %v2257 = vadd.f32 %v1879, %v2189
    %v2258 = vadd.f32 %v1880, %v2202
    %v2259 = vadd.f32 %v1881, %v2215
    %v2260 = vadd.f32 %v1882, %v2228
    %v2261 = vadd.f32 %v1883, %v2241
    %v2262 = vadd.f32 %v1884, %v2254
    %s2263 = scalar_lea.vmem [#allocation2], 1536
    %v2264 = vld [vmem:[%s2263] sm:$0xff]
    %v2265 = vld [vmem:[%s2263 + $0x8] sm:$0xff]
    %v2266 = vld [vmem:[%s2263 + $0x10] sm:$0xff]
    %v2267 = vld [vmem:[%s2263 + $0x18] sm:$0xff]
    %v2268 = vld [vmem:[%s2263 + $0x20] sm:$0xff]
    %v2269 = vld [vmem:[%s2263 + $0x28] sm:$0xff]
    %v2270 = vld [vmem:[%s2263 + $0x30] sm:$0xff]
    %v2271 = vld [vmem:[%s2263 + $0x38] sm:$0xff]
    %v2272 = vld [vmem:[%s2263 + $0x40] sm:$0xff]
    %v2273 = vld [vmem:[%s2263 + $0x48] sm:$0xff]
    %v2274 = vld [vmem:[%s2263 + $0x50] sm:$0xff]
    %v2275 = vld [vmem:[%s2263 + $0x58] sm:$0xff]
    %v2276 = vld [vmem:[%s2263 + $0x60] sm:$0xff]
    %v2277 = vld [vmem:[%s2263 + $0x68] sm:$0xff]
    %v2278 = vld [vmem:[%s2263 + $0x70] sm:$0xff]
    %v2279 = vld [vmem:[%s2263 + $0x78] sm:$0xff]
    %v2280 = vld [vmem:[%s2263 + $0x80] sm:$0xff]
    %v2281 = vld [vmem:[%s2263 + $0x88] sm:$0xff]
    %v2282 = vld [vmem:[%s2263 + $0x90] sm:$0xff]
    %v2283 = vld [vmem:[%s2263 + $0x98] sm:$0xff]
    %v2284 = vld [vmem:[%s2263 + $0xa0] sm:$0xff]
    %v2285 = vld [vmem:[%s2263 + $0xa8] sm:$0xff]
    %v2286 = vld [vmem:[%s2263 + $0xb0] sm:$0xff]
    %v2287 = vld [vmem:[%s2263 + $0xb8] sm:$0xff]
    %v2288 = vld [vmem:[%s2263 + $0xc0] sm:$0xff]
    %v2289 = vld [vmem:[%s2263 + $0xc8] sm:$0xff]
    %v2290 = vld [vmem:[%s2263 + $0xd0] sm:$0xff]
    %v2291 = vld [vmem:[%s2263 + $0xd8] sm:$0xff]
    %v2292 = vld [vmem:[%s2263 + $0xe0] sm:$0xff]
    %v2293 = vld [vmem:[%s2263 + $0xe8] sm:$0xff]
    %v2294 = vld [vmem:[%s2263 + $0xf0] sm:$0xff]
    %v2295 = vld [vmem:[%s2263 + $0xf8] sm:$0xff]
    %v2296 = vld [vmem:[%s2263 + $0x100] sm:$0xff]
    %v2297 = vld [vmem:[%s2263 + $0x108] sm:$0xff]
    %v2298 = vld [vmem:[%s2263 + $0x110] sm:$0xff]
    %v2299 = vld [vmem:[%s2263 + $0x118] sm:$0xff]
    %v2300 = vld [vmem:[%s2263 + $0x120] sm:$0xff]
    %v2301 = vld [vmem:[%s2263 + $0x128] sm:$0xff]
    %v2302 = vld [vmem:[%s2263 + $0x130] sm:$0xff]
    %v2303 = vld [vmem:[%s2263 + $0x138] sm:$0xff]
    %v2304 = vld [vmem:[%s2263 + $0x140] sm:$0xff]
    %v2305 = vld [vmem:[%s2263 + $0x148] sm:$0xff]
    %v2306 = vld [vmem:[%s2263 + $0x150] sm:$0xff]
    %v2307 = vld [vmem:[%s2263 + $0x158] sm:$0xff]
    %v2308 = vld [vmem:[%s2263 + $0x160] sm:$0xff]
    %v2309 = vld [vmem:[%s2263 + $0x168] sm:$0xff]
    %v2310 = vld [vmem:[%s2263 + $0x170] sm:$0xff]
    %v2311 = vld [vmem:[%s2263 + $0x178] sm:$0xff]
    %v2312 = vrot.slane %v860, 4
    %v2313 = vrot.slane %v861, 3
    %v2314 = vsel %vm863, %v2313, %v2312
    %v2315 = vpack.c.b16 %v2314, %v2314
    %v2365 = vunpack.c.l.b16 %v2264
    %v2366 = vunpack.c.h.b16 %v2264
    %v2367 = vunpack.c.l.b16 %v2265
    %v2368 = vunpack.c.h.b16 %v2265
    %v2369 = vunpack.c.l.b16 %v2266
    %v2370 = vunpack.c.h.b16 %v2266
    %v2371 = vunpack.c.l.b16 %v2267
    %v2372 = vunpack.c.h.b16 %v2267
    %v2373 = vunpack.c.l.b16 %v2268
    %v2374 = vunpack.c.h.b16 %v2268
    %v2375 = vunpack.c.l.b16 %v2269
    %v2376 = vunpack.c.h.b16 %v2269
    %v2377 = vunpack.c.l.b16 %v2270
    %v2378 = vunpack.c.h.b16 %v2270
    %v2379 = vunpack.c.l.b16 %v2271
    %v2380 = vunpack.c.h.b16 %v2271
    %v2381 = vunpack.c.l.b16 %v2272
    %v2382 = vunpack.c.h.b16 %v2272
    %v2383 = vunpack.c.l.b16 %v2273
    %v2384 = vunpack.c.h.b16 %v2273
    %v2385 = vunpack.c.l.b16 %v2274
    %v2386 = vunpack.c.h.b16 %v2274
    %v2387 = vunpack.c.l.b16 %v2275
    %v2388 = vunpack.c.h.b16 %v2275
    %v2389 = vunpack.c.l.b16 %v2276
    %v2390 = vunpack.c.h.b16 %v2276
    %v2391 = vunpack.c.l.b16 %v2277
    %v2392 = vunpack.c.h.b16 %v2277
    %v2393 = vunpack.c.l.b16 %v2278
    %v2394 = vunpack.c.h.b16 %v2278
    %v2395 = vunpack.c.l.b16 %v2279
    %v2396 = vunpack.c.h.b16 %v2279
    %v2397 = vunpack.c.l.b16 %v2280
    %v2398 = vunpack.c.h.b16 %v2280
    %v2399 = vunpack.c.l.b16 %v2281
    %v2400 = vunpack.c.h.b16 %v2281
    %v2401 = vunpack.c.l.b16 %v2282
    %v2402 = vunpack.c.h.b16 %v2282
    %v2403 = vunpack.c.l.b16 %v2283
    %v2404 = vunpack.c.h.b16 %v2283
    %v2405 = vunpack.c.l.b16 %v2284
    %v2406 = vunpack.c.h.b16 %v2284
    %v2407 = vunpack.c.l.b16 %v2285
    %v2408 = vunpack.c.h.b16 %v2285
    %v2409 = vunpack.c.l.b16 %v2286
    %v2410 = vunpack.c.h.b16 %v2286
    %v2411 = vunpack.c.l.b16 %v2287
    %v2412 = vunpack.c.h.b16 %v2287
    %v2413 = vunpack.c.l.b16 %v2288
    %v2414 = vunpack.c.h.b16 %v2288
    %v2415 = vunpack.c.l.b16 %v2289
    %v2416 = vunpack.c.h.b16 %v2289
    %v2417 = vunpack.c.l.b16 %v2290
    %v2418 = vunpack.c.h.b16 %v2290
    %v2419 = vunpack.c.l.b16 %v2291
    %v2420 = vunpack.c.h.b16 %v2291
    %v2421 = vunpack.c.l.b16 %v2292
    %v2422 = vunpack.c.h.b16 %v2292
    %v2423 = vunpack.c.l.b16 %v2293
    %v2424 = vunpack.c.h.b16 %v2293
    %v2425 = vunpack.c.l.b16 %v2294
    %v2426 = vunpack.c.h.b16 %v2294
    %v2427 = vunpack.c.l.b16 %v2295
    %v2428 = vunpack.c.h.b16 %v2295
    %v2429 = vunpack.c.l.b16 %v2296
    %v2430 = vunpack.c.h.b16 %v2296
    %v2431 = vunpack.c.l.b16 %v2297
    %v2432 = vunpack.c.h.b16 %v2297
    %v2433 = vunpack.c.l.b16 %v2298
    %v2434 = vunpack.c.h.b16 %v2298
    %v2435 = vunpack.c.l.b16 %v2299
    %v2436 = vunpack.c.h.b16 %v2299
    %v2437 = vunpack.c.l.b16 %v2300
    %v2438 = vunpack.c.h.b16 %v2300
    %v2439 = vunpack.c.l.b16 %v2301
    %v2440 = vunpack.c.h.b16 %v2301
    %v2441 = vunpack.c.l.b16 %v2302
    %v2442 = vunpack.c.h.b16 %v2302
    %v2443 = vunpack.c.l.b16 %v2303
    %v2444 = vunpack.c.h.b16 %v2303
    %v2445 = vunpack.c.l.b16 %v2304
    %v2446 = vunpack.c.h.b16 %v2304
    %v2447 = vunpack.c.l.b16 %v2305
    %v2448 = vunpack.c.h.b16 %v2305
    %v2449 = vunpack.c.l.b16 %v2306
    %v2450 = vunpack.c.h.b16 %v2306
    %v2451 = vunpack.c.l.b16 %v2307
    %v2452 = vunpack.c.h.b16 %v2307
    %v2453 = vunpack.c.l.b16 %v2308
    %v2454 = vunpack.c.h.b16 %v2308
    %v2455 = vunpack.c.l.b16 %v2309
    %v2456 = vunpack.c.h.b16 %v2309
    %v2457 = vunpack.c.l.b16 %v2310
    %v2458 = vunpack.c.h.b16 %v2310
    %v2459 = vunpack.c.l.b16 %v2311
    %v2460 = vunpack.c.h.b16 %v2311
    %v2461 = vpack.c.b16 %v2371, %v2365
    %v2462 = vpack.c.b16 %v2372, %v2366
    %v2463 = vpack.c.b16 %v2373, %v2367
    %v2464 = vpack.c.b16 %v2374, %v2368
    %v2465 = vpack.c.b16 %v2375, %v2369
    %v2466 = vpack.c.b16 %v2376, %v2370
    %v2467 = vpack.c.b16 %v2383, %v2377
    %v2468 = vpack.c.b16 %v2384, %v2378
    %v2469 = vpack.c.b16 %v2385, %v2379
    %v2470 = vpack.c.b16 %v2386, %v2380
    %v2471 = vpack.c.b16 %v2387, %v2381
    %v2472 = vpack.c.b16 %v2388, %v2382
    %v2473 = vpack.c.b16 %v2395, %v2389
    %v2474 = vpack.c.b16 %v2396, %v2390
    %v2475 = vpack.c.b16 %v2397, %v2391
    %v2476 = vpack.c.b16 %v2398, %v2392
    %v2477 = vpack.c.b16 %v2399, %v2393
    %v2478 = vpack.c.b16 %v2400, %v2394
    %v2479 = vpack.c.b16 %v2407, %v2401
    %v2480 = vpack.c.b16 %v2408, %v2402
    %v2481 = vpack.c.b16 %v2409, %v2403
    %v2482 = vpack.c.b16 %v2410, %v2404
    %v2483 = vpack.c.b16 %v2411, %v2405
    %v2484 = vpack.c.b16 %v2412, %v2406
    %v2485 = vpack.c.b16 %v2419, %v2413
    %v2486 = vpack.c.b16 %v2420, %v2414
    %v2487 = vpack.c.b16 %v2421, %v2415
    %v2488 = vpack.c.b16 %v2422, %v2416
    %v2489 = vpack.c.b16 %v2423, %v2417
    %v2490 = vpack.c.b16 %v2424, %v2418
    %v2491 = vpack.c.b16 %v2431, %v2425
    %v2492 = vpack.c.b16 %v2432, %v2426
    %v2493 = vpack.c.b16 %v2433, %v2427
    %v2494 = vpack.c.b16 %v2434, %v2428
    %v2495 = vpack.c.b16 %v2435, %v2429
    %v2496 = vpack.c.b16 %v2436, %v2430
    %v2497 = vpack.c.b16 %v2443, %v2437
    %v2498 = vpack.c.b16 %v2444, %v2438
    %v2499 = vpack.c.b16 %v2445, %v2439
    %v2500 = vpack.c.b16 %v2446, %v2440
    %v2501 = vpack.c.b16 %v2447, %v2441
    %v2502 = vpack.c.b16 %v2448, %v2442
    %v2503 = vpack.c.b16 %v2455, %v2449
    %v2504 = vpack.c.b16 %v2456, %v2450
    %v2505 = vpack.c.b16 %v2457, %v2451
    %v2506 = vpack.c.b16 %v2458, %v2452
    %v2507 = vpack.c.b16 %v2459, %v2453
    %v2508 = vpack.c.b16 %v2460, %v2454
    %2557 = vmatpush.bf16.msra.mxu0 %v2503
    %2558 = vmatpush.bf16.msra.mxu0 %v2497
    %2559 = vmatpush.bf16.msra.mxu0 %v2491
    %2560 = vmatpush.bf16.msra.mxu0 %v2485
    %2561 = vmatpush.bf16.msra.mxu0 %v2479
    %2562 = vmatpush.bf16.msra.mxu0 %v2473
    %2563 = vmatpush.bf16.msra.mxu0 %v2467
    %2564 = vmatpush.bf16.msra.mxu0 %v2461
    %2565 = vmatmul.bf16.gmra.mxu0 %v2315
    %v2566 = vpop.f32.mrf.mxu0
    %v2567 = vadd.f32 0.0, %v2566
    %v2568 = vpop.f32.mrf.mxu0
    %2569 = vdwg.mxu0
    %2570 = vmatpush.bf16.msra.mxu0 %v2504
    %2571 = vmatpush.bf16.msra.mxu0 %v2498
    %2572 = vmatpush.bf16.msra.mxu0 %v2492
    %2573 = vmatpush.bf16.msra.mxu0 %v2486
    %2574 = vmatpush.bf16.msra.mxu0 %v2480
    %2575 = vmatpush.bf16.msra.mxu0 %v2474
    %2576 = vmatpush.bf16.msra.mxu0 %v2468
    %2577 = vmatpush.bf16.msra.mxu0 %v2462
    %2578 = vmatmul.bf16.gmra.mxu0 %v2315
    %v2579 = vpop.f32.mrf.mxu0
    %v2580 = vadd.f32 0.0, %v2579
    %v2581 = vpop.f32.mrf.mxu0
    %2582 = vdwg.mxu0
    %2583 = vmatpush.bf16.msra.mxu0 %v2505
    %2584 = vmatpush.bf16.msra.mxu0 %v2499
    %2585 = vmatpush.bf16.msra.mxu0 %v2493
    %2586 = vmatpush.bf16.msra.mxu0 %v2487
    %2587 = vmatpush.bf16.msra.mxu0 %v2481
    %2588 = vmatpush.bf16.msra.mxu0 %v2475
    %2589 = vmatpush.bf16.msra.mxu0 %v2469
    %2590 = vmatpush.bf16.msra.mxu0 %v2463
    %2591 = vmatmul.bf16.gmra.mxu0 %v2315
    %v2592 = vpop.f32.mrf.mxu0
    %v2593 = vadd.f32 0.0, %v2592
    %v2594 = vpop.f32.mrf.mxu0
    %2595 = vdwg.mxu0
    %2596 = vmatpush.bf16.msra.mxu0 %v2506
    %2597 = vmatpush.bf16.msra.mxu0 %v2500
    %2598 = vmatpush.bf16.msra.mxu0 %v2494
    %2599 = vmatpush.bf16.msra.mxu0 %v2488
    %2600 = vmatpush.bf16.msra.mxu0 %v2482
    %2601 = vmatpush.bf16.msra.mxu0 %v2476
    %2602 = vmatpush.bf16.msra.mxu0 %v2470
    %2603 = vmatpush.bf16.msra.mxu0 %v2464
    %2604 = vmatmul.bf16.gmra.mxu0 %v2315
    %v2605 = vpop.f32.mrf.mxu0
    %v2606 = vadd.f32 0.0, %v2605
    %v2607 = vpop.f32.mrf.mxu0
    %2608 = vdwg.mxu0
    %2609 = vmatpush.bf16.msra.mxu0 %v2507
    %2610 = vmatpush.bf16.msra.mxu0 %v2501
    %2611 = vmatpush.bf16.msra.mxu0 %v2495
    %2612 = vmatpush.bf16.msra.mxu0 %v2489
    %2613 = vmatpush.bf16.msra.mxu0 %v2483
    %2614 = vmatpush.bf16.msra.mxu0 %v2477
    %2615 = vmatpush.bf16.msra.mxu0 %v2471
    %2616 = vmatpush.bf16.msra.mxu0 %v2465
    %2617 = vmatmul.bf16.gmra.mxu0 %v2315
    %v2618 = vpop.f32.mrf.mxu0
    %v2619 = vadd.f32 0.0, %v2618
    %v2620 = vpop.f32.mrf.mxu0
    %2621 = vdwg.mxu0
    %2622 = vmatpush.bf16.msra.mxu0 %v2508
    %2623 = vmatpush.bf16.msra.mxu0 %v2502
    %2624 = vmatpush.bf16.msra.mxu0 %v2496
    %2625 = vmatpush.bf16.msra.mxu0 %v2490
    %2626 = vmatpush.bf16.msra.mxu0 %v2484
    %2627 = vmatpush.bf16.msra.mxu0 %v2478
    %2628 = vmatpush.bf16.msra.mxu0 %v2472
    %2629 = vmatpush.bf16.msra.mxu0 %v2466
    %2630 = vmatmul.bf16.gmra.mxu0 %v2315
    %v2631 = vpop.f32.mrf.mxu0
    %v2632 = vadd.f32 0.0, %v2631
    %v2633 = vpop.f32.mrf.mxu0
    %2634 = vdwg.mxu0
    %v2635 = vadd.f32 %v2257, %v2567
    %v2636 = vadd.f32 %v2258, %v2580
    %v2637 = vadd.f32 %v2259, %v2593
    %v2638 = vadd.f32 %v2260, %v2606
    %v2639 = vadd.f32 %v2261, %v2619
    %v2640 = vadd.f32 %v2262, %v2632
    %s2641 = scalar_lea.vmem [#allocation2], 1920
    %v2642 = vld [vmem:[%s2641] sm:$0xff]
    %v2643 = vld [vmem:[%s2641 + $0x8] sm:$0xff]
    %v2644 = vld [vmem:[%s2641 + $0x10] sm:$0xff]
    %v2645 = vld [vmem:[%s2641 + $0x18] sm:$0xff]
    %v2646 = vld [vmem:[%s2641 + $0x20] sm:$0xff]
    %v2647 = vld [vmem:[%s2641 + $0x28] sm:$0xff]
    %v2648 = vld [vmem:[%s2641 + $0x30] sm:$0xff]
    %v2649 = vld [vmem:[%s2641 + $0x38] sm:$0xff]
    %v2650 = vld [vmem:[%s2641 + $0x40] sm:$0xff]
    %v2651 = vld [vmem:[%s2641 + $0x48] sm:$0xff]
    %v2652 = vld [vmem:[%s2641 + $0x50] sm:$0xff]
    %v2653 = vld [vmem:[%s2641 + $0x58] sm:$0xff]
    %v2654 = vld [vmem:[%s2641 + $0x60] sm:$0xff]
    %v2655 = vld [vmem:[%s2641 + $0x68] sm:$0xff]
    %v2656 = vld [vmem:[%s2641 + $0x70] sm:$0xff]
    %v2657 = vld [vmem:[%s2641 + $0x78] sm:$0xff]
    %v2658 = vld [vmem:[%s2641 + $0x80] sm:$0xff]
    %v2659 = vld [vmem:[%s2641 + $0x88] sm:$0xff]
    %v2660 = vld [vmem:[%s2641 + $0x90] sm:$0xff]
    %v2661 = vld [vmem:[%s2641 + $0x98] sm:$0xff]
    %v2662 = vld [vmem:[%s2641 + $0xa0] sm:$0xff]
    %v2663 = vld [vmem:[%s2641 + $0xa8] sm:$0xff]
    %v2664 = vld [vmem:[%s2641 + $0xb0] sm:$0xff]
    %v2665 = vld [vmem:[%s2641 + $0xb8] sm:$0xff]
    %v2666 = vld [vmem:[%s2641 + $0xc0] sm:$0xff]
    %v2667 = vld [vmem:[%s2641 + $0xc8] sm:$0xff]
    %v2668 = vld [vmem:[%s2641 + $0xd0] sm:$0xff]
    %v2669 = vld [vmem:[%s2641 + $0xd8] sm:$0xff]
    %v2670 = vld [vmem:[%s2641 + $0xe0] sm:$0xff]
    %v2671 = vld [vmem:[%s2641 + $0xe8] sm:$0xff]
    %v2672 = vld [vmem:[%s2641 + $0xf0] sm:$0xff]
    %v2673 = vld [vmem:[%s2641 + $0xf8] sm:$0xff]
    %v2674 = vld [vmem:[%s2641 + $0x100] sm:$0xff]
    %v2675 = vld [vmem:[%s2641 + $0x108] sm:$0xff]
    %v2676 = vld [vmem:[%s2641 + $0x110] sm:$0xff]
    %v2677 = vld [vmem:[%s2641 + $0x118] sm:$0xff]
    %v2678 = vld [vmem:[%s2641 + $0x120] sm:$0xff]
    %v2679 = vld [vmem:[%s2641 + $0x128] sm:$0xff]
    %v2680 = vld [vmem:[%s2641 + $0x130] sm:$0xff]
    %v2681 = vld [vmem:[%s2641 + $0x138] sm:$0xff]
    %v2682 = vld [vmem:[%s2641 + $0x140] sm:$0xff]
    %v2683 = vld [vmem:[%s2641 + $0x148] sm:$0xff]
    %v2684 = vld [vmem:[%s2641 + $0x150] sm:$0xff]
    %v2685 = vld [vmem:[%s2641 + $0x158] sm:$0xff]
    %v2686 = vld [vmem:[%s2641 + $0x160] sm:$0xff]
    %v2687 = vld [vmem:[%s2641 + $0x168] sm:$0xff]
    %v2688 = vld [vmem:[%s2641 + $0x170] sm:$0xff]
    %v2689 = vld [vmem:[%s2641 + $0x178] sm:$0xff]
    %v2690 = vrot.slane %v860, 5
    %v2691 = vrot.slane %v861, 4
    %v2692 = vsel %vm863, %v2691, %v2690
    %v2693 = vpack.c.b16 %v2692, %v2692
    %v2743 = vunpack.c.l.b16 %v2642
    %v2744 = vunpack.c.h.b16 %v2642
    %v2745 = vunpack.c.l.b16 %v2643
    %v2746 = vunpack.c.h.b16 %v2643
    %v2747 = vunpack.c.l.b16 %v2644
    %v2748 = vunpack.c.h.b16 %v2644
    %v2749 = vunpack.c.l.b16 %v2645
    %v2750 = vunpack.c.h.b16 %v2645
    %v2751 = vunpack.c.l.b16 %v2646
    %v2752 = vunpack.c.h.b16 %v2646
    %v2753 = vunpack.c.l.b16 %v2647
    %v2754 = vunpack.c.h.b16 %v2647
    %v2755 = vunpack.c.l.b16 %v2648
    %v2756 = vunpack.c.h.b16 %v2648
    %v2757 = vunpack.c.l.b16 %v2649
    %v2758 = vunpack.c.h.b16 %v2649
    %v2759 = vunpack.c.l.b16 %v2650
    %v2760 = vunpack.c.h.b16 %v2650
    %v2761 = vunpack.c.l.b16 %v2651
    %v2762 = vunpack.c.h.b16 %v2651
    %v2763 = vunpack.c.l.b16 %v2652
    %v2764 = vunpack.c.h.b16 %v2652
    %v2765 = vunpack.c.l.b16 %v2653
    %v2766 = vunpack.c.h.b16 %v2653
    %v2767 = vunpack.c.l.b16 %v2654
    %v2768 = vunpack.c.h.b16 %v2654
    %v2769 = vunpack.c.l.b16 %v2655
    %v2770 = vunpack.c.h.b16 %v2655
    %v2771 = vunpack.c.l.b16 %v2656
    %v2772 = vunpack.c.h.b16 %v2656
    %v2773 = vunpack.c.l.b16 %v2657
    %v2774 = vunpack.c.h.b16 %v2657
    %v2775 = vunpack.c.l.b16 %v2658
    %v2776 = vunpack.c.h.b16 %v2658
    %v2777 = vunpack.c.l.b16 %v2659
    %v2778 = vunpack.c.h.b16 %v2659
    %v2779 = vunpack.c.l.b16 %v2660
    %v2780 = vunpack.c.h.b16 %v2660
    %v2781 = vunpack.c.l.b16 %v2661
    %v2782 = vunpack.c.h.b16 %v2661
    %v2783 = vunpack.c.l.b16 %v2662
    %v2784 = vunpack.c.h.b16 %v2662
    %v2785 = vunpack.c.l.b16 %v2663
    %v2786 = vunpack.c.h.b16 %v2663
    %v2787 = vunpack.c.l.b16 %v2664
    %v2788 = vunpack.c.h.b16 %v2664
    %v2789 = vunpack.c.l.b16 %v2665
    %v2790 = vunpack.c.h.b16 %v2665
    %v2791 = vunpack.c.l.b16 %v2666
    %v2792 = vunpack.c.h.b16 %v2666
    %v2793 = vunpack.c.l.b16 %v2667
    %v2794 = vunpack.c.h.b16 %v2667
    %v2795 = vunpack.c.l.b16 %v2668
    %v2796 = vunpack.c.h.b16 %v2668
    %v2797 = vunpack.c.l.b16 %v2669
    %v2798 = vunpack.c.h.b16 %v2669
    %v2799 = vunpack.c.l.b16 %v2670
    %v2800 = vunpack.c.h.b16 %v2670
    %v2801 = vunpack.c.l.b16 %v2671
    %v2802 = vunpack.c.h.b16 %v2671
    %v2803 = vunpack.c.l.b16 %v2672
    %v2804 = vunpack.c.h.b16 %v2672
    %v2805 = vunpack.c.l.b16 %v2673
    %v2806 = vunpack.c.h.b16 %v2673
    %v2807 = vunpack.c.l.b16 %v2674
    %v2808 = vunpack.c.h.b16 %v2674
    %v2809 = vunpack.c.l.b16 %v2675
    %v2810 = vunpack.c.h.b16 %v2675
    %v2811 = vunpack.c.l.b16 %v2676
    %v2812 = vunpack.c.h.b16 %v2676
    %v2813 = vunpack.c.l.b16 %v2677
    %v2814 = vunpack.c.h.b16 %v2677
    %v2815 = vunpack.c.l.b16 %v2678
    %v2816 = vunpack.c.h.b16 %v2678
    %v2817 = vunpack.c.l.b16 %v2679
    %v2818 = vunpack.c.h.b16 %v2679
    %v2819 = vunpack.c.l.b16 %v2680
    %v2820 = vunpack.c.h.b16 %v2680
    %v2821 = vunpack.c.l.b16 %v2681
    %v2822 = vunpack.c.h.b16 %v2681
    %v2823 = vunpack.c.l.b16 %v2682
    %v2824 = vunpack.c.h.b16 %v2682
    %v2825 = vunpack.c.l.b16 %v2683
    %v2826 = vunpack.c.h.b16 %v2683
    %v2827 = vunpack.c.l.b16 %v2684
    %v2828 = vunpack.c.h.b16 %v2684
    %v2829 = vunpack.c.l.b16 %v2685
    %v2830 = vunpack.c.h.b16 %v2685
    %v2831 = vunpack.c.l.b16 %v2686
    %v2832 = vunpack.c.h.b16 %v2686
    %v2833 = vunpack.c.l.b16 %v2687
    %v2834 = vunpack.c.h.b16 %v2687
    %v2835 = vunpack.c.l.b16 %v2688
    %v2836 = vunpack.c.h.b16 %v2688
    %v2837 = vunpack.c.l.b16 %v2689
    %v2838 = vunpack.c.h.b16 %v2689
    %v2839 = vpack.c.b16 %v2749, %v2743
    %v2840 = vpack.c.b16 %v2750, %v2744
    %v2841 = vpack.c.b16 %v2751, %v2745
    %v2842 = vpack.c.b16 %v2752, %v2746
    %v2843 = vpack.c.b16 %v2753, %v2747
    %v2844 = vpack.c.b16 %v2754, %v2748
    %v2845 = vpack.c.b16 %v2761, %v2755
    %v2846 = vpack.c.b16 %v2762, %v2756
    %v2847 = vpack.c.b16 %v2763, %v2757
    %v2848 = vpack.c.b16 %v2764, %v2758
    %v2849 = vpack.c.b16 %v2765, %v2759
    %v2850 = vpack.c.b16 %v2766, %v2760
    %v2851 = vpack.c.b16 %v2773, %v2767
    %v2852 = vpack.c.b16 %v2774, %v2768
    %v2853 = vpack.c.b16 %v2775, %v2769
    %v2854 = vpack.c.b16 %v2776, %v2770
    %v2855 = vpack.c.b16 %v2777, %v2771
    %v2856 = vpack.c.b16 %v2778, %v2772
    %v2857 = vpack.c.b16 %v2785, %v2779
    %v2858 = vpack.c.b16 %v2786, %v2780
    %v2859 = vpack.c.b16 %v2787, %v2781
    %v2860 = vpack.c.b16 %v2788, %v2782
    %v2861 = vpack.c.b16 %v2789, %v2783
    %v2862 = vpack.c.b16 %v2790, %v2784
    %v2863 = vpack.c.b16 %v2797, %v2791
    %v2864 = vpack.c.b16 %v2798, %v2792
    %v2865 = vpack.c.b16 %v2799, %v2793
    %v2866 = vpack.c.b16 %v2800, %v2794
    %v2867 = vpack.c.b16 %v2801, %v2795
    %v2868 = vpack.c.b16 %v2802, %v2796
    %v2869 = vpack.c.b16 %v2809, %v2803
    %v2870 = vpack.c.b16 %v2810, %v2804
    %v2871 = vpack.c.b16 %v2811, %v2805
    %v2872 = vpack.c.b16 %v2812, %v2806
    %v2873 = vpack.c.b16 %v2813, %v2807
    %v2874 = vpack.c.b16 %v2814, %v2808
    %v2875 = vpack.c.b16 %v2821, %v2815
    %v2876 = vpack.c.b16 %v2822, %v2816
    %v2877 = vpack.c.b16 %v2823, %v2817
    %v2878 = vpack.c.b16 %v2824, %v2818
    %v2879 = vpack.c.b16 %v2825, %v2819
    %v2880 = vpack.c.b16 %v2826, %v2820
    %v2881 = vpack.c.b16 %v2833, %v2827
    %v2882 = vpack.c.b16 %v2834, %v2828
    %v2883 = vpack.c.b16 %v2835, %v2829
    %v2884 = vpack.c.b16 %v2836, %v2830
    %v2885 = vpack.c.b16 %v2837, %v2831
    %v2886 = vpack.c.b16 %v2838, %v2832
    %2935 = vmatpush.bf16.msra.mxu0 %v2881
    %2936 = vmatpush.bf16.msra.mxu0 %v2875
    %2937 = vmatpush.bf16.msra.mxu0 %v2869
    %2938 = vmatpush.bf16.msra.mxu0 %v2863
    %2939 = vmatpush.bf16.msra.mxu0 %v2857
    %2940 = vmatpush.bf16.msra.mxu0 %v2851
    %2941 = vmatpush.bf16.msra.mxu0 %v2845
    %2942 = vmatpush.bf16.msra.mxu0 %v2839
    %2943 = vmatmul.bf16.gmra.mxu0 %v2693
    %v2944 = vpop.f32.mrf.mxu0
    %v2945 = vadd.f32 0.0, %v2944
    %v2946 = vpop.f32.mrf.mxu0
    %2947 = vdwg.mxu0
    %2948 = vmatpush.bf16.msra.mxu0 %v2882
    %2949 = vmatpush.bf16.msra.mxu0 %v2876
    %2950 = vmatpush.bf16.msra.mxu0 %v2870
    %2951 = vmatpush.bf16.msra.mxu0 %v2864
    %2952 = vmatpush.bf16.msra.mxu0 %v2858
    %2953 = vmatpush.bf16.msra.mxu0 %v2852
    %2954 = vmatpush.bf16.msra.mxu0 %v2846
    %2955 = vmatpush.bf16.msra.mxu0 %v2840
    %2956 = vmatmul.bf16.gmra.mxu0 %v2693
    %v2957 = vpop.f32.mrf.mxu0
    %v2958 = vadd.f32 0.0, %v2957
    %v2959 = vpop.f32.mrf.mxu0
    %2960 = vdwg.mxu0
    %2961 = vmatpush.bf16.msra.mxu0 %v2883
    %2962 = vmatpush.bf16.msra.mxu0 %v2877
    %2963 = vmatpush.bf16.msra.mxu0 %v2871
    %2964 = vmatpush.bf16.msra.mxu0 %v2865
    %2965 = vmatpush.bf16.msra.mxu0 %v2859
    %2966 = vmatpush.bf16.msra.mxu0 %v2853
    %2967 = vmatpush.bf16.msra.mxu0 %v2847
    %2968 = vmatpush.bf16.msra.mxu0 %v2841
    %2969 = vmatmul.bf16.gmra.mxu0 %v2693
    %v2970 = vpop.f32.mrf.mxu0
    %v2971 = vadd.f32 0.0, %v2970
    %v2972 = vpop.f32.mrf.mxu0
    %2973 = vdwg.mxu0
    %2974 = vmatpush.bf16.msra.mxu0 %v2884
    %2975 = vmatpush.bf16.msra.mxu0 %v2878
    %2976 = vmatpush.bf16.msra.mxu0 %v2872
    %2977 = vmatpush.bf16.msra.mxu0 %v2866
    %2978 = vmatpush.bf16.msra.mxu0 %v2860
    %2979 = vmatpush.bf16.msra.mxu0 %v2854
    %2980 = vmatpush.bf16.msra.mxu0 %v2848
    %2981 = vmatpush.bf16.msra.mxu0 %v2842
    %2982 = vmatmul.bf16.gmra.mxu0 %v2693
    %v2983 = vpop.f32.mrf.mxu0
    %v2984 = vadd.f32 0.0, %v2983
    %v2985 = vpop.f32.mrf.mxu0
    %2986 = vdwg.mxu0
    %2987 = vmatpush.bf16.msra.mxu0 %v2885
    %2988 = vmatpush.bf16.msra.mxu0 %v2879
    %2989 = vmatpush.bf16.msra.mxu0 %v2873
    %2990 = vmatpush.bf16.msra.mxu0 %v2867
    %2991 = vmatpush.bf16.msra.mxu0 %v2861
    %2992 = vmatpush.bf16.msra.mxu0 %v2855
    %2993 = vmatpush.bf16.msra.mxu0 %v2849
    %2994 = vmatpush.bf16.msra.mxu0 %v2843
    %2995 = vmatmul.bf16.gmra.mxu0 %v2693
    %v2996 = vpop.f32.mrf.mxu0
    %v2997 = vadd.f32 0.0, %v2996
    %v2998 = vpop.f32.mrf.mxu0
    %2999 = vdwg.mxu0
    %3000 = vmatpush.bf16.msra.mxu0 %v2886
    %3001 = vmatpush.bf16.msra.mxu0 %v2880
    %3002 = vmatpush.bf16.msra.mxu0 %v2874
    %3003 = vmatpush.bf16.msra.mxu0 %v2868
    %3004 = vmatpush.bf16.msra.mxu0 %v2862
    %3005 = vmatpush.bf16.msra.mxu0 %v2856
    %3006 = vmatpush.bf16.msra.mxu0 %v2850
    %3007 = vmatpush.bf16.msra.mxu0 %v2844
    %3008 = vmatmul.bf16.gmra.mxu0 %v2693
    %v3009 = vpop.f32.mrf.mxu0
    %v3010 = vadd.f32 0.0, %v3009
    %v3011 = vpop.f32.mrf.mxu0
    %3012 = vdwg.mxu0
    %v3013 = vadd.f32 %v2635, %v2945
    %v3014 = vadd.f32 %v2636, %v2958
    %v3015 = vadd.f32 %v2637, %v2971
    %v3016 = vadd.f32 %v2638, %v2984
    %v3017 = vadd.f32 %v2639, %v2997
    %v3018 = vadd.f32 %v2640, %v3010
    %s3019 = scalar_lea.vmem [#allocation2], 2304
    %v3020 = vld [vmem:[%s3019] sm:$0xff]
    %v3021 = vld [vmem:[%s3019 + $0x8] sm:$0xff]
    %v3022 = vld [vmem:[%s3019 + $0x10] sm:$0xff]
    %v3023 = vld [vmem:[%s3019 + $0x18] sm:$0xff]
    %v3024 = vld [vmem:[%s3019 + $0x20] sm:$0xff]
    %v3025 = vld [vmem:[%s3019 + $0x28] sm:$0xff]
    %v3026 = vld [vmem:[%s3019 + $0x30] sm:$0xff]
    %v3027 = vld [vmem:[%s3019 + $0x38] sm:$0xff]
    %v3028 = vld [vmem:[%s3019 + $0x40] sm:$0xff]
    %v3029 = vld [vmem:[%s3019 + $0x48] sm:$0xff]
    %v3030 = vld [vmem:[%s3019 + $0x50] sm:$0xff]
    %v3031 = vld [vmem:[%s3019 + $0x58] sm:$0xff]
    %v3032 = vld [vmem:[%s3019 + $0x60] sm:$0xff]
    %v3033 = vld [vmem:[%s3019 + $0x68] sm:$0xff]
    %v3034 = vld [vmem:[%s3019 + $0x70] sm:$0xff]
    %v3035 = vld [vmem:[%s3019 + $0x78] sm:$0xff]
    %v3036 = vld [vmem:[%s3019 + $0x80] sm:$0xff]
    %v3037 = vld [vmem:[%s3019 + $0x88] sm:$0xff]
    %v3038 = vld [vmem:[%s3019 + $0x90] sm:$0xff]
    %v3039 = vld [vmem:[%s3019 + $0x98] sm:$0xff]
    %v3040 = vld [vmem:[%s3019 + $0xa0] sm:$0xff]
    %v3041 = vld [vmem:[%s3019 + $0xa8] sm:$0xff]
    %v3042 = vld [vmem:[%s3019 + $0xb0] sm:$0xff]
    %v3043 = vld [vmem:[%s3019 + $0xb8] sm:$0xff]
    %v3044 = vld [vmem:[%s3019 + $0xc0] sm:$0xff]
    %v3045 = vld [vmem:[%s3019 + $0xc8] sm:$0xff]
    %v3046 = vld [vmem:[%s3019 + $0xd0] sm:$0xff]
    %v3047 = vld [vmem:[%s3019 + $0xd8] sm:$0xff]
    %v3048 = vld [vmem:[%s3019 + $0xe0] sm:$0xff]
    %v3049 = vld [vmem:[%s3019 + $0xe8] sm:$0xff]
    %v3050 = vld [vmem:[%s3019 + $0xf0] sm:$0xff]
    %v3051 = vld [vmem:[%s3019 + $0xf8] sm:$0xff]
    %v3052 = vld [vmem:[%s3019 + $0x100] sm:$0xff]
    %v3053 = vld [vmem:[%s3019 + $0x108] sm:$0xff]
    %v3054 = vld [vmem:[%s3019 + $0x110] sm:$0xff]
    %v3055 = vld [vmem:[%s3019 + $0x118] sm:$0xff]
    %v3056 = vld [vmem:[%s3019 + $0x120] sm:$0xff]
    %v3057 = vld [vmem:[%s3019 + $0x128] sm:$0xff]
    %v3058 = vld [vmem:[%s3019 + $0x130] sm:$0xff]
    %v3059 = vld [vmem:[%s3019 + $0x138] sm:$0xff]
    %v3060 = vld [vmem:[%s3019 + $0x140] sm:$0xff]
    %v3061 = vld [vmem:[%s3019 + $0x148] sm:$0xff]
    %v3062 = vld [vmem:[%s3019 + $0x150] sm:$0xff]
    %v3063 = vld [vmem:[%s3019 + $0x158] sm:$0xff]
    %v3064 = vld [vmem:[%s3019 + $0x160] sm:$0xff]
    %v3065 = vld [vmem:[%s3019 + $0x168] sm:$0xff]
    %v3066 = vld [vmem:[%s3019 + $0x170] sm:$0xff]
    %v3067 = vld [vmem:[%s3019 + $0x178] sm:$0xff]
    %v3068 = vrot.slane %v860, 6
    %v3069 = vrot.slane %v861, 5
    %v3070 = vsel %vm863, %v3069, %v3068
    %v3071 = vpack.c.b16 %v3070, %v3070
    %v3121 = vunpack.c.l.b16 %v3020
    %v3122 = vunpack.c.h.b16 %v3020
    %v3123 = vunpack.c.l.b16 %v3021
    %v3124 = vunpack.c.h.b16 %v3021
    %v3125 = vunpack.c.l.b16 %v3022
    %v3126 = vunpack.c.h.b16 %v3022
    %v3127 = vunpack.c.l.b16 %v3023
    %v3128 = vunpack.c.h.b16 %v3023
    %v3129 = vunpack.c.l.b16 %v3024
    %v3130 = vunpack.c.h.b16 %v3024
    %v3131 = vunpack.c.l.b16 %v3025
    %v3132 = vunpack.c.h.b16 %v3025
    %v3133 = vunpack.c.l.b16 %v3026
    %v3134 = vunpack.c.h.b16 %v3026
    %v3135 = vunpack.c.l.b16 %v3027
    %v3136 = vunpack.c.h.b16 %v3027
    %v3137 = vunpack.c.l.b16 %v3028
    %v3138 = vunpack.c.h.b16 %v3028
    %v3139 = vunpack.c.l.b16 %v3029
    %v3140 = vunpack.c.h.b16 %v3029
    %v3141 = vunpack.c.l.b16 %v3030
    %v3142 = vunpack.c.h.b16 %v3030
    %v3143 = vunpack.c.l.b16 %v3031
    %v3144 = vunpack.c.h.b16 %v3031
    %v3145 = vunpack.c.l.b16 %v3032
    %v3146 = vunpack.c.h.b16 %v3032
    %v3147 = vunpack.c.l.b16 %v3033
    %v3148 = vunpack.c.h.b16 %v3033
    %v3149 = vunpack.c.l.b16 %v3034
    %v3150 = vunpack.c.h.b16 %v3034
    %v3151 = vunpack.c.l.b16 %v3035
    %v3152 = vunpack.c.h.b16 %v3035
    %v3153 = vunpack.c.l.b16 %v3036
    %v3154 = vunpack.c.h.b16 %v3036
    %v3155 = vunpack.c.l.b16 %v3037
    %v3156 = vunpack.c.h.b16 %v3037
    %v3157 = vunpack.c.l.b16 %v3038
    %v3158 = vunpack.c.h.b16 %v3038
    %v3159 = vunpack.c.l.b16 %v3039
    %v3160 = vunpack.c.h.b16 %v3039
    %v3161 = vunpack.c.l.b16 %v3040
    %v3162 = vunpack.c.h.b16 %v3040
    %v3163 = vunpack.c.l.b16 %v3041
    %v3164 = vunpack.c.h.b16 %v3041
    %v3165 = vunpack.c.l.b16 %v3042
    %v3166 = vunpack.c.h.b16 %v3042
    %v3167 = vunpack.c.l.b16 %v3043
    %v3168 = vunpack.c.h.b16 %v3043
    %v3169 = vunpack.c.l.b16 %v3044
    %v3170 = vunpack.c.h.b16 %v3044
    %v3171 = vunpack.c.l.b16 %v3045
    %v3172 = vunpack.c.h.b16 %v3045
    %v3173 = vunpack.c.l.b16 %v3046
    %v3174 = vunpack.c.h.b16 %v3046
    %v3175 = vunpack.c.l.b16 %v3047
    %v3176 = vunpack.c.h.b16 %v3047
    %v3177 = vunpack.c.l.b16 %v3048
    %v3178 = vunpack.c.h.b16 %v3048
    %v3179 = vunpack.c.l.b16 %v3049
    %v3180 = vunpack.c.h.b16 %v3049
    %v3181 = vunpack.c.l.b16 %v3050
    %v3182 = vunpack.c.h.b16 %v3050
    %v3183 = vunpack.c.l.b16 %v3051
    %v3184 = vunpack.c.h.b16 %v3051
    %v3185 = vunpack.c.l.b16 %v3052
    %v3186 = vunpack.c.h.b16 %v3052
    %v3187 = vunpack.c.l.b16 %v3053
    %v3188 = vunpack.c.h.b16 %v3053
    %v3189 = vunpack.c.l.b16 %v3054
    %v3190 = vunpack.c.h.b16 %v3054
    %v3191 = vunpack.c.l.b16 %v3055
    %v3192 = vunpack.c.h.b16 %v3055
    %v3193 = vunpack.c.l.b16 %v3056
    %v3194 = vunpack.c.h.b16 %v3056
    %v3195 = vunpack.c.l.b16 %v3057
    %v3196 = vunpack.c.h.b16 %v3057
    %v3197 = vunpack.c.l.b16 %v3058
    %v3198 = vunpack.c.h.b16 %v3058
    %v3199 = vunpack.c.l.b16 %v3059
    %v3200 = vunpack.c.h.b16 %v3059
    %v3201 = vunpack.c.l.b16 %v3060
    %v3202 = vunpack.c.h.b16 %v3060
    %v3203 = vunpack.c.l.b16 %v3061
    %v3204 = vunpack.c.h.b16 %v3061
    %v3205 = vunpack.c.l.b16 %v3062
    %v3206 = vunpack.c.h.b16 %v3062
    %v3207 = vunpack.c.l.b16 %v3063
    %v3208 = vunpack.c.h.b16 %v3063
    %v3209 = vunpack.c.l.b16 %v3064
    %v3210 = vunpack.c.h.b16 %v3064
    %v3211 = vunpack.c.l.b16 %v3065
    %v3212 = vunpack.c.h.b16 %v3065
    %v3213 = vunpack.c.l.b16 %v3066
    %v3214 = vunpack.c.h.b16 %v3066
    %v3215 = vunpack.c.l.b16 %v3067
    %v3216 = vunpack.c.h.b16 %v3067
    %v3217 = vpack.c.b16 %v3127, %v3121
    %v3218 = vpack.c.b16 %v3128, %v3122
    %v3219 = vpack.c.b16 %v3129, %v3123
    %v3220 = vpack.c.b16 %v3130, %v3124
    %v3221 = vpack.c.b16 %v3131, %v3125
    %v3222 = vpack.c.b16 %v3132, %v3126
    %v3223 = vpack.c.b16 %v3139, %v3133
    %v3224 = vpack.c.b16 %v3140, %v3134
    %v3225 = vpack.c.b16 %v3141, %v3135
    %v3226 = vpack.c.b16 %v3142, %v3136
    %v3227 = vpack.c.b16 %v3143, %v3137
    %v3228 = vpack.c.b16 %v3144, %v3138
    %v3229 = vpack.c.b16 %v3151, %v3145
    %v3230 = vpack.c.b16 %v3152, %v3146
    %v3231 = vpack.c.b16 %v3153, %v3147
    %v3232 = vpack.c.b16 %v3154, %v3148
    %v3233 = vpack.c.b16 %v3155, %v3149
    %v3234 = vpack.c.b16 %v3156, %v3150
    %v3235 = vpack.c.b16 %v3163, %v3157
    %v3236 = vpack.c.b16 %v3164, %v3158
    %v3237 = vpack.c.b16 %v3165, %v3159
    %v3238 = vpack.c.b16 %v3166, %v3160
    %v3239 = vpack.c.b16 %v3167, %v3161
    %v3240 = vpack.c.b16 %v3168, %v3162
    %v3241 = vpack.c.b16 %v3175, %v3169
    %v3242 = vpack.c.b16 %v3176, %v3170
    %v3243 = vpack.c.b16 %v3177, %v3171
    %v3244 = vpack.c.b16 %v3178, %v3172
    %v3245 = vpack.c.b16 %v3179, %v3173
    %v3246 = vpack.c.b16 %v3180, %v3174
    %v3247 = vpack.c.b16 %v3187, %v3181
    %v3248 = vpack.c.b16 %v3188, %v3182
    %v3249 = vpack.c.b16 %v3189, %v3183
    %v3250 = vpack.c.b16 %v3190, %v3184
    %v3251 = vpack.c.b16 %v3191, %v3185
    %v3252 = vpack.c.b16 %v3192, %v3186
    %v3253 = vpack.c.b16 %v3199, %v3193
    %v3254 = vpack.c.b16 %v3200, %v3194
    %v3255 = vpack.c.b16 %v3201, %v3195
    %v3256 = vpack.c.b16 %v3202, %v3196
    %v3257 = vpack.c.b16 %v3203, %v3197
    %v3258 = vpack.c.b16 %v3204, %v3198
    %v3259 = vpack.c.b16 %v3211, %v3205
    %v3260 = vpack.c.b16 %v3212, %v3206
    %v3261 = vpack.c.b16 %v3213, %v3207
    %v3262 = vpack.c.b16 %v3214, %v3208
    %v3263 = vpack.c.b16 %v3215, %v3209
    %v3264 = vpack.c.b16 %v3216, %v3210
    %3313 = vmatpush.bf16.msra.mxu0 %v3259
    %3314 = vmatpush.bf16.msra.mxu0 %v3253
    %3315 = vmatpush.bf16.msra.mxu0 %v3247
    %3316 = vmatpush.bf16.msra.mxu0 %v3241
    %3317 = vmatpush.bf16.msra.mxu0 %v3235
    %3318 = vmatpush.bf16.msra.mxu0 %v3229
    %3319 = vmatpush.bf16.msra.mxu0 %v3223
    %3320 = vmatpush.bf16.msra.mxu0 %v3217
    %3321 = vmatmul.bf16.gmra.mxu0 %v3071
    %v3322 = vpop.f32.mrf.mxu0
    %v3323 = vadd.f32 0.0, %v3322
    %v3324 = vpop.f32.mrf.mxu0
    %3325 = vdwg.mxu0
    %3326 = vmatpush.bf16.msra.mxu0 %v3260
    %3327 = vmatpush.bf16.msra.mxu0 %v3254
    %3328 = vmatpush.bf16.msra.mxu0 %v3248
    %3329 = vmatpush.bf16.msra.mxu0 %v3242
    %3330 = vmatpush.bf16.msra.mxu0 %v3236
    %3331 = vmatpush.bf16.msra.mxu0 %v3230
    %3332 = vmatpush.bf16.msra.mxu0 %v3224
    %3333 = vmatpush.bf16.msra.mxu0 %v3218
    %3334 = vmatmul.bf16.gmra.mxu0 %v3071
    %v3335 = vpop.f32.mrf.mxu0
    %v3336 = vadd.f32 0.0, %v3335
    %v3337 = vpop.f32.mrf.mxu0
    %3338 = vdwg.mxu0
    %3339 = vmatpush.bf16.msra.mxu0 %v3261
    %3340 = vmatpush.bf16.msra.mxu0 %v3255
    %3341 = vmatpush.bf16.msra.mxu0 %v3249
    %3342 = vmatpush.bf16.msra.mxu0 %v3243
    %3343 = vmatpush.bf16.msra.mxu0 %v3237
    %3344 = vmatpush.bf16.msra.mxu0 %v3231
    %3345 = vmatpush.bf16.msra.mxu0 %v3225
    %3346 = vmatpush.bf16.msra.mxu0 %v3219
    %3347 = vmatmul.bf16.gmra.mxu0 %v3071
    %v3348 = vpop.f32.mrf.mxu0
    %v3349 = vadd.f32 0.0, %v3348
    %v3350 = vpop.f32.mrf.mxu0
    %3351 = vdwg.mxu0
    %3352 = vmatpush.bf16.msra.mxu0 %v3262
    %3353 = vmatpush.bf16.msra.mxu0 %v3256
    %3354 = vmatpush.bf16.msra.mxu0 %v3250
    %3355 = vmatpush.bf16.msra.mxu0 %v3244
    %3356 = vmatpush.bf16.msra.mxu0 %v3238
    %3357 = vmatpush.bf16.msra.mxu0 %v3232
    %3358 = vmatpush.bf16.msra.mxu0 %v3226
    %3359 = vmatpush.bf16.msra.mxu0 %v3220
    %3360 = vmatmul.bf16.gmra.mxu0 %v3071
    %v3361 = vpop.f32.mrf.mxu0
    %v3362 = vadd.f32 0.0, %v3361
    %v3363 = vpop.f32.mrf.mxu0
    %3364 = vdwg.mxu0
    %3365 = vmatpush.bf16.msra.mxu0 %v3263
    %3366 = vmatpush.bf16.msra.mxu0 %v3257
    %3367 = vmatpush.bf16.msra.mxu0 %v3251
    %3368 = vmatpush.bf16.msra.mxu0 %v3245
    %3369 = vmatpush.bf16.msra.mxu0 %v3239
    %3370 = vmatpush.bf16.msra.mxu0 %v3233
    %3371 = vmatpush.bf16.msra.mxu0 %v3227
    %3372 = vmatpush.bf16.msra.mxu0 %v3221
    %3373 = vmatmul.bf16.gmra.mxu0 %v3071
    %v3374 = vpop.f32.mrf.mxu0
    %v3375 = vadd.f32 0.0, %v3374
    %v3376 = vpop.f32.mrf.mxu0
    %3377 = vdwg.mxu0
    %3378 = vmatpush.bf16.msra.mxu0 %v3264
    %3379 = vmatpush.bf16.msra.mxu0 %v3258
    %3380 = vmatpush.bf16.msra.mxu0 %v3252
    %3381 = vmatpush.bf16.msra.mxu0 %v3246
    %3382 = vmatpush.bf16.msra.mxu0 %v3240
    %3383 = vmatpush.bf16.msra.mxu0 %v3234
    %3384 = vmatpush.bf16.msra.mxu0 %v3228
    %3385 = vmatpush.bf16.msra.mxu0 %v3222
    %3386 = vmatmul.bf16.gmra.mxu0 %v3071
    %v3387 = vpop.f32.mrf.mxu0
    %v3388 = vadd.f32 0.0, %v3387
    %v3389 = vpop.f32.mrf.mxu0
    %3390 = vdwg.mxu0
    %v3391 = vadd.f32 %v3013, %v3323
    %v3392 = vadd.f32 %v3014, %v3336
    %v3393 = vadd.f32 %v3015, %v3349
    %v3394 = vadd.f32 %v3016, %v3362
    %v3395 = vadd.f32 %v3017, %v3375
    %v3396 = vadd.f32 %v3018, %v3388
    %s3397 = scalar_lea.vmem [#allocation2], 2688
    %v3398 = vld [vmem:[%s3397] sm:$0xff]
    %v3399 = vld [vmem:[%s3397 + $0x8] sm:$0xff]
    %v3400 = vld [vmem:[%s3397 + $0x10] sm:$0xff]
    %v3401 = vld [vmem:[%s3397 + $0x18] sm:$0xff]
    %v3402 = vld [vmem:[%s3397 + $0x20] sm:$0xff]
    %v3403 = vld [vmem:[%s3397 + $0x28] sm:$0xff]
    %v3404 = vld [vmem:[%s3397 + $0x30] sm:$0xff]
    %v3405 = vld [vmem:[%s3397 + $0x38] sm:$0xff]
    %v3406 = vld [vmem:[%s3397 + $0x40] sm:$0xff]
    %v3407 = vld [vmem:[%s3397 + $0x48] sm:$0xff]
    %v3408 = vld [vmem:[%s3397 + $0x50] sm:$0xff]
    %v3409 = vld [vmem:[%s3397 + $0x58] sm:$0xff]
    %v3410 = vld [vmem:[%s3397 + $0x60] sm:$0xff]
    %v3411 = vld [vmem:[%s3397 + $0x68] sm:$0xff]
    %v3412 = vld [vmem:[%s3397 + $0x70] sm:$0xff]
    %v3413 = vld [vmem:[%s3397 + $0x78] sm:$0xff]
    %v3414 = vld [vmem:[%s3397 + $0x80] sm:$0xff]
    %v3415 = vld [vmem:[%s3397 + $0x88] sm:$0xff]
    %v3416 = vld [vmem:[%s3397 + $0x90] sm:$0xff]
    %v3417 = vld [vmem:[%s3397 + $0x98] sm:$0xff]
    %v3418 = vld [vmem:[%s3397 + $0xa0] sm:$0xff]
    %v3419 = vld [vmem:[%s3397 + $0xa8] sm:$0xff]
    %v3420 = vld [vmem:[%s3397 + $0xb0] sm:$0xff]
    %v3421 = vld [vmem:[%s3397 + $0xb8] sm:$0xff]
    %v3422 = vld [vmem:[%s3397 + $0xc0] sm:$0xff]
    %v3423 = vld [vmem:[%s3397 + $0xc8] sm:$0xff]
    %v3424 = vld [vmem:[%s3397 + $0xd0] sm:$0xff]
    %v3425 = vld [vmem:[%s3397 + $0xd8] sm:$0xff]
    %v3426 = vld [vmem:[%s3397 + $0xe0] sm:$0xff]
    %v3427 = vld [vmem:[%s3397 + $0xe8] sm:$0xff]
    %v3428 = vld [vmem:[%s3397 + $0xf0] sm:$0xff]
    %v3429 = vld [vmem:[%s3397 + $0xf8] sm:$0xff]
    %v3430 = vld [vmem:[%s3397 + $0x100] sm:$0xff]
    %v3431 = vld [vmem:[%s3397 + $0x108] sm:$0xff]
    %v3432 = vld [vmem:[%s3397 + $0x110] sm:$0xff]
    %v3433 = vld [vmem:[%s3397 + $0x118] sm:$0xff]
    %v3434 = vld [vmem:[%s3397 + $0x120] sm:$0xff]
    %v3435 = vld [vmem:[%s3397 + $0x128] sm:$0xff]
    %v3436 = vld [vmem:[%s3397 + $0x130] sm:$0xff]
    %v3437 = vld [vmem:[%s3397 + $0x138] sm:$0xff]
    %v3438 = vld [vmem:[%s3397 + $0x140] sm:$0xff]
    %v3439 = vld [vmem:[%s3397 + $0x148] sm:$0xff]
    %v3440 = vld [vmem:[%s3397 + $0x150] sm:$0xff]
    %v3441 = vld [vmem:[%s3397 + $0x158] sm:$0xff]
    %v3442 = vld [vmem:[%s3397 + $0x160] sm:$0xff]
    %v3443 = vld [vmem:[%s3397 + $0x168] sm:$0xff]
    %v3444 = vld [vmem:[%s3397 + $0x170] sm:$0xff]
    %v3445 = vld [vmem:[%s3397 + $0x178] sm:$0xff]
    %v3446 = vrot.slane %v860, 7
    %v3447 = vrot.slane %v861, 6
    %v3448 = vsel %vm863, %v3447, %v3446
    %v3449 = vpack.c.b16 %v3448, %v3448
    %v3499 = vunpack.c.l.b16 %v3398
    %v3500 = vunpack.c.h.b16 %v3398
    %v3501 = vunpack.c.l.b16 %v3399
    %v3502 = vunpack.c.h.b16 %v3399
    %v3503 = vunpack.c.l.b16 %v3400
    %v3504 = vunpack.c.h.b16 %v3400
    %v3505 = vunpack.c.l.b16 %v3401
    %v3506 = vunpack.c.h.b16 %v3401
    %v3507 = vunpack.c.l.b16 %v3402
    %v3508 = vunpack.c.h.b16 %v3402
    %v3509 = vunpack.c.l.b16 %v3403
    %v3510 = vunpack.c.h.b16 %v3403
    %v3511 = vunpack.c.l.b16 %v3404
    %v3512 = vunpack.c.h.b16 %v3404
    %v3513 = vunpack.c.l.b16 %v3405
    %v3514 = vunpack.c.h.b16 %v3405
    %v3515 = vunpack.c.l.b16 %v3406
    %v3516 = vunpack.c.h.b16 %v3406
    %v3517 = vunpack.c.l.b16 %v3407
    %v3518 = vunpack.c.h.b16 %v3407
    %v3519 = vunpack.c.l.b16 %v3408
    %v3520 = vunpack.c.h.b16 %v3408
    %v3521 = vunpack.c.l.b16 %v3409
    %v3522 = vunpack.c.h.b16 %v3409
    %v3523 = vunpack.c.l.b16 %v3410
    %v3524 = vunpack.c.h.b16 %v3410
    %v3525 = vunpack.c.l.b16 %v3411
    %v3526 = vunpack.c.h.b16 %v3411
    %v3527 = vunpack.c.l.b16 %v3412
    %v3528 = vunpack.c.h.b16 %v3412
    %v3529 = vunpack.c.l.b16 %v3413
    %v3530 = vunpack.c.h.b16 %v3413
    %v3531 = vunpack.c.l.b16 %v3414
    %v3532 = vunpack.c.h.b16 %v3414
    %v3533 = vunpack.c.l.b16 %v3415
    %v3534 = vunpack.c.h.b16 %v3415
    %v3535 = vunpack.c.l.b16 %v3416
    %v3536 = vunpack.c.h.b16 %v3416
    %v3537 = vunpack.c.l.b16 %v3417
    %v3538 = vunpack.c.h.b16 %v3417
    %v3539 = vunpack.c.l.b16 %v3418
    %v3540 = vunpack.c.h.b16 %v3418
    %v3541 = vunpack.c.l.b16 %v3419
    %v3542 = vunpack.c.h.b16 %v3419
    %v3543 = vunpack.c.l.b16 %v3420
    %v3544 = vunpack.c.h.b16 %v3420
    %v3545 = vunpack.c.l.b16 %v3421
    %v3546 = vunpack.c.h.b16 %v3421
    %v3547 = vunpack.c.l.b16 %v3422
    %v3548 = vunpack.c.h.b16 %v3422
    %v3549 = vunpack.c.l.b16 %v3423
    %v3550 = vunpack.c.h.b16 %v3423
    %v3551 = vunpack.c.l.b16 %v3424
    %v3552 = vunpack.c.h.b16 %v3424
    %v3553 = vunpack.c.l.b16 %v3425
    %v3554 = vunpack.c.h.b16 %v3425
    %v3555 = vunpack.c.l.b16 %v3426
    %v3556 = vunpack.c.h.b16 %v3426
    %v3557 = vunpack.c.l.b16 %v3427
    %v3558 = vunpack.c.h.b16 %v3427
    %v3559 = vunpack.c.l.b16 %v3428
    %v3560 = vunpack.c.h.b16 %v3428
    %v3561 = vunpack.c.l.b16 %v3429
    %v3562 = vunpack.c.h.b16 %v3429
    %v3563 = vunpack.c.l.b16 %v3430
    %v3564 = vunpack.c.h.b16 %v3430
    %v3565 = vunpack.c.l.b16 %v3431
    %v3566 = vunpack.c.h.b16 %v3431
    %v3567 = vunpack.c.l.b16 %v3432
    %v3568 = vunpack.c.h.b16 %v3432
    %v3569 = vunpack.c.l.b16 %v3433
    %v3570 = vunpack.c.h.b16 %v3433
    %v3571 = vunpack.c.l.b16 %v3434
    %v3572 = vunpack.c.h.b16 %v3434
    %v3573 = vunpack.c.l.b16 %v3435
    %v3574 = vunpack.c.h.b16 %v3435
    %v3575 = vunpack.c.l.b16 %v3436
    %v3576 = vunpack.c.h.b16 %v3436
    %v3577 = vunpack.c.l.b16 %v3437
    %v3578 = vunpack.c.h.b16 %v3437
    %v3579 = vunpack.c.l.b16 %v3438
    %v3580 = vunpack.c.h.b16 %v3438
    %v3581 = vunpack.c.l.b16 %v3439
    %v3582 = vunpack.c.h.b16 %v3439
    %v3583 = vunpack.c.l.b16 %v3440
    %v3584 = vunpack.c.h.b16 %v3440
    %v3585 = vunpack.c.l.b16 %v3441
    %v3586 = vunpack.c.h.b16 %v3441
    %v3587 = vunpack.c.l.b16 %v3442
    %v3588 = vunpack.c.h.b16 %v3442
    %v3589 = vunpack.c.l.b16 %v3443
    %v3590 = vunpack.c.h.b16 %v3443
    %v3591 = vunpack.c.l.b16 %v3444
    %v3592 = vunpack.c.h.b16 %v3444
    %v3593 = vunpack.c.l.b16 %v3445
    %v3594 = vunpack.c.h.b16 %v3445
    %v3595 = vpack.c.b16 %v3505, %v3499
    %v3596 = vpack.c.b16 %v3506, %v3500
    %v3597 = vpack.c.b16 %v3507, %v3501
    %v3598 = vpack.c.b16 %v3508, %v3502
    %v3599 = vpack.c.b16 %v3509, %v3503
    %v3600 = vpack.c.b16 %v3510, %v3504
    %v3601 = vpack.c.b16 %v3517, %v3511
    %v3602 = vpack.c.b16 %v3518, %v3512
    %v3603 = vpack.c.b16 %v3519, %v3513
    %v3604 = vpack.c.b16 %v3520, %v3514
    %v3605 = vpack.c.b16 %v3521, %v3515
    %v3606 = vpack.c.b16 %v3522, %v3516
    %v3607 = vpack.c.b16 %v3529, %v3523
    %v3608 = vpack.c.b16 %v3530, %v3524
    %v3609 = vpack.c.b16 %v3531, %v3525
    %v3610 = vpack.c.b16 %v3532, %v3526
    %v3611 = vpack.c.b16 %v3533, %v3527
    %v3612 = vpack.c.b16 %v3534, %v3528
    %v3613 = vpack.c.b16 %v3541, %v3535
    %v3614 = vpack.c.b16 %v3542, %v3536
    %v3615 = vpack.c.b16 %v3543, %v3537
    %v3616 = vpack.c.b16 %v3544, %v3538
    %v3617 = vpack.c.b16 %v3545, %v3539
    %v3618 = vpack.c.b16 %v3546, %v3540
    %v3619 = vpack.c.b16 %v3553, %v3547
    %v3620 = vpack.c.b16 %v3554, %v3548
    %v3621 = vpack.c.b16 %v3555, %v3549
    %v3622 = vpack.c.b16 %v3556, %v3550
    %v3623 = vpack.c.b16 %v3557, %v3551
    %v3624 = vpack.c.b16 %v3558, %v3552
    %v3625 = vpack.c.b16 %v3565, %v3559
    %v3626 = vpack.c.b16 %v3566, %v3560
    %v3627 = vpack.c.b16 %v3567, %v3561
    %v3628 = vpack.c.b16 %v3568, %v3562
    %v3629 = vpack.c.b16 %v3569, %v3563
    %v3630 = vpack.c.b16 %v3570, %v3564
    %v3631 = vpack.c.b16 %v3577, %v3571
    %v3632 = vpack.c.b16 %v3578, %v3572
    %v3633 = vpack.c.b16 %v3579, %v3573
    %v3634 = vpack.c.b16 %v3580, %v3574
    %v3635 = vpack.c.b16 %v3581, %v3575
    %v3636 = vpack.c.b16 %v3582, %v3576
    %v3637 = vpack.c.b16 %v3589, %v3583
    %v3638 = vpack.c.b16 %v3590, %v3584
    %v3639 = vpack.c.b16 %v3591, %v3585
    %v3640 = vpack.c.b16 %v3592, %v3586
    %v3641 = vpack.c.b16 %v3593, %v3587
    %v3642 = vpack.c.b16 %v3594, %v3588
    %3691 = vmatpush.bf16.msra.mxu0 %v3637
    %3692 = vmatpush.bf16.msra.mxu0 %v3631
    %3693 = vmatpush.bf16.msra.mxu0 %v3625
    %3694 = vmatpush.bf16.msra.mxu0 %v3619
    %3695 = vmatpush.bf16.msra.mxu0 %v3613
    %3696 = vmatpush.bf16.msra.mxu0 %v3607
    %3697 = vmatpush.bf16.msra.mxu0 %v3601
    %3698 = vmatpush.bf16.msra.mxu0 %v3595
    %3699 = vmatmul.bf16.gmra.mxu0 %v3449
    %v3700 = vpop.f32.mrf.mxu0
    %v3701 = vadd.f32 0.0, %v3700
    %v3702 = vpop.f32.mrf.mxu0
    %3703 = vdwg.mxu0
    %3704 = vmatpush.bf16.msra.mxu0 %v3638
    %3705 = vmatpush.bf16.msra.mxu0 %v3632
    %3706 = vmatpush.bf16.msra.mxu0 %v3626
    %3707 = vmatpush.bf16.msra.mxu0 %v3620
    %3708 = vmatpush.bf16.msra.mxu0 %v3614
    %3709 = vmatpush.bf16.msra.mxu0 %v3608
    %3710 = vmatpush.bf16.msra.mxu0 %v3602
    %3711 = vmatpush.bf16.msra.mxu0 %v3596
    %3712 = vmatmul.bf16.gmra.mxu0 %v3449
    %v3713 = vpop.f32.mrf.mxu0
    %v3714 = vadd.f32 0.0, %v3713
    %v3715 = vpop.f32.mrf.mxu0
    %3716 = vdwg.mxu0
    %3717 = vmatpush.bf16.msra.mxu0 %v3639
    %3718 = vmatpush.bf16.msra.mxu0 %v3633
    %3719 = vmatpush.bf16.msra.mxu0 %v3627
    %3720 = vmatpush.bf16.msra.mxu0 %v3621
    %3721 = vmatpush.bf16.msra.mxu0 %v3615
    %3722 = vmatpush.bf16.msra.mxu0 %v3609
    %3723 = vmatpush.bf16.msra.mxu0 %v3603
    %3724 = vmatpush.bf16.msra.mxu0 %v3597
    %3725 = vmatmul.bf16.gmra.mxu0 %v3449
    %v3726 = vpop.f32.mrf.mxu0
    %v3727 = vadd.f32 0.0, %v3726
    %v3728 = vpop.f32.mrf.mxu0
    %3729 = vdwg.mxu0
    %3730 = vmatpush.bf16.msra.mxu0 %v3640
    %3731 = vmatpush.bf16.msra.mxu0 %v3634
    %3732 = vmatpush.bf16.msra.mxu0 %v3628
    %3733 = vmatpush.bf16.msra.mxu0 %v3622
    %3734 = vmatpush.bf16.msra.mxu0 %v3616
    %3735 = vmatpush.bf16.msra.mxu0 %v3610
    %3736 = vmatpush.bf16.msra.mxu0 %v3604
    %3737 = vmatpush.bf16.msra.mxu0 %v3598
    %3738 = vmatmul.bf16.gmra.mxu0 %v3449
    %v3739 = vpop.f32.mrf.mxu0
    %v3740 = vadd.f32 0.0, %v3739
    %v3741 = vpop.f32.mrf.mxu0
    %3742 = vdwg.mxu0
    %3743 = vmatpush.bf16.msra.mxu0 %v3641
    %3744 = vmatpush.bf16.msra.mxu0 %v3635
    %3745 = vmatpush.bf16.msra.mxu0 %v3629
    %3746 = vmatpush.bf16.msra.mxu0 %v3623
    %3747 = vmatpush.bf16.msra.mxu0 %v3617
    %3748 = vmatpush.bf16.msra.mxu0 %v3611
    %3749 = vmatpush.bf16.msra.mxu0 %v3605
    %3750 = vmatpush.bf16.msra.mxu0 %v3599
    %3751 = vmatmul.bf16.gmra.mxu0 %v3449
    %v3752 = vpop.f32.mrf.mxu0
    %v3753 = vadd.f32 0.0, %v3752
    %v3754 = vpop.f32.mrf.mxu0
    %3755 = vdwg.mxu0
    %3756 = vmatpush.bf16.msra.mxu0 %v3642
    %3757 = vmatpush.bf16.msra.mxu0 %v3636
    %3758 = vmatpush.bf16.msra.mxu0 %v3630
    %3759 = vmatpush.bf16.msra.mxu0 %v3624
    %3760 = vmatpush.bf16.msra.mxu0 %v3618
    %3761 = vmatpush.bf16.msra.mxu0 %v3612
    %3762 = vmatpush.bf16.msra.mxu0 %v3606
    %3763 = vmatpush.bf16.msra.mxu0 %v3600
    %3764 = vmatmul.bf16.gmra.mxu0 %v3449
    %v3765 = vpop.f32.mrf.mxu0
    %v3766 = vadd.f32 0.0, %v3765
    %v3767 = vpop.f32.mrf.mxu0
    %3768 = vdwg.mxu0
    %v3769 = vadd.f32 %v3391, %v3701
    %v3770 = vadd.f32 %v3392, %v3714
    %v3771 = vadd.f32 %v3393, %v3727
    %v3772 = vadd.f32 %v3394, %v3740
    %v3773 = vadd.f32 %v3395, %v3753
    %v3774 = vadd.f32 %v3396, %v3766
    %s3775 = scalar_lea.vmem [#allocation2], 3072
    %v3776 = vld [vmem:[%s3775] sm:$0xff]
    %v3777 = vld [vmem:[%s3775 + $0x8] sm:$0xff]
    %v3778 = vld [vmem:[%s3775 + $0x10] sm:$0xff]
    %v3779 = vld [vmem:[%s3775 + $0x18] sm:$0xff]
    %v3780 = vld [vmem:[%s3775 + $0x20] sm:$0xff]
    %v3781 = vld [vmem:[%s3775 + $0x28] sm:$0xff]
    %v3782 = vld [vmem:[%s3775 + $0x30] sm:$0xff]
    %v3783 = vld [vmem:[%s3775 + $0x38] sm:$0xff]
    %v3784 = vld [vmem:[%s3775 + $0x40] sm:$0xff]
    %v3785 = vld [vmem:[%s3775 + $0x48] sm:$0xff]
    %v3786 = vld [vmem:[%s3775 + $0x50] sm:$0xff]
    %v3787 = vld [vmem:[%s3775 + $0x58] sm:$0xff]
    %v3788 = vld [vmem:[%s3775 + $0x60] sm:$0xff]
    %v3789 = vld [vmem:[%s3775 + $0x68] sm:$0xff]
    %v3790 = vld [vmem:[%s3775 + $0x70] sm:$0xff]
    %v3791 = vld [vmem:[%s3775 + $0x78] sm:$0xff]
    %v3792 = vld [vmem:[%s3775 + $0x80] sm:$0xff]
    %v3793 = vld [vmem:[%s3775 + $0x88] sm:$0xff]
    %v3794 = vld [vmem:[%s3775 + $0x90] sm:$0xff]
    %v3795 = vld [vmem:[%s3775 + $0x98] sm:$0xff]
    %v3796 = vld [vmem:[%s3775 + $0xa0] sm:$0xff]
    %v3797 = vld [vmem:[%s3775 + $0xa8] sm:$0xff]
    %v3798 = vld [vmem:[%s3775 + $0xb0] sm:$0xff]
    %v3799 = vld [vmem:[%s3775 + $0xb8] sm:$0xff]
    %v3800 = vld [vmem:[%s3775 + $0xc0] sm:$0xff]
    %v3801 = vld [vmem:[%s3775 + $0xc8] sm:$0xff]
    %v3802 = vld [vmem:[%s3775 + $0xd0] sm:$0xff]
    %v3803 = vld [vmem:[%s3775 + $0xd8] sm:$0xff]
    %v3804 = vld [vmem:[%s3775 + $0xe0] sm:$0xff]
    %v3805 = vld [vmem:[%s3775 + $0xe8] sm:$0xff]
    %v3806 = vld [vmem:[%s3775 + $0xf0] sm:$0xff]
    %v3807 = vld [vmem:[%s3775 + $0xf8] sm:$0xff]
    %v3808 = vld [vmem:[%s3775 + $0x100] sm:$0xff]
    %v3809 = vld [vmem:[%s3775 + $0x108] sm:$0xff]
    %v3810 = vld [vmem:[%s3775 + $0x110] sm:$0xff]
    %v3811 = vld [vmem:[%s3775 + $0x118] sm:$0xff]
    %v3812 = vld [vmem:[%s3775 + $0x120] sm:$0xff]
    %v3813 = vld [vmem:[%s3775 + $0x128] sm:$0xff]
    %v3814 = vld [vmem:[%s3775 + $0x130] sm:$0xff]
    %v3815 = vld [vmem:[%s3775 + $0x138] sm:$0xff]
    %v3816 = vld [vmem:[%s3775 + $0x140] sm:$0xff]
    %v3817 = vld [vmem:[%s3775 + $0x148] sm:$0xff]
    %v3818 = vld [vmem:[%s3775 + $0x150] sm:$0xff]
    %v3819 = vld [vmem:[%s3775 + $0x158] sm:$0xff]
    %v3820 = vld [vmem:[%s3775 + $0x160] sm:$0xff]
    %v3821 = vld [vmem:[%s3775 + $0x168] sm:$0xff]
    %v3822 = vld [vmem:[%s3775 + $0x170] sm:$0xff]
    %v3823 = vld [vmem:[%s3775 + $0x178] sm:$0xff]
    %v3826 = vunpack.c.l.b16 %v464
    %v3827 = vunpack.c.l.b16 %v749
    %v3828 = vpack.c.b16 %v3826, %v3826
    %v3829 = vpack.c.b16 %v3827, %v3827
    %v3830 = vunpack.c.l.b16 %v3828
    %v3831 = vunpack.c.l.b16 %v3829
    %v3832 = vrot.slane %v3831, 7
    %v3833 = vsel %vm863, %v3832, %v3830
    %v3834 = vpack.c.b16 %v3833, %v3833
    %v3884 = vunpack.c.l.b16 %v3776
    %v3885 = vunpack.c.h.b16 %v3776
    %v3886 = vunpack.c.l.b16 %v3777
    %v3887 = vunpack.c.h.b16 %v3777
    %v3888 = vunpack.c.l.b16 %v3778
    %v3889 = vunpack.c.h.b16 %v3778
    %v3890 = vunpack.c.l.b16 %v3779
    %v3891 = vunpack.c.h.b16 %v3779
    %v3892 = vunpack.c.l.b16 %v3780
    %v3893 = vunpack.c.h.b16 %v3780
    %v3894 = vunpack.c.l.b16 %v3781
    %v3895 = vunpack.c.h.b16 %v3781
    %v3896 = vunpack.c.l.b16 %v3782
    %v3897 = vunpack.c.h.b16 %v3782
    %v3898 = vunpack.c.l.b16 %v3783
    %v3899 = vunpack.c.h.b16 %v3783
    %v3900 = vunpack.c.l.b16 %v3784
    %v3901 = vunpack.c.h.b16 %v3784
    %v3902 = vunpack.c.l.b16 %v3785
    %v3903 = vunpack.c.h.b16 %v3785
    %v3904 = vunpack.c.l.b16 %v3786
    %v3905 = vunpack.c.h.b16 %v3786
    %v3906 = vunpack.c.l.b16 %v3787
    %v3907 = vunpack.c.h.b16 %v3787
    %v3908 = vunpack.c.l.b16 %v3788
    %v3909 = vunpack.c.h.b16 %v3788
    %v3910 = vunpack.c.l.b16 %v3789
    %v3911 = vunpack.c.h.b16 %v3789
    %v3912 = vunpack.c.l.b16 %v3790
    %v3913 = vunpack.c.h.b16 %v3790
    %v3914 = vunpack.c.l.b16 %v3791
    %v3915 = vunpack.c.h.b16 %v3791
    %v3916 = vunpack.c.l.b16 %v3792
    %v3917 = vunpack.c.h.b16 %v3792
    %v3918 = vunpack.c.l.b16 %v3793
    %v3919 = vunpack.c.h.b16 %v3793
    %v3920 = vunpack.c.l.b16 %v3794
    %v3921 = vunpack.c.h.b16 %v3794
    %v3922 = vunpack.c.l.b16 %v3795
    %v3923 = vunpack.c.h.b16 %v3795
    %v3924 = vunpack.c.l.b16 %v3796
    %v3925 = vunpack.c.h.b16 %v3796
    %v3926 = vunpack.c.l.b16 %v3797
    %v3927 = vunpack.c.h.b16 %v3797
    %v3928 = vunpack.c.l.b16 %v3798
    %v3929 = vunpack.c.h.b16 %v3798
    %v3930 = vunpack.c.l.b16 %v3799
    %v3931 = vunpack.c.h.b16 %v3799
    %v3932 = vunpack.c.l.b16 %v3800
    %v3933 = vunpack.c.h.b16 %v3800
    %v3934 = vunpack.c.l.b16 %v3801
    %v3935 = vunpack.c.h.b16 %v3801
    %v3936 = vunpack.c.l.b16 %v3802
    %v3937 = vunpack.c.h.b16 %v3802
    %v3938 = vunpack.c.l.b16 %v3803
    %v3939 = vunpack.c.h.b16 %v3803
    %v3940 = vunpack.c.l.b16 %v3804
    %v3941 = vunpack.c.h.b16 %v3804
    %v3942 = vunpack.c.l.b16 %v3805
    %v3943 = vunpack.c.h.b16 %v3805
    %v3944 = vunpack.c.l.b16 %v3806
    %v3945 = vunpack.c.h.b16 %v3806
    %v3946 = vunpack.c.l.b16 %v3807
    %v3947 = vunpack.c.h.b16 %v3807
    %v3948 = vunpack.c.l.b16 %v3808
    %v3949 = vunpack.c.h.b16 %v3808
    %v3950 = vunpack.c.l.b16 %v3809
    %v3951 = vunpack.c.h.b16 %v3809
    %v3952 = vunpack.c.l.b16 %v3810
    %v3953 = vunpack.c.h.b16 %v3810
    %v3954 = vunpack.c.l.b16 %v3811
    %v3955 = vunpack.c.h.b16 %v3811
    %v3956 = vunpack.c.l.b16 %v3812
    %v3957 = vunpack.c.h.b16 %v3812
    %v3958 = vunpack.c.l.b16 %v3813
    %v3959 = vunpack.c.h.b16 %v3813
    %v3960 = vunpack.c.l.b16 %v3814
    %v3961 = vunpack.c.h.b16 %v3814
    %v3962 = vunpack.c.l.b16 %v3815
    %v3963 = vunpack.c.h.b16 %v3815
    %v3964 = vunpack.c.l.b16 %v3816
    %v3965 = vunpack.c.h.b16 %v3816
    %v3966 = vunpack.c.l.b16 %v3817
    %v3967 = vunpack.c.h.b16 %v3817
    %v3968 = vunpack.c.l.b16 %v3818
    %v3969 = vunpack.c.h.b16 %v3818
    %v3970 = vunpack.c.l.b16 %v3819
    %v3971 = vunpack.c.h.b16 %v3819
    %v3972 = vunpack.c.l.b16 %v3820
    %v3973 = vunpack.c.h.b16 %v3820
    %v3974 = vunpack.c.l.b16 %v3821
    %v3975 = vunpack.c.h.b16 %v3821
    %v3976 = vunpack.c.l.b16 %v3822
    %v3977 = vunpack.c.h.b16 %v3822
    %v3978 = vunpack.c.l.b16 %v3823
    %v3979 = vunpack.c.h.b16 %v3823
    %v3980 = vpack.c.b16 %v3890, %v3884
    %v3981 = vpack.c.b16 %v3891, %v3885
    %v3982 = vpack.c.b16 %v3892, %v3886
    %v3983 = vpack.c.b16 %v3893, %v3887
    %v3984 = vpack.c.b16 %v3894, %v3888
    %v3985 = vpack.c.b16 %v3895, %v3889
    %v3986 = vpack.c.b16 %v3902, %v3896
    %v3987 = vpack.c.b16 %v3903, %v3897
    %v3988 = vpack.c.b16 %v3904, %v3898
    %v3989 = vpack.c.b16 %v3905, %v3899
    %v3990 = vpack.c.b16 %v3906, %v3900
    %v3991 = vpack.c.b16 %v3907, %v3901
    %v3992 = vpack.c.b16 %v3914, %v3908
    %v3993 = vpack.c.b16 %v3915, %v3909
    %v3994 = vpack.c.b16 %v3916, %v3910
    %v3995 = vpack.c.b16 %v3917, %v3911
    %v3996 = vpack.c.b16 %v3918, %v3912
    %v3997 = vpack.c.b16 %v3919, %v3913
    %v3998 = vpack.c.b16 %v3926, %v3920
    %v3999 = vpack.c.b16 %v3927, %v3921
    %v4000 = vpack.c.b16 %v3928, %v3922
    %v4001 = vpack.c.b16 %v3929, %v3923
    %v4002 = vpack.c.b16 %v3930, %v3924
    %v4003 = vpack.c.b16 %v3931, %v3925
    %v4004 = vpack.c.b16 %v3938, %v3932
    %v4005 = vpack.c.b16 %v3939, %v3933
    %v4006 = vpack.c.b16 %v3940, %v3934
    %v4007 = vpack.c.b16 %v3941, %v3935
    %v4008 = vpack.c.b16 %v3942, %v3936
    %v4009 = vpack.c.b16 %v3943, %v3937
    %v4010 = vpack.c.b16 %v3950, %v3944
    %v4011 = vpack.c.b16 %v3951, %v3945
    %v4012 = vpack.c.b16 %v3952, %v3946
    %v4013 = vpack.c.b16 %v3953, %v3947
    %v4014 = vpack.c.b16 %v3954, %v3948
    %v4015 = vpack.c.b16 %v3955, %v3949
    %v4016 = vpack.c.b16 %v3962, %v3956
    %v4017 = vpack.c.b16 %v3963, %v3957
    %v4018 = vpack.c.b16 %v3964, %v3958
    %v4019 = vpack.c.b16 %v3965, %v3959
    %v4020 = vpack.c.b16 %v3966, %v3960
    %v4021 = vpack.c.b16 %v3967, %v3961
    %v4022 = vpack.c.b16 %v3974, %v3968
    %v4023 = vpack.c.b16 %v3975, %v3969
    %v4024 = vpack.c.b16 %v3976, %v3970
    %v4025 = vpack.c.b16 %v3977, %v3971
    %v4026 = vpack.c.b16 %v3978, %v3972
    %v4027 = vpack.c.b16 %v3979, %v3973
    %4076 = vmatpush.bf16.msra.mxu0 %v4022
    %4077 = vmatpush.bf16.msra.mxu0 %v4016
    %4078 = vmatpush.bf16.msra.mxu0 %v4010
    %4079 = vmatpush.bf16.msra.mxu0 %v4004
    %4080 = vmatpush.bf16.msra.mxu0 %v3998
    %4081 = vmatpush.bf16.msra.mxu0 %v3992
    %4082 = vmatpush.bf16.msra.mxu0 %v3986
    %4083 = vmatpush.bf16.msra.mxu0 %v3980
    %4084 = vmatmul.bf16.gmra.mxu0 %v3834
    %v4085 = vpop.f32.mrf.mxu0
    %v4086 = vadd.f32 0.0, %v4085
    %v4087 = vpop.f32.mrf.mxu0
    %4088 = vdwg.mxu0
    %4089 = vmatpush.bf16.msra.mxu0 %v4023
    %4090 = vmatpush.bf16.msra.mxu0 %v4017
    %4091 = vmatpush.bf16.msra.mxu0 %v4011
    %4092 = vmatpush.bf16.msra.mxu0 %v4005
    %4093 = vmatpush.bf16.msra.mxu0 %v3999
    %4094 = vmatpush.bf16.msra.mxu0 %v3993
    %4095 = vmatpush.bf16.msra.mxu0 %v3987
    %4096 = vmatpush.bf16.msra.mxu0 %v3981
    %4097 = vmatmul.bf16.gmra.mxu0 %v3834
    %v4098 = vpop.f32.mrf.mxu0
    %v4099 = vadd.f32 0.0, %v4098
    %v4100 = vpop.f32.mrf.mxu0
    %4101 = vdwg.mxu0
    %4102 = vmatpush.bf16.msra.mxu0 %v4024
    %4103 = vmatpush.bf16.msra.mxu0 %v4018
    %4104 = vmatpush.bf16.msra.mxu0 %v4012
    %4105 = vmatpush.bf16.msra.mxu0 %v4006
    %4106 = vmatpush.bf16.msra.mxu0 %v4000
    %4107 = vmatpush.bf16.msra.mxu0 %v3994
    %4108 = vmatpush.bf16.msra.mxu0 %v3988
    %4109 = vmatpush.bf16.msra.mxu0 %v3982
    %4110 = vmatmul.bf16.gmra.mxu0 %v3834
    %v4111 = vpop.f32.mrf.mxu0
    %v4112 = vadd.f32 0.0, %v4111
    %v4113 = vpop.f32.mrf.mxu0
    %4114 = vdwg.mxu0
    %4115 = vmatpush.bf16.msra.mxu0 %v4025
    %4116 = vmatpush.bf16.msra.mxu0 %v4019
    %4117 = vmatpush.bf16.msra.mxu0 %v4013
    %4118 = vmatpush.bf16.msra.mxu0 %v4007
    %4119 = vmatpush.bf16.msra.mxu0 %v4001
    %4120 = vmatpush.bf16.msra.mxu0 %v3995
    %4121 = vmatpush.bf16.msra.mxu0 %v3989
    %4122 = vmatpush.bf16.msra.mxu0 %v3983
    %4123 = vmatmul.bf16.gmra.mxu0 %v3834
    %v4124 = vpop.f32.mrf.mxu0
    %v4125 = vadd.f32 0.0, %v4124
    %v4126 = vpop.f32.mrf.mxu0
    %4127 = vdwg.mxu0
    %4128 = vmatpush.bf16.msra.mxu0 %v4026
    %4129 = vmatpush.bf16.msra.mxu0 %v4020
    %4130 = vmatpush.bf16.msra.mxu0 %v4014
    %4131 = vmatpush.bf16.msra.mxu0 %v4008
    %4132 = vmatpush.bf16.msra.mxu0 %v4002
    %4133 = vmatpush.bf16.msra.mxu0 %v3996
    %4134 = vmatpush.bf16.msra.mxu0 %v3990
    %4135 = vmatpush.bf16.msra.mxu0 %v3984
    %4136 = vmatmul.bf16.gmra.mxu0 %v3834
    %v4137 = vpop.f32.mrf.mxu0
    %v4138 = vadd.f32 0.0, %v4137
    %v4139 = vpop.f32.mrf.mxu0
    %4140 = vdwg.mxu0
    %4141 = vmatpush.bf16.msra.mxu0 %v4027
    %4142 = vmatpush.bf16.msra.mxu0 %v4021
    %4143 = vmatpush.bf16.msra.mxu0 %v4015
    %4144 = vmatpush.bf16.msra.mxu0 %v4009
    %4145 = vmatpush.bf16.msra.mxu0 %v4003
    %4146 = vmatpush.bf16.msra.mxu0 %v3997
    %4147 = vmatpush.bf16.msra.mxu0 %v3991
    %4148 = vmatpush.bf16.msra.mxu0 %v3985
    %4149 = vmatmul.bf16.gmra.mxu0 %v3834
    %v4150 = vpop.f32.mrf.mxu0
    %v4151 = vadd.f32 0.0, %v4150
    %v4152 = vpop.f32.mrf.mxu0
    %4153 = vdwg.mxu0
    %v4154 = vadd.f32 %v3769, %v4086
    %v4155 = vadd.f32 %v3770, %v4099
    %v4156 = vadd.f32 %v3771, %v4112
    %v4157 = vadd.f32 %v3772, %v4125
    %v4158 = vadd.f32 %v3773, %v4138
    %v4159 = vadd.f32 %v3774, %v4151
    %s4160 = scalar_lea.vmem [#allocation2], 3456
    %v4161 = vld [vmem:[%s4160] sm:$0xff]
    %v4162 = vld [vmem:[%s4160 + $0x8] sm:$0xff]
    %v4163 = vld [vmem:[%s4160 + $0x10] sm:$0xff]
    %v4164 = vld [vmem:[%s4160 + $0x18] sm:$0xff]
    %v4165 = vld [vmem:[%s4160 + $0x20] sm:$0xff]
    %v4166 = vld [vmem:[%s4160 + $0x28] sm:$0xff]
    %v4167 = vld [vmem:[%s4160 + $0x30] sm:$0xff]
    %v4168 = vld [vmem:[%s4160 + $0x38] sm:$0xff]
    %v4169 = vld [vmem:[%s4160 + $0x40] sm:$0xff]
    %v4170 = vld [vmem:[%s4160 + $0x48] sm:$0xff]
    %v4171 = vld [vmem:[%s4160 + $0x50] sm:$0xff]
    %v4172 = vld [vmem:[%s4160 + $0x58] sm:$0xff]
    %v4173 = vld [vmem:[%s4160 + $0x60] sm:$0xff]
    %v4174 = vld [vmem:[%s4160 + $0x68] sm:$0xff]
    %v4175 = vld [vmem:[%s4160 + $0x70] sm:$0xff]
    %v4176 = vld [vmem:[%s4160 + $0x78] sm:$0xff]
    %v4177 = vld [vmem:[%s4160 + $0x80] sm:$0xff]
    %v4178 = vld [vmem:[%s4160 + $0x88] sm:$0xff]
    %v4179 = vld [vmem:[%s4160 + $0x90] sm:$0xff]
    %v4180 = vld [vmem:[%s4160 + $0x98] sm:$0xff]
    %v4181 = vld [vmem:[%s4160 + $0xa0] sm:$0xff]
    %v4182 = vld [vmem:[%s4160 + $0xa8] sm:$0xff]
    %v4183 = vld [vmem:[%s4160 + $0xb0] sm:$0xff]
    %v4184 = vld [vmem:[%s4160 + $0xb8] sm:$0xff]
    %v4185 = vld [vmem:[%s4160 + $0xc0] sm:$0xff]
    %v4186 = vld [vmem:[%s4160 + $0xc8] sm:$0xff]
    %v4187 = vld [vmem:[%s4160 + $0xd0] sm:$0xff]
    %v4188 = vld [vmem:[%s4160 + $0xd8] sm:$0xff]
    %v4189 = vld [vmem:[%s4160 + $0xe0] sm:$0xff]
    %v4190 = vld [vmem:[%s4160 + $0xe8] sm:$0xff]
    %v4191 = vld [vmem:[%s4160 + $0xf0] sm:$0xff]
    %v4192 = vld [vmem:[%s4160 + $0xf8] sm:$0xff]
    %v4193 = vld [vmem:[%s4160 + $0x100] sm:$0xff]
    %v4194 = vld [vmem:[%s4160 + $0x108] sm:$0xff]
    %v4195 = vld [vmem:[%s4160 + $0x110] sm:$0xff]
    %v4196 = vld [vmem:[%s4160 + $0x118] sm:$0xff]
    %v4197 = vld [vmem:[%s4160 + $0x120] sm:$0xff]
    %v4198 = vld [vmem:[%s4160 + $0x128] sm:$0xff]
    %v4199 = vld [vmem:[%s4160 + $0x130] sm:$0xff]
    %v4200 = vld [vmem:[%s4160 + $0x138] sm:$0xff]
    %v4201 = vld [vmem:[%s4160 + $0x140] sm:$0xff]
    %v4202 = vld [vmem:[%s4160 + $0x148] sm:$0xff]
    %v4203 = vld [vmem:[%s4160 + $0x150] sm:$0xff]
    %v4204 = vld [vmem:[%s4160 + $0x158] sm:$0xff]
    %v4205 = vld [vmem:[%s4160 + $0x160] sm:$0xff]
    %v4206 = vld [vmem:[%s4160 + $0x168] sm:$0xff]
    %v4207 = vld [vmem:[%s4160 + $0x170] sm:$0xff]
    %v4208 = vld [vmem:[%s4160 + $0x178] sm:$0xff]
    %v4209 = vrot.slane %v3830, 1
    %v4210 = vsel %vm863, %v3831, %v4209
    %v4211 = vpack.c.b16 %v4210, %v4210
    %v4261 = vunpack.c.l.b16 %v4161
    %v4262 = vunpack.c.h.b16 %v4161
    %v4263 = vunpack.c.l.b16 %v4162
    %v4264 = vunpack.c.h.b16 %v4162
    %v4265 = vunpack.c.l.b16 %v4163
    %v4266 = vunpack.c.h.b16 %v4163
    %v4267 = vunpack.c.l.b16 %v4164
    %v4268 = vunpack.c.h.b16 %v4164
    %v4269 = vunpack.c.l.b16 %v4165
    %v4270 = vunpack.c.h.b16 %v4165
    %v4271 = vunpack.c.l.b16 %v4166
    %v4272 = vunpack.c.h.b16 %v4166
    %v4273 = vunpack.c.l.b16 %v4167
    %v4274 = vunpack.c.h.b16 %v4167
    %v4275 = vunpack.c.l.b16 %v4168
    %v4276 = vunpack.c.h.b16 %v4168
    %v4277 = vunpack.c.l.b16 %v4169
    %v4278 = vunpack.c.h.b16 %v4169
    %v4279 = vunpack.c.l.b16 %v4170
    %v4280 = vunpack.c.h.b16 %v4170
    %v4281 = vunpack.c.l.b16 %v4171
    %v4282 = vunpack.c.h.b16 %v4171
    %v4283 = vunpack.c.l.b16 %v4172
    %v4284 = vunpack.c.h.b16 %v4172
    %v4285 = vunpack.c.l.b16 %v4173
    %v4286 = vunpack.c.h.b16 %v4173
    %v4287 = vunpack.c.l.b16 %v4174
    %v4288 = vunpack.c.h.b16 %v4174
    %v4289 = vunpack.c.l.b16 %v4175
    %v4290 = vunpack.c.h.b16 %v4175
    %v4291 = vunpack.c.l.b16 %v4176
    %v4292 = vunpack.c.h.b16 %v4176
    %v4293 = vunpack.c.l.b16 %v4177
    %v4294 = vunpack.c.h.b16 %v4177
    %v4295 = vunpack.c.l.b16 %v4178
    %v4296 = vunpack.c.h.b16 %v4178
    %v4297 = vunpack.c.l.b16 %v4179
    %v4298 = vunpack.c.h.b16 %v4179
    %v4299 = vunpack.c.l.b16 %v4180
    %v4300 = vunpack.c.h.b16 %v4180
    %v4301 = vunpack.c.l.b16 %v4181
    %v4302 = vunpack.c.h.b16 %v4181
    %v4303 = vunpack.c.l.b16 %v4182
    %v4304 = vunpack.c.h.b16 %v4182
    %v4305 = vunpack.c.l.b16 %v4183
    %v4306 = vunpack.c.h.b16 %v4183
    %v4307 = vunpack.c.l.b16 %v4184
    %v4308 = vunpack.c.h.b16 %v4184
    %v4309 = vunpack.c.l.b16 %v4185
    %v4310 = vunpack.c.h.b16 %v4185
    %v4311 = vunpack.c.l.b16 %v4186
    %v4312 = vunpack.c.h.b16 %v4186
    %v4313 = vunpack.c.l.b16 %v4187
    %v4314 = vunpack.c.h.b16 %v4187
    %v4315 = vunpack.c.l.b16 %v4188
    %v4316 = vunpack.c.h.b16 %v4188
    %v4317 = vunpack.c.l.b16 %v4189
    %v4318 = vunpack.c.h.b16 %v4189
    %v4319 = vunpack.c.l.b16 %v4190
    %v4320 = vunpack.c.h.b16 %v4190
    %v4321 = vunpack.c.l.b16 %v4191
    %v4322 = vunpack.c.h.b16 %v4191
    %v4323 = vunpack.c.l.b16 %v4192
    %v4324 = vunpack.c.h.b16 %v4192
    %v4325 = vunpack.c.l.b16 %v4193
    %v4326 = vunpack.c.h.b16 %v4193
    %v4327 = vunpack.c.l.b16 %v4194
    %v4328 = vunpack.c.h.b16 %v4194
    %v4329 = vunpack.c.l.b16 %v4195
    %v4330 = vunpack.c.h.b16 %v4195
    %v4331 = vunpack.c.l.b16 %v4196
    %v4332 = vunpack.c.h.b16 %v4196
    %v4333 = vunpack.c.l.b16 %v4197
    %v4334 = vunpack.c.h.b16 %v4197
    %v4335 = vunpack.c.l.b16 %v4198
    %v4336 = vunpack.c.h.b16 %v4198
    %v4337 = vunpack.c.l.b16 %v4199
    %v4338 = vunpack.c.h.b16 %v4199
    %v4339 = vunpack.c.l.b16 %v4200
    %v4340 = vunpack.c.h.b16 %v4200
    %v4341 = vunpack.c.l.b16 %v4201
    %v4342 = vunpack.c.h.b16 %v4201
    %v4343 = vunpack.c.l.b16 %v4202
    %v4344 = vunpack.c.h.b16 %v4202
    %v4345 = vunpack.c.l.b16 %v4203
    %v4346 = vunpack.c.h.b16 %v4203
    %v4347 = vunpack.c.l.b16 %v4204
    %v4348 = vunpack.c.h.b16 %v4204
    %v4349 = vunpack.c.l.b16 %v4205
    %v4350 = vunpack.c.h.b16 %v4205
    %v4351 = vunpack.c.l.b16 %v4206
    %v4352 = vunpack.c.h.b16 %v4206
    %v4353 = vunpack.c.l.b16 %v4207
    %v4354 = vunpack.c.h.b16 %v4207
    %v4355 = vunpack.c.l.b16 %v4208
    %v4356 = vunpack.c.h.b16 %v4208
    %v4357 = vpack.c.b16 %v4267, %v4261
    %v4358 = vpack.c.b16 %v4268, %v4262
    %v4359 = vpack.c.b16 %v4269, %v4263
    %v4360 = vpack.c.b16 %v4270, %v4264
    %v4361 = vpack.c.b16 %v4271, %v4265
    %v4362 = vpack.c.b16 %v4272, %v4266
    %v4363 = vpack.c.b16 %v4279, %v4273
    %v4364 = vpack.c.b16 %v4280, %v4274
    %v4365 = vpack.c.b16 %v4281, %v4275
    %v4366 = vpack.c.b16 %v4282, %v4276
    %v4367 = vpack.c.b16 %v4283, %v4277
    %v4368 = vpack.c.b16 %v4284, %v4278
    %v4369 = vpack.c.b16 %v4291, %v4285
    %v4370 = vpack.c.b16 %v4292, %v4286
    %v4371 = vpack.c.b16 %v4293, %v4287
    %v4372 = vpack.c.b16 %v4294, %v4288
    %v4373 = vpack.c.b16 %v4295, %v4289
    %v4374 = vpack.c.b16 %v4296, %v4290
    %v4375 = vpack.c.b16 %v4303, %v4297
    %v4376 = vpack.c.b16 %v4304, %v4298
    %v4377 = vpack.c.b16 %v4305, %v4299
    %v4378 = vpack.c.b16 %v4306, %v4300
    %v4379 = vpack.c.b16 %v4307, %v4301
    %v4380 = vpack.c.b16 %v4308, %v4302
    %v4381 = vpack.c.b16 %v4315, %v4309
    %v4382 = vpack.c.b16 %v4316, %v4310
    %v4383 = vpack.c.b16 %v4317, %v4311
    %v4384 = vpack.c.b16 %v4318, %v4312
    %v4385 = vpack.c.b16 %v4319, %v4313
    %v4386 = vpack.c.b16 %v4320, %v4314
    %v4387 = vpack.c.b16 %v4327, %v4321
    %v4388 = vpack.c.b16 %v4328, %v4322
    %v4389 = vpack.c.b16 %v4329, %v4323
    %v4390 = vpack.c.b16 %v4330, %v4324
    %v4391 = vpack.c.b16 %v4331, %v4325
    %v4392 = vpack.c.b16 %v4332, %v4326
    %v4393 = vpack.c.b16 %v4339, %v4333
    %v4394 = vpack.c.b16 %v4340, %v4334
    %v4395 = vpack.c.b16 %v4341, %v4335
    %v4396 = vpack.c.b16 %v4342, %v4336
    %v4397 = vpack.c.b16 %v4343, %v4337
    %v4398 = vpack.c.b16 %v4344, %v4338
    %v4399 = vpack.c.b16 %v4351, %v4345
    %v4400 = vpack.c.b16 %v4352, %v4346
    %v4401 = vpack.c.b16 %v4353, %v4347
    %v4402 = vpack.c.b16 %v4354, %v4348
    %v4403 = vpack.c.b16 %v4355, %v4349
    %v4404 = vpack.c.b16 %v4356, %v4350
    %4453 = vmatpush.bf16.msra.mxu0 %v4399
    %4454 = vmatpush.bf16.msra.mxu0 %v4393
    %4455 = vmatpush.bf16.msra.mxu0 %v4387
    %4456 = vmatpush.bf16.msra.mxu0 %v4381
    %4457 = vmatpush.bf16.msra.mxu0 %v4375
    %4458 = vmatpush.bf16.msra.mxu0 %v4369
    %4459 = vmatpush.bf16.msra.mxu0 %v4363
    %4460 = vmatpush.bf16.msra.mxu0 %v4357
    %4461 = vmatmul.bf16.gmra.mxu0 %v4211
    %v4462 = vpop.f32.mrf.mxu0
    %v4463 = vadd.f32 0.0, %v4462
    %v4464 = vpop.f32.mrf.mxu0
    %4465 = vdwg.mxu0
    %4466 = vmatpush.bf16.msra.mxu0 %v4400
    %4467 = vmatpush.bf16.msra.mxu0 %v4394
    %4468 = vmatpush.bf16.msra.mxu0 %v4388
    %4469 = vmatpush.bf16.msra.mxu0 %v4382
    %4470 = vmatpush.bf16.msra.mxu0 %v4376
    %4471 = vmatpush.bf16.msra.mxu0 %v4370
    %4472 = vmatpush.bf16.msra.mxu0 %v4364
    %4473 = vmatpush.bf16.msra.mxu0 %v4358
    %4474 = vmatmul.bf16.gmra.mxu0 %v4211
    %v4475 = vpop.f32.mrf.mxu0
    %v4476 = vadd.f32 0.0, %v4475
    %v4477 = vpop.f32.mrf.mxu0
    %4478 = vdwg.mxu0
    %4479 = vmatpush.bf16.msra.mxu0 %v4401
    %4480 = vmatpush.bf16.msra.mxu0 %v4395
    %4481 = vmatpush.bf16.msra.mxu0 %v4389
    %4482 = vmatpush.bf16.msra.mxu0 %v4383
    %4483 = vmatpush.bf16.msra.mxu0 %v4377
    %4484 = vmatpush.bf16.msra.mxu0 %v4371
    %4485 = vmatpush.bf16.msra.mxu0 %v4365
    %4486 = vmatpush.bf16.msra.mxu0 %v4359
    %4487 = vmatmul.bf16.gmra.mxu0 %v4211
    %v4488 = vpop.f32.mrf.mxu0
    %v4489 = vadd.f32 0.0, %v4488
    %v4490 = vpop.f32.mrf.mxu0
    %4491 = vdwg.mxu0
    %4492 = vmatpush.bf16.msra.mxu0 %v4402
    %4493 = vmatpush.bf16.msra.mxu0 %v4396
    %4494 = vmatpush.bf16.msra.mxu0 %v4390
    %4495 = vmatpush.bf16.msra.mxu0 %v4384
    %4496 = vmatpush.bf16.msra.mxu0 %v4378
    %4497 = vmatpush.bf16.msra.mxu0 %v4372
    %4498 = vmatpush.bf16.msra.mxu0 %v4366
    %4499 = vmatpush.bf16.msra.mxu0 %v4360
    %4500 = vmatmul.bf16.gmra.mxu0 %v4211
    %v4501 = vpop.f32.mrf.mxu0
    %v4502 = vadd.f32 0.0, %v4501
    %v4503 = vpop.f32.mrf.mxu0
    %4504 = vdwg.mxu0
    %4505 = vmatpush.bf16.msra.mxu0 %v4403
    %4506 = vmatpush.bf16.msra.mxu0 %v4397
    %4507 = vmatpush.bf16.msra.mxu0 %v4391
    %4508 = vmatpush.bf16.msra.mxu0 %v4385
    %4509 = vmatpush.bf16.msra.mxu0 %v4379
    %4510 = vmatpush.bf16.msra.mxu0 %v4373
    %4511 = vmatpush.bf16.msra.mxu0 %v4367
    %4512 = vmatpush.bf16.msra.mxu0 %v4361
    %4513 = vmatmul.bf16.gmra.mxu0 %v4211
    %v4514 = vpop.f32.mrf.mxu0
    %v4515 = vadd.f32 0.0, %v4514
    %v4516 = vpop.f32.mrf.mxu0
    %4517 = vdwg.mxu0
    %4518 = vmatpush.bf16.msra.mxu0 %v4404
    %4519 = vmatpush.bf16.msra.mxu0 %v4398
    %4520 = vmatpush.bf16.msra.mxu0 %v4392
    %4521 = vmatpush.bf16.msra.mxu0 %v4386
    %4522 = vmatpush.bf16.msra.mxu0 %v4380
    %4523 = vmatpush.bf16.msra.mxu0 %v4374
    %4524 = vmatpush.bf16.msra.mxu0 %v4368
    %4525 = vmatpush.bf16.msra.mxu0 %v4362
    %4526 = vmatmul.bf16.gmra.mxu0 %v4211
    %v4527 = vpop.f32.mrf.mxu0
    %v4528 = vadd.f32 0.0, %v4527
    %v4529 = vpop.f32.mrf.mxu0
    %4530 = vdwg.mxu0
    %v4531 = vadd.f32 %v4154, %v4463
    %v4532 = vadd.f32 %v4155, %v4476
    %v4533 = vadd.f32 %v4156, %v4489
    %v4534 = vadd.f32 %v4157, %v4502
    %v4535 = vadd.f32 %v4158, %v4515
    %v4536 = vadd.f32 %v4159, %v4528
    %s4537 = scalar_lea.vmem [#allocation2], 3840
    %v4538 = vld [vmem:[%s4537] sm:$0xff]
    %v4539 = vld [vmem:[%s4537 + $0x8] sm:$0xff]
    %v4540 = vld [vmem:[%s4537 + $0x10] sm:$0xff]
    %v4541 = vld [vmem:[%s4537 + $0x18] sm:$0xff]
    %v4542 = vld [vmem:[%s4537 + $0x20] sm:$0xff]
    %v4543 = vld [vmem:[%s4537 + $0x28] sm:$0xff]
    %v4544 = vld [vmem:[%s4537 + $0x30] sm:$0xff]
    %v4545 = vld [vmem:[%s4537 + $0x38] sm:$0xff]
    %v4546 = vld [vmem:[%s4537 + $0x40] sm:$0xff]
    %v4547 = vld [vmem:[%s4537 + $0x48] sm:$0xff]
    %v4548 = vld [vmem:[%s4537 + $0x50] sm:$0xff]
    %v4549 = vld [vmem:[%s4537 + $0x58] sm:$0xff]
    %v4550 = vld [vmem:[%s4537 + $0x60] sm:$0xff]
    %v4551 = vld [vmem:[%s4537 + $0x68] sm:$0xff]
    %v4552 = vld [vmem:[%s4537 + $0x70] sm:$0xff]
    %v4553 = vld [vmem:[%s4537 + $0x78] sm:$0xff]
    %v4554 = vld [vmem:[%s4537 + $0x80] sm:$0xff]
    %v4555 = vld [vmem:[%s4537 + $0x88] sm:$0xff]
    %v4556 = vld [vmem:[%s4537 + $0x90] sm:$0xff]
    %v4557 = vld [vmem:[%s4537 + $0x98] sm:$0xff]
    %v4558 = vld [vmem:[%s4537 + $0xa0] sm:$0xff]
    %v4559 = vld [vmem:[%s4537 + $0xa8] sm:$0xff]
    %v4560 = vld [vmem:[%s4537 + $0xb0] sm:$0xff]
    %v4561 = vld [vmem:[%s4537 + $0xb8] sm:$0xff]
    %v4562 = vld [vmem:[%s4537 + $0xc0] sm:$0xff]
    %v4563 = vld [vmem:[%s4537 + $0xc8] sm:$0xff]
    %v4564 = vld [vmem:[%s4537 + $0xd0] sm:$0xff]
    %v4565 = vld [vmem:[%s4537 + $0xd8] sm:$0xff]
    %v4566 = vld [vmem:[%s4537 + $0xe0] sm:$0xff]
    %v4567 = vld [vmem:[%s4537 + $0xe8] sm:$0xff]
    %v4568 = vld [vmem:[%s4537 + $0xf0] sm:$0xff]
    %v4569 = vld [vmem:[%s4537 + $0xf8] sm:$0xff]
    %v4570 = vld [vmem:[%s4537 + $0x100] sm:$0xff]
    %v4571 = vld [vmem:[%s4537 + $0x108] sm:$0xff]
    %v4572 = vld [vmem:[%s4537 + $0x110] sm:$0xff]
    %v4573 = vld [vmem:[%s4537 + $0x118] sm:$0xff]
    %v4574 = vld [vmem:[%s4537 + $0x120] sm:$0xff]
    %v4575 = vld [vmem:[%s4537 + $0x128] sm:$0xff]
    %v4576 = vld [vmem:[%s4537 + $0x130] sm:$0xff]
    %v4577 = vld [vmem:[%s4537 + $0x138] sm:$0xff]
    %v4578 = vld [vmem:[%s4537 + $0x140] sm:$0xff]
    %v4579 = vld [vmem:[%s4537 + $0x148] sm:$0xff]
    %v4580 = vld [vmem:[%s4537 + $0x150] sm:$0xff]
    %v4581 = vld [vmem:[%s4537 + $0x158] sm:$0xff]
    %v4582 = vld [vmem:[%s4537 + $0x160] sm:$0xff]
    %v4583 = vld [vmem:[%s4537 + $0x168] sm:$0xff]
    %v4584 = vld [vmem:[%s4537 + $0x170] sm:$0xff]
    %v4585 = vld [vmem:[%s4537 + $0x178] sm:$0xff]
    %v4586 = vrot.slane %v3830, 2
    %v4587 = vrot.slane %v3831, 1
    %v4588 = vsel %vm863, %v4587, %v4586
    %v4589 = vpack.c.b16 %v4588, %v4588
    %v4639 = vunpack.c.l.b16 %v4538
    %v4640 = vunpack.c.h.b16 %v4538
    %v4641 = vunpack.c.l.b16 %v4539
    %v4642 = vunpack.c.h.b16 %v4539
    %v4643 = vunpack.c.l.b16 %v4540
    %v4644 = vunpack.c.h.b16 %v4540
    %v4645 = vunpack.c.l.b16 %v4541
    %v4646 = vunpack.c.h.b16 %v4541
    %v4647 = vunpack.c.l.b16 %v4542
    %v4648 = vunpack.c.h.b16 %v4542
    %v4649 = vunpack.c.l.b16 %v4543
    %v4650 = vunpack.c.h.b16 %v4543
    %v4651 = vunpack.c.l.b16 %v4544
    %v4652 = vunpack.c.h.b16 %v4544
    %v4653 = vunpack.c.l.b16 %v4545
    %v4654 = vunpack.c.h.b16 %v4545
    %v4655 = vunpack.c.l.b16 %v4546
    %v4656 = vunpack.c.h.b16 %v4546
    %v4657 = vunpack.c.l.b16 %v4547
    %v4658 = vunpack.c.h.b16 %v4547
    %v4659 = vunpack.c.l.b16 %v4548
    %v4660 = vunpack.c.h.b16 %v4548
    %v4661 = vunpack.c.l.b16 %v4549
    %v4662 = vunpack.c.h.b16 %v4549
    %v4663 = vunpack.c.l.b16 %v4550
    %v4664 = vunpack.c.h.b16 %v4550
    %v4665 = vunpack.c.l.b16 %v4551
    %v4666 = vunpack.c.h.b16 %v4551
    %v4667 = vunpack.c.l.b16 %v4552
    %v4668 = vunpack.c.h.b16 %v4552
    %v4669 = vunpack.c.l.b16 %v4553
    %v4670 = vunpack.c.h.b16 %v4553
    %v4671 = vunpack.c.l.b16 %v4554
    %v4672 = vunpack.c.h.b16 %v4554
    %v4673 = vunpack.c.l.b16 %v4555
    %v4674 = vunpack.c.h.b16 %v4555
    %v4675 = vunpack.c.l.b16 %v4556
    %v4676 = vunpack.c.h.b16 %v4556
    %v4677 = vunpack.c.l.b16 %v4557
    %v4678 = vunpack.c.h.b16 %v4557
    %v4679 = vunpack.c.l.b16 %v4558
    %v4680 = vunpack.c.h.b16 %v4558
    %v4681 = vunpack.c.l.b16 %v4559
    %v4682 = vunpack.c.h.b16 %v4559
    %v4683 = vunpack.c.l.b16 %v4560
    %v4684 = vunpack.c.h.b16 %v4560
    %v4685 = vunpack.c.l.b16 %v4561
    %v4686 = vunpack.c.h.b16 %v4561
    %v4687 = vunpack.c.l.b16 %v4562
    %v4688 = vunpack.c.h.b16 %v4562
    %v4689 = vunpack.c.l.b16 %v4563
    %v4690 = vunpack.c.h.b16 %v4563
    %v4691 = vunpack.c.l.b16 %v4564
    %v4692 = vunpack.c.h.b16 %v4564
    %v4693 = vunpack.c.l.b16 %v4565
    %v4694 = vunpack.c.h.b16 %v4565
    %v4695 = vunpack.c.l.b16 %v4566
    %v4696 = vunpack.c.h.b16 %v4566
    %v4697 = vunpack.c.l.b16 %v4567
    %v4698 = vunpack.c.h.b16 %v4567
    %v4699 = vunpack.c.l.b16 %v4568
    %v4700 = vunpack.c.h.b16 %v4568
    %v4701 = vunpack.c.l.b16 %v4569
    %v4702 = vunpack.c.h.b16 %v4569
    %v4703 = vunpack.c.l.b16 %v4570
    %v4704 = vunpack.c.h.b16 %v4570
    %v4705 = vunpack.c.l.b16 %v4571
    %v4706 = vunpack.c.h.b16 %v4571
    %v4707 = vunpack.c.l.b16 %v4572
    %v4708 = vunpack.c.h.b16 %v4572
    %v4709 = vunpack.c.l.b16 %v4573
    %v4710 = vunpack.c.h.b16 %v4573
    %v4711 = vunpack.c.l.b16 %v4574
    %v4712 = vunpack.c.h.b16 %v4574
    %v4713 = vunpack.c.l.b16 %v4575
    %v4714 = vunpack.c.h.b16 %v4575
    %v4715 = vunpack.c.l.b16 %v4576
    %v4716 = vunpack.c.h.b16 %v4576
    %v4717 = vunpack.c.l.b16 %v4577
    %v4718 = vunpack.c.h.b16 %v4577
    %v4719 = vunpack.c.l.b16 %v4578
    %v4720 = vunpack.c.h.b16 %v4578
    %v4721 = vunpack.c.l.b16 %v4579
    %v4722 = vunpack.c.h.b16 %v4579
    %v4723 = vunpack.c.l.b16 %v4580
    %v4724 = vunpack.c.h.b16 %v4580
    %v4725 = vunpack.c.l.b16 %v4581
    %v4726 = vunpack.c.h.b16 %v4581
    %v4727 = vunpack.c.l.b16 %v4582
    %v4728 = vunpack.c.h.b16 %v4582
    %v4729 = vunpack.c.l.b16 %v4583
    %v4730 = vunpack.c.h.b16 %v4583
    %v4731 = vunpack.c.l.b16 %v4584
    %v4732 = vunpack.c.h.b16 %v4584
    %v4733 = vunpack.c.l.b16 %v4585
    %v4734 = vunpack.c.h.b16 %v4585
    %v4735 = vpack.c.b16 %v4645, %v4639
    %v4736 = vpack.c.b16 %v4646, %v4640
    %v4737 = vpack.c.b16 %v4647, %v4641
    %v4738 = vpack.c.b16 %v4648, %v4642
    %v4739 = vpack.c.b16 %v4649, %v4643
    %v4740 = vpack.c.b16 %v4650, %v4644
    %v4741 = vpack.c.b16 %v4657, %v4651
    %v4742 = vpack.c.b16 %v4658, %v4652
    %v4743 = vpack.c.b16 %v4659, %v4653
    %v4744 = vpack.c.b16 %v4660, %v4654
    %v4745 = vpack.c.b16 %v4661, %v4655
    %v4746 = vpack.c.b16 %v4662, %v4656
    %v4747 = vpack.c.b16 %v4669, %v4663
    %v4748 = vpack.c.b16 %v4670, %v4664
    %v4749 = vpack.c.b16 %v4671, %v4665
    %v4750 = vpack.c.b16 %v4672, %v4666
    %v4751 = vpack.c.b16 %v4673, %v4667
    %v4752 = vpack.c.b16 %v4674, %v4668
    %v4753 = vpack.c.b16 %v4681, %v4675
    %v4754 = vpack.c.b16 %v4682, %v4676
    %v4755 = vpack.c.b16 %v4683, %v4677
    %v4756 = vpack.c.b16 %v4684, %v4678
    %v4757 = vpack.c.b16 %v4685, %v4679
    %v4758 = vpack.c.b16 %v4686, %v4680
    %v4759 = vpack.c.b16 %v4693, %v4687
    %v4760 = vpack.c.b16 %v4694, %v4688
    %v4761 = vpack.c.b16 %v4695, %v4689
    %v4762 = vpack.c.b16 %v4696, %v4690
    %v4763 = vpack.c.b16 %v4697, %v4691
    %v4764 = vpack.c.b16 %v4698, %v4692
    %v4765 = vpack.c.b16 %v4705, %v4699
    %v4766 = vpack.c.b16 %v4706, %v4700
    %v4767 = vpack.c.b16 %v4707, %v4701
    %v4768 = vpack.c.b16 %v4708, %v4702
    %v4769 = vpack.c.b16 %v4709, %v4703
    %v4770 = vpack.c.b16 %v4710, %v4704
    %v4771 = vpack.c.b16 %v4717, %v4711
    %v4772 = vpack.c.b16 %v4718, %v4712
    %v4773 = vpack.c.b16 %v4719, %v4713
    %v4774 = vpack.c.b16 %v4720, %v4714
    %v4775 = vpack.c.b16 %v4721, %v4715
    %v4776 = vpack.c.b16 %v4722, %v4716
    %v4777 = vpack.c.b16 %v4729, %v4723
    %v4778 = vpack.c.b16 %v4730, %v4724
    %v4779 = vpack.c.b16 %v4731, %v4725
    %v4780 = vpack.c.b16 %v4732, %v4726
    %v4781 = vpack.c.b16 %v4733, %v4727
    %v4782 = vpack.c.b16 %v4734, %v4728
    %4831 = vmatpush.bf16.msra.mxu0 %v4777
    %4832 = vmatpush.bf16.msra.mxu0 %v4771
    %4833 = vmatpush.bf16.msra.mxu0 %v4765
    %4834 = vmatpush.bf16.msra.mxu0 %v4759
    %4835 = vmatpush.bf16.msra.mxu0 %v4753
    %4836 = vmatpush.bf16.msra.mxu0 %v4747
    %4837 = vmatpush.bf16.msra.mxu0 %v4741
    %4838 = vmatpush.bf16.msra.mxu0 %v4735
    %4839 = vmatmul.bf16.gmra.mxu0 %v4589
    %v4840 = vpop.f32.mrf.mxu0
    %v4841 = vadd.f32 0.0, %v4840
    %v4842 = vpop.f32.mrf.mxu0
    %4843 = vdwg.mxu0
    %4844 = vmatpush.bf16.msra.mxu0 %v4778
    %4845 = vmatpush.bf16.msra.mxu0 %v4772
    %4846 = vmatpush.bf16.msra.mxu0 %v4766
    %4847 = vmatpush.bf16.msra.mxu0 %v4760
    %4848 = vmatpush.bf16.msra.mxu0 %v4754
    %4849 = vmatpush.bf16.msra.mxu0 %v4748
    %4850 = vmatpush.bf16.msra.mxu0 %v4742
    %4851 = vmatpush.bf16.msra.mxu0 %v4736
    %4852 = vmatmul.bf16.gmra.mxu0 %v4589
    %v4853 = vpop.f32.mrf.mxu0
    %v4854 = vadd.f32 0.0, %v4853
    %v4855 = vpop.f32.mrf.mxu0
    %4856 = vdwg.mxu0
    %4857 = vmatpush.bf16.msra.mxu0 %v4779
    %4858 = vmatpush.bf16.msra.mxu0 %v4773
    %4859 = vmatpush.bf16.msra.mxu0 %v4767
    %4860 = vmatpush.bf16.msra.mxu0 %v4761
    %4861 = vmatpush.bf16.msra.mxu0 %v4755
    %4862 = vmatpush.bf16.msra.mxu0 %v4749
    %4863 = vmatpush.bf16.msra.mxu0 %v4743
    %4864 = vmatpush.bf16.msra.mxu0 %v4737
    %4865 = vmatmul.bf16.gmra.mxu0 %v4589
    %v4866 = vpop.f32.mrf.mxu0
    %v4867 = vadd.f32 0.0, %v4866
    %v4868 = vpop.f32.mrf.mxu0
    %4869 = vdwg.mxu0
    %4870 = vmatpush.bf16.msra.mxu0 %v4780
    %4871 = vmatpush.bf16.msra.mxu0 %v4774
    %4872 = vmatpush.bf16.msra.mxu0 %v4768
    %4873 = vmatpush.bf16.msra.mxu0 %v4762
    %4874 = vmatpush.bf16.msra.mxu0 %v4756
    %4875 = vmatpush.bf16.msra.mxu0 %v4750
    %4876 = vmatpush.bf16.msra.mxu0 %v4744
    %4877 = vmatpush.bf16.msra.mxu0 %v4738
    %4878 = vmatmul.bf16.gmra.mxu0 %v4589
    %v4879 = vpop.f32.mrf.mxu0
    %v4880 = vadd.f32 0.0, %v4879
    %v4881 = vpop.f32.mrf.mxu0
    %4882 = vdwg.mxu0
    %4883 = vmatpush.bf16.msra.mxu0 %v4781
    %4884 = vmatpush.bf16.msra.mxu0 %v4775
    %4885 = vmatpush.bf16.msra.mxu0 %v4769
    %4886 = vmatpush.bf16.msra.mxu0 %v4763
    %4887 = vmatpush.bf16.msra.mxu0 %v4757
    %4888 = vmatpush.bf16.msra.mxu0 %v4751
    %4889 = vmatpush.bf16.msra.mxu0 %v4745
    %4890 = vmatpush.bf16.msra.mxu0 %v4739
    %4891 = vmatmul.bf16.gmra.mxu0 %v4589
    %v4892 = vpop.f32.mrf.mxu0
    %v4893 = vadd.f32 0.0, %v4892
    %v4894 = vpop.f32.mrf.mxu0
    %4895 = vdwg.mxu0
    %4896 = vmatpush.bf16.msra.mxu0 %v4782
    %4897 = vmatpush.bf16.msra.mxu0 %v4776
    %4898 = vmatpush.bf16.msra.mxu0 %v4770
    %4899 = vmatpush.bf16.msra.mxu0 %v4764
    %4900 = vmatpush.bf16.msra.mxu0 %v4758
    %4901 = vmatpush.bf16.msra.mxu0 %v4752
    %4902 = vmatpush.bf16.msra.mxu0 %v4746
    %4903 = vmatpush.bf16.msra.mxu0 %v4740
    %4904 = vmatmul.bf16.gmra.mxu0 %v4589
    %v4905 = vpop.f32.mrf.mxu0
    %v4906 = vadd.f32 0.0, %v4905
    %v4907 = vpop.f32.mrf.mxu0
    %4908 = vdwg.mxu0
    %v4909 = vadd.f32 %v4531, %v4841
    %v4910 = vadd.f32 %v4532, %v4854
    %v4911 = vadd.f32 %v4533, %v4867
    %v4912 = vadd.f32 %v4534, %v4880
    %v4913 = vadd.f32 %v4535, %v4893
    %v4914 = vadd.f32 %v4536, %v4906
    %s4915 = scalar_lea.vmem [#allocation2], 4224
    %v4916 = vld [vmem:[%s4915] sm:$0xff]
    %v4917 = vld [vmem:[%s4915 + $0x8] sm:$0xff]
    %v4918 = vld [vmem:[%s4915 + $0x10] sm:$0xff]
    %v4919 = vld [vmem:[%s4915 + $0x18] sm:$0xff]
    %v4920 = vld [vmem:[%s4915 + $0x20] sm:$0xff]
    %v4921 = vld [vmem:[%s4915 + $0x28] sm:$0xff]
    %v4922 = vld [vmem:[%s4915 + $0x30] sm:$0xff]
    %v4923 = vld [vmem:[%s4915 + $0x38] sm:$0xff]
    %v4924 = vld [vmem:[%s4915 + $0x40] sm:$0xff]
    %v4925 = vld [vmem:[%s4915 + $0x48] sm:$0xff]
    %v4926 = vld [vmem:[%s4915 + $0x50] sm:$0xff]
    %v4927 = vld [vmem:[%s4915 + $0x58] sm:$0xff]
    %v4928 = vld [vmem:[%s4915 + $0x60] sm:$0xff]
    %v4929 = vld [vmem:[%s4915 + $0x68] sm:$0xff]
    %v4930 = vld [vmem:[%s4915 + $0x70] sm:$0xff]
    %v4931 = vld [vmem:[%s4915 + $0x78] sm:$0xff]
    %v4932 = vld [vmem:[%s4915 + $0x80] sm:$0xff]
    %v4933 = vld [vmem:[%s4915 + $0x88] sm:$0xff]
    %v4934 = vld [vmem:[%s4915 + $0x90] sm:$0xff]
    %v4935 = vld [vmem:[%s4915 + $0x98] sm:$0xff]
    %v4936 = vld [vmem:[%s4915 + $0xa0] sm:$0xff]
    %v4937 = vld [vmem:[%s4915 + $0xa8] sm:$0xff]
    %v4938 = vld [vmem:[%s4915 + $0xb0] sm:$0xff]
    %v4939 = vld [vmem:[%s4915 + $0xb8] sm:$0xff]
    %v4940 = vld [vmem:[%s4915 + $0xc0] sm:$0xff]
    %v4941 = vld [vmem:[%s4915 + $0xc8] sm:$0xff]
    %v4942 = vld [vmem:[%s4915 + $0xd0] sm:$0xff]
    %v4943 = vld [vmem:[%s4915 + $0xd8] sm:$0xff]
    %v4944 = vld [vmem:[%s4915 + $0xe0] sm:$0xff]
    %v4945 = vld [vmem:[%s4915 + $0xe8] sm:$0xff]
    %v4946 = vld [vmem:[%s4915 + $0xf0] sm:$0xff]
    %v4947 = vld [vmem:[%s4915 + $0xf8] sm:$0xff]
    %v4948 = vld [vmem:[%s4915 + $0x100] sm:$0xff]
    %v4949 = vld [vmem:[%s4915 + $0x108] sm:$0xff]
    %v4950 = vld [vmem:[%s4915 + $0x110] sm:$0xff]
    %v4951 = vld [vmem:[%s4915 + $0x118] sm:$0xff]
    %v4952 = vld [vmem:[%s4915 + $0x120] sm:$0xff]
    %v4953 = vld [vmem:[%s4915 + $0x128] sm:$0xff]
    %v4954 = vld [vmem:[%s4915 + $0x130] sm:$0xff]
    %v4955 = vld [vmem:[%s4915 + $0x138] sm:$0xff]
    %v4956 = vld [vmem:[%s4915 + $0x140] sm:$0xff]
    %v4957 = vld [vmem:[%s4915 + $0x148] sm:$0xff]
    %v4958 = vld [vmem:[%s4915 + $0x150] sm:$0xff]
    %v4959 = vld [vmem:[%s4915 + $0x158] sm:$0xff]
    %v4960 = vld [vmem:[%s4915 + $0x160] sm:$0xff]
    %v4961 = vld [vmem:[%s4915 + $0x168] sm:$0xff]
    %v4962 = vld [vmem:[%s4915 + $0x170] sm:$0xff]
    %v4963 = vld [vmem:[%s4915 + $0x178] sm:$0xff]
    %v4964 = vrot.slane %v3830, 3
    %v4965 = vrot.slane %v3831, 2
    %v4966 = vsel %vm863, %v4965, %v4964
    %v4967 = vpack.c.b16 %v4966, %v4966
    %v5017 = vunpack.c.l.b16 %v4916
    %v5018 = vunpack.c.h.b16 %v4916
    %v5019 = vunpack.c.l.b16 %v4917
    %v5020 = vunpack.c.h.b16 %v4917
    %v5021 = vunpack.c.l.b16 %v4918
    %v5022 = vunpack.c.h.b16 %v4918
    %v5023 = vunpack.c.l.b16 %v4919
    %v5024 = vunpack.c.h.b16 %v4919
    %v5025 = vunpack.c.l.b16 %v4920
    %v5026 = vunpack.c.h.b16 %v4920
    %v5027 = vunpack.c.l.b16 %v4921
    %v5028 = vunpack.c.h.b16 %v4921
    %v5029 = vunpack.c.l.b16 %v4922
    %v5030 = vunpack.c.h.b16 %v4922
    %v5031 = vunpack.c.l.b16 %v4923
    %v5032 = vunpack.c.h.b16 %v4923
    %v5033 = vunpack.c.l.b16 %v4924
    %v5034 = vunpack.c.h.b16 %v4924
    %v5035 = vunpack.c.l.b16 %v4925
    %v5036 = vunpack.c.h.b16 %v4925
    %v5037 = vunpack.c.l.b16 %v4926
    %v5038 = vunpack.c.h.b16 %v4926
    %v5039 = vunpack.c.l.b16 %v4927
    %v5040 = vunpack.c.h.b16 %v4927
    %v5041 = vunpack.c.l.b16 %v4928
    %v5042 = vunpack.c.h.b16 %v4928
    %v5043 = vunpack.c.l.b16 %v4929
    %v5044 = vunpack.c.h.b16 %v4929
    %v5045 = vunpack.c.l.b16 %v4930
    %v5046 = vunpack.c.h.b16 %v4930
    %v5047 = vunpack.c.l.b16 %v4931
    %v5048 = vunpack.c.h.b16 %v4931
    %v5049 = vunpack.c.l.b16 %v4932
    %v5050 = vunpack.c.h.b16 %v4932
    %v5051 = vunpack.c.l.b16 %v4933
    %v5052 = vunpack.c.h.b16 %v4933
    %v5053 = vunpack.c.l.b16 %v4934
    %v5054 = vunpack.c.h.b16 %v4934
    %v5055 = vunpack.c.l.b16 %v4935
    %v5056 = vunpack.c.h.b16 %v4935
    %v5057 = vunpack.c.l.b16 %v4936
    %v5058 = vunpack.c.h.b16 %v4936
    %v5059 = vunpack.c.l.b16 %v4937
    %v5060 = vunpack.c.h.b16 %v4937
    %v5061 = vunpack.c.l.b16 %v4938
    %v5062 = vunpack.c.h.b16 %v4938
    %v5063 = vunpack.c.l.b16 %v4939
    %v5064 = vunpack.c.h.b16 %v4939
    %v5065 = vunpack.c.l.b16 %v4940
    %v5066 = vunpack.c.h.b16 %v4940
    %v5067 = vunpack.c.l.b16 %v4941
    %v5068 = vunpack.c.h.b16 %v4941
    %v5069 = vunpack.c.l.b16 %v4942
    %v5070 = vunpack.c.h.b16 %v4942
    %v5071 = vunpack.c.l.b16 %v4943
    %v5072 = vunpack.c.h.b16 %v4943
    %v5073 = vunpack.c.l.b16 %v4944
    %v5074 = vunpack.c.h.b16 %v4944
    %v5075 = vunpack.c.l.b16 %v4945
    %v5076 = vunpack.c.h.b16 %v4945
    %v5077 = vunpack.c.l.b16 %v4946
    %v5078 = vunpack.c.h.b16 %v4946
    %v5079 = vunpack.c.l.b16 %v4947
    %v5080 = vunpack.c.h.b16 %v4947
    %v5081 = vunpack.c.l.b16 %v4948
    %v5082 = vunpack.c.h.b16 %v4948
    %v5083 = vunpack.c.l.b16 %v4949
    %v5084 = vunpack.c.h.b16 %v4949
    %v5085 = vunpack.c.l.b16 %v4950
    %v5086 = vunpack.c.h.b16 %v4950
    %v5087 = vunpack.c.l.b16 %v4951
    %v5088 = vunpack.c.h.b16 %v4951
    %v5089 = vunpack.c.l.b16 %v4952
    %v5090 = vunpack.c.h.b16 %v4952
    %v5091 = vunpack.c.l.b16 %v4953
    %v5092 = vunpack.c.h.b16 %v4953
    %v5093 = vunpack.c.l.b16 %v4954
    %v5094 = vunpack.c.h.b16 %v4954
    %v5095 = vunpack.c.l.b16 %v4955
    %v5096 = vunpack.c.h.b16 %v4955
    %v5097 = vunpack.c.l.b16 %v4956
    %v5098 = vunpack.c.h.b16 %v4956
    %v5099 = vunpack.c.l.b16 %v4957
    %v5100 = vunpack.c.h.b16 %v4957
    %v5101 = vunpack.c.l.b16 %v4958
    %v5102 = vunpack.c.h.b16 %v4958
    %v5103 = vunpack.c.l.b16 %v4959
    %v5104 = vunpack.c.h.b16 %v4959
    %v5105 = vunpack.c.l.b16 %v4960
    %v5106 = vunpack.c.h.b16 %v4960
    %v5107 = vunpack.c.l.b16 %v4961
    %v5108 = vunpack.c.h.b16 %v4961
    %v5109 = vunpack.c.l.b16 %v4962
    %v5110 = vunpack.c.h.b16 %v4962
    %v5111 = vunpack.c.l.b16 %v4963
    %v5112 = vunpack.c.h.b16 %v4963
    %v5113 = vpack.c.b16 %v5023, %v5017
    %v5114 = vpack.c.b16 %v5024, %v5018
    %v5115 = vpack.c.b16 %v5025, %v5019
    %v5116 = vpack.c.b16 %v5026, %v5020
    %v5117 = vpack.c.b16 %v5027, %v5021
    %v5118 = vpack.c.b16 %v5028, %v5022
    %v5119 = vpack.c.b16 %v5035, %v5029
    %v5120 = vpack.c.b16 %v5036, %v5030
    %v5121 = vpack.c.b16 %v5037, %v5031
    %v5122 = vpack.c.b16 %v5038, %v5032
    %v5123 = vpack.c.b16 %v5039, %v5033
    %v5124 = vpack.c.b16 %v5040, %v5034
    %v5125 = vpack.c.b16 %v5047, %v5041
    %v5126 = vpack.c.b16 %v5048, %v5042
    %v5127 = vpack.c.b16 %v5049, %v5043
    %v5128 = vpack.c.b16 %v5050, %v5044
    %v5129 = vpack.c.b16 %v5051, %v5045
    %v5130 = vpack.c.b16 %v5052, %v5046
    %v5131 = vpack.c.b16 %v5059, %v5053
    %v5132 = vpack.c.b16 %v5060, %v5054
    %v5133 = vpack.c.b16 %v5061, %v5055
    %v5134 = vpack.c.b16 %v5062, %v5056
    %v5135 = vpack.c.b16 %v5063, %v5057
    %v5136 = vpack.c.b16 %v5064, %v5058
    %v5137 = vpack.c.b16 %v5071, %v5065
    %v5138 = vpack.c.b16 %v5072, %v5066
    %v5139 = vpack.c.b16 %v5073, %v5067
    %v5140 = vpack.c.b16 %v5074, %v5068
    %v5141 = vpack.c.b16 %v5075, %v5069
    %v5142 = vpack.c.b16 %v5076, %v5070
    %v5143 = vpack.c.b16 %v5083, %v5077
    %v5144 = vpack.c.b16 %v5084, %v5078
    %v5145 = vpack.c.b16 %v5085, %v5079
    %v5146 = vpack.c.b16 %v5086, %v5080
    %v5147 = vpack.c.b16 %v5087, %v5081
    %v5148 = vpack.c.b16 %v5088, %v5082
    %v5149 = vpack.c.b16 %v5095, %v5089
    %v5150 = vpack.c.b16 %v5096, %v5090
    %v5151 = vpack.c.b16 %v5097, %v5091
    %v5152 = vpack.c.b16 %v5098, %v5092
    %v5153 = vpack.c.b16 %v5099, %v5093
    %v5154 = vpack.c.b16 %v5100, %v5094
    %v5155 = vpack.c.b16 %v5107, %v5101
    %v5156 = vpack.c.b16 %v5108, %v5102
    %v5157 = vpack.c.b16 %v5109, %v5103
    %v5158 = vpack.c.b16 %v5110, %v5104
    %v5159 = vpack.c.b16 %v5111, %v5105
    %v5160 = vpack.c.b16 %v5112, %v5106
    %5209 = vmatpush.bf16.msra.mxu0 %v5155
    %5210 = vmatpush.bf16.msra.mxu0 %v5149
    %5211 = vmatpush.bf16.msra.mxu0 %v5143
    %5212 = vmatpush.bf16.msra.mxu0 %v5137
    %5213 = vmatpush.bf16.msra.mxu0 %v5131
    %5214 = vmatpush.bf16.msra.mxu0 %v5125
    %5215 = vmatpush.bf16.msra.mxu0 %v5119
    %5216 = vmatpush.bf16.msra.mxu0 %v5113
    %5217 = vmatmul.bf16.gmra.mxu0 %v4967
    %v5218 = vpop.f32.mrf.mxu0
    %v5219 = vadd.f32 0.0, %v5218
    %v5220 = vpop.f32.mrf.mxu0
    %5221 = vdwg.mxu0
    %5222 = vmatpush.bf16.msra.mxu0 %v5156
    %5223 = vmatpush.bf16.msra.mxu0 %v5150
    %5224 = vmatpush.bf16.msra.mxu0 %v5144
    %5225 = vmatpush.bf16.msra.mxu0 %v5138
    %5226 = vmatpush.bf16.msra.mxu0 %v5132
    %5227 = vmatpush.bf16.msra.mxu0 %v5126
    %5228 = vmatpush.bf16.msra.mxu0 %v5120
    %5229 = vmatpush.bf16.msra.mxu0 %v5114
    %5230 = vmatmul.bf16.gmra.mxu0 %v4967
    %v5231 = vpop.f32.mrf.mxu0
    %v5232 = vadd.f32 0.0, %v5231
    %v5233 = vpop.f32.mrf.mxu0
    %5234 = vdwg.mxu0
    %5235 = vmatpush.bf16.msra.mxu0 %v5157
    %5236 = vmatpush.bf16.msra.mxu0 %v5151
    %5237 = vmatpush.bf16.msra.mxu0 %v5145
    %5238 = vmatpush.bf16.msra.mxu0 %v5139
    %5239 = vmatpush.bf16.msra.mxu0 %v5133
    %5240 = vmatpush.bf16.msra.mxu0 %v5127
    %5241 = vmatpush.bf16.msra.mxu0 %v5121
    %5242 = vmatpush.bf16.msra.mxu0 %v5115
    %5243 = vmatmul.bf16.gmra.mxu0 %v4967
    %v5244 = vpop.f32.mrf.mxu0
    %v5245 = vadd.f32 0.0, %v5244
    %v5246 = vpop.f32.mrf.mxu0
    %5247 = vdwg.mxu0
    %5248 = vmatpush.bf16.msra.mxu0 %v5158
    %5249 = vmatpush.bf16.msra.mxu0 %v5152
    %5250 = vmatpush.bf16.msra.mxu0 %v5146
    %5251 = vmatpush.bf16.msra.mxu0 %v5140
    %5252 = vmatpush.bf16.msra.mxu0 %v5134
    %5253 = vmatpush.bf16.msra.mxu0 %v5128
    %5254 = vmatpush.bf16.msra.mxu0 %v5122
    %5255 = vmatpush.bf16.msra.mxu0 %v5116
    %5256 = vmatmul.bf16.gmra.mxu0 %v4967
    %v5257 = vpop.f32.mrf.mxu0
    %v5258 = vadd.f32 0.0, %v5257
    %v5259 = vpop.f32.mrf.mxu0
    %5260 = vdwg.mxu0
    %5261 = vmatpush.bf16.msra.mxu0 %v5159
    %5262 = vmatpush.bf16.msra.mxu0 %v5153
    %5263 = vmatpush.bf16.msra.mxu0 %v5147
    %5264 = vmatpush.bf16.msra.mxu0 %v5141
    %5265 = vmatpush.bf16.msra.mxu0 %v5135
    %5266 = vmatpush.bf16.msra.mxu0 %v5129
    %5267 = vmatpush.bf16.msra.mxu0 %v5123
    %5268 = vmatpush.bf16.msra.mxu0 %v5117
    %5269 = vmatmul.bf16.gmra.mxu0 %v4967
    %v5270 = vpop.f32.mrf.mxu0
    %v5271 = vadd.f32 0.0, %v5270
    %v5272 = vpop.f32.mrf.mxu0
    %5273 = vdwg.mxu0
    %5274 = vmatpush.bf16.msra.mxu0 %v5160
    %5275 = vmatpush.bf16.msra.mxu0 %v5154
    %5276 = vmatpush.bf16.msra.mxu0 %v5148
    %5277 = vmatpush.bf16.msra.mxu0 %v5142
    %5278 = vmatpush.bf16.msra.mxu0 %v5136
    %5279 = vmatpush.bf16.msra.mxu0 %v5130
    %5280 = vmatpush.bf16.msra.mxu0 %v5124
    %5281 = vmatpush.bf16.msra.mxu0 %v5118
    %5282 = vmatmul.bf16.gmra.mxu0 %v4967
    %v5283 = vpop.f32.mrf.mxu0
    %v5284 = vadd.f32 0.0, %v5283
    %v5285 = vpop.f32.mrf.mxu0
    %5286 = vdwg.mxu0
    %v5287 = vadd.f32 %v4909, %v5219
    %v5288 = vadd.f32 %v4910, %v5232
    %v5289 = vadd.f32 %v4911, %v5245
    %v5290 = vadd.f32 %v4912, %v5258
    %v5291 = vadd.f32 %v4913, %v5271
    %v5292 = vadd.f32 %v4914, %v5284
    %s5293 = scalar_lea.vmem [#allocation2], 4608
    %v5294 = vld [vmem:[%s5293] sm:$0xff]
    %v5295 = vld [vmem:[%s5293 + $0x8] sm:$0xff]
    %v5296 = vld [vmem:[%s5293 + $0x10] sm:$0xff]
    %v5297 = vld [vmem:[%s5293 + $0x18] sm:$0xff]
    %v5298 = vld [vmem:[%s5293 + $0x20] sm:$0xff]
    %v5299 = vld [vmem:[%s5293 + $0x28] sm:$0xff]
    %v5300 = vld [vmem:[%s5293 + $0x30] sm:$0xff]
    %v5301 = vld [vmem:[%s5293 + $0x38] sm:$0xff]
    %v5302 = vld [vmem:[%s5293 + $0x40] sm:$0xff]
    %v5303 = vld [vmem:[%s5293 + $0x48] sm:$0xff]
    %v5304 = vld [vmem:[%s5293 + $0x50] sm:$0xff]
    %v5305 = vld [vmem:[%s5293 + $0x58] sm:$0xff]
    %v5306 = vld [vmem:[%s5293 + $0x60] sm:$0xff]
    %v5307 = vld [vmem:[%s5293 + $0x68] sm:$0xff]
    %v5308 = vld [vmem:[%s5293 + $0x70] sm:$0xff]
    %v5309 = vld [vmem:[%s5293 + $0x78] sm:$0xff]
    %v5310 = vld [vmem:[%s5293 + $0x80] sm:$0xff]
    %v5311 = vld [vmem:[%s5293 + $0x88] sm:$0xff]
    %v5312 = vld [vmem:[%s5293 + $0x90] sm:$0xff]
    %v5313 = vld [vmem:[%s5293 + $0x98] sm:$0xff]
    %v5314 = vld [vmem:[%s5293 + $0xa0] sm:$0xff]
    %v5315 = vld [vmem:[%s5293 + $0xa8] sm:$0xff]
    %v5316 = vld [vmem:[%s5293 + $0xb0] sm:$0xff]
    %v5317 = vld [vmem:[%s5293 + $0xb8] sm:$0xff]
    %v5318 = vld [vmem:[%s5293 + $0xc0] sm:$0xff]
    %v5319 = vld [vmem:[%s5293 + $0xc8] sm:$0xff]
    %v5320 = vld [vmem:[%s5293 + $0xd0] sm:$0xff]
    %v5321 = vld [vmem:[%s5293 + $0xd8] sm:$0xff]
    %v5322 = vld [vmem:[%s5293 + $0xe0] sm:$0xff]
    %v5323 = vld [vmem:[%s5293 + $0xe8] sm:$0xff]
    %v5324 = vld [vmem:[%s5293 + $0xf0] sm:$0xff]
    %v5325 = vld [vmem:[%s5293 + $0xf8] sm:$0xff]
    %v5326 = vld [vmem:[%s5293 + $0x100] sm:$0xff]
    %v5327 = vld [vmem:[%s5293 + $0x108] sm:$0xff]
    %v5328 = vld [vmem:[%s5293 + $0x110] sm:$0xff]
    %v5329 = vld [vmem:[%s5293 + $0x118] sm:$0xff]
    %v5330 = vld [vmem:[%s5293 + $0x120] sm:$0xff]
    %v5331 = vld [vmem:[%s5293 + $0x128] sm:$0xff]
    %v5332 = vld [vmem:[%s5293 + $0x130] sm:$0xff]
    %v5333 = vld [vmem:[%s5293 + $0x138] sm:$0xff]
    %v5334 = vld [vmem:[%s5293 + $0x140] sm:$0xff]
    %v5335 = vld [vmem:[%s5293 + $0x148] sm:$0xff]
    %v5336 = vld [vmem:[%s5293 + $0x150] sm:$0xff]
    %v5337 = vld [vmem:[%s5293 + $0x158] sm:$0xff]
    %v5338 = vld [vmem:[%s5293 + $0x160] sm:$0xff]
    %v5339 = vld [vmem:[%s5293 + $0x168] sm:$0xff]
    %v5340 = vld [vmem:[%s5293 + $0x170] sm:$0xff]
    %v5341 = vld [vmem:[%s5293 + $0x178] sm:$0xff]
    %v5342 = vrot.slane %v3830, 4
    %v5343 = vrot.slane %v3831, 3
    %v5344 = vsel %vm863, %v5343, %v5342
    %v5345 = vpack.c.b16 %v5344, %v5344
    %v5395 = vunpack.c.l.b16 %v5294
    %v5396 = vunpack.c.h.b16 %v5294
    %v5397 = vunpack.c.l.b16 %v5295
    %v5398 = vunpack.c.h.b16 %v5295
    %v5399 = vunpack.c.l.b16 %v5296
    %v5400 = vunpack.c.h.b16 %v5296
    %v5401 = vunpack.c.l.b16 %v5297
    %v5402 = vunpack.c.h.b16 %v5297
    %v5403 = vunpack.c.l.b16 %v5298
    %v5404 = vunpack.c.h.b16 %v5298
    %v5405 = vunpack.c.l.b16 %v5299
    %v5406 = vunpack.c.h.b16 %v5299
    %v5407 = vunpack.c.l.b16 %v5300
    %v5408 = vunpack.c.h.b16 %v5300
    %v5409 = vunpack.c.l.b16 %v5301
    %v5410 = vunpack.c.h.b16 %v5301
    %v5411 = vunpack.c.l.b16 %v5302
    %v5412 = vunpack.c.h.b16 %v5302
    %v5413 = vunpack.c.l.b16 %v5303
    %v5414 = vunpack.c.h.b16 %v5303
    %v5415 = vunpack.c.l.b16 %v5304
    %v5416 = vunpack.c.h.b16 %v5304
    %v5417 = vunpack.c.l.b16 %v5305
    %v5418 = vunpack.c.h.b16 %v5305
    %v5419 = vunpack.c.l.b16 %v5306
    %v5420 = vunpack.c.h.b16 %v5306
    %v5421 = vunpack.c.l.b16 %v5307
    %v5422 = vunpack.c.h.b16 %v5307
    %v5423 = vunpack.c.l.b16 %v5308
    %v5424 = vunpack.c.h.b16 %v5308
    %v5425 = vunpack.c.l.b16 %v5309
    %v5426 = vunpack.c.h.b16 %v5309
    %v5427 = vunpack.c.l.b16 %v5310
    %v5428 = vunpack.c.h.b16 %v5310
    %v5429 = vunpack.c.l.b16 %v5311
    %v5430 = vunpack.c.h.b16 %v5311
    %v5431 = vunpack.c.l.b16 %v5312
    %v5432 = vunpack.c.h.b16 %v5312
    %v5433 = vunpack.c.l.b16 %v5313
    %v5434 = vunpack.c.h.b16 %v5313
    %v5435 = vunpack.c.l.b16 %v5314
    %v5436 = vunpack.c.h.b16 %v5314
    %v5437 = vunpack.c.l.b16 %v5315
    %v5438 = vunpack.c.h.b16 %v5315
    %v5439 = vunpack.c.l.b16 %v5316
    %v5440 = vunpack.c.h.b16 %v5316
    %v5441 = vunpack.c.l.b16 %v5317
    %v5442 = vunpack.c.h.b16 %v5317
    %v5443 = vunpack.c.l.b16 %v5318
    %v5444 = vunpack.c.h.b16 %v5318
    %v5445 = vunpack.c.l.b16 %v5319
    %v5446 = vunpack.c.h.b16 %v5319
    %v5447 = vunpack.c.l.b16 %v5320
    %v5448 = vunpack.c.h.b16 %v5320
    %v5449 = vunpack.c.l.b16 %v5321
    %v5450 = vunpack.c.h.b16 %v5321
    %v5451 = vunpack.c.l.b16 %v5322
    %v5452 = vunpack.c.h.b16 %v5322
    %v5453 = vunpack.c.l.b16 %v5323
    %v5454 = vunpack.c.h.b16 %v5323
    %v5455 = vunpack.c.l.b16 %v5324
    %v5456 = vunpack.c.h.b16 %v5324
    %v5457 = vunpack.c.l.b16 %v5325
    %v5458 = vunpack.c.h.b16 %v5325
    %v5459 = vunpack.c.l.b16 %v5326
    %v5460 = vunpack.c.h.b16 %v5326
    %v5461 = vunpack.c.l.b16 %v5327
    %v5462 = vunpack.c.h.b16 %v5327
    %v5463 = vunpack.c.l.b16 %v5328
    %v5464 = vunpack.c.h.b16 %v5328
    %v5465 = vunpack.c.l.b16 %v5329
    %v5466 = vunpack.c.h.b16 %v5329
    %v5467 = vunpack.c.l.b16 %v5330
    %v5468 = vunpack.c.h.b16 %v5330
    %v5469 = vunpack.c.l.b16 %v5331
    %v5470 = vunpack.c.h.b16 %v5331
    %v5471 = vunpack.c.l.b16 %v5332
    %v5472 = vunpack.c.h.b16 %v5332
    %v5473 = vunpack.c.l.b16 %v5333
    %v5474 = vunpack.c.h.b16 %v5333
    %v5475 = vunpack.c.l.b16 %v5334
    %v5476 = vunpack.c.h.b16 %v5334
    %v5477 = vunpack.c.l.b16 %v5335
    %v5478 = vunpack.c.h.b16 %v5335
    %v5479 = vunpack.c.l.b16 %v5336
    %v5480 = vunpack.c.h.b16 %v5336
    %v5481 = vunpack.c.l.b16 %v5337
    %v5482 = vunpack.c.h.b16 %v5337
    %v5483 = vunpack.c.l.b16 %v5338
    %v5484 = vunpack.c.h.b16 %v5338
    %v5485 = vunpack.c.l.b16 %v5339
    %v5486 = vunpack.c.h.b16 %v5339
    %v5487 = vunpack.c.l.b16 %v5340
    %v5488 = vunpack.c.h.b16 %v5340
    %v5489 = vunpack.c.l.b16 %v5341
    %v5490 = vunpack.c.h.b16 %v5341
    %v5491 = vpack.c.b16 %v5401, %v5395
    %v5492 = vpack.c.b16 %v5402, %v5396
    %v5493 = vpack.c.b16 %v5403, %v5397
    %v5494 = vpack.c.b16 %v5404, %v5398
    %v5495 = vpack.c.b16 %v5405, %v5399
    %v5496 = vpack.c.b16 %v5406, %v5400
    %v5497 = vpack.c.b16 %v5413, %v5407
    %v5498 = vpack.c.b16 %v5414, %v5408
    %v5499 = vpack.c.b16 %v5415, %v5409
    %v5500 = vpack.c.b16 %v5416, %v5410
    %v5501 = vpack.c.b16 %v5417, %v5411
    %v5502 = vpack.c.b16 %v5418, %v5412
    %v5503 = vpack.c.b16 %v5425, %v5419
    %v5504 = vpack.c.b16 %v5426, %v5420
    %v5505 = vpack.c.b16 %v5427, %v5421
    %v5506 = vpack.c.b16 %v5428, %v5422
    %v5507 = vpack.c.b16 %v5429, %v5423
    %v5508 = vpack.c.b16 %v5430, %v5424
    %v5509 = vpack.c.b16 %v5437, %v5431
    %v5510 = vpack.c.b16 %v5438, %v5432
    %v5511 = vpack.c.b16 %v5439, %v5433
    %v5512 = vpack.c.b16 %v5440, %v5434
    %v5513 = vpack.c.b16 %v5441, %v5435
    %v5514 = vpack.c.b16 %v5442, %v5436
    %v5515 = vpack.c.b16 %v5449, %v5443
    %v5516 = vpack.c.b16 %v5450, %v5444
    %v5517 = vpack.c.b16 %v5451, %v5445
    %v5518 = vpack.c.b16 %v5452, %v5446
    %v5519 = vpack.c.b16 %v5453, %v5447
    %v5520 = vpack.c.b16 %v5454, %v5448
    %v5521 = vpack.c.b16 %v5461, %v5455
    %v5522 = vpack.c.b16 %v5462, %v5456
    %v5523 = vpack.c.b16 %v5463, %v5457
    %v5524 = vpack.c.b16 %v5464, %v5458
    %v5525 = vpack.c.b16 %v5465, %v5459
    %v5526 = vpack.c.b16 %v5466, %v5460
    %v5527 = vpack.c.b16 %v5473, %v5467
    %v5528 = vpack.c.b16 %v5474, %v5468
    %v5529 = vpack.c.b16 %v5475, %v5469
    %v5530 = vpack.c.b16 %v5476, %v5470
    %v5531 = vpack.c.b16 %v5477, %v5471
    %v5532 = vpack.c.b16 %v5478, %v5472
    %v5533 = vpack.c.b16 %v5485, %v5479
    %v5534 = vpack.c.b16 %v5486, %v5480
    %v5535 = vpack.c.b16 %v5487, %v5481
    %v5536 = vpack.c.b16 %v5488, %v5482
    %v5537 = vpack.c.b16 %v5489, %v5483
    %v5538 = vpack.c.b16 %v5490, %v5484
    %5587 = vmatpush.bf16.msra.mxu0 %v5533
    %5588 = vmatpush.bf16.msra.mxu0 %v5527
    %5589 = vmatpush.bf16.msra.mxu0 %v5521
    %5590 = vmatpush.bf16.msra.mxu0 %v5515
    %5591 = vmatpush.bf16.msra.mxu0 %v5509
    %5592 = vmatpush.bf16.msra.mxu0 %v5503
    %5593 = vmatpush.bf16.msra.mxu0 %v5497
    %5594 = vmatpush.bf16.msra.mxu0 %v5491
    %5595 = vmatmul.bf16.gmra.mxu0 %v5345
    %v5596 = vpop.f32.mrf.mxu0
    %v5597 = vadd.f32 0.0, %v5596
    %v5598 = vpop.f32.mrf.mxu0
    %5599 = vdwg.mxu0
    %5600 = vmatpush.bf16.msra.mxu0 %v5534
    %5601 = vmatpush.bf16.msra.mxu0 %v5528
    %5602 = vmatpush.bf16.msra.mxu0 %v5522
    %5603 = vmatpush.bf16.msra.mxu0 %v5516
    %5604 = vmatpush.bf16.msra.mxu0 %v5510
    %5605 = vmatpush.bf16.msra.mxu0 %v5504
    %5606 = vmatpush.bf16.msra.mxu0 %v5498
    %5607 = vmatpush.bf16.msra.mxu0 %v5492
    %5608 = vmatmul.bf16.gmra.mxu0 %v5345
    %v5609 = vpop.f32.mrf.mxu0
    %v5610 = vadd.f32 0.0, %v5609
    %v5611 = vpop.f32.mrf.mxu0
    %5612 = vdwg.mxu0
    %5613 = vmatpush.bf16.msra.mxu0 %v5535
    %5614 = vmatpush.bf16.msra.mxu0 %v5529
    %5615 = vmatpush.bf16.msra.mxu0 %v5523
    %5616 = vmatpush.bf16.msra.mxu0 %v5517
    %5617 = vmatpush.bf16.msra.mxu0 %v5511
    %5618 = vmatpush.bf16.msra.mxu0 %v5505
    %5619 = vmatpush.bf16.msra.mxu0 %v5499
    %5620 = vmatpush.bf16.msra.mxu0 %v5493
    %5621 = vmatmul.bf16.gmra.mxu0 %v5345
    %v5622 = vpop.f32.mrf.mxu0
    %v5623 = vadd.f32 0.0, %v5622
    %v5624 = vpop.f32.mrf.mxu0
    %5625 = vdwg.mxu0
    %5626 = vmatpush.bf16.msra.mxu0 %v5536
    %5627 = vmatpush.bf16.msra.mxu0 %v5530
    %5628 = vmatpush.bf16.msra.mxu0 %v5524
    %5629 = vmatpush.bf16.msra.mxu0 %v5518
    %5630 = vmatpush.bf16.msra.mxu0 %v5512
    %5631 = vmatpush.bf16.msra.mxu0 %v5506
    %5632 = vmatpush.bf16.msra.mxu0 %v5500
    %5633 = vmatpush.bf16.msra.mxu0 %v5494
    %5634 = vmatmul.bf16.gmra.mxu0 %v5345
    %v5635 = vpop.f32.mrf.mxu0
    %v5636 = vadd.f32 0.0, %v5635
    %v5637 = vpop.f32.mrf.mxu0
    %5638 = vdwg.mxu0
    %5639 = vmatpush.bf16.msra.mxu0 %v5537
    %5640 = vmatpush.bf16.msra.mxu0 %v5531
    %5641 = vmatpush.bf16.msra.mxu0 %v5525
    %5642 = vmatpush.bf16.msra.mxu0 %v5519
    %5643 = vmatpush.bf16.msra.mxu0 %v5513
    %5644 = vmatpush.bf16.msra.mxu0 %v5507
    %5645 = vmatpush.bf16.msra.mxu0 %v5501
    %5646 = vmatpush.bf16.msra.mxu0 %v5495
    %5647 = vmatmul.bf16.gmra.mxu0 %v5345
    %v5648 = vpop.f32.mrf.mxu0
    %v5649 = vadd.f32 0.0, %v5648
    %v5650 = vpop.f32.mrf.mxu0
    %5651 = vdwg.mxu0
    %5652 = vmatpush.bf16.msra.mxu0 %v5538
    %5653 = vmatpush.bf16.msra.mxu0 %v5532
    %5654 = vmatpush.bf16.msra.mxu0 %v5526
    %5655 = vmatpush.bf16.msra.mxu0 %v5520
    %5656 = vmatpush.bf16.msra.mxu0 %v5514
    %5657 = vmatpush.bf16.msra.mxu0 %v5508
    %5658 = vmatpush.bf16.msra.mxu0 %v5502
    %5659 = vmatpush.bf16.msra.mxu0 %v5496
    %5660 = vmatmul.bf16.gmra.mxu0 %v5345
    %v5661 = vpop.f32.mrf.mxu0
    %v5662 = vadd.f32 0.0, %v5661
    %v5663 = vpop.f32.mrf.mxu0
    %5664 = vdwg.mxu0
    %v5665 = vadd.f32 %v5287, %v5597
    %v5666 = vadd.f32 %v5288, %v5610
    %v5667 = vadd.f32 %v5289, %v5623
    %v5668 = vadd.f32 %v5290, %v5636
    %v5669 = vadd.f32 %v5291, %v5649
    %v5670 = vadd.f32 %v5292, %v5662
    %s5671 = scalar_lea.vmem [#allocation2], 4992
    %v5672 = vld [vmem:[%s5671] sm:$0xff]
    %v5673 = vld [vmem:[%s5671 + $0x8] sm:$0xff]
    %v5674 = vld [vmem:[%s5671 + $0x10] sm:$0xff]
    %v5675 = vld [vmem:[%s5671 + $0x18] sm:$0xff]
    %v5676 = vld [vmem:[%s5671 + $0x20] sm:$0xff]
    %v5677 = vld [vmem:[%s5671 + $0x28] sm:$0xff]
    %v5678 = vld [vmem:[%s5671 + $0x30] sm:$0xff]
    %v5679 = vld [vmem:[%s5671 + $0x38] sm:$0xff]
    %v5680 = vld [vmem:[%s5671 + $0x40] sm:$0xff]
    %v5681 = vld [vmem:[%s5671 + $0x48] sm:$0xff]
    %v5682 = vld [vmem:[%s5671 + $0x50] sm:$0xff]
    %v5683 = vld [vmem:[%s5671 + $0x58] sm:$0xff]
    %v5684 = vld [vmem:[%s5671 + $0x60] sm:$0xff]
    %v5685 = vld [vmem:[%s5671 + $0x68] sm:$0xff]
    %v5686 = vld [vmem:[%s5671 + $0x70] sm:$0xff]
    %v5687 = vld [vmem:[%s5671 + $0x78] sm:$0xff]
    %v5688 = vld [vmem:[%s5671 + $0x80] sm:$0xff]
    %v5689 = vld [vmem:[%s5671 + $0x88] sm:$0xff]
    %v5690 = vld [vmem:[%s5671 + $0x90] sm:$0xff]
    %v5691 = vld [vmem:[%s5671 + $0x98] sm:$0xff]
    %v5692 = vld [vmem:[%s5671 + $0xa0] sm:$0xff]
    %v5693 = vld [vmem:[%s5671 + $0xa8] sm:$0xff]
    %v5694 = vld [vmem:[%s5671 + $0xb0] sm:$0xff]
    %v5695 = vld [vmem:[%s5671 + $0xb8] sm:$0xff]
    %v5696 = vld [vmem:[%s5671 + $0xc0] sm:$0xff]
    %v5697 = vld [vmem:[%s5671 + $0xc8] sm:$0xff]
    %v5698 = vld [vmem:[%s5671 + $0xd0] sm:$0xff]
    %v5699 = vld [vmem:[%s5671 + $0xd8] sm:$0xff]
    %v5700 = vld [vmem:[%s5671 + $0xe0] sm:$0xff]
    %v5701 = vld [vmem:[%s5671 + $0xe8] sm:$0xff]
    %v5702 = vld [vmem:[%s5671 + $0xf0] sm:$0xff]
    %v5703 = vld [vmem:[%s5671 + $0xf8] sm:$0xff]
    %v5704 = vld [vmem:[%s5671 + $0x100] sm:$0xff]
    %v5705 = vld [vmem:[%s5671 + $0x108] sm:$0xff]
    %v5706 = vld [vmem:[%s5671 + $0x110] sm:$0xff]
    %v5707 = vld [vmem:[%s5671 + $0x118] sm:$0xff]
    %v5708 = vld [vmem:[%s5671 + $0x120] sm:$0xff]
    %v5709 = vld [vmem:[%s5671 + $0x128] sm:$0xff]
    %v5710 = vld [vmem:[%s5671 + $0x130] sm:$0xff]
    %v5711 = vld [vmem:[%s5671 + $0x138] sm:$0xff]
    %v5712 = vld [vmem:[%s5671 + $0x140] sm:$0xff]
    %v5713 = vld [vmem:[%s5671 + $0x148] sm:$0xff]
    %v5714 = vld [vmem:[%s5671 + $0x150] sm:$0xff]
    %v5715 = vld [vmem:[%s5671 + $0x158] sm:$0xff]
    %v5716 = vld [vmem:[%s5671 + $0x160] sm:$0xff]
    %v5717 = vld [vmem:[%s5671 + $0x168] sm:$0xff]
    %v5718 = vld [vmem:[%s5671 + $0x170] sm:$0xff]
    %v5719 = vld [vmem:[%s5671 + $0x178] sm:$0xff]
    %v5720 = vrot.slane %v3830, 5
    %v5721 = vrot.slane %v3831, 4
    %v5722 = vsel %vm863, %v5721, %v5720
    %v5723 = vpack.c.b16 %v5722, %v5722
    %v5773 = vunpack.c.l.b16 %v5672
    %v5774 = vunpack.c.h.b16 %v5672
    %v5775 = vunpack.c.l.b16 %v5673
    %v5776 = vunpack.c.h.b16 %v5673
    %v5777 = vunpack.c.l.b16 %v5674
    %v5778 = vunpack.c.h.b16 %v5674
    %v5779 = vunpack.c.l.b16 %v5675
    %v5780 = vunpack.c.h.b16 %v5675
    %v5781 = vunpack.c.l.b16 %v5676
    %v5782 = vunpack.c.h.b16 %v5676
    %v5783 = vunpack.c.l.b16 %v5677
    %v5784 = vunpack.c.h.b16 %v5677
    %v5785 = vunpack.c.l.b16 %v5678
    %v5786 = vunpack.c.h.b16 %v5678
    %v5787 = vunpack.c.l.b16 %v5679
    %v5788 = vunpack.c.h.b16 %v5679
    %v5789 = vunpack.c.l.b16 %v5680
    %v5790 = vunpack.c.h.b16 %v5680
    %v5791 = vunpack.c.l.b16 %v5681
    %v5792 = vunpack.c.h.b16 %v5681
    %v5793 = vunpack.c.l.b16 %v5682
    %v5794 = vunpack.c.h.b16 %v5682
    %v5795 = vunpack.c.l.b16 %v5683
    %v5796 = vunpack.c.h.b16 %v5683
    %v5797 = vunpack.c.l.b16 %v5684
    %v5798 = vunpack.c.h.b16 %v5684
    %v5799 = vunpack.c.l.b16 %v5685
    %v5800 = vunpack.c.h.b16 %v5685
    %v5801 = vunpack.c.l.b16 %v5686
    %v5802 = vunpack.c.h.b16 %v5686
    %v5803 = vunpack.c.l.b16 %v5687
    %v5804 = vunpack.c.h.b16 %v5687
    %v5805 = vunpack.c.l.b16 %v5688
    %v5806 = vunpack.c.h.b16 %v5688
    %v5807 = vunpack.c.l.b16 %v5689
    %v5808 = vunpack.c.h.b16 %v5689
    %v5809 = vunpack.c.l.b16 %v5690
    %v5810 = vunpack.c.h.b16 %v5690
    %v5811 = vunpack.c.l.b16 %v5691
    %v5812 = vunpack.c.h.b16 %v5691
    %v5813 = vunpack.c.l.b16 %v5692
    %v5814 = vunpack.c.h.b16 %v5692
    %v5815 = vunpack.c.l.b16 %v5693
    %v5816 = vunpack.c.h.b16 %v5693
    %v5817 = vunpack.c.l.b16 %v5694
    %v5818 = vunpack.c.h.b16 %v5694
    %v5819 = vunpack.c.l.b16 %v5695
    %v5820 = vunpack.c.h.b16 %v5695
    %v5821 = vunpack.c.l.b16 %v5696
    %v5822 = vunpack.c.h.b16 %v5696
    %v5823 = vunpack.c.l.b16 %v5697
    %v5824 = vunpack.c.h.b16 %v5697
    %v5825 = vunpack.c.l.b16 %v5698
    %v5826 = vunpack.c.h.b16 %v5698
    %v5827 = vunpack.c.l.b16 %v5699
    %v5828 = vunpack.c.h.b16 %v5699
    %v5829 = vunpack.c.l.b16 %v5700
    %v5830 = vunpack.c.h.b16 %v5700
    %v5831 = vunpack.c.l.b16 %v5701
    %v5832 = vunpack.c.h.b16 %v5701
    %v5833 = vunpack.c.l.b16 %v5702
    %v5834 = vunpack.c.h.b16 %v5702
    %v5835 = vunpack.c.l.b16 %v5703
    %v5836 = vunpack.c.h.b16 %v5703
    %v5837 = vunpack.c.l.b16 %v5704
    %v5838 = vunpack.c.h.b16 %v5704
    %v5839 = vunpack.c.l.b16 %v5705
    %v5840 = vunpack.c.h.b16 %v5705
    %v5841 = vunpack.c.l.b16 %v5706
    %v5842 = vunpack.c.h.b16 %v5706
    %v5843 = vunpack.c.l.b16 %v5707
    %v5844 = vunpack.c.h.b16 %v5707
    %v5845 = vunpack.c.l.b16 %v5708
    %v5846 = vunpack.c.h.b16 %v5708
    %v5847 = vunpack.c.l.b16 %v5709
    %v5848 = vunpack.c.h.b16 %v5709
    %v5849 = vunpack.c.l.b16 %v5710
    %v5850 = vunpack.c.h.b16 %v5710
    %v5851 = vunpack.c.l.b16 %v5711
    %v5852 = vunpack.c.h.b16 %v5711
    %v5853 = vunpack.c.l.b16 %v5712
    %v5854 = vunpack.c.h.b16 %v5712
    %v5855 = vunpack.c.l.b16 %v5713
    %v5856 = vunpack.c.h.b16 %v5713
    %v5857 = vunpack.c.l.b16 %v5714
    %v5858 = vunpack.c.h.b16 %v5714
    %v5859 = vunpack.c.l.b16 %v5715
    %v5860 = vunpack.c.h.b16 %v5715
    %v5861 = vunpack.c.l.b16 %v5716
    %v5862 = vunpack.c.h.b16 %v5716
    %v5863 = vunpack.c.l.b16 %v5717
    %v5864 = vunpack.c.h.b16 %v5717
    %v5865 = vunpack.c.l.b16 %v5718
    %v5866 = vunpack.c.h.b16 %v5718
    %v5867 = vunpack.c.l.b16 %v5719
    %v5868 = vunpack.c.h.b16 %v5719
    %v5869 = vpack.c.b16 %v5779, %v5773
    %v5870 = vpack.c.b16 %v5780, %v5774
    %v5871 = vpack.c.b16 %v5781, %v5775
    %v5872 = vpack.c.b16 %v5782, %v5776
    %v5873 = vpack.c.b16 %v5783, %v5777
    %v5874 = vpack.c.b16 %v5784, %v5778
    %v5875 = vpack.c.b16 %v5791, %v5785
    %v5876 = vpack.c.b16 %v5792, %v5786
    %v5877 = vpack.c.b16 %v5793, %v5787
    %v5878 = vpack.c.b16 %v5794, %v5788
    %v5879 = vpack.c.b16 %v5795, %v5789
    %v5880 = vpack.c.b16 %v5796, %v5790
    %v5881 = vpack.c.b16 %v5803, %v5797
    %v5882 = vpack.c.b16 %v5804, %v5798
    %v5883 = vpack.c.b16 %v5805, %v5799
    %v5884 = vpack.c.b16 %v5806, %v5800
    %v5885 = vpack.c.b16 %v5807, %v5801
    %v5886 = vpack.c.b16 %v5808, %v5802
    %v5887 = vpack.c.b16 %v5815, %v5809
    %v5888 = vpack.c.b16 %v5816, %v5810
    %v5889 = vpack.c.b16 %v5817, %v5811
    %v5890 = vpack.c.b16 %v5818, %v5812
    %v5891 = vpack.c.b16 %v5819, %v5813
    %v5892 = vpack.c.b16 %v5820, %v5814
    %v5893 = vpack.c.b16 %v5827, %v5821
    %v5894 = vpack.c.b16 %v5828, %v5822
    %v5895 = vpack.c.b16 %v5829, %v5823
    %v5896 = vpack.c.b16 %v5830, %v5824
    %v5897 = vpack.c.b16 %v5831, %v5825
    %v5898 = vpack.c.b16 %v5832, %v5826
    %v5899 = vpack.c.b16 %v5839, %v5833
    %v5900 = vpack.c.b16 %v5840, %v5834
    %v5901 = vpack.c.b16 %v5841, %v5835
    %v5902 = vpack.c.b16 %v5842, %v5836
    %v5903 = vpack.c.b16 %v5843, %v5837
    %v5904 = vpack.c.b16 %v5844, %v5838
    %v5905 = vpack.c.b16 %v5851, %v5845
    %v5906 = vpack.c.b16 %v5852, %v5846
    %v5907 = vpack.c.b16 %v5853, %v5847
    %v5908 = vpack.c.b16 %v5854, %v5848
    %v5909 = vpack.c.b16 %v5855, %v5849
    %v5910 = vpack.c.b16 %v5856, %v5850
    %v5911 = vpack.c.b16 %v5863, %v5857
    %v5912 = vpack.c.b16 %v5864, %v5858
    %v5913 = vpack.c.b16 %v5865, %v5859
    %v5914 = vpack.c.b16 %v5866, %v5860
    %v5915 = vpack.c.b16 %v5867, %v5861
    %v5916 = vpack.c.b16 %v5868, %v5862
    %5965 = vmatpush.bf16.msra.mxu0 %v5911
    %5966 = vmatpush.bf16.msra.mxu0 %v5905
    %5967 = vmatpush.bf16.msra.mxu0 %v5899
    %5968 = vmatpush.bf16.msra.mxu0 %v5893
    %5969 = vmatpush.bf16.msra.mxu0 %v5887
    %5970 = vmatpush.bf16.msra.mxu0 %v5881
    %5971 = vmatpush.bf16.msra.mxu0 %v5875
    %5972 = vmatpush.bf16.msra.mxu0 %v5869
    %5973 = vmatmul.bf16.gmra.mxu0 %v5723
    %v5974 = vpop.f32.mrf.mxu0
    %v5975 = vadd.f32 0.0, %v5974
    %v5976 = vpop.f32.mrf.mxu0
    %5977 = vdwg.mxu0
    %5978 = vmatpush.bf16.msra.mxu0 %v5912
    %5979 = vmatpush.bf16.msra.mxu0 %v5906
    %5980 = vmatpush.bf16.msra.mxu0 %v5900
    %5981 = vmatpush.bf16.msra.mxu0 %v5894
    %5982 = vmatpush.bf16.msra.mxu0 %v5888
    %5983 = vmatpush.bf16.msra.mxu0 %v5882
    %5984 = vmatpush.bf16.msra.mxu0 %v5876
    %5985 = vmatpush.bf16.msra.mxu0 %v5870
    %5986 = vmatmul.bf16.gmra.mxu0 %v5723
    %v5987 = vpop.f32.mrf.mxu0
    %v5988 = vadd.f32 0.0, %v5987
    %v5989 = vpop.f32.mrf.mxu0
    %5990 = vdwg.mxu0
    %5991 = vmatpush.bf16.msra.mxu0 %v5913
    %5992 = vmatpush.bf16.msra.mxu0 %v5907
    %5993 = vmatpush.bf16.msra.mxu0 %v5901
    %5994 = vmatpush.bf16.msra.mxu0 %v5895
    %5995 = vmatpush.bf16.msra.mxu0 %v5889
    %5996 = vmatpush.bf16.msra.mxu0 %v5883
    %5997 = vmatpush.bf16.msra.mxu0 %v5877
    %5998 = vmatpush.bf16.msra.mxu0 %v5871
    %5999 = vmatmul.bf16.gmra.mxu0 %v5723
    %v6000 = vpop.f32.mrf.mxu0
    %v6001 = vadd.f32 0.0, %v6000
    %v6002 = vpop.f32.mrf.mxu0
    %6003 = vdwg.mxu0
    %6004 = vmatpush.bf16.msra.mxu0 %v5914
    %6005 = vmatpush.bf16.msra.mxu0 %v5908
    %6006 = vmatpush.bf16.msra.mxu0 %v5902
    %6007 = vmatpush.bf16.msra.mxu0 %v5896
    %6008 = vmatpush.bf16.msra.mxu0 %v5890
    %6009 = vmatpush.bf16.msra.mxu0 %v5884
    %6010 = vmatpush.bf16.msra.mxu0 %v5878
    %6011 = vmatpush.bf16.msra.mxu0 %v5872
    %6012 = vmatmul.bf16.gmra.mxu0 %v5723
    %v6013 = vpop.f32.mrf.mxu0
    %v6014 = vadd.f32 0.0, %v6013
    %v6015 = vpop.f32.mrf.mxu0
    %6016 = vdwg.mxu0
    %6017 = vmatpush.bf16.msra.mxu0 %v5915
    %6018 = vmatpush.bf16.msra.mxu0 %v5909
    %6019 = vmatpush.bf16.msra.mxu0 %v5903
    %6020 = vmatpush.bf16.msra.mxu0 %v5897
    %6021 = vmatpush.bf16.msra.mxu0 %v5891
    %6022 = vmatpush.bf16.msra.mxu0 %v5885
    %6023 = vmatpush.bf16.msra.mxu0 %v5879
    %6024 = vmatpush.bf16.msra.mxu0 %v5873
    %6025 = vmatmul.bf16.gmra.mxu0 %v5723
    %v6026 = vpop.f32.mrf.mxu0
    %v6027 = vadd.f32 0.0, %v6026
    %v6028 = vpop.f32.mrf.mxu0
    %6029 = vdwg.mxu0
    %6030 = vmatpush.bf16.msra.mxu0 %v5916
    %6031 = vmatpush.bf16.msra.mxu0 %v5910
    %6032 = vmatpush.bf16.msra.mxu0 %v5904
    %6033 = vmatpush.bf16.msra.mxu0 %v5898
    %6034 = vmatpush.bf16.msra.mxu0 %v5892
    %6035 = vmatpush.bf16.msra.mxu0 %v5886
    %6036 = vmatpush.bf16.msra.mxu0 %v5880
    %6037 = vmatpush.bf16.msra.mxu0 %v5874
    %6038 = vmatmul.bf16.gmra.mxu0 %v5723
    %v6039 = vpop.f32.mrf.mxu0
    %v6040 = vadd.f32 0.0, %v6039
    %v6041 = vpop.f32.mrf.mxu0
    %6042 = vdwg.mxu0
    %v6043 = vadd.f32 %v5665, %v5975
    %v6044 = vadd.f32 %v5666, %v5988
    %v6045 = vadd.f32 %v5667, %v6001
    %v6046 = vadd.f32 %v5668, %v6014
    %v6047 = vadd.f32 %v5669, %v6027
    %v6048 = vadd.f32 %v5670, %v6040
    %s6049 = scalar_lea.vmem [#allocation2], 5376
    %v6050 = vld [vmem:[%s6049] sm:$0xff]
    %v6051 = vld [vmem:[%s6049 + $0x8] sm:$0xff]
    %v6052 = vld [vmem:[%s6049 + $0x10] sm:$0xff]
    %v6053 = vld [vmem:[%s6049 + $0x18] sm:$0xff]
    %v6054 = vld [vmem:[%s6049 + $0x20] sm:$0xff]
    %v6055 = vld [vmem:[%s6049 + $0x28] sm:$0xff]
    %v6056 = vld [vmem:[%s6049 + $0x30] sm:$0xff]
    %v6057 = vld [vmem:[%s6049 + $0x38] sm:$0xff]
    %v6058 = vld [vmem:[%s6049 + $0x40] sm:$0xff]
    %v6059 = vld [vmem:[%s6049 + $0x48] sm:$0xff]
    %v6060 = vld [vmem:[%s6049 + $0x50] sm:$0xff]
    %v6061 = vld [vmem:[%s6049 + $0x58] sm:$0xff]
    %v6062 = vld [vmem:[%s6049 + $0x60] sm:$0xff]
    %v6063 = vld [vmem:[%s6049 + $0x68] sm:$0xff]
    %v6064 = vld [vmem:[%s6049 + $0x70] sm:$0xff]
    %v6065 = vld [vmem:[%s6049 + $0x78] sm:$0xff]
    %v6066 = vld [vmem:[%s6049 + $0x80] sm:$0xff]
    %v6067 = vld [vmem:[%s6049 + $0x88] sm:$0xff]
    %v6068 = vld [vmem:[%s6049 + $0x90] sm:$0xff]
    %v6069 = vld [vmem:[%s6049 + $0x98] sm:$0xff]
    %v6070 = vld [vmem:[%s6049 + $0xa0] sm:$0xff]
    %v6071 = vld [vmem:[%s6049 + $0xa8] sm:$0xff]
    %v6072 = vld [vmem:[%s6049 + $0xb0] sm:$0xff]
    %v6073 = vld [vmem:[%s6049 + $0xb8] sm:$0xff]
    %v6074 = vld [vmem:[%s6049 + $0xc0] sm:$0xff]
    %v6075 = vld [vmem:[%s6049 + $0xc8] sm:$0xff]
    %v6076 = vld [vmem:[%s6049 + $0xd0] sm:$0xff]
    %v6077 = vld [vmem:[%s6049 + $0xd8] sm:$0xff]
    %v6078 = vld [vmem:[%s6049 + $0xe0] sm:$0xff]
    %v6079 = vld [vmem:[%s6049 + $0xe8] sm:$0xff]
    %v6080 = vld [vmem:[%s6049 + $0xf0] sm:$0xff]
    %v6081 = vld [vmem:[%s6049 + $0xf8] sm:$0xff]
    %v6082 = vld [vmem:[%s6049 + $0x100] sm:$0xff]
    %v6083 = vld [vmem:[%s6049 + $0x108] sm:$0xff]
    %v6084 = vld [vmem:[%s6049 + $0x110] sm:$0xff]
    %v6085 = vld [vmem:[%s6049 + $0x118] sm:$0xff]
    %v6086 = vld [vmem:[%s6049 + $0x120] sm:$0xff]
    %v6087 = vld [vmem:[%s6049 + $0x128] sm:$0xff]
    %v6088 = vld [vmem:[%s6049 + $0x130] sm:$0xff]
    %v6089 = vld [vmem:[%s6049 + $0x138] sm:$0xff]
    %v6090 = vld [vmem:[%s6049 + $0x140] sm:$0xff]
    %v6091 = vld [vmem:[%s6049 + $0x148] sm:$0xff]
    %v6092 = vld [vmem:[%s6049 + $0x150] sm:$0xff]
    %v6093 = vld [vmem:[%s6049 + $0x158] sm:$0xff]
    %v6094 = vld [vmem:[%s6049 + $0x160] sm:$0xff]
    %v6095 = vld [vmem:[%s6049 + $0x168] sm:$0xff]
    %v6096 = vld [vmem:[%s6049 + $0x170] sm:$0xff]
    %v6097 = vld [vmem:[%s6049 + $0x178] sm:$0xff]
    %v6098 = vrot.slane %v3830, 6
    %v6099 = vrot.slane %v3831, 5
    %v6100 = vsel %vm863, %v6099, %v6098
    %v6101 = vpack.c.b16 %v6100, %v6100
    %v6151 = vunpack.c.l.b16 %v6050
    %v6152 = vunpack.c.h.b16 %v6050
    %v6153 = vunpack.c.l.b16 %v6051
    %v6154 = vunpack.c.h.b16 %v6051
    %v6155 = vunpack.c.l.b16 %v6052
    %v6156 = vunpack.c.h.b16 %v6052
    %v6157 = vunpack.c.l.b16 %v6053
    %v6158 = vunpack.c.h.b16 %v6053
    %v6159 = vunpack.c.l.b16 %v6054
    %v6160 = vunpack.c.h.b16 %v6054
    %v6161 = vunpack.c.l.b16 %v6055
    %v6162 = vunpack.c.h.b16 %v6055
    %v6163 = vunpack.c.l.b16 %v6056
    %v6164 = vunpack.c.h.b16 %v6056
    %v6165 = vunpack.c.l.b16 %v6057
    %v6166 = vunpack.c.h.b16 %v6057
    %v6167 = vunpack.c.l.b16 %v6058
    %v6168 = vunpack.c.h.b16 %v6058
    %v6169 = vunpack.c.l.b16 %v6059
    %v6170 = vunpack.c.h.b16 %v6059
    %v6171 = vunpack.c.l.b16 %v6060
    %v6172 = vunpack.c.h.b16 %v6060
    %v6173 = vunpack.c.l.b16 %v6061
    %v6174 = vunpack.c.h.b16 %v6061
    %v6175 = vunpack.c.l.b16 %v6062
    %v6176 = vunpack.c.h.b16 %v6062
    %v6177 = vunpack.c.l.b16 %v6063
    %v6178 = vunpack.c.h.b16 %v6063
    %v6179 = vunpack.c.l.b16 %v6064
    %v6180 = vunpack.c.h.b16 %v6064
    %v6181 = vunpack.c.l.b16 %v6065
    %v6182 = vunpack.c.h.b16 %v6065
    %v6183 = vunpack.c.l.b16 %v6066
    %v6184 = vunpack.c.h.b16 %v6066
    %v6185 = vunpack.c.l.b16 %v6067
    %v6186 = vunpack.c.h.b16 %v6067
    %v6187 = vunpack.c.l.b16 %v6068
    %v6188 = vunpack.c.h.b16 %v6068
    %v6189 = vunpack.c.l.b16 %v6069
    %v6190 = vunpack.c.h.b16 %v6069
    %v6191 = vunpack.c.l.b16 %v6070
    %v6192 = vunpack.c.h.b16 %v6070
    %v6193 = vunpack.c.l.b16 %v6071
    %v6194 = vunpack.c.h.b16 %v6071
    %v6195 = vunpack.c.l.b16 %v6072
    %v6196 = vunpack.c.h.b16 %v6072
    %v6197 = vunpack.c.l.b16 %v6073
    %v6198 = vunpack.c.h.b16 %v6073
    %v6199 = vunpack.c.l.b16 %v6074
    %v6200 = vunpack.c.h.b16 %v6074
    %v6201 = vunpack.c.l.b16 %v6075
    %v6202 = vunpack.c.h.b16 %v6075
    %v6203 = vunpack.c.l.b16 %v6076
    %v6204 = vunpack.c.h.b16 %v6076
    %v6205 = vunpack.c.l.b16 %v6077
    %v6206 = vunpack.c.h.b16 %v6077
    %v6207 = vunpack.c.l.b16 %v6078
    %v6208 = vunpack.c.h.b16 %v6078
    %v6209 = vunpack.c.l.b16 %v6079
    %v6210 = vunpack.c.h.b16 %v6079
    %v6211 = vunpack.c.l.b16 %v6080
    %v6212 = vunpack.c.h.b16 %v6080
    %v6213 = vunpack.c.l.b16 %v6081
    %v6214 = vunpack.c.h.b16 %v6081
    %v6215 = vunpack.c.l.b16 %v6082
    %v6216 = vunpack.c.h.b16 %v6082
    %v6217 = vunpack.c.l.b16 %v6083
    %v6218 = vunpack.c.h.b16 %v6083
    %v6219 = vunpack.c.l.b16 %v6084
    %v6220 = vunpack.c.h.b16 %v6084
    %v6221 = vunpack.c.l.b16 %v6085
    %v6222 = vunpack.c.h.b16 %v6085
    %v6223 = vunpack.c.l.b16 %v6086
    %v6224 = vunpack.c.h.b16 %v6086
    %v6225 = vunpack.c.l.b16 %v6087
    %v6226 = vunpack.c.h.b16 %v6087
    %v6227 = vunpack.c.l.b16 %v6088
    %v6228 = vunpack.c.h.b16 %v6088
    %v6229 = vunpack.c.l.b16 %v6089
    %v6230 = vunpack.c.h.b16 %v6089
    %v6231 = vunpack.c.l.b16 %v6090
    %v6232 = vunpack.c.h.b16 %v6090
    %v6233 = vunpack.c.l.b16 %v6091
    %v6234 = vunpack.c.h.b16 %v6091
    %v6235 = vunpack.c.l.b16 %v6092
    %v6236 = vunpack.c.h.b16 %v6092
    %v6237 = vunpack.c.l.b16 %v6093
    %v6238 = vunpack.c.h.b16 %v6093
    %v6239 = vunpack.c.l.b16 %v6094
    %v6240 = vunpack.c.h.b16 %v6094
    %v6241 = vunpack.c.l.b16 %v6095
    %v6242 = vunpack.c.h.b16 %v6095
    %v6243 = vunpack.c.l.b16 %v6096
    %v6244 = vunpack.c.h.b16 %v6096
    %v6245 = vunpack.c.l.b16 %v6097
    %v6246 = vunpack.c.h.b16 %v6097
    %v6247 = vpack.c.b16 %v6157, %v6151
    %v6248 = vpack.c.b16 %v6158, %v6152
    %v6249 = vpack.c.b16 %v6159, %v6153
    %v6250 = vpack.c.b16 %v6160, %v6154
    %v6251 = vpack.c.b16 %v6161, %v6155
    %v6252 = vpack.c.b16 %v6162, %v6156
    %v6253 = vpack.c.b16 %v6169, %v6163
    %v6254 = vpack.c.b16 %v6170, %v6164
    %v6255 = vpack.c.b16 %v6171, %v6165
    %v6256 = vpack.c.b16 %v6172, %v6166
    %v6257 = vpack.c.b16 %v6173, %v6167
    %v6258 = vpack.c.b16 %v6174, %v6168
    %v6259 = vpack.c.b16 %v6181, %v6175
    %v6260 = vpack.c.b16 %v6182, %v6176
    %v6261 = vpack.c.b16 %v6183, %v6177
    %v6262 = vpack.c.b16 %v6184, %v6178
    %v6263 = vpack.c.b16 %v6185, %v6179
    %v6264 = vpack.c.b16 %v6186, %v6180
    %v6265 = vpack.c.b16 %v6193, %v6187
    %v6266 = vpack.c.b16 %v6194, %v6188
    %v6267 = vpack.c.b16 %v6195, %v6189
    %v6268 = vpack.c.b16 %v6196, %v6190
    %v6269 = vpack.c.b16 %v6197, %v6191
    %v6270 = vpack.c.b16 %v6198, %v6192
    %v6271 = vpack.c.b16 %v6205, %v6199
    %v6272 = vpack.c.b16 %v6206, %v6200
    %v6273 = vpack.c.b16 %v6207, %v6201
    %v6274 = vpack.c.b16 %v6208, %v6202
    %v6275 = vpack.c.b16 %v6209, %v6203
    %v6276 = vpack.c.b16 %v6210, %v6204
    %v6277 = vpack.c.b16 %v6217, %v6211
    %v6278 = vpack.c.b16 %v6218, %v6212
    %v6279 = vpack.c.b16 %v6219, %v6213
    %v6280 = vpack.c.b16 %v6220, %v6214
    %v6281 = vpack.c.b16 %v6221, %v6215
    %v6282 = vpack.c.b16 %v6222, %v6216
    %v6283 = vpack.c.b16 %v6229, %v6223
    %v6284 = vpack.c.b16 %v6230, %v6224
    %v6285 = vpack.c.b16 %v6231, %v6225
    %v6286 = vpack.c.b16 %v6232, %v6226
    %v6287 = vpack.c.b16 %v6233, %v6227
    %v6288 = vpack.c.b16 %v6234, %v6228
    %v6289 = vpack.c.b16 %v6241, %v6235
    %v6290 = vpack.c.b16 %v6242, %v6236
    %v6291 = vpack.c.b16 %v6243, %v6237
    %v6292 = vpack.c.b16 %v6244, %v6238
    %v6293 = vpack.c.b16 %v6245, %v6239
    %v6294 = vpack.c.b16 %v6246, %v6240
    %6343 = vmatpush.bf16.msra.mxu0 %v6289
    %6344 = vmatpush.bf16.msra.mxu0 %v6283
    %6345 = vmatpush.bf16.msra.mxu0 %v6277
    %6346 = vmatpush.bf16.msra.mxu0 %v6271
    %6347 = vmatpush.bf16.msra.mxu0 %v6265
    %6348 = vmatpush.bf16.msra.mxu0 %v6259
    %6349 = vmatpush.bf16.msra.mxu0 %v6253
    %6350 = vmatpush.bf16.msra.mxu0 %v6247
    %6351 = vmatmul.bf16.gmra.mxu0 %v6101
    %v6352 = vpop.f32.mrf.mxu0
    %v6353 = vadd.f32 0.0, %v6352
    %v6354 = vpop.f32.mrf.mxu0
    %6355 = vdwg.mxu0
    %6356 = vmatpush.bf16.msra.mxu0 %v6290
    %6357 = vmatpush.bf16.msra.mxu0 %v6284
    %6358 = vmatpush.bf16.msra.mxu0 %v6278
    %6359 = vmatpush.bf16.msra.mxu0 %v6272
    %6360 = vmatpush.bf16.msra.mxu0 %v6266
    %6361 = vmatpush.bf16.msra.mxu0 %v6260
    %6362 = vmatpush.bf16.msra.mxu0 %v6254
    %6363 = vmatpush.bf16.msra.mxu0 %v6248
    %6364 = vmatmul.bf16.gmra.mxu0 %v6101
    %v6365 = vpop.f32.mrf.mxu0
    %v6366 = vadd.f32 0.0, %v6365
    %v6367 = vpop.f32.mrf.mxu0
    %6368 = vdwg.mxu0
    %6369 = vmatpush.bf16.msra.mxu0 %v6291
    %6370 = vmatpush.bf16.msra.mxu0 %v6285
    %6371 = vmatpush.bf16.msra.mxu0 %v6279
    %6372 = vmatpush.bf16.msra.mxu0 %v6273
    %6373 = vmatpush.bf16.msra.mxu0 %v6267
    %6374 = vmatpush.bf16.msra.mxu0 %v6261
    %6375 = vmatpush.bf16.msra.mxu0 %v6255
    %6376 = vmatpush.bf16.msra.mxu0 %v6249
    %6377 = vmatmul.bf16.gmra.mxu0 %v6101
    %v6378 = vpop.f32.mrf.mxu0
    %v6379 = vadd.f32 0.0, %v6378
    %v6380 = vpop.f32.mrf.mxu0
    %6381 = vdwg.mxu0
    %6382 = vmatpush.bf16.msra.mxu0 %v6292
    %6383 = vmatpush.bf16.msra.mxu0 %v6286
    %6384 = vmatpush.bf16.msra.mxu0 %v6280
    %6385 = vmatpush.bf16.msra.mxu0 %v6274
    %6386 = vmatpush.bf16.msra.mxu0 %v6268
    %6387 = vmatpush.bf16.msra.mxu0 %v6262
    %6388 = vmatpush.bf16.msra.mxu0 %v6256
    %6389 = vmatpush.bf16.msra.mxu0 %v6250
    %6390 = vmatmul.bf16.gmra.mxu0 %v6101
    %v6391 = vpop.f32.mrf.mxu0
    %v6392 = vadd.f32 0.0, %v6391
    %v6393 = vpop.f32.mrf.mxu0
    %6394 = vdwg.mxu0
    %6395 = vmatpush.bf16.msra.mxu0 %v6293
    %6396 = vmatpush.bf16.msra.mxu0 %v6287
    %6397 = vmatpush.bf16.msra.mxu0 %v6281
    %6398 = vmatpush.bf16.msra.mxu0 %v6275
    %6399 = vmatpush.bf16.msra.mxu0 %v6269
    %6400 = vmatpush.bf16.msra.mxu0 %v6263
    %6401 = vmatpush.bf16.msra.mxu0 %v6257
    %6402 = vmatpush.bf16.msra.mxu0 %v6251
    %6403 = vmatmul.bf16.gmra.mxu0 %v6101
    %v6404 = vpop.f32.mrf.mxu0
    %v6405 = vadd.f32 0.0, %v6404
    %v6406 = vpop.f32.mrf.mxu0
    %6407 = vdwg.mxu0
    %6408 = vmatpush.bf16.msra.mxu0 %v6294
    %6409 = vmatpush.bf16.msra.mxu0 %v6288
    %6410 = vmatpush.bf16.msra.mxu0 %v6282
    %6411 = vmatpush.bf16.msra.mxu0 %v6276
    %6412 = vmatpush.bf16.msra.mxu0 %v6270
    %6413 = vmatpush.bf16.msra.mxu0 %v6264
    %6414 = vmatpush.bf16.msra.mxu0 %v6258
    %6415 = vmatpush.bf16.msra.mxu0 %v6252
    %6416 = vmatmul.bf16.gmra.mxu0 %v6101
    %v6417 = vpop.f32.mrf.mxu0
    %v6418 = vadd.f32 0.0, %v6417
    %v6419 = vpop.f32.mrf.mxu0
    %6420 = vdwg.mxu0
    %v6421 = vadd.f32 %v6043, %v6353
    %v6422 = vadd.f32 %v6044, %v6366
    %v6423 = vadd.f32 %v6045, %v6379
    %v6424 = vadd.f32 %v6046, %v6392
    %v6425 = vadd.f32 %v6047, %v6405
    %v6426 = vadd.f32 %v6048, %v6418
    %s6427 = scalar_lea.vmem [#allocation2], 5760
    %v6428 = vld [vmem:[%s6427] sm:$0xff]
    %v6429 = vld [vmem:[%s6427 + $0x8] sm:$0xff]
    %v6430 = vld [vmem:[%s6427 + $0x10] sm:$0xff]
    %v6431 = vld [vmem:[%s6427 + $0x18] sm:$0xff]
    %v6432 = vld [vmem:[%s6427 + $0x20] sm:$0xff]
    %v6433 = vld [vmem:[%s6427 + $0x28] sm:$0xff]
    %v6434 = vld [vmem:[%s6427 + $0x30] sm:$0xff]
    %v6435 = vld [vmem:[%s6427 + $0x38] sm:$0xff]
    %v6436 = vld [vmem:[%s6427 + $0x40] sm:$0xff]
    %v6437 = vld [vmem:[%s6427 + $0x48] sm:$0xff]
    %v6438 = vld [vmem:[%s6427 + $0x50] sm:$0xff]
    %v6439 = vld [vmem:[%s6427 + $0x58] sm:$0xff]
    %v6440 = vld [vmem:[%s6427 + $0x60] sm:$0xff]
    %v6441 = vld [vmem:[%s6427 + $0x68] sm:$0xff]
    %v6442 = vld [vmem:[%s6427 + $0x70] sm:$0xff]
    %v6443 = vld [vmem:[%s6427 + $0x78] sm:$0xff]
    %v6444 = vld [vmem:[%s6427 + $0x80] sm:$0xff]
    %v6445 = vld [vmem:[%s6427 + $0x88] sm:$0xff]
    %v6446 = vld [vmem:[%s6427 + $0x90] sm:$0xff]
    %v6447 = vld [vmem:[%s6427 + $0x98] sm:$0xff]
    %v6448 = vld [vmem:[%s6427 + $0xa0] sm:$0xff]
    %v6449 = vld [vmem:[%s6427 + $0xa8] sm:$0xff]
    %v6450 = vld [vmem:[%s6427 + $0xb0] sm:$0xff]
    %v6451 = vld [vmem:[%s6427 + $0xb8] sm:$0xff]
    %v6452 = vld [vmem:[%s6427 + $0xc0] sm:$0xff]
    %v6453 = vld [vmem:[%s6427 + $0xc8] sm:$0xff]
    %v6454 = vld [vmem:[%s6427 + $0xd0] sm:$0xff]
    %v6455 = vld [vmem:[%s6427 + $0xd8] sm:$0xff]
    %v6456 = vld [vmem:[%s6427 + $0xe0] sm:$0xff]
    %v6457 = vld [vmem:[%s6427 + $0xe8] sm:$0xff]
    %v6458 = vld [vmem:[%s6427 + $0xf0] sm:$0xff]
    %v6459 = vld [vmem:[%s6427 + $0xf8] sm:$0xff]
    %v6460 = vld [vmem:[%s6427 + $0x100] sm:$0xff]
    %v6461 = vld [vmem:[%s6427 + $0x108] sm:$0xff]
    %v6462 = vld [vmem:[%s6427 + $0x110] sm:$0xff]
    %v6463 = vld [vmem:[%s6427 + $0x118] sm:$0xff]
    %v6464 = vld [vmem:[%s6427 + $0x120] sm:$0xff]
    %v6465 = vld [vmem:[%s6427 + $0x128] sm:$0xff]
    %v6466 = vld [vmem:[%s6427 + $0x130] sm:$0xff]
    %v6467 = vld [vmem:[%s6427 + $0x138] sm:$0xff]
    %v6468 = vld [vmem:[%s6427 + $0x140] sm:$0xff]
    %v6469 = vld [vmem:[%s6427 + $0x148] sm:$0xff]
    %v6470 = vld [vmem:[%s6427 + $0x150] sm:$0xff]
    %v6471 = vld [vmem:[%s6427 + $0x158] sm:$0xff]
    %v6472 = vld [vmem:[%s6427 + $0x160] sm:$0xff]
    %v6473 = vld [vmem:[%s6427 + $0x168] sm:$0xff]
    %v6474 = vld [vmem:[%s6427 + $0x170] sm:$0xff]
    %v6475 = vld [vmem:[%s6427 + $0x178] sm:$0xff]
    %v6476 = vrot.slane %v3830, 7
    %v6477 = vrot.slane %v3831, 6
    %v6478 = vsel %vm863, %v6477, %v6476
    %v6479 = vpack.c.b16 %v6478, %v6478
    %v6529 = vunpack.c.l.b16 %v6428
    %v6530 = vunpack.c.h.b16 %v6428
    %v6531 = vunpack.c.l.b16 %v6429
    %v6532 = vunpack.c.h.b16 %v6429
    %v6533 = vunpack.c.l.b16 %v6430
    %v6534 = vunpack.c.h.b16 %v6430
    %v6535 = vunpack.c.l.b16 %v6431
    %v6536 = vunpack.c.h.b16 %v6431
    %v6537 = vunpack.c.l.b16 %v6432
    %v6538 = vunpack.c.h.b16 %v6432
    %v6539 = vunpack.c.l.b16 %v6433
    %v6540 = vunpack.c.h.b16 %v6433
    %v6541 = vunpack.c.l.b16 %v6434
    %v6542 = vunpack.c.h.b16 %v6434
    %v6543 = vunpack.c.l.b16 %v6435
    %v6544 = vunpack.c.h.b16 %v6435
    %v6545 = vunpack.c.l.b16 %v6436
    %v6546 = vunpack.c.h.b16 %v6436
    %v6547 = vunpack.c.l.b16 %v6437
    %v6548 = vunpack.c.h.b16 %v6437
    %v6549 = vunpack.c.l.b16 %v6438
    %v6550 = vunpack.c.h.b16 %v6438
    %v6551 = vunpack.c.l.b16 %v6439
    %v6552 = vunpack.c.h.b16 %v6439
    %v6553 = vunpack.c.l.b16 %v6440
    %v6554 = vunpack.c.h.b16 %v6440
    %v6555 = vunpack.c.l.b16 %v6441
    %v6556 = vunpack.c.h.b16 %v6441
    %v6557 = vunpack.c.l.b16 %v6442
    %v6558 = vunpack.c.h.b16 %v6442
    %v6559 = vunpack.c.l.b16 %v6443
    %v6560 = vunpack.c.h.b16 %v6443
    %v6561 = vunpack.c.l.b16 %v6444
    %v6562 = vunpack.c.h.b16 %v6444
    %v6563 = vunpack.c.l.b16 %v6445
    %v6564 = vunpack.c.h.b16 %v6445
    %v6565 = vunpack.c.l.b16 %v6446
    %v6566 = vunpack.c.h.b16 %v6446
    %v6567 = vunpack.c.l.b16 %v6447
    %v6568 = vunpack.c.h.b16 %v6447
    %v6569 = vunpack.c.l.b16 %v6448
    %v6570 = vunpack.c.h.b16 %v6448
    %v6571 = vunpack.c.l.b16 %v6449
    %v6572 = vunpack.c.h.b16 %v6449
    %v6573 = vunpack.c.l.b16 %v6450
    %v6574 = vunpack.c.h.b16 %v6450
    %v6575 = vunpack.c.l.b16 %v6451
    %v6576 = vunpack.c.h.b16 %v6451
    %v6577 = vunpack.c.l.b16 %v6452
    %v6578 = vunpack.c.h.b16 %v6452
    %v6579 = vunpack.c.l.b16 %v6453
    %v6580 = vunpack.c.h.b16 %v6453
    %v6581 = vunpack.c.l.b16 %v6454
    %v6582 = vunpack.c.h.b16 %v6454
    %v6583 = vunpack.c.l.b16 %v6455
    %v6584 = vunpack.c.h.b16 %v6455
    %v6585 = vunpack.c.l.b16 %v6456
    %v6586 = vunpack.c.h.b16 %v6456
    %v6587 = vunpack.c.l.b16 %v6457
    %v6588 = vunpack.c.h.b16 %v6457
    %v6589 = vunpack.c.l.b16 %v6458
    %v6590 = vunpack.c.h.b16 %v6458
    %v6591 = vunpack.c.l.b16 %v6459
    %v6592 = vunpack.c.h.b16 %v6459
    %v6593 = vunpack.c.l.b16 %v6460
    %v6594 = vunpack.c.h.b16 %v6460
    %v6595 = vunpack.c.l.b16 %v6461
    %v6596 = vunpack.c.h.b16 %v6461
    %v6597 = vunpack.c.l.b16 %v6462
    %v6598 = vunpack.c.h.b16 %v6462
    %v6599 = vunpack.c.l.b16 %v6463
    %v6600 = vunpack.c.h.b16 %v6463
    %v6601 = vunpack.c.l.b16 %v6464
    %v6602 = vunpack.c.h.b16 %v6464
    %v6603 = vunpack.c.l.b16 %v6465
    %v6604 = vunpack.c.h.b16 %v6465
    %v6605 = vunpack.c.l.b16 %v6466
    %v6606 = vunpack.c.h.b16 %v6466
    %v6607 = vunpack.c.l.b16 %v6467
    %v6608 = vunpack.c.h.b16 %v6467
    %v6609 = vunpack.c.l.b16 %v6468
    %v6610 = vunpack.c.h.b16 %v6468
    %v6611 = vunpack.c.l.b16 %v6469
    %v6612 = vunpack.c.h.b16 %v6469
    %v6613 = vunpack.c.l.b16 %v6470
    %v6614 = vunpack.c.h.b16 %v6470
    %v6615 = vunpack.c.l.b16 %v6471
    %v6616 = vunpack.c.h.b16 %v6471
    %v6617 = vunpack.c.l.b16 %v6472
    %v6618 = vunpack.c.h.b16 %v6472
    %v6619 = vunpack.c.l.b16 %v6473
    %v6620 = vunpack.c.h.b16 %v6473
    %v6621 = vunpack.c.l.b16 %v6474
    %v6622 = vunpack.c.h.b16 %v6474
    %v6623 = vunpack.c.l.b16 %v6475
    %v6624 = vunpack.c.h.b16 %v6475
    %v6625 = vpack.c.b16 %v6535, %v6529
    %v6626 = vpack.c.b16 %v6536, %v6530
    %v6627 = vpack.c.b16 %v6537, %v6531
    %v6628 = vpack.c.b16 %v6538, %v6532
    %v6629 = vpack.c.b16 %v6539, %v6533
    %v6630 = vpack.c.b16 %v6540, %v6534
    %v6631 = vpack.c.b16 %v6547, %v6541
    %v6632 = vpack.c.b16 %v6548, %v6542
    %v6633 = vpack.c.b16 %v6549, %v6543
    %v6634 = vpack.c.b16 %v6550, %v6544
    %v6635 = vpack.c.b16 %v6551, %v6545
    %v6636 = vpack.c.b16 %v6552, %v6546
    %v6637 = vpack.c.b16 %v6559, %v6553
    %v6638 = vpack.c.b16 %v6560, %v6554
    %v6639 = vpack.c.b16 %v6561, %v6555
    %v6640 = vpack.c.b16 %v6562, %v6556
    %v6641 = vpack.c.b16 %v6563, %v6557
    %v6642 = vpack.c.b16 %v6564, %v6558
    %v6643 = vpack.c.b16 %v6571, %v6565
    %v6644 = vpack.c.b16 %v6572, %v6566
    %v6645 = vpack.c.b16 %v6573, %v6567
    %v6646 = vpack.c.b16 %v6574, %v6568
    %v6647 = vpack.c.b16 %v6575, %v6569
    %v6648 = vpack.c.b16 %v6576, %v6570
    %v6649 = vpack.c.b16 %v6583, %v6577
    %v6650 = vpack.c.b16 %v6584, %v6578
    %v6651 = vpack.c.b16 %v6585, %v6579
    %v6652 = vpack.c.b16 %v6586, %v6580
    %v6653 = vpack.c.b16 %v6587, %v6581
    %v6654 = vpack.c.b16 %v6588, %v6582
    %v6655 = vpack.c.b16 %v6595, %v6589
    %v6656 = vpack.c.b16 %v6596, %v6590
    %v6657 = vpack.c.b16 %v6597, %v6591
    %v6658 = vpack.c.b16 %v6598, %v6592
    %v6659 = vpack.c.b16 %v6599, %v6593
    %v6660 = vpack.c.b16 %v6600, %v6594
    %v6661 = vpack.c.b16 %v6607, %v6601
    %v6662 = vpack.c.b16 %v6608, %v6602
    %v6663 = vpack.c.b16 %v6609, %v6603
    %v6664 = vpack.c.b16 %v6610, %v6604
    %v6665 = vpack.c.b16 %v6611, %v6605
    %v6666 = vpack.c.b16 %v6612, %v6606
    %v6667 = vpack.c.b16 %v6619, %v6613
    %v6668 = vpack.c.b16 %v6620, %v6614
    %v6669 = vpack.c.b16 %v6621, %v6615
    %v6670 = vpack.c.b16 %v6622, %v6616
    %v6671 = vpack.c.b16 %v6623, %v6617
    %v6672 = vpack.c.b16 %v6624, %v6618
    %6721 = vmatpush.bf16.msra.mxu0 %v6667
    %6722 = vmatpush.bf16.msra.mxu0 %v6661
    %6723 = vmatpush.bf16.msra.mxu0 %v6655
    %6724 = vmatpush.bf16.msra.mxu0 %v6649
    %6725 = vmatpush.bf16.msra.mxu0 %v6643
    %6726 = vmatpush.bf16.msra.mxu0 %v6637
    %6727 = vmatpush.bf16.msra.mxu0 %v6631
    %6728 = vmatpush.bf16.msra.mxu0 %v6625
    %6729 = vmatmul.bf16.gmra.mxu0 %v6479
    %v6730 = vpop.f32.mrf.mxu0
    %v6731 = vadd.f32 0.0, %v6730
    %v6732 = vpop.f32.mrf.mxu0
    %6733 = vdwg.mxu0
    %6734 = vmatpush.bf16.msra.mxu0 %v6668
    %6735 = vmatpush.bf16.msra.mxu0 %v6662
    %6736 = vmatpush.bf16.msra.mxu0 %v6656
    %6737 = vmatpush.bf16.msra.mxu0 %v6650
    %6738 = vmatpush.bf16.msra.mxu0 %v6644
    %6739 = vmatpush.bf16.msra.mxu0 %v6638
    %6740 = vmatpush.bf16.msra.mxu0 %v6632
    %6741 = vmatpush.bf16.msra.mxu0 %v6626
    %6742 = vmatmul.bf16.gmra.mxu0 %v6479
    %v6743 = vpop.f32.mrf.mxu0
    %v6744 = vadd.f32 0.0, %v6743
    %v6745 = vpop.f32.mrf.mxu0
    %6746 = vdwg.mxu0
    %6747 = vmatpush.bf16.msra.mxu0 %v6669
    %6748 = vmatpush.bf16.msra.mxu0 %v6663
    %6749 = vmatpush.bf16.msra.mxu0 %v6657
    %6750 = vmatpush.bf16.msra.mxu0 %v6651
    %6751 = vmatpush.bf16.msra.mxu0 %v6645
    %6752 = vmatpush.bf16.msra.mxu0 %v6639
    %6753 = vmatpush.bf16.msra.mxu0 %v6633
    %6754 = vmatpush.bf16.msra.mxu0 %v6627
    %6755 = vmatmul.bf16.gmra.mxu0 %v6479
    %v6756 = vpop.f32.mrf.mxu0
    %v6757 = vadd.f32 0.0, %v6756
    %v6758 = vpop.f32.mrf.mxu0
    %6759 = vdwg.mxu0
    %6760 = vmatpush.bf16.msra.mxu0 %v6670
    %6761 = vmatpush.bf16.msra.mxu0 %v6664
    %6762 = vmatpush.bf16.msra.mxu0 %v6658
    %6763 = vmatpush.bf16.msra.mxu0 %v6652
    %6764 = vmatpush.bf16.msra.mxu0 %v6646
    %6765 = vmatpush.bf16.msra.mxu0 %v6640
    %6766 = vmatpush.bf16.msra.mxu0 %v6634
    %6767 = vmatpush.bf16.msra.mxu0 %v6628
    %6768 = vmatmul.bf16.gmra.mxu0 %v6479
    %v6769 = vpop.f32.mrf.mxu0
    %v6770 = vadd.f32 0.0, %v6769
    %v6771 = vpop.f32.mrf.mxu0
    %6772 = vdwg.mxu0
    %6773 = vmatpush.bf16.msra.mxu0 %v6671
    %6774 = vmatpush.bf16.msra.mxu0 %v6665
    %6775 = vmatpush.bf16.msra.mxu0 %v6659
    %6776 = vmatpush.bf16.msra.mxu0 %v6653
    %6777 = vmatpush.bf16.msra.mxu0 %v6647
    %6778 = vmatpush.bf16.msra.mxu0 %v6641
    %6779 = vmatpush.bf16.msra.mxu0 %v6635
    %6780 = vmatpush.bf16.msra.mxu0 %v6629
    %6781 = vmatmul.bf16.gmra.mxu0 %v6479
    %v6782 = vpop.f32.mrf.mxu0
    %v6783 = vadd.f32 0.0, %v6782
    %v6784 = vpop.f32.mrf.mxu0
    %6785 = vdwg.mxu0
    %6786 = vmatpush.bf16.msra.mxu0 %v6672
    %6787 = vmatpush.bf16.msra.mxu0 %v6666
    %6788 = vmatpush.bf16.msra.mxu0 %v6660
    %6789 = vmatpush.bf16.msra.mxu0 %v6654
    %6790 = vmatpush.bf16.msra.mxu0 %v6648
    %6791 = vmatpush.bf16.msra.mxu0 %v6642
    %6792 = vmatpush.bf16.msra.mxu0 %v6636
    %6793 = vmatpush.bf16.msra.mxu0 %v6630
    %6794 = vmatmul.bf16.gmra.mxu0 %v6479
    %v6795 = vpop.f32.mrf.mxu0
    %v6796 = vadd.f32 0.0, %v6795
    %v6797 = vpop.f32.mrf.mxu0
    %6798 = vdwg.mxu0
    %v6799 = vadd.f32 %v6421, %v6731
    %v6800 = vadd.f32 %v6422, %v6744
    %v6801 = vadd.f32 %v6423, %v6757
    %v6802 = vadd.f32 %v6424, %v6770
    %v6803 = vadd.f32 %v6425, %v6783
    %v6804 = vadd.f32 %v6426, %v6796
    %s6805 = scalar_lea.vmem [#allocation2], 6144
    %v6806 = vld [vmem:[%s6805] sm:$0xff]
    %v6807 = vld [vmem:[%s6805 + $0x8] sm:$0xff]
    %v6808 = vld [vmem:[%s6805 + $0x10] sm:$0xff]
    %v6809 = vld [vmem:[%s6805 + $0x18] sm:$0xff]
    %v6810 = vld [vmem:[%s6805 + $0x20] sm:$0xff]
    %v6811 = vld [vmem:[%s6805 + $0x28] sm:$0xff]
    %v6812 = vld [vmem:[%s6805 + $0x30] sm:$0xff]
    %v6813 = vld [vmem:[%s6805 + $0x38] sm:$0xff]
    %v6814 = vld [vmem:[%s6805 + $0x40] sm:$0xff]
    %v6815 = vld [vmem:[%s6805 + $0x48] sm:$0xff]
    %v6816 = vld [vmem:[%s6805 + $0x50] sm:$0xff]
    %v6817 = vld [vmem:[%s6805 + $0x58] sm:$0xff]
    %v6818 = vld [vmem:[%s6805 + $0x60] sm:$0xff]
    %v6819 = vld [vmem:[%s6805 + $0x68] sm:$0xff]
    %v6820 = vld [vmem:[%s6805 + $0x70] sm:$0xff]
    %v6821 = vld [vmem:[%s6805 + $0x78] sm:$0xff]
    %v6822 = vld [vmem:[%s6805 + $0x80] sm:$0xff]
    %v6823 = vld [vmem:[%s6805 + $0x88] sm:$0xff]
    %v6824 = vld [vmem:[%s6805 + $0x90] sm:$0xff]
    %v6825 = vld [vmem:[%s6805 + $0x98] sm:$0xff]
    %v6826 = vld [vmem:[%s6805 + $0xa0] sm:$0xff]
    %v6827 = vld [vmem:[%s6805 + $0xa8] sm:$0xff]
    %v6828 = vld [vmem:[%s6805 + $0xb0] sm:$0xff]
    %v6829 = vld [vmem:[%s6805 + $0xb8] sm:$0xff]
    %v6830 = vld [vmem:[%s6805 + $0xc0] sm:$0xff]
    %v6831 = vld [vmem:[%s6805 + $0xc8] sm:$0xff]
    %v6832 = vld [vmem:[%s6805 + $0xd0] sm:$0xff]
    %v6833 = vld [vmem:[%s6805 + $0xd8] sm:$0xff]
    %v6834 = vld [vmem:[%s6805 + $0xe0] sm:$0xff]
    %v6835 = vld [vmem:[%s6805 + $0xe8] sm:$0xff]
    %v6836 = vld [vmem:[%s6805 + $0xf0] sm:$0xff]
    %v6837 = vld [vmem:[%s6805 + $0xf8] sm:$0xff]
    %v6838 = vld [vmem:[%s6805 + $0x100] sm:$0xff]
    %v6839 = vld [vmem:[%s6805 + $0x108] sm:$0xff]
    %v6840 = vld [vmem:[%s6805 + $0x110] sm:$0xff]
    %v6841 = vld [vmem:[%s6805 + $0x118] sm:$0xff]
    %v6842 = vld [vmem:[%s6805 + $0x120] sm:$0xff]
    %v6843 = vld [vmem:[%s6805 + $0x128] sm:$0xff]
    %v6844 = vld [vmem:[%s6805 + $0x130] sm:$0xff]
    %v6845 = vld [vmem:[%s6805 + $0x138] sm:$0xff]
    %v6846 = vld [vmem:[%s6805 + $0x140] sm:$0xff]
    %v6847 = vld [vmem:[%s6805 + $0x148] sm:$0xff]
    %v6848 = vld [vmem:[%s6805 + $0x150] sm:$0xff]
    %v6849 = vld [vmem:[%s6805 + $0x158] sm:$0xff]
    %v6850 = vld [vmem:[%s6805 + $0x160] sm:$0xff]
    %v6851 = vld [vmem:[%s6805 + $0x168] sm:$0xff]
    %v6852 = vld [vmem:[%s6805 + $0x170] sm:$0xff]
    %v6853 = vld [vmem:[%s6805 + $0x178] sm:$0xff]
    %v6856 = vunpack.c.l.b16 %v465
    %v6857 = vunpack.c.l.b16 %v750
    %v6858 = vpack.c.b16 %v6856, %v6856
    %v6859 = vpack.c.b16 %v6857, %v6857
    %v6860 = vunpack.c.l.b16 %v6858
    %v6861 = vunpack.c.l.b16 %v6859
    %v6862 = vrot.slane %v6861, 7
    %v6863 = vsel %vm863, %v6862, %v6860
    %v6864 = vpack.c.b16 %v6863, %v6863
    %v6914 = vunpack.c.l.b16 %v6806
    %v6915 = vunpack.c.h.b16 %v6806
    %v6916 = vunpack.c.l.b16 %v6807
    %v6917 = vunpack.c.h.b16 %v6807
    %v6918 = vunpack.c.l.b16 %v6808
    %v6919 = vunpack.c.h.b16 %v6808
    %v6920 = vunpack.c.l.b16 %v6809
    %v6921 = vunpack.c.h.b16 %v6809
    %v6922 = vunpack.c.l.b16 %v6810
    %v6923 = vunpack.c.h.b16 %v6810
    %v6924 = vunpack.c.l.b16 %v6811
    %v6925 = vunpack.c.h.b16 %v6811
    %v6926 = vunpack.c.l.b16 %v6812
    %v6927 = vunpack.c.h.b16 %v6812
    %v6928 = vunpack.c.l.b16 %v6813
    %v6929 = vunpack.c.h.b16 %v6813
    %v6930 = vunpack.c.l.b16 %v6814
    %v6931 = vunpack.c.h.b16 %v6814
    %v6932 = vunpack.c.l.b16 %v6815
    %v6933 = vunpack.c.h.b16 %v6815
    %v6934 = vunpack.c.l.b16 %v6816
    %v6935 = vunpack.c.h.b16 %v6816
    %v6936 = vunpack.c.l.b16 %v6817
    %v6937 = vunpack.c.h.b16 %v6817
    %v6938 = vunpack.c.l.b16 %v6818
    %v6939 = vunpack.c.h.b16 %v6818
    %v6940 = vunpack.c.l.b16 %v6819
    %v6941 = vunpack.c.h.b16 %v6819
    %v6942 = vunpack.c.l.b16 %v6820
    %v6943 = vunpack.c.h.b16 %v6820
    %v6944 = vunpack.c.l.b16 %v6821
    %v6945 = vunpack.c.h.b16 %v6821
    %v6946 = vunpack.c.l.b16 %v6822
    %v6947 = vunpack.c.h.b16 %v6822
    %v6948 = vunpack.c.l.b16 %v6823
    %v6949 = vunpack.c.h.b16 %v6823
    %v6950 = vunpack.c.l.b16 %v6824
    %v6951 = vunpack.c.h.b16 %v6824
    %v6952 = vunpack.c.l.b16 %v6825
    %v6953 = vunpack.c.h.b16 %v6825
    %v6954 = vunpack.c.l.b16 %v6826
    %v6955 = vunpack.c.h.b16 %v6826
    %v6956 = vunpack.c.l.b16 %v6827
    %v6957 = vunpack.c.h.b16 %v6827
    %v6958 = vunpack.c.l.b16 %v6828
    %v6959 = vunpack.c.h.b16 %v6828
    %v6960 = vunpack.c.l.b16 %v6829
    %v6961 = vunpack.c.h.b16 %v6829
    %v6962 = vunpack.c.l.b16 %v6830
    %v6963 = vunpack.c.h.b16 %v6830
    %v6964 = vunpack.c.l.b16 %v6831
    %v6965 = vunpack.c.h.b16 %v6831
    %v6966 = vunpack.c.l.b16 %v6832
    %v6967 = vunpack.c.h.b16 %v6832
    %v6968 = vunpack.c.l.b16 %v6833
    %v6969 = vunpack.c.h.b16 %v6833
    %v6970 = vunpack.c.l.b16 %v6834
    %v6971 = vunpack.c.h.b16 %v6834
    %v6972 = vunpack.c.l.b16 %v6835
    %v6973 = vunpack.c.h.b16 %v6835
    %v6974 = vunpack.c.l.b16 %v6836
    %v6975 = vunpack.c.h.b16 %v6836
    %v6976 = vunpack.c.l.b16 %v6837
    %v6977 = vunpack.c.h.b16 %v6837
    %v6978 = vunpack.c.l.b16 %v6838
    %v6979 = vunpack.c.h.b16 %v6838
    %v6980 = vunpack.c.l.b16 %v6839
    %v6981 = vunpack.c.h.b16 %v6839
    %v6982 = vunpack.c.l.b16 %v6840
    %v6983 = vunpack.c.h.b16 %v6840
    %v6984 = vunpack.c.l.b16 %v6841
    %v6985 = vunpack.c.h.b16 %v6841
    %v6986 = vunpack.c.l.b16 %v6842
    %v6987 = vunpack.c.h.b16 %v6842
    %v6988 = vunpack.c.l.b16 %v6843
    %v6989 = vunpack.c.h.b16 %v6843
    %v6990 = vunpack.c.l.b16 %v6844
    %v6991 = vunpack.c.h.b16 %v6844
    %v6992 = vunpack.c.l.b16 %v6845
    %v6993 = vunpack.c.h.b16 %v6845
    %v6994 = vunpack.c.l.b16 %v6846
    %v6995 = vunpack.c.h.b16 %v6846
    %v6996 = vunpack.c.l.b16 %v6847
    %v6997 = vunpack.c.h.b16 %v6847
    %v6998 = vunpack.c.l.b16 %v6848
    %v6999 = vunpack.c.h.b16 %v6848
    %v7000 = vunpack.c.l.b16 %v6849
    %v7001 = vunpack.c.h.b16 %v6849
    %v7002 = vunpack.c.l.b16 %v6850
    %v7003 = vunpack.c.h.b16 %v6850
    %v7004 = vunpack.c.l.b16 %v6851
    %v7005 = vunpack.c.h.b16 %v6851
    %v7006 = vunpack.c.l.b16 %v6852
    %v7007 = vunpack.c.h.b16 %v6852
    %v7008 = vunpack.c.l.b16 %v6853
    %v7009 = vunpack.c.h.b16 %v6853
    %v7010 = vpack.c.b16 %v6920, %v6914
    %v7011 = vpack.c.b16 %v6921, %v6915
    %v7012 = vpack.c.b16 %v6922, %v6916
    %v7013 = vpack.c.b16 %v6923, %v6917
    %v7014 = vpack.c.b16 %v6924, %v6918
    %v7015 = vpack.c.b16 %v6925, %v6919
    %v7016 = vpack.c.b16 %v6932, %v6926
    %v7017 = vpack.c.b16 %v6933, %v6927
    %v7018 = vpack.c.b16 %v6934, %v6928
    %v7019 = vpack.c.b16 %v6935, %v6929
    %v7020 = vpack.c.b16 %v6936, %v6930
    %v7021 = vpack.c.b16 %v6937, %v6931
    %v7022 = vpack.c.b16 %v6944, %v6938
    %v7023 = vpack.c.b16 %v6945, %v6939
    %v7024 = vpack.c.b16 %v6946, %v6940
    %v7025 = vpack.c.b16 %v6947, %v6941
    %v7026 = vpack.c.b16 %v6948, %v6942
    %v7027 = vpack.c.b16 %v6949, %v6943
    %v7028 = vpack.c.b16 %v6956, %v6950
    %v7029 = vpack.c.b16 %v6957, %v6951
    %v7030 = vpack.c.b16 %v6958, %v6952
    %v7031 = vpack.c.b16 %v6959, %v6953
    %v7032 = vpack.c.b16 %v6960, %v6954
    %v7033 = vpack.c.b16 %v6961, %v6955
    %v7034 = vpack.c.b16 %v6968, %v6962
    %v7035 = vpack.c.b16 %v6969, %v6963
    %v7036 = vpack.c.b16 %v6970, %v6964
    %v7037 = vpack.c.b16 %v6971, %v6965
    %v7038 = vpack.c.b16 %v6972, %v6966
    %v7039 = vpack.c.b16 %v6973, %v6967
    %v7040 = vpack.c.b16 %v6980, %v6974
    %v7041 = vpack.c.b16 %v6981, %v6975
    %v7042 = vpack.c.b16 %v6982, %v6976
    %v7043 = vpack.c.b16 %v6983, %v6977
    %v7044 = vpack.c.b16 %v6984, %v6978
    %v7045 = vpack.c.b16 %v6985, %v6979
    %v7046 = vpack.c.b16 %v6992, %v6986
    %v7047 = vpack.c.b16 %v6993, %v6987
    %v7048 = vpack.c.b16 %v6994, %v6988
    %v7049 = vpack.c.b16 %v6995, %v6989
    %v7050 = vpack.c.b16 %v6996, %v6990
    %v7051 = vpack.c.b16 %v6997, %v6991
    %v7052 = vpack.c.b16 %v7004, %v6998
    %v7053 = vpack.c.b16 %v7005, %v6999
    %v7054 = vpack.c.b16 %v7006, %v7000
    %v7055 = vpack.c.b16 %v7007, %v7001
    %v7056 = vpack.c.b16 %v7008, %v7002
    %v7057 = vpack.c.b16 %v7009, %v7003
    %7106 = vmatpush.bf16.msra.mxu0 %v7052
    %7107 = vmatpush.bf16.msra.mxu0 %v7046
    %7108 = vmatpush.bf16.msra.mxu0 %v7040
    %7109 = vmatpush.bf16.msra.mxu0 %v7034
    %7110 = vmatpush.bf16.msra.mxu0 %v7028
    %7111 = vmatpush.bf16.msra.mxu0 %v7022
    %7112 = vmatpush.bf16.msra.mxu0 %v7016
    %7113 = vmatpush.bf16.msra.mxu0 %v7010
    %7114 = vmatmul.bf16.gmra.mxu0 %v6864
    %v7115 = vpop.f32.mrf.mxu0
    %v7116 = vadd.f32 0.0, %v7115
    %v7117 = vpop.f32.mrf.mxu0
    %7118 = vdwg.mxu0
    %7119 = vmatpush.bf16.msra.mxu0 %v7053
    %7120 = vmatpush.bf16.msra.mxu0 %v7047
    %7121 = vmatpush.bf16.msra.mxu0 %v7041
    %7122 = vmatpush.bf16.msra.mxu0 %v7035
    %7123 = vmatpush.bf16.msra.mxu0 %v7029
    %7124 = vmatpush.bf16.msra.mxu0 %v7023
    %7125 = vmatpush.bf16.msra.mxu0 %v7017
    %7126 = vmatpush.bf16.msra.mxu0 %v7011
    %7127 = vmatmul.bf16.gmra.mxu0 %v6864
    %v7128 = vpop.f32.mrf.mxu0
    %v7129 = vadd.f32 0.0, %v7128
    %v7130 = vpop.f32.mrf.mxu0
    %7131 = vdwg.mxu0
    %7132 = vmatpush.bf16.msra.mxu0 %v7054
    %7133 = vmatpush.bf16.msra.mxu0 %v7048
    %7134 = vmatpush.bf16.msra.mxu0 %v7042
    %7135 = vmatpush.bf16.msra.mxu0 %v7036
    %7136 = vmatpush.bf16.msra.mxu0 %v7030
    %7137 = vmatpush.bf16.msra.mxu0 %v7024
    %7138 = vmatpush.bf16.msra.mxu0 %v7018
    %7139 = vmatpush.bf16.msra.mxu0 %v7012
    %7140 = vmatmul.bf16.gmra.mxu0 %v6864
    %v7141 = vpop.f32.mrf.mxu0
    %v7142 = vadd.f32 0.0, %v7141
    %v7143 = vpop.f32.mrf.mxu0
    %7144 = vdwg.mxu0
    %7145 = vmatpush.bf16.msra.mxu0 %v7055
    %7146 = vmatpush.bf16.msra.mxu0 %v7049
    %7147 = vmatpush.bf16.msra.mxu0 %v7043
    %7148 = vmatpush.bf16.msra.mxu0 %v7037
    %7149 = vmatpush.bf16.msra.mxu0 %v7031
    %7150 = vmatpush.bf16.msra.mxu0 %v7025
    %7151 = vmatpush.bf16.msra.mxu0 %v7019
    %7152 = vmatpush.bf16.msra.mxu0 %v7013
    %7153 = vmatmul.bf16.gmra.mxu0 %v6864
    %v7154 = vpop.f32.mrf.mxu0
    %v7155 = vadd.f32 0.0, %v7154
    %v7156 = vpop.f32.mrf.mxu0
    %7157 = vdwg.mxu0
    %7158 = vmatpush.bf16.msra.mxu0 %v7056
    %7159 = vmatpush.bf16.msra.mxu0 %v7050
    %7160 = vmatpush.bf16.msra.mxu0 %v7044
    %7161 = vmatpush.bf16.msra.mxu0 %v7038
    %7162 = vmatpush.bf16.msra.mxu0 %v7032
    %7163 = vmatpush.bf16.msra.mxu0 %v7026
    %7164 = vmatpush.bf16.msra.mxu0 %v7020
    %7165 = vmatpush.bf16.msra.mxu0 %v7014
    %7166 = vmatmul.bf16.gmra.mxu0 %v6864
    %v7167 = vpop.f32.mrf.mxu0
    %v7168 = vadd.f32 0.0, %v7167
    %v7169 = vpop.f32.mrf.mxu0
    %7170 = vdwg.mxu0
    %7171 = vmatpush.bf16.msra.mxu0 %v7057
    %7172 = vmatpush.bf16.msra.mxu0 %v7051
    %7173 = vmatpush.bf16.msra.mxu0 %v7045
    %7174 = vmatpush.bf16.msra.mxu0 %v7039
    %7175 = vmatpush.bf16.msra.mxu0 %v7033
    %7176 = vmatpush.bf16.msra.mxu0 %v7027
    %7177 = vmatpush.bf16.msra.mxu0 %v7021
    %7178 = vmatpush.bf16.msra.mxu0 %v7015
    %7179 = vmatmul.bf16.gmra.mxu0 %v6864
    %v7180 = vpop.f32.mrf.mxu0
    %v7181 = vadd.f32 0.0, %v7180
    %v7182 = vpop.f32.mrf.mxu0
    %7183 = vdwg.mxu0
    %v7184 = vadd.f32 %v6799, %v7116
    %v7185 = vadd.f32 %v6800, %v7129
    %v7186 = vadd.f32 %v6801, %v7142
    %v7187 = vadd.f32 %v6802, %v7155
    %v7188 = vadd.f32 %v6803, %v7168
    %v7189 = vadd.f32 %v6804, %v7181
    %s7190 = scalar_lea.vmem [#allocation2], 6528
    %v7191 = vld [vmem:[%s7190] sm:$0xff]
    %v7192 = vld [vmem:[%s7190 + $0x8] sm:$0xff]
    %v7193 = vld [vmem:[%s7190 + $0x10] sm:$0xff]
    %v7194 = vld [vmem:[%s7190 + $0x18] sm:$0xff]
    %v7195 = vld [vmem:[%s7190 + $0x20] sm:$0xff]
    %v7196 = vld [vmem:[%s7190 + $0x28] sm:$0xff]
    %v7197 = vld [vmem:[%s7190 + $0x30] sm:$0xff]
    %v7198 = vld [vmem:[%s7190 + $0x38] sm:$0xff]
    %v7199 = vld [vmem:[%s7190 + $0x40] sm:$0xff]
    %v7200 = vld [vmem:[%s7190 + $0x48] sm:$0xff]
    %v7201 = vld [vmem:[%s7190 + $0x50] sm:$0xff]
    %v7202 = vld [vmem:[%s7190 + $0x58] sm:$0xff]
    %v7203 = vld [vmem:[%s7190 + $0x60] sm:$0xff]
    %v7204 = vld [vmem:[%s7190 + $0x68] sm:$0xff]
    %v7205 = vld [vmem:[%s7190 + $0x70] sm:$0xff]
    %v7206 = vld [vmem:[%s7190 + $0x78] sm:$0xff]
    %v7207 = vld [vmem:[%s7190 + $0x80] sm:$0xff]
    %v7208 = vld [vmem:[%s7190 + $0x88] sm:$0xff]
    %v7209 = vld [vmem:[%s7190 + $0x90] sm:$0xff]
    %v7210 = vld [vmem:[%s7190 + $0x98] sm:$0xff]
    %v7211 = vld [vmem:[%s7190 + $0xa0] sm:$0xff]
    %v7212 = vld [vmem:[%s7190 + $0xa8] sm:$0xff]
    %v7213 = vld [vmem:[%s7190 + $0xb0] sm:$0xff]
    %v7214 = vld [vmem:[%s7190 + $0xb8] sm:$0xff]
    %v7215 = vld [vmem:[%s7190 + $0xc0] sm:$0xff]
    %v7216 = vld [vmem:[%s7190 + $0xc8] sm:$0xff]
    %v7217 = vld [vmem:[%s7190 + $0xd0] sm:$0xff]
    %v7218 = vld [vmem:[%s7190 + $0xd8] sm:$0xff]
    %v7219 = vld [vmem:[%s7190 + $0xe0] sm:$0xff]
    %v7220 = vld [vmem:[%s7190 + $0xe8] sm:$0xff]
    %v7221 = vld [vmem:[%s7190 + $0xf0] sm:$0xff]
    %v7222 = vld [vmem:[%s7190 + $0xf8] sm:$0xff]
    %v7223 = vld [vmem:[%s7190 + $0x100] sm:$0xff]
    %v7224 = vld [vmem:[%s7190 + $0x108] sm:$0xff]
    %v7225 = vld [vmem:[%s7190 + $0x110] sm:$0xff]
    %v7226 = vld [vmem:[%s7190 + $0x118] sm:$0xff]
    %v7227 = vld [vmem:[%s7190 + $0x120] sm:$0xff]
    %v7228 = vld [vmem:[%s7190 + $0x128] sm:$0xff]
    %v7229 = vld [vmem:[%s7190 + $0x130] sm:$0xff]
    %v7230 = vld [vmem:[%s7190 + $0x138] sm:$0xff]
    %v7231 = vld [vmem:[%s7190 + $0x140] sm:$0xff]
    %v7232 = vld [vmem:[%s7190 + $0x148] sm:$0xff]
    %v7233 = vld [vmem:[%s7190 + $0x150] sm:$0xff]
    %v7234 = vld [vmem:[%s7190 + $0x158] sm:$0xff]
    %v7235 = vld [vmem:[%s7190 + $0x160] sm:$0xff]
    %v7236 = vld [vmem:[%s7190 + $0x168] sm:$0xff]
    %v7237 = vld [vmem:[%s7190 + $0x170] sm:$0xff]
    %v7238 = vld [vmem:[%s7190 + $0x178] sm:$0xff]
    %v7239 = vrot.slane %v6860, 1
    %v7240 = vsel %vm863, %v6861, %v7239
    %v7241 = vpack.c.b16 %v7240, %v7240
    %v7291 = vunpack.c.l.b16 %v7191
    %v7292 = vunpack.c.h.b16 %v7191
    %v7293 = vunpack.c.l.b16 %v7192
    %v7294 = vunpack.c.h.b16 %v7192
    %v7295 = vunpack.c.l.b16 %v7193
    %v7296 = vunpack.c.h.b16 %v7193
    %v7297 = vunpack.c.l.b16 %v7194
    %v7298 = vunpack.c.h.b16 %v7194
    %v7299 = vunpack.c.l.b16 %v7195
    %v7300 = vunpack.c.h.b16 %v7195
    %v7301 = vunpack.c.l.b16 %v7196
    %v7302 = vunpack.c.h.b16 %v7196
    %v7303 = vunpack.c.l.b16 %v7197
    %v7304 = vunpack.c.h.b16 %v7197
    %v7305 = vunpack.c.l.b16 %v7198
    %v7306 = vunpack.c.h.b16 %v7198
    %v7307 = vunpack.c.l.b16 %v7199
    %v7308 = vunpack.c.h.b16 %v7199
    %v7309 = vunpack.c.l.b16 %v7200
    %v7310 = vunpack.c.h.b16 %v7200
    %v7311 = vunpack.c.l.b16 %v7201
    %v7312 = vunpack.c.h.b16 %v7201
    %v7313 = vunpack.c.l.b16 %v7202
    %v7314 = vunpack.c.h.b16 %v7202
    %v7315 = vunpack.c.l.b16 %v7203
    %v7316 = vunpack.c.h.b16 %v7203
    %v7317 = vunpack.c.l.b16 %v7204
    %v7318 = vunpack.c.h.b16 %v7204
    %v7319 = vunpack.c.l.b16 %v7205
    %v7320 = vunpack.c.h.b16 %v7205
    %v7321 = vunpack.c.l.b16 %v7206
    %v7322 = vunpack.c.h.b16 %v7206
    %v7323 = vunpack.c.l.b16 %v7207
    %v7324 = vunpack.c.h.b16 %v7207
    %v7325 = vunpack.c.l.b16 %v7208
    %v7326 = vunpack.c.h.b16 %v7208
    %v7327 = vunpack.c.l.b16 %v7209
    %v7328 = vunpack.c.h.b16 %v7209
    %v7329 = vunpack.c.l.b16 %v7210
    %v7330 = vunpack.c.h.b16 %v7210
    %v7331 = vunpack.c.l.b16 %v7211
    %v7332 = vunpack.c.h.b16 %v7211
    %v7333 = vunpack.c.l.b16 %v7212
    %v7334 = vunpack.c.h.b16 %v7212
    %v7335 = vunpack.c.l.b16 %v7213
    %v7336 = vunpack.c.h.b16 %v7213
    %v7337 = vunpack.c.l.b16 %v7214
    %v7338 = vunpack.c.h.b16 %v7214
    %v7339 = vunpack.c.l.b16 %v7215
    %v7340 = vunpack.c.h.b16 %v7215
    %v7341 = vunpack.c.l.b16 %v7216
    %v7342 = vunpack.c.h.b16 %v7216
    %v7343 = vunpack.c.l.b16 %v7217
    %v7344 = vunpack.c.h.b16 %v7217
    %v7345 = vunpack.c.l.b16 %v7218
    %v7346 = vunpack.c.h.b16 %v7218
    %v7347 = vunpack.c.l.b16 %v7219
    %v7348 = vunpack.c.h.b16 %v7219
    %v7349 = vunpack.c.l.b16 %v7220
    %v7350 = vunpack.c.h.b16 %v7220
    %v7351 = vunpack.c.l.b16 %v7221
    %v7352 = vunpack.c.h.b16 %v7221
    %v7353 = vunpack.c.l.b16 %v7222
    %v7354 = vunpack.c.h.b16 %v7222
    %v7355 = vunpack.c.l.b16 %v7223
    %v7356 = vunpack.c.h.b16 %v7223
    %v7357 = vunpack.c.l.b16 %v7224
    %v7358 = vunpack.c.h.b16 %v7224
    %v7359 = vunpack.c.l.b16 %v7225
    %v7360 = vunpack.c.h.b16 %v7225
    %v7361 = vunpack.c.l.b16 %v7226
    %v7362 = vunpack.c.h.b16 %v7226
    %v7363 = vunpack.c.l.b16 %v7227
    %v7364 = vunpack.c.h.b16 %v7227
    %v7365 = vunpack.c.l.b16 %v7228
    %v7366 = vunpack.c.h.b16 %v7228
    %v7367 = vunpack.c.l.b16 %v7229
    %v7368 = vunpack.c.h.b16 %v7229
    %v7369 = vunpack.c.l.b16 %v7230
    %v7370 = vunpack.c.h.b16 %v7230
    %v7371 = vunpack.c.l.b16 %v7231
    %v7372 = vunpack.c.h.b16 %v7231
    %v7373 = vunpack.c.l.b16 %v7232
    %v7374 = vunpack.c.h.b16 %v7232
    %v7375 = vunpack.c.l.b16 %v7233
    %v7376 = vunpack.c.h.b16 %v7233
    %v7377 = vunpack.c.l.b16 %v7234
    %v7378 = vunpack.c.h.b16 %v7234
    %v7379 = vunpack.c.l.b16 %v7235
    %v7380 = vunpack.c.h.b16 %v7235
    %v7381 = vunpack.c.l.b16 %v7236
    %v7382 = vunpack.c.h.b16 %v7236
    %v7383 = vunpack.c.l.b16 %v7237
    %v7384 = vunpack.c.h.b16 %v7237
    %v7385 = vunpack.c.l.b16 %v7238
    %v7386 = vunpack.c.h.b16 %v7238
    %v7387 = vpack.c.b16 %v7297, %v7291
    %v7388 = vpack.c.b16 %v7298, %v7292
    %v7389 = vpack.c.b16 %v7299, %v7293
    %v7390 = vpack.c.b16 %v7300, %v7294
    %v7391 = vpack.c.b16 %v7301, %v7295
    %v7392 = vpack.c.b16 %v7302, %v7296
    %v7393 = vpack.c.b16 %v7309, %v7303
    %v7394 = vpack.c.b16 %v7310, %v7304
    %v7395 = vpack.c.b16 %v7311, %v7305
    %v7396 = vpack.c.b16 %v7312, %v7306
    %v7397 = vpack.c.b16 %v7313, %v7307
    %v7398 = vpack.c.b16 %v7314, %v7308
    %v7399 = vpack.c.b16 %v7321, %v7315
    %v7400 = vpack.c.b16 %v7322, %v7316
    %v7401 = vpack.c.b16 %v7323, %v7317
    %v7402 = vpack.c.b16 %v7324, %v7318
    %v7403 = vpack.c.b16 %v7325, %v7319
    %v7404 = vpack.c.b16 %v7326, %v7320
    %v7405 = vpack.c.b16 %v7333, %v7327
    %v7406 = vpack.c.b16 %v7334, %v7328
    %v7407 = vpack.c.b16 %v7335, %v7329
    %v7408 = vpack.c.b16 %v7336, %v7330
    %v7409 = vpack.c.b16 %v7337, %v7331
    %v7410 = vpack.c.b16 %v7338, %v7332
    %v7411 = vpack.c.b16 %v7345, %v7339
    %v7412 = vpack.c.b16 %v7346, %v7340
    %v7413 = vpack.c.b16 %v7347, %v7341
    %v7414 = vpack.c.b16 %v7348, %v7342
    %v7415 = vpack.c.b16 %v7349, %v7343
    %v7416 = vpack.c.b16 %v7350, %v7344
    %v7417 = vpack.c.b16 %v7357, %v7351
    %v7418 = vpack.c.b16 %v7358, %v7352
    %v7419 = vpack.c.b16 %v7359, %v7353
    %v7420 = vpack.c.b16 %v7360, %v7354
    %v7421 = vpack.c.b16 %v7361, %v7355
    %v7422 = vpack.c.b16 %v7362, %v7356
    %v7423 = vpack.c.b16 %v7369, %v7363
    %v7424 = vpack.c.b16 %v7370, %v7364
    %v7425 = vpack.c.b16 %v7371, %v7365
    %v7426 = vpack.c.b16 %v7372, %v7366
    %v7427 = vpack.c.b16 %v7373, %v7367
    %v7428 = vpack.c.b16 %v7374, %v7368
    %v7429 = vpack.c.b16 %v7381, %v7375
    %v7430 = vpack.c.b16 %v7382, %v7376
    %v7431 = vpack.c.b16 %v7383, %v7377
    %v7432 = vpack.c.b16 %v7384, %v7378
    %v7433 = vpack.c.b16 %v7385, %v7379
    %v7434 = vpack.c.b16 %v7386, %v7380
    %7483 = vmatpush.bf16.msra.mxu0 %v7429
    %7484 = vmatpush.bf16.msra.mxu0 %v7423
    %7485 = vmatpush.bf16.msra.mxu0 %v7417
    %7486 = vmatpush.bf16.msra.mxu0 %v7411
    %7487 = vmatpush.bf16.msra.mxu0 %v7405
    %7488 = vmatpush.bf16.msra.mxu0 %v7399
    %7489 = vmatpush.bf16.msra.mxu0 %v7393
    %7490 = vmatpush.bf16.msra.mxu0 %v7387
    %7491 = vmatmul.bf16.gmra.mxu0 %v7241
    %v7492 = vpop.f32.mrf.mxu0
    %v7493 = vadd.f32 0.0, %v7492
    %v7494 = vpop.f32.mrf.mxu0
    %7495 = vdwg.mxu0
    %7496 = vmatpush.bf16.msra.mxu0 %v7430
    %7497 = vmatpush.bf16.msra.mxu0 %v7424
    %7498 = vmatpush.bf16.msra.mxu0 %v7418
    %7499 = vmatpush.bf16.msra.mxu0 %v7412
    %7500 = vmatpush.bf16.msra.mxu0 %v7406
    %7501 = vmatpush.bf16.msra.mxu0 %v7400
    %7502 = vmatpush.bf16.msra.mxu0 %v7394
    %7503 = vmatpush.bf16.msra.mxu0 %v7388
    %7504 = vmatmul.bf16.gmra.mxu0 %v7241
    %v7505 = vpop.f32.mrf.mxu0
    %v7506 = vadd.f32 0.0, %v7505
    %v7507 = vpop.f32.mrf.mxu0
    %7508 = vdwg.mxu0
    %7509 = vmatpush.bf16.msra.mxu0 %v7431
    %7510 = vmatpush.bf16.msra.mxu0 %v7425
    %7511 = vmatpush.bf16.msra.mxu0 %v7419
    %7512 = vmatpush.bf16.msra.mxu0 %v7413
    %7513 = vmatpush.bf16.msra.mxu0 %v7407
    %7514 = vmatpush.bf16.msra.mxu0 %v7401
    %7515 = vmatpush.bf16.msra.mxu0 %v7395
    %7516 = vmatpush.bf16.msra.mxu0 %v7389
    %7517 = vmatmul.bf16.gmra.mxu0 %v7241
    %v7518 = vpop.f32.mrf.mxu0
    %v7519 = vadd.f32 0.0, %v7518
    %v7520 = vpop.f32.mrf.mxu0
    %7521 = vdwg.mxu0
    %7522 = vmatpush.bf16.msra.mxu0 %v7432
    %7523 = vmatpush.bf16.msra.mxu0 %v7426
    %7524 = vmatpush.bf16.msra.mxu0 %v7420
    %7525 = vmatpush.bf16.msra.mxu0 %v7414
    %7526 = vmatpush.bf16.msra.mxu0 %v7408
    %7527 = vmatpush.bf16.msra.mxu0 %v7402
    %7528 = vmatpush.bf16.msra.mxu0 %v7396
    %7529 = vmatpush.bf16.msra.mxu0 %v7390
    %7530 = vmatmul.bf16.gmra.mxu0 %v7241
    %v7531 = vpop.f32.mrf.mxu0
    %v7532 = vadd.f32 0.0, %v7531
    %v7533 = vpop.f32.mrf.mxu0
    %7534 = vdwg.mxu0
    %7535 = vmatpush.bf16.msra.mxu0 %v7433
    %7536 = vmatpush.bf16.msra.mxu0 %v7427
    %7537 = vmatpush.bf16.msra.mxu0 %v7421
    %7538 = vmatpush.bf16.msra.mxu0 %v7415
    %7539 = vmatpush.bf16.msra.mxu0 %v7409
    %7540 = vmatpush.bf16.msra.mxu0 %v7403
    %7541 = vmatpush.bf16.msra.mxu0 %v7397
    %7542 = vmatpush.bf16.msra.mxu0 %v7391
    %7543 = vmatmul.bf16.gmra.mxu0 %v7241
    %v7544 = vpop.f32.mrf.mxu0
    %v7545 = vadd.f32 0.0, %v7544
    %v7546 = vpop.f32.mrf.mxu0
    %7547 = vdwg.mxu0
    %7548 = vmatpush.bf16.msra.mxu0 %v7434
    %7549 = vmatpush.bf16.msra.mxu0 %v7428
    %7550 = vmatpush.bf16.msra.mxu0 %v7422
    %7551 = vmatpush.bf16.msra.mxu0 %v7416
    %7552 = vmatpush.bf16.msra.mxu0 %v7410
    %7553 = vmatpush.bf16.msra.mxu0 %v7404
    %7554 = vmatpush.bf16.msra.mxu0 %v7398
    %7555 = vmatpush.bf16.msra.mxu0 %v7392
    %7556 = vmatmul.bf16.gmra.mxu0 %v7241
    %v7557 = vpop.f32.mrf.mxu0
    %v7558 = vadd.f32 0.0, %v7557
    %v7559 = vpop.f32.mrf.mxu0
    %7560 = vdwg.mxu0
    %v7561 = vadd.f32 %v7184, %v7493
    %v7562 = vadd.f32 %v7185, %v7506
    %v7563 = vadd.f32 %v7186, %v7519
    %v7564 = vadd.f32 %v7187, %v7532
    %v7565 = vadd.f32 %v7188, %v7545
    %v7566 = vadd.f32 %v7189, %v7558
    %s7567 = scalar_lea.vmem [#allocation2], 6912
    %v7568 = vld [vmem:[%s7567] sm:$0xff]
    %v7569 = vld [vmem:[%s7567 + $0x8] sm:$0xff]
    %v7570 = vld [vmem:[%s7567 + $0x10] sm:$0xff]
    %v7571 = vld [vmem:[%s7567 + $0x18] sm:$0xff]
    %v7572 = vld [vmem:[%s7567 + $0x20] sm:$0xff]
    %v7573 = vld [vmem:[%s7567 + $0x28] sm:$0xff]
    %v7574 = vld [vmem:[%s7567 + $0x30] sm:$0xff]
    %v7575 = vld [vmem:[%s7567 + $0x38] sm:$0xff]
    %v7576 = vld [vmem:[%s7567 + $0x40] sm:$0xff]
    %v7577 = vld [vmem:[%s7567 + $0x48] sm:$0xff]
    %v7578 = vld [vmem:[%s7567 + $0x50] sm:$0xff]
    %v7579 = vld [vmem:[%s7567 + $0x58] sm:$0xff]
    %v7580 = vld [vmem:[%s7567 + $0x60] sm:$0xff]
    %v7581 = vld [vmem:[%s7567 + $0x68] sm:$0xff]
    %v7582 = vld [vmem:[%s7567 + $0x70] sm:$0xff]
    %v7583 = vld [vmem:[%s7567 + $0x78] sm:$0xff]
    %v7584 = vld [vmem:[%s7567 + $0x80] sm:$0xff]
    %v7585 = vld [vmem:[%s7567 + $0x88] sm:$0xff]
    %v7586 = vld [vmem:[%s7567 + $0x90] sm:$0xff]
    %v7587 = vld [vmem:[%s7567 + $0x98] sm:$0xff]
    %v7588 = vld [vmem:[%s7567 + $0xa0] sm:$0xff]
    %v7589 = vld [vmem:[%s7567 + $0xa8] sm:$0xff]
    %v7590 = vld [vmem:[%s7567 + $0xb0] sm:$0xff]
    %v7591 = vld [vmem:[%s7567 + $0xb8] sm:$0xff]
    %v7592 = vld [vmem:[%s7567 + $0xc0] sm:$0xff]
    %v7593 = vld [vmem:[%s7567 + $0xc8] sm:$0xff]
    %v7594 = vld [vmem:[%s7567 + $0xd0] sm:$0xff]
    %v7595 = vld [vmem:[%s7567 + $0xd8] sm:$0xff]
    %v7596 = vld [vmem:[%s7567 + $0xe0] sm:$0xff]
    %v7597 = vld [vmem:[%s7567 + $0xe8] sm:$0xff]
    %v7598 = vld [vmem:[%s7567 + $0xf0] sm:$0xff]
    %v7599 = vld [vmem:[%s7567 + $0xf8] sm:$0xff]
    %v7600 = vld [vmem:[%s7567 + $0x100] sm:$0xff]
    %v7601 = vld [vmem:[%s7567 + $0x108] sm:$0xff]
    %v7602 = vld [vmem:[%s7567 + $0x110] sm:$0xff]
    %v7603 = vld [vmem:[%s7567 + $0x118] sm:$0xff]
    %v7604 = vld [vmem:[%s7567 + $0x120] sm:$0xff]
    %v7605 = vld [vmem:[%s7567 + $0x128] sm:$0xff]
    %v7606 = vld [vmem:[%s7567 + $0x130] sm:$0xff]
    %v7607 = vld [vmem:[%s7567 + $0x138] sm:$0xff]
    %v7608 = vld [vmem:[%s7567 + $0x140] sm:$0xff]
    %v7609 = vld [vmem:[%s7567 + $0x148] sm:$0xff]
    %v7610 = vld [vmem:[%s7567 + $0x150] sm:$0xff]
    %v7611 = vld [vmem:[%s7567 + $0x158] sm:$0xff]
    %v7612 = vld [vmem:[%s7567 + $0x160] sm:$0xff]
    %v7613 = vld [vmem:[%s7567 + $0x168] sm:$0xff]
    %v7614 = vld [vmem:[%s7567 + $0x170] sm:$0xff]
    %v7615 = vld [vmem:[%s7567 + $0x178] sm:$0xff]
    %v7616 = vrot.slane %v6860, 2
    %v7617 = vrot.slane %v6861, 1
    %v7618 = vsel %vm863, %v7617, %v7616
    %v7619 = vpack.c.b16 %v7618, %v7618
    %v7669 = vunpack.c.l.b16 %v7568
    %v7670 = vunpack.c.h.b16 %v7568
    %v7671 = vunpack.c.l.b16 %v7569
    %v7672 = vunpack.c.h.b16 %v7569
    %v7673 = vunpack.c.l.b16 %v7570
    %v7674 = vunpack.c.h.b16 %v7570
    %v7675 = vunpack.c.l.b16 %v7571
    %v7676 = vunpack.c.h.b16 %v7571
    %v7677 = vunpack.c.l.b16 %v7572
    %v7678 = vunpack.c.h.b16 %v7572
    %v7679 = vunpack.c.l.b16 %v7573
    %v7680 = vunpack.c.h.b16 %v7573
    %v7681 = vunpack.c.l.b16 %v7574
    %v7682 = vunpack.c.h.b16 %v7574
    %v7683 = vunpack.c.l.b16 %v7575
    %v7684 = vunpack.c.h.b16 %v7575
    %v7685 = vunpack.c.l.b16 %v7576
    %v7686 = vunpack.c.h.b16 %v7576
    %v7687 = vunpack.c.l.b16 %v7577
    %v7688 = vunpack.c.h.b16 %v7577
    %v7689 = vunpack.c.l.b16 %v7578
    %v7690 = vunpack.c.h.b16 %v7578
    %v7691 = vunpack.c.l.b16 %v7579
    %v7692 = vunpack.c.h.b16 %v7579
    %v7693 = vunpack.c.l.b16 %v7580
    %v7694 = vunpack.c.h.b16 %v7580
    %v7695 = vunpack.c.l.b16 %v7581
    %v7696 = vunpack.c.h.b16 %v7581
    %v7697 = vunpack.c.l.b16 %v7582
    %v7698 = vunpack.c.h.b16 %v7582
    %v7699 = vunpack.c.l.b16 %v7583
    %v7700 = vunpack.c.h.b16 %v7583
    %v7701 = vunpack.c.l.b16 %v7584
    %v7702 = vunpack.c.h.b16 %v7584
    %v7703 = vunpack.c.l.b16 %v7585
    %v7704 = vunpack.c.h.b16 %v7585
    %v7705 = vunpack.c.l.b16 %v7586
    %v7706 = vunpack.c.h.b16 %v7586
    %v7707 = vunpack.c.l.b16 %v7587
    %v7708 = vunpack.c.h.b16 %v7587
    %v7709 = vunpack.c.l.b16 %v7588
    %v7710 = vunpack.c.h.b16 %v7588
    %v7711 = vunpack.c.l.b16 %v7589
    %v7712 = vunpack.c.h.b16 %v7589
    %v7713 = vunpack.c.l.b16 %v7590
    %v7714 = vunpack.c.h.b16 %v7590
    %v7715 = vunpack.c.l.b16 %v7591
    %v7716 = vunpack.c.h.b16 %v7591
    %v7717 = vunpack.c.l.b16 %v7592
    %v7718 = vunpack.c.h.b16 %v7592
    %v7719 = vunpack.c.l.b16 %v7593
    %v7720 = vunpack.c.h.b16 %v7593
    %v7721 = vunpack.c.l.b16 %v7594
    %v7722 = vunpack.c.h.b16 %v7594
    %v7723 = vunpack.c.l.b16 %v7595
    %v7724 = vunpack.c.h.b16 %v7595
    %v7725 = vunpack.c.l.b16 %v7596
    %v7726 = vunpack.c.h.b16 %v7596
    %v7727 = vunpack.c.l.b16 %v7597
    %v7728 = vunpack.c.h.b16 %v7597
    %v7729 = vunpack.c.l.b16 %v7598
    %v7730 = vunpack.c.h.b16 %v7598
    %v7731 = vunpack.c.l.b16 %v7599
    %v7732 = vunpack.c.h.b16 %v7599
    %v7733 = vunpack.c.l.b16 %v7600
    %v7734 = vunpack.c.h.b16 %v7600
    %v7735 = vunpack.c.l.b16 %v7601
    %v7736 = vunpack.c.h.b16 %v7601
    %v7737 = vunpack.c.l.b16 %v7602
    %v7738 = vunpack.c.h.b16 %v7602
    %v7739 = vunpack.c.l.b16 %v7603
    %v7740 = vunpack.c.h.b16 %v7603
    %v7741 = vunpack.c.l.b16 %v7604
    %v7742 = vunpack.c.h.b16 %v7604
    %v7743 = vunpack.c.l.b16 %v7605
    %v7744 = vunpack.c.h.b16 %v7605
    %v7745 = vunpack.c.l.b16 %v7606
    %v7746 = vunpack.c.h.b16 %v7606
    %v7747 = vunpack.c.l.b16 %v7607
    %v7748 = vunpack.c.h.b16 %v7607
    %v7749 = vunpack.c.l.b16 %v7608
    %v7750 = vunpack.c.h.b16 %v7608
    %v7751 = vunpack.c.l.b16 %v7609
    %v7752 = vunpack.c.h.b16 %v7609
    %v7753 = vunpack.c.l.b16 %v7610
    %v7754 = vunpack.c.h.b16 %v7610
    %v7755 = vunpack.c.l.b16 %v7611
    %v7756 = vunpack.c.h.b16 %v7611
    %v7757 = vunpack.c.l.b16 %v7612
    %v7758 = vunpack.c.h.b16 %v7612
    %v7759 = vunpack.c.l.b16 %v7613
    %v7760 = vunpack.c.h.b16 %v7613
    %v7761 = vunpack.c.l.b16 %v7614
    %v7762 = vunpack.c.h.b16 %v7614
    %v7763 = vunpack.c.l.b16 %v7615
    %v7764 = vunpack.c.h.b16 %v7615
    %v7765 = vpack.c.b16 %v7675, %v7669
    %v7766 = vpack.c.b16 %v7676, %v7670
    %v7767 = vpack.c.b16 %v7677, %v7671
    %v7768 = vpack.c.b16 %v7678, %v7672
    %v7769 = vpack.c.b16 %v7679, %v7673
    %v7770 = vpack.c.b16 %v7680, %v7674
    %v7771 = vpack.c.b16 %v7687, %v7681
    %v7772 = vpack.c.b16 %v7688, %v7682
    %v7773 = vpack.c.b16 %v7689, %v7683
    %v7774 = vpack.c.b16 %v7690, %v7684
    %v7775 = vpack.c.b16 %v7691, %v7685
    %v7776 = vpack.c.b16 %v7692, %v7686
    %v7777 = vpack.c.b16 %v7699, %v7693
    %v7778 = vpack.c.b16 %v7700, %v7694
    %v7779 = vpack.c.b16 %v7701, %v7695
    %v7780 = vpack.c.b16 %v7702, %v7696
    %v7781 = vpack.c.b16 %v7703, %v7697
    %v7782 = vpack.c.b16 %v7704, %v7698
    %v7783 = vpack.c.b16 %v7711, %v7705
    %v7784 = vpack.c.b16 %v7712, %v7706
    %v7785 = vpack.c.b16 %v7713, %v7707
    %v7786 = vpack.c.b16 %v7714, %v7708
    %v7787 = vpack.c.b16 %v7715, %v7709
    %v7788 = vpack.c.b16 %v7716, %v7710
    %v7789 = vpack.c.b16 %v7723, %v7717
    %v7790 = vpack.c.b16 %v7724, %v7718
    %v7791 = vpack.c.b16 %v7725, %v7719
    %v7792 = vpack.c.b16 %v7726, %v7720
    %v7793 = vpack.c.b16 %v7727, %v7721
    %v7794 = vpack.c.b16 %v7728, %v7722
    %v7795 = vpack.c.b16 %v7735, %v7729
    %v7796 = vpack.c.b16 %v7736, %v7730
    %v7797 = vpack.c.b16 %v7737, %v7731
    %v7798 = vpack.c.b16 %v7738, %v7732
    %v7799 = vpack.c.b16 %v7739, %v7733
    %v7800 = vpack.c.b16 %v7740, %v7734
    %v7801 = vpack.c.b16 %v7747, %v7741
    %v7802 = vpack.c.b16 %v7748, %v7742
    %v7803 = vpack.c.b16 %v7749, %v7743
    %v7804 = vpack.c.b16 %v7750, %v7744
    %v7805 = vpack.c.b16 %v7751, %v7745
    %v7806 = vpack.c.b16 %v7752, %v7746
    %v7807 = vpack.c.b16 %v7759, %v7753
    %v7808 = vpack.c.b16 %v7760, %v7754
    %v7809 = vpack.c.b16 %v7761, %v7755
    %v7810 = vpack.c.b16 %v7762, %v7756
    %v7811 = vpack.c.b16 %v7763, %v7757
    %v7812 = vpack.c.b16 %v7764, %v7758
    %7861 = vmatpush.bf16.msra.mxu0 %v7807
    %7862 = vmatpush.bf16.msra.mxu0 %v7801
    %7863 = vmatpush.bf16.msra.mxu0 %v7795
    %7864 = vmatpush.bf16.msra.mxu0 %v7789
    %7865 = vmatpush.bf16.msra.mxu0 %v7783
    %7866 = vmatpush.bf16.msra.mxu0 %v7777
    %7867 = vmatpush.bf16.msra.mxu0 %v7771
    %7868 = vmatpush.bf16.msra.mxu0 %v7765
    %7869 = vmatmul.bf16.gmra.mxu0 %v7619
    %v7870 = vpop.f32.mrf.mxu0
    %v7871 = vadd.f32 0.0, %v7870
    %v7872 = vpop.f32.mrf.mxu0
    %7873 = vdwg.mxu0
    %7874 = vmatpush.bf16.msra.mxu0 %v7808
    %7875 = vmatpush.bf16.msra.mxu0 %v7802
    %7876 = vmatpush.bf16.msra.mxu0 %v7796
    %7877 = vmatpush.bf16.msra.mxu0 %v7790
    %7878 = vmatpush.bf16.msra.mxu0 %v7784
    %7879 = vmatpush.bf16.msra.mxu0 %v7778
    %7880 = vmatpush.bf16.msra.mxu0 %v7772
    %7881 = vmatpush.bf16.msra.mxu0 %v7766
    %7882 = vmatmul.bf16.gmra.mxu0 %v7619
    %v7883 = vpop.f32.mrf.mxu0
    %v7884 = vadd.f32 0.0, %v7883
    %v7885 = vpop.f32.mrf.mxu0
    %7886 = vdwg.mxu0
    %7887 = vmatpush.bf16.msra.mxu0 %v7809
    %7888 = vmatpush.bf16.msra.mxu0 %v7803
    %7889 = vmatpush.bf16.msra.mxu0 %v7797
    %7890 = vmatpush.bf16.msra.mxu0 %v7791
    %7891 = vmatpush.bf16.msra.mxu0 %v7785
    %7892 = vmatpush.bf16.msra.mxu0 %v7779
    %7893 = vmatpush.bf16.msra.mxu0 %v7773
    %7894 = vmatpush.bf16.msra.mxu0 %v7767
    %7895 = vmatmul.bf16.gmra.mxu0 %v7619
    %v7896 = vpop.f32.mrf.mxu0
    %v7897 = vadd.f32 0.0, %v7896
    %v7898 = vpop.f32.mrf.mxu0
    %7899 = vdwg.mxu0
    %7900 = vmatpush.bf16.msra.mxu0 %v7810
    %7901 = vmatpush.bf16.msra.mxu0 %v7804
    %7902 = vmatpush.bf16.msra.mxu0 %v7798
    %7903 = vmatpush.bf16.msra.mxu0 %v7792
    %7904 = vmatpush.bf16.msra.mxu0 %v7786
    %7905 = vmatpush.bf16.msra.mxu0 %v7780
    %7906 = vmatpush.bf16.msra.mxu0 %v7774
    %7907 = vmatpush.bf16.msra.mxu0 %v7768
    %7908 = vmatmul.bf16.gmra.mxu0 %v7619
    %v7909 = vpop.f32.mrf.mxu0
    %v7910 = vadd.f32 0.0, %v7909
    %v7911 = vpop.f32.mrf.mxu0
    %7912 = vdwg.mxu0
    %7913 = vmatpush.bf16.msra.mxu0 %v7811
    %7914 = vmatpush.bf16.msra.mxu0 %v7805
    %7915 = vmatpush.bf16.msra.mxu0 %v7799
    %7916 = vmatpush.bf16.msra.mxu0 %v7793
    %7917 = vmatpush.bf16.msra.mxu0 %v7787
    %7918 = vmatpush.bf16.msra.mxu0 %v7781
    %7919 = vmatpush.bf16.msra.mxu0 %v7775
    %7920 = vmatpush.bf16.msra.mxu0 %v7769
    %7921 = vmatmul.bf16.gmra.mxu0 %v7619
    %v7922 = vpop.f32.mrf.mxu0
    %v7923 = vadd.f32 0.0, %v7922
    %v7924 = vpop.f32.mrf.mxu0
    %7925 = vdwg.mxu0
    %7926 = vmatpush.bf16.msra.mxu0 %v7812
    %7927 = vmatpush.bf16.msra.mxu0 %v7806
    %7928 = vmatpush.bf16.msra.mxu0 %v7800
    %7929 = vmatpush.bf16.msra.mxu0 %v7794
    %7930 = vmatpush.bf16.msra.mxu0 %v7788
    %7931 = vmatpush.bf16.msra.mxu0 %v7782
    %7932 = vmatpush.bf16.msra.mxu0 %v7776
    %7933 = vmatpush.bf16.msra.mxu0 %v7770
    %7934 = vmatmul.bf16.gmra.mxu0 %v7619
    %v7935 = vpop.f32.mrf.mxu0
    %v7936 = vadd.f32 0.0, %v7935
    %v7937 = vpop.f32.mrf.mxu0
    %7938 = vdwg.mxu0
    %v7939 = vadd.f32 %v7561, %v7871
    %v7940 = vadd.f32 %v7562, %v7884
    %v7941 = vadd.f32 %v7563, %v7897
    %v7942 = vadd.f32 %v7564, %v7910
    %v7943 = vadd.f32 %v7565, %v7923
    %v7944 = vadd.f32 %v7566, %v7936
    %s7945 = scalar_lea.vmem [#allocation2], 7296
    %v7946 = vld [vmem:[%s7945] sm:$0xff]
    %v7947 = vld [vmem:[%s7945 + $0x8] sm:$0xff]
    %v7948 = vld [vmem:[%s7945 + $0x10] sm:$0xff]
    %v7949 = vld [vmem:[%s7945 + $0x18] sm:$0xff]
    %v7950 = vld [vmem:[%s7945 + $0x20] sm:$0xff]
    %v7951 = vld [vmem:[%s7945 + $0x28] sm:$0xff]
    %v7952 = vld [vmem:[%s7945 + $0x30] sm:$0xff]
    %v7953 = vld [vmem:[%s7945 + $0x38] sm:$0xff]
    %v7954 = vld [vmem:[%s7945 + $0x40] sm:$0xff]
    %v7955 = vld [vmem:[%s7945 + $0x48] sm:$0xff]
    %v7956 = vld [vmem:[%s7945 + $0x50] sm:$0xff]
    %v7957 = vld [vmem:[%s7945 + $0x58] sm:$0xff]
    %v7958 = vld [vmem:[%s7945 + $0x60] sm:$0xff]
    %v7959 = vld [vmem:[%s7945 + $0x68] sm:$0xff]
    %v7960 = vld [vmem:[%s7945 + $0x70] sm:$0xff]
    %v7961 = vld [vmem:[%s7945 + $0x78] sm:$0xff]
    %v7962 = vld [vmem:[%s7945 + $0x80] sm:$0xff]
    %v7963 = vld [vmem:[%s7945 + $0x88] sm:$0xff]
    %v7964 = vld [vmem:[%s7945 + $0x90] sm:$0xff]
    %v7965 = vld [vmem:[%s7945 + $0x98] sm:$0xff]
    %v7966 = vld [vmem:[%s7945 + $0xa0] sm:$0xff]
    %v7967 = vld [vmem:[%s7945 + $0xa8] sm:$0xff]
    %v7968 = vld [vmem:[%s7945 + $0xb0] sm:$0xff]
    %v7969 = vld [vmem:[%s7945 + $0xb8] sm:$0xff]
    %v7970 = vld [vmem:[%s7945 + $0xc0] sm:$0xff]
    %v7971 = vld [vmem:[%s7945 + $0xc8] sm:$0xff]
    %v7972 = vld [vmem:[%s7945 + $0xd0] sm:$0xff]
    %v7973 = vld [vmem:[%s7945 + $0xd8] sm:$0xff]
    %v7974 = vld [vmem:[%s7945 + $0xe0] sm:$0xff]
    %v7975 = vld [vmem:[%s7945 + $0xe8] sm:$0xff]
    %v7976 = vld [vmem:[%s7945 + $0xf0] sm:$0xff]
    %v7977 = vld [vmem:[%s7945 + $0xf8] sm:$0xff]
    %v7978 = vld [vmem:[%s7945 + $0x100] sm:$0xff]
    %v7979 = vld [vmem:[%s7945 + $0x108] sm:$0xff]
    %v7980 = vld [vmem:[%s7945 + $0x110] sm:$0xff]
    %v7981 = vld [vmem:[%s7945 + $0x118] sm:$0xff]
    %v7982 = vld [vmem:[%s7945 + $0x120] sm:$0xff]
    %v7983 = vld [vmem:[%s7945 + $0x128] sm:$0xff]
    %v7984 = vld [vmem:[%s7945 + $0x130] sm:$0xff]
    %v7985 = vld [vmem:[%s7945 + $0x138] sm:$0xff]
    %v7986 = vld [vmem:[%s7945 + $0x140] sm:$0xff]
    %v7987 = vld [vmem:[%s7945 + $0x148] sm:$0xff]
    %v7988 = vld [vmem:[%s7945 + $0x150] sm:$0xff]
    %v7989 = vld [vmem:[%s7945 + $0x158] sm:$0xff]
    %v7990 = vld [vmem:[%s7945 + $0x160] sm:$0xff]
    %v7991 = vld [vmem:[%s7945 + $0x168] sm:$0xff]
    %v7992 = vld [vmem:[%s7945 + $0x170] sm:$0xff]
    %v7993 = vld [vmem:[%s7945 + $0x178] sm:$0xff]
    %v7994 = vrot.slane %v6860, 3
    %v7995 = vrot.slane %v6861, 2
    %v7996 = vsel %vm863, %v7995, %v7994
    %v7997 = vpack.c.b16 %v7996, %v7996
    %v8047 = vunpack.c.l.b16 %v7946
    %v8048 = vunpack.c.h.b16 %v7946
    %v8049 = vunpack.c.l.b16 %v7947
    %v8050 = vunpack.c.h.b16 %v7947
    %v8051 = vunpack.c.l.b16 %v7948
    %v8052 = vunpack.c.h.b16 %v7948
    %v8053 = vunpack.c.l.b16 %v7949
    %v8054 = vunpack.c.h.b16 %v7949
    %v8055 = vunpack.c.l.b16 %v7950
    %v8056 = vunpack.c.h.b16 %v7950
    %v8057 = vunpack.c.l.b16 %v7951
    %v8058 = vunpack.c.h.b16 %v7951
    %v8059 = vunpack.c.l.b16 %v7952
    %v8060 = vunpack.c.h.b16 %v7952
    %v8061 = vunpack.c.l.b16 %v7953
    %v8062 = vunpack.c.h.b16 %v7953
    %v8063 = vunpack.c.l.b16 %v7954
    %v8064 = vunpack.c.h.b16 %v7954
    %v8065 = vunpack.c.l.b16 %v7955
    %v8066 = vunpack.c.h.b16 %v7955
    %v8067 = vunpack.c.l.b16 %v7956
    %v8068 = vunpack.c.h.b16 %v7956
    %v8069 = vunpack.c.l.b16 %v7957
    %v8070 = vunpack.c.h.b16 %v7957
    %v8071 = vunpack.c.l.b16 %v7958
    %v8072 = vunpack.c.h.b16 %v7958
    %v8073 = vunpack.c.l.b16 %v7959
    %v8074 = vunpack.c.h.b16 %v7959
    %v8075 = vunpack.c.l.b16 %v7960
    %v8076 = vunpack.c.h.b16 %v7960
    %v8077 = vunpack.c.l.b16 %v7961
    %v8078 = vunpack.c.h.b16 %v7961
    %v8079 = vunpack.c.l.b16 %v7962
    %v8080 = vunpack.c.h.b16 %v7962
    %v8081 = vunpack.c.l.b16 %v7963
    %v8082 = vunpack.c.h.b16 %v7963
    %v8083 = vunpack.c.l.b16 %v7964
    %v8084 = vunpack.c.h.b16 %v7964
    %v8085 = vunpack.c.l.b16 %v7965
    %v8086 = vunpack.c.h.b16 %v7965
    %v8087 = vunpack.c.l.b16 %v7966
    %v8088 = vunpack.c.h.b16 %v7966
    %v8089 = vunpack.c.l.b16 %v7967
    %v8090 = vunpack.c.h.b16 %v7967
    %v8091 = vunpack.c.l.b16 %v7968
    %v8092 = vunpack.c.h.b16 %v7968
    %v8093 = vunpack.c.l.b16 %v7969
    %v8094 = vunpack.c.h.b16 %v7969
    %v8095 = vunpack.c.l.b16 %v7970
    %v8096 = vunpack.c.h.b16 %v7970
    %v8097 = vunpack.c.l.b16 %v7971
    %v8098 = vunpack.c.h.b16 %v7971
    %v8099 = vunpack.c.l.b16 %v7972
    %v8100 = vunpack.c.h.b16 %v7972
    %v8101 = vunpack.c.l.b16 %v7973
    %v8102 = vunpack.c.h.b16 %v7973
    %v8103 = vunpack.c.l.b16 %v7974
    %v8104 = vunpack.c.h.b16 %v7974
    %v8105 = vunpack.c.l.b16 %v7975
    %v8106 = vunpack.c.h.b16 %v7975
    %v8107 = vunpack.c.l.b16 %v7976
    %v8108 = vunpack.c.h.b16 %v7976
    %v8109 = vunpack.c.l.b16 %v7977
    %v8110 = vunpack.c.h.b16 %v7977
    %v8111 = vunpack.c.l.b16 %v7978
    %v8112 = vunpack.c.h.b16 %v7978
    %v8113 = vunpack.c.l.b16 %v7979
    %v8114 = vunpack.c.h.b16 %v7979
    %v8115 = vunpack.c.l.b16 %v7980
    %v8116 = vunpack.c.h.b16 %v7980
    %v8117 = vunpack.c.l.b16 %v7981
    %v8118 = vunpack.c.h.b16 %v7981
    %v8119 = vunpack.c.l.b16 %v7982
    %v8120 = vunpack.c.h.b16 %v7982
    %v8121 = vunpack.c.l.b16 %v7983
    %v8122 = vunpack.c.h.b16 %v7983
    %v8123 = vunpack.c.l.b16 %v7984
    %v8124 = vunpack.c.h.b16 %v7984
    %v8125 = vunpack.c.l.b16 %v7985
    %v8126 = vunpack.c.h.b16 %v7985
    %v8127 = vunpack.c.l.b16 %v7986
    %v8128 = vunpack.c.h.b16 %v7986
    %v8129 = vunpack.c.l.b16 %v7987
    %v8130 = vunpack.c.h.b16 %v7987
    %v8131 = vunpack.c.l.b16 %v7988
    %v8132 = vunpack.c.h.b16 %v7988
    %v8133 = vunpack.c.l.b16 %v7989
    %v8134 = vunpack.c.h.b16 %v7989
    %v8135 = vunpack.c.l.b16 %v7990
    %v8136 = vunpack.c.h.b16 %v7990
    %v8137 = vunpack.c.l.b16 %v7991
    %v8138 = vunpack.c.h.b16 %v7991
    %v8139 = vunpack.c.l.b16 %v7992
    %v8140 = vunpack.c.h.b16 %v7992
    %v8141 = vunpack.c.l.b16 %v7993
    %v8142 = vunpack.c.h.b16 %v7993
    %v8143 = vpack.c.b16 %v8053, %v8047
    %v8144 = vpack.c.b16 %v8054, %v8048
    %v8145 = vpack.c.b16 %v8055, %v8049
    %v8146 = vpack.c.b16 %v8056, %v8050
    %v8147 = vpack.c.b16 %v8057, %v8051
    %v8148 = vpack.c.b16 %v8058, %v8052
    %v8149 = vpack.c.b16 %v8065, %v8059
    %v8150 = vpack.c.b16 %v8066, %v8060
    %v8151 = vpack.c.b16 %v8067, %v8061
    %v8152 = vpack.c.b16 %v8068, %v8062
    %v8153 = vpack.c.b16 %v8069, %v8063
    %v8154 = vpack.c.b16 %v8070, %v8064
    %v8155 = vpack.c.b16 %v8077, %v8071
    %v8156 = vpack.c.b16 %v8078, %v8072
    %v8157 = vpack.c.b16 %v8079, %v8073
    %v8158 = vpack.c.b16 %v8080, %v8074
    %v8159 = vpack.c.b16 %v8081, %v8075
    %v8160 = vpack.c.b16 %v8082, %v8076
    %v8161 = vpack.c.b16 %v8089, %v8083
    %v8162 = vpack.c.b16 %v8090, %v8084
    %v8163 = vpack.c.b16 %v8091, %v8085
    %v8164 = vpack.c.b16 %v8092, %v8086
    %v8165 = vpack.c.b16 %v8093, %v8087
    %v8166 = vpack.c.b16 %v8094, %v8088
    %v8167 = vpack.c.b16 %v8101, %v8095
    %v8168 = vpack.c.b16 %v8102, %v8096
    %v8169 = vpack.c.b16 %v8103, %v8097
    %v8170 = vpack.c.b16 %v8104, %v8098
    %v8171 = vpack.c.b16 %v8105, %v8099
    %v8172 = vpack.c.b16 %v8106, %v8100
    %v8173 = vpack.c.b16 %v8113, %v8107
    %v8174 = vpack.c.b16 %v8114, %v8108
    %v8175 = vpack.c.b16 %v8115, %v8109
    %v8176 = vpack.c.b16 %v8116, %v8110
    %v8177 = vpack.c.b16 %v8117, %v8111
    %v8178 = vpack.c.b16 %v8118, %v8112
    %v8179 = vpack.c.b16 %v8125, %v8119
    %v8180 = vpack.c.b16 %v8126, %v8120
    %v8181 = vpack.c.b16 %v8127, %v8121
    %v8182 = vpack.c.b16 %v8128, %v8122
    %v8183 = vpack.c.b16 %v8129, %v8123
    %v8184 = vpack.c.b16 %v8130, %v8124
    %v8185 = vpack.c.b16 %v8137, %v8131
    %v8186 = vpack.c.b16 %v8138, %v8132
    %v8187 = vpack.c.b16 %v8139, %v8133
    %v8188 = vpack.c.b16 %v8140, %v8134
    %v8189 = vpack.c.b16 %v8141, %v8135
    %v8190 = vpack.c.b16 %v8142, %v8136
    %8239 = vmatpush.bf16.msra.mxu0 %v8185
    %8240 = vmatpush.bf16.msra.mxu0 %v8179
    %8241 = vmatpush.bf16.msra.mxu0 %v8173
    %8242 = vmatpush.bf16.msra.mxu0 %v8167
    %8243 = vmatpush.bf16.msra.mxu0 %v8161
    %8244 = vmatpush.bf16.msra.mxu0 %v8155
    %8245 = vmatpush.bf16.msra.mxu0 %v8149
    %8246 = vmatpush.bf16.msra.mxu0 %v8143
    %8247 = vmatmul.bf16.gmra.mxu0 %v7997
    %v8248 = vpop.f32.mrf.mxu0
    %v8249 = vadd.f32 0.0, %v8248
    %v8250 = vpop.f32.mrf.mxu0
    %8251 = vdwg.mxu0
    %8252 = vmatpush.bf16.msra.mxu0 %v8186
    %8253 = vmatpush.bf16.msra.mxu0 %v8180
    %8254 = vmatpush.bf16.msra.mxu0 %v8174
    %8255 = vmatpush.bf16.msra.mxu0 %v8168
    %8256 = vmatpush.bf16.msra.mxu0 %v8162
    %8257 = vmatpush.bf16.msra.mxu0 %v8156
    %8258 = vmatpush.bf16.msra.mxu0 %v8150
    %8259 = vmatpush.bf16.msra.mxu0 %v8144
    %8260 = vmatmul.bf16.gmra.mxu0 %v7997
    %v8261 = vpop.f32.mrf.mxu0
    %v8262 = vadd.f32 0.0, %v8261
    %v8263 = vpop.f32.mrf.mxu0
    %8264 = vdwg.mxu0
    %8265 = vmatpush.bf16.msra.mxu0 %v8187
    %8266 = vmatpush.bf16.msra.mxu0 %v8181
    %8267 = vmatpush.bf16.msra.mxu0 %v8175
    %8268 = vmatpush.bf16.msra.mxu0 %v8169
    %8269 = vmatpush.bf16.msra.mxu0 %v8163
    %8270 = vmatpush.bf16.msra.mxu0 %v8157
    %8271 = vmatpush.bf16.msra.mxu0 %v8151
    %8272 = vmatpush.bf16.msra.mxu0 %v8145
    %8273 = vmatmul.bf16.gmra.mxu0 %v7997
    %v8274 = vpop.f32.mrf.mxu0
    %v8275 = vadd.f32 0.0, %v8274
    %v8276 = vpop.f32.mrf.mxu0
    %8277 = vdwg.mxu0
    %8278 = vmatpush.bf16.msra.mxu0 %v8188
    %8279 = vmatpush.bf16.msra.mxu0 %v8182
    %8280 = vmatpush.bf16.msra.mxu0 %v8176
    %8281 = vmatpush.bf16.msra.mxu0 %v8170
    %8282 = vmatpush.bf16.msra.mxu0 %v8164
    %8283 = vmatpush.bf16.msra.mxu0 %v8158
    %8284 = vmatpush.bf16.msra.mxu0 %v8152
    %8285 = vmatpush.bf16.msra.mxu0 %v8146
    %8286 = vmatmul.bf16.gmra.mxu0 %v7997
    %v8287 = vpop.f32.mrf.mxu0
    %v8288 = vadd.f32 0.0, %v8287
    %v8289 = vpop.f32.mrf.mxu0
    %8290 = vdwg.mxu0
    %8291 = vmatpush.bf16.msra.mxu0 %v8189
    %8292 = vmatpush.bf16.msra.mxu0 %v8183
    %8293 = vmatpush.bf16.msra.mxu0 %v8177
    %8294 = vmatpush.bf16.msra.mxu0 %v8171
    %8295 = vmatpush.bf16.msra.mxu0 %v8165
    %8296 = vmatpush.bf16.msra.mxu0 %v8159
    %8297 = vmatpush.bf16.msra.mxu0 %v8153
    %8298 = vmatpush.bf16.msra.mxu0 %v8147
    %8299 = vmatmul.bf16.gmra.mxu0 %v7997
    %v8300 = vpop.f32.mrf.mxu0
    %v8301 = vadd.f32 0.0, %v8300
    %v8302 = vpop.f32.mrf.mxu0
    %8303 = vdwg.mxu0
    %8304 = vmatpush.bf16.msra.mxu0 %v8190
    %8305 = vmatpush.bf16.msra.mxu0 %v8184
    %8306 = vmatpush.bf16.msra.mxu0 %v8178
    %8307 = vmatpush.bf16.msra.mxu0 %v8172
    %8308 = vmatpush.bf16.msra.mxu0 %v8166
    %8309 = vmatpush.bf16.msra.mxu0 %v8160
    %8310 = vmatpush.bf16.msra.mxu0 %v8154
    %8311 = vmatpush.bf16.msra.mxu0 %v8148
    %8312 = vmatmul.bf16.gmra.mxu0 %v7997
    %v8313 = vpop.f32.mrf.mxu0
    %v8314 = vadd.f32 0.0, %v8313
    %v8315 = vpop.f32.mrf.mxu0
    %8316 = vdwg.mxu0
    %v8317 = vadd.f32 %v7939, %v8249
    %v8318 = vadd.f32 %v7940, %v8262
    %v8319 = vadd.f32 %v7941, %v8275
    %v8320 = vadd.f32 %v7942, %v8288
    %v8321 = vadd.f32 %v7943, %v8301
    %v8322 = vadd.f32 %v7944, %v8314
    %s8323 = scalar_lea.vmem [#allocation2], 7680
    %v8324 = vld [vmem:[%s8323] sm:$0xff]
    %v8325 = vld [vmem:[%s8323 + $0x8] sm:$0xff]
    %v8326 = vld [vmem:[%s8323 + $0x10] sm:$0xff]
    %v8327 = vld [vmem:[%s8323 + $0x18] sm:$0xff]
    %v8328 = vld [vmem:[%s8323 + $0x20] sm:$0xff]
    %v8329 = vld [vmem:[%s8323 + $0x28] sm:$0xff]
    %v8330 = vld [vmem:[%s8323 + $0x30] sm:$0xff]
    %v8331 = vld [vmem:[%s8323 + $0x38] sm:$0xff]
    %v8332 = vld [vmem:[%s8323 + $0x40] sm:$0xff]
    %v8333 = vld [vmem:[%s8323 + $0x48] sm:$0xff]
    %v8334 = vld [vmem:[%s8323 + $0x50] sm:$0xff]
    %v8335 = vld [vmem:[%s8323 + $0x58] sm:$0xff]
    %v8336 = vld [vmem:[%s8323 + $0x60] sm:$0xff]
    %v8337 = vld [vmem:[%s8323 + $0x68] sm:$0xff]
    %v8338 = vld [vmem:[%s8323 + $0x70] sm:$0xff]
    %v8339 = vld [vmem:[%s8323 + $0x78] sm:$0xff]
    %v8340 = vld [vmem:[%s8323 + $0x80] sm:$0xff]
    %v8341 = vld [vmem:[%s8323 + $0x88] sm:$0xff]
    %v8342 = vld [vmem:[%s8323 + $0x90] sm:$0xff]
    %v8343 = vld [vmem:[%s8323 + $0x98] sm:$0xff]
    %v8344 = vld [vmem:[%s8323 + $0xa0] sm:$0xff]
    %v8345 = vld [vmem:[%s8323 + $0xa8] sm:$0xff]
    %v8346 = vld [vmem:[%s8323 + $0xb0] sm:$0xff]
    %v8347 = vld [vmem:[%s8323 + $0xb8] sm:$0xff]
    %v8348 = vld [vmem:[%s8323 + $0xc0] sm:$0xff]
    %v8349 = vld [vmem:[%s8323 + $0xc8] sm:$0xff]
    %v8350 = vld [vmem:[%s8323 + $0xd0] sm:$0xff]
    %v8351 = vld [vmem:[%s8323 + $0xd8] sm:$0xff]
    %v8352 = vld [vmem:[%s8323 + $0xe0] sm:$0xff]
    %v8353 = vld [vmem:[%s8323 + $0xe8] sm:$0xff]
    %v8354 = vld [vmem:[%s8323 + $0xf0] sm:$0xff]
    %v8355 = vld [vmem:[%s8323 + $0xf8] sm:$0xff]
    %v8356 = vld [vmem:[%s8323 + $0x100] sm:$0xff]
    %v8357 = vld [vmem:[%s8323 + $0x108] sm:$0xff]
    %v8358 = vld [vmem:[%s8323 + $0x110] sm:$0xff]
    %v8359 = vld [vmem:[%s8323 + $0x118] sm:$0xff]
    %v8360 = vld [vmem:[%s8323 + $0x120] sm:$0xff]
    %v8361 = vld [vmem:[%s8323 + $0x128] sm:$0xff]
    %v8362 = vld [vmem:[%s8323 + $0x130] sm:$0xff]
    %v8363 = vld [vmem:[%s8323 + $0x138] sm:$0xff]
    %v8364 = vld [vmem:[%s8323 + $0x140] sm:$0xff]
    %v8365 = vld [vmem:[%s8323 + $0x148] sm:$0xff]
    %v8366 = vld [vmem:[%s8323 + $0x150] sm:$0xff]
    %v8367 = vld [vmem:[%s8323 + $0x158] sm:$0xff]
    %v8368 = vld [vmem:[%s8323 + $0x160] sm:$0xff]
    %v8369 = vld [vmem:[%s8323 + $0x168] sm:$0xff]
    %v8370 = vld [vmem:[%s8323 + $0x170] sm:$0xff]
    %v8371 = vld [vmem:[%s8323 + $0x178] sm:$0xff]
    %v8372 = vrot.slane %v6860, 4
    %v8373 = vrot.slane %v6861, 3
    %v8374 = vsel %vm863, %v8373, %v8372
    %v8375 = vpack.c.b16 %v8374, %v8374
    %v8425 = vunpack.c.l.b16 %v8324
    %v8426 = vunpack.c.h.b16 %v8324
    %v8427 = vunpack.c.l.b16 %v8325
    %v8428 = vunpack.c.h.b16 %v8325
    %v8429 = vunpack.c.l.b16 %v8326
    %v8430 = vunpack.c.h.b16 %v8326
    %v8431 = vunpack.c.l.b16 %v8327
    %v8432 = vunpack.c.h.b16 %v8327
    %v8433 = vunpack.c.l.b16 %v8328
    %v8434 = vunpack.c.h.b16 %v8328
    %v8435 = vunpack.c.l.b16 %v8329
    %v8436 = vunpack.c.h.b16 %v8329
    %v8437 = vunpack.c.l.b16 %v8330
    %v8438 = vunpack.c.h.b16 %v8330
    %v8439 = vunpack.c.l.b16 %v8331
    %v8440 = vunpack.c.h.b16 %v8331
    %v8441 = vunpack.c.l.b16 %v8332
    %v8442 = vunpack.c.h.b16 %v8332
    %v8443 = vunpack.c.l.b16 %v8333
    %v8444 = vunpack.c.h.b16 %v8333
    %v8445 = vunpack.c.l.b16 %v8334
    %v8446 = vunpack.c.h.b16 %v8334
    %v8447 = vunpack.c.l.b16 %v8335
    %v8448 = vunpack.c.h.b16 %v8335
    %v8449 = vunpack.c.l.b16 %v8336
    %v8450 = vunpack.c.h.b16 %v8336
    %v8451 = vunpack.c.l.b16 %v8337
    %v8452 = vunpack.c.h.b16 %v8337
    %v8453 = vunpack.c.l.b16 %v8338
    %v8454 = vunpack.c.h.b16 %v8338
    %v8455 = vunpack.c.l.b16 %v8339
    %v8456 = vunpack.c.h.b16 %v8339
    %v8457 = vunpack.c.l.b16 %v8340
    %v8458 = vunpack.c.h.b16 %v8340
    %v8459 = vunpack.c.l.b16 %v8341
    %v8460 = vunpack.c.h.b16 %v8341
    %v8461 = vunpack.c.l.b16 %v8342
    %v8462 = vunpack.c.h.b16 %v8342
    %v8463 = vunpack.c.l.b16 %v8343
    %v8464 = vunpack.c.h.b16 %v8343
    %v8465 = vunpack.c.l.b16 %v8344
    %v8466 = vunpack.c.h.b16 %v8344
    %v8467 = vunpack.c.l.b16 %v8345
    %v8468 = vunpack.c.h.b16 %v8345
    %v8469 = vunpack.c.l.b16 %v8346
    %v8470 = vunpack.c.h.b16 %v8346
    %v8471 = vunpack.c.l.b16 %v8347
    %v8472 = vunpack.c.h.b16 %v8347
    %v8473 = vunpack.c.l.b16 %v8348
    %v8474 = vunpack.c.h.b16 %v8348
    %v8475 = vunpack.c.l.b16 %v8349
    %v8476 = vunpack.c.h.b16 %v8349
    %v8477 = vunpack.c.l.b16 %v8350
    %v8478 = vunpack.c.h.b16 %v8350
    %v8479 = vunpack.c.l.b16 %v8351
    %v8480 = vunpack.c.h.b16 %v8351
    %v8481 = vunpack.c.l.b16 %v8352
    %v8482 = vunpack.c.h.b16 %v8352
    %v8483 = vunpack.c.l.b16 %v8353
    %v8484 = vunpack.c.h.b16 %v8353
    %v8485 = vunpack.c.l.b16 %v8354
    %v8486 = vunpack.c.h.b16 %v8354
    %v8487 = vunpack.c.l.b16 %v8355
    %v8488 = vunpack.c.h.b16 %v8355
    %v8489 = vunpack.c.l.b16 %v8356
    %v8490 = vunpack.c.h.b16 %v8356
    %v8491 = vunpack.c.l.b16 %v8357
    %v8492 = vunpack.c.h.b16 %v8357
    %v8493 = vunpack.c.l.b16 %v8358
    %v8494 = vunpack.c.h.b16 %v8358
    %v8495 = vunpack.c.l.b16 %v8359
    %v8496 = vunpack.c.h.b16 %v8359
    %v8497 = vunpack.c.l.b16 %v8360
    %v8498 = vunpack.c.h.b16 %v8360
    %v8499 = vunpack.c.l.b16 %v8361
    %v8500 = vunpack.c.h.b16 %v8361
    %v8501 = vunpack.c.l.b16 %v8362
    %v8502 = vunpack.c.h.b16 %v8362
    %v8503 = vunpack.c.l.b16 %v8363
    %v8504 = vunpack.c.h.b16 %v8363
    %v8505 = vunpack.c.l.b16 %v8364
    %v8506 = vunpack.c.h.b16 %v8364
    %v8507 = vunpack.c.l.b16 %v8365
    %v8508 = vunpack.c.h.b16 %v8365
    %v8509 = vunpack.c.l.b16 %v8366
    %v8510 = vunpack.c.h.b16 %v8366
    %v8511 = vunpack.c.l.b16 %v8367
    %v8512 = vunpack.c.h.b16 %v8367
    %v8513 = vunpack.c.l.b16 %v8368
    %v8514 = vunpack.c.h.b16 %v8368
    %v8515 = vunpack.c.l.b16 %v8369
    %v8516 = vunpack.c.h.b16 %v8369
    %v8517 = vunpack.c.l.b16 %v8370
    %v8518 = vunpack.c.h.b16 %v8370
    %v8519 = vunpack.c.l.b16 %v8371
    %v8520 = vunpack.c.h.b16 %v8371
    %v8521 = vpack.c.b16 %v8431, %v8425
    %v8522 = vpack.c.b16 %v8432, %v8426
    %v8523 = vpack.c.b16 %v8433, %v8427
    %v8524 = vpack.c.b16 %v8434, %v8428
    %v8525 = vpack.c.b16 %v8435, %v8429
    %v8526 = vpack.c.b16 %v8436, %v8430
    %v8527 = vpack.c.b16 %v8443, %v8437
    %v8528 = vpack.c.b16 %v8444, %v8438
    %v8529 = vpack.c.b16 %v8445, %v8439
    %v8530 = vpack.c.b16 %v8446, %v8440
    %v8531 = vpack.c.b16 %v8447, %v8441
    %v8532 = vpack.c.b16 %v8448, %v8442
    %v8533 = vpack.c.b16 %v8455, %v8449
    %v8534 = vpack.c.b16 %v8456, %v8450
    %v8535 = vpack.c.b16 %v8457, %v8451
    %v8536 = vpack.c.b16 %v8458, %v8452
    %v8537 = vpack.c.b16 %v8459, %v8453
    %v8538 = vpack.c.b16 %v8460, %v8454
    %v8539 = vpack.c.b16 %v8467, %v8461
    %v8540 = vpack.c.b16 %v8468, %v8462
    %v8541 = vpack.c.b16 %v8469, %v8463
    %v8542 = vpack.c.b16 %v8470, %v8464
    %v8543 = vpack.c.b16 %v8471, %v8465
    %v8544 = vpack.c.b16 %v8472, %v8466
    %v8545 = vpack.c.b16 %v8479, %v8473
    %v8546 = vpack.c.b16 %v8480, %v8474
    %v8547 = vpack.c.b16 %v8481, %v8475
    %v8548 = vpack.c.b16 %v8482, %v8476
    %v8549 = vpack.c.b16 %v8483, %v8477
    %v8550 = vpack.c.b16 %v8484, %v8478
    %v8551 = vpack.c.b16 %v8491, %v8485
    %v8552 = vpack.c.b16 %v8492, %v8486
    %v8553 = vpack.c.b16 %v8493, %v8487
    %v8554 = vpack.c.b16 %v8494, %v8488
    %v8555 = vpack.c.b16 %v8495, %v8489
    %v8556 = vpack.c.b16 %v8496, %v8490
    %v8557 = vpack.c.b16 %v8503, %v8497
    %v8558 = vpack.c.b16 %v8504, %v8498
    %v8559 = vpack.c.b16 %v8505, %v8499
    %v8560 = vpack.c.b16 %v8506, %v8500
    %v8561 = vpack.c.b16 %v8507, %v8501
    %v8562 = vpack.c.b16 %v8508, %v8502
    %v8563 = vpack.c.b16 %v8515, %v8509
    %v8564 = vpack.c.b16 %v8516, %v8510
    %v8565 = vpack.c.b16 %v8517, %v8511
    %v8566 = vpack.c.b16 %v8518, %v8512
    %v8567 = vpack.c.b16 %v8519, %v8513
    %v8568 = vpack.c.b16 %v8520, %v8514
    %8617 = vmatpush.bf16.msra.mxu0 %v8563
    %8618 = vmatpush.bf16.msra.mxu0 %v8557
    %8619 = vmatpush.bf16.msra.mxu0 %v8551
    %8620 = vmatpush.bf16.msra.mxu0 %v8545
    %8621 = vmatpush.bf16.msra.mxu0 %v8539
    %8622 = vmatpush.bf16.msra.mxu0 %v8533
    %8623 = vmatpush.bf16.msra.mxu0 %v8527
    %8624 = vmatpush.bf16.msra.mxu0 %v8521
    %8625 = vmatmul.bf16.gmra.mxu0 %v8375
    %v8626 = vpop.f32.mrf.mxu0
    %v8627 = vadd.f32 0.0, %v8626
    %v8628 = vpop.f32.mrf.mxu0
    %8629 = vdwg.mxu0
    %8630 = vmatpush.bf16.msra.mxu0 %v8564
    %8631 = vmatpush.bf16.msra.mxu0 %v8558
    %8632 = vmatpush.bf16.msra.mxu0 %v8552
    %8633 = vmatpush.bf16.msra.mxu0 %v8546
    %8634 = vmatpush.bf16.msra.mxu0 %v8540
    %8635 = vmatpush.bf16.msra.mxu0 %v8534
    %8636 = vmatpush.bf16.msra.mxu0 %v8528
    %8637 = vmatpush.bf16.msra.mxu0 %v8522
    %8638 = vmatmul.bf16.gmra.mxu0 %v8375
    %v8639 = vpop.f32.mrf.mxu0
    %v8640 = vadd.f32 0.0, %v8639
    %v8641 = vpop.f32.mrf.mxu0
    %8642 = vdwg.mxu0
    %8643 = vmatpush.bf16.msra.mxu0 %v8565
    %8644 = vmatpush.bf16.msra.mxu0 %v8559
    %8645 = vmatpush.bf16.msra.mxu0 %v8553
    %8646 = vmatpush.bf16.msra.mxu0 %v8547
    %8647 = vmatpush.bf16.msra.mxu0 %v8541
    %8648 = vmatpush.bf16.msra.mxu0 %v8535
    %8649 = vmatpush.bf16.msra.mxu0 %v8529
    %8650 = vmatpush.bf16.msra.mxu0 %v8523
    %8651 = vmatmul.bf16.gmra.mxu0 %v8375
    %v8652 = vpop.f32.mrf.mxu0
    %v8653 = vadd.f32 0.0, %v8652
    %v8654 = vpop.f32.mrf.mxu0
    %8655 = vdwg.mxu0
    %8656 = vmatpush.bf16.msra.mxu0 %v8566
    %8657 = vmatpush.bf16.msra.mxu0 %v8560
    %8658 = vmatpush.bf16.msra.mxu0 %v8554
    %8659 = vmatpush.bf16.msra.mxu0 %v8548
    %8660 = vmatpush.bf16.msra.mxu0 %v8542
    %8661 = vmatpush.bf16.msra.mxu0 %v8536
    %8662 = vmatpush.bf16.msra.mxu0 %v8530
    %8663 = vmatpush.bf16.msra.mxu0 %v8524
    %8664 = vmatmul.bf16.gmra.mxu0 %v8375
    %v8665 = vpop.f32.mrf.mxu0
    %v8666 = vadd.f32 0.0, %v8665
    %v8667 = vpop.f32.mrf.mxu0
    %8668 = vdwg.mxu0
    %8669 = vmatpush.bf16.msra.mxu0 %v8567
    %8670 = vmatpush.bf16.msra.mxu0 %v8561
    %8671 = vmatpush.bf16.msra.mxu0 %v8555
    %8672 = vmatpush.bf16.msra.mxu0 %v8549
    %8673 = vmatpush.bf16.msra.mxu0 %v8543
    %8674 = vmatpush.bf16.msra.mxu0 %v8537
    %8675 = vmatpush.bf16.msra.mxu0 %v8531
    %8676 = vmatpush.bf16.msra.mxu0 %v8525
    %8677 = vmatmul.bf16.gmra.mxu0 %v8375
    %v8678 = vpop.f32.mrf.mxu0
    %v8679 = vadd.f32 0.0, %v8678
    %v8680 = vpop.f32.mrf.mxu0
    %8681 = vdwg.mxu0
    %8682 = vmatpush.bf16.msra.mxu0 %v8568
    %8683 = vmatpush.bf16.msra.mxu0 %v8562
    %8684 = vmatpush.bf16.msra.mxu0 %v8556
    %8685 = vmatpush.bf16.msra.mxu0 %v8550
    %8686 = vmatpush.bf16.msra.mxu0 %v8544
    %8687 = vmatpush.bf16.msra.mxu0 %v8538
    %8688 = vmatpush.bf16.msra.mxu0 %v8532
    %8689 = vmatpush.bf16.msra.mxu0 %v8526
    %8690 = vmatmul.bf16.gmra.mxu0 %v8375
    %v8691 = vpop.f32.mrf.mxu0
    %v8692 = vadd.f32 0.0, %v8691
    %v8693 = vpop.f32.mrf.mxu0
    %8694 = vdwg.mxu0
    %v8695 = vadd.f32 %v8317, %v8627
    %v8696 = vadd.f32 %v8318, %v8640
    %v8697 = vadd.f32 %v8319, %v8653
    %v8698 = vadd.f32 %v8320, %v8666
    %v8699 = vadd.f32 %v8321, %v8679
    %v8700 = vadd.f32 %v8322, %v8692
    %s8701 = scalar_lea.vmem [#allocation2], 8064
    %v8702 = vld [vmem:[%s8701] sm:$0xff]
    %v8703 = vld [vmem:[%s8701 + $0x8] sm:$0xff]
    %v8704 = vld [vmem:[%s8701 + $0x10] sm:$0xff]
    %v8705 = vld [vmem:[%s8701 + $0x18] sm:$0xff]
    %v8706 = vld [vmem:[%s8701 + $0x20] sm:$0xff]
    %v8707 = vld [vmem:[%s8701 + $0x28] sm:$0xff]
    %v8708 = vld [vmem:[%s8701 + $0x30] sm:$0xff]
    %v8709 = vld [vmem:[%s8701 + $0x38] sm:$0xff]
    %v8710 = vld [vmem:[%s8701 + $0x40] sm:$0xff]
    %v8711 = vld [vmem:[%s8701 + $0x48] sm:$0xff]
    %v8712 = vld [vmem:[%s8701 + $0x50] sm:$0xff]
    %v8713 = vld [vmem:[%s8701 + $0x58] sm:$0xff]
    %v8714 = vld [vmem:[%s8701 + $0x60] sm:$0xff]
    %v8715 = vld [vmem:[%s8701 + $0x68] sm:$0xff]
    %v8716 = vld [vmem:[%s8701 + $0x70] sm:$0xff]
    %v8717 = vld [vmem:[%s8701 + $0x78] sm:$0xff]
    %v8718 = vld [vmem:[%s8701 + $0x80] sm:$0xff]
    %v8719 = vld [vmem:[%s8701 + $0x88] sm:$0xff]
    %v8720 = vld [vmem:[%s8701 + $0x90] sm:$0xff]
    %v8721 = vld [vmem:[%s8701 + $0x98] sm:$0xff]
    %v8722 = vld [vmem:[%s8701 + $0xa0] sm:$0xff]
    %v8723 = vld [vmem:[%s8701 + $0xa8] sm:$0xff]
    %v8724 = vld [vmem:[%s8701 + $0xb0] sm:$0xff]
    %v8725 = vld [vmem:[%s8701 + $0xb8] sm:$0xff]
    %v8726 = vld [vmem:[%s8701 + $0xc0] sm:$0xff]
    %v8727 = vld [vmem:[%s8701 + $0xc8] sm:$0xff]
    %v8728 = vld [vmem:[%s8701 + $0xd0] sm:$0xff]
    %v8729 = vld [vmem:[%s8701 + $0xd8] sm:$0xff]
    %v8730 = vld [vmem:[%s8701 + $0xe0] sm:$0xff]
    %v8731 = vld [vmem:[%s8701 + $0xe8] sm:$0xff]
    %v8732 = vld [vmem:[%s8701 + $0xf0] sm:$0xff]
    %v8733 = vld [vmem:[%s8701 + $0xf8] sm:$0xff]
    %v8734 = vld [vmem:[%s8701 + $0x100] sm:$0xff]
    %v8735 = vld [vmem:[%s8701 + $0x108] sm:$0xff]
    %v8736 = vld [vmem:[%s8701 + $0x110] sm:$0xff]
    %v8737 = vld [vmem:[%s8701 + $0x118] sm:$0xff]
    %v8738 = vld [vmem:[%s8701 + $0x120] sm:$0xff]
    %v8739 = vld [vmem:[%s8701 + $0x128] sm:$0xff]
    %v8740 = vld [vmem:[%s8701 + $0x130] sm:$0xff]
    %v8741 = vld [vmem:[%s8701 + $0x138] sm:$0xff]
    %v8742 = vld [vmem:[%s8701 + $0x140] sm:$0xff]
    %v8743 = vld [vmem:[%s8701 + $0x148] sm:$0xff]
    %v8744 = vld [vmem:[%s8701 + $0x150] sm:$0xff]
    %v8745 = vld [vmem:[%s8701 + $0x158] sm:$0xff]
    %v8746 = vld [vmem:[%s8701 + $0x160] sm:$0xff]
    %v8747 = vld [vmem:[%s8701 + $0x168] sm:$0xff]
    %v8748 = vld [vmem:[%s8701 + $0x170] sm:$0xff]
    %v8749 = vld [vmem:[%s8701 + $0x178] sm:$0xff]
    %v8750 = vrot.slane %v6860, 5
    %v8751 = vrot.slane %v6861, 4
    %v8752 = vsel %vm863, %v8751, %v8750
    %v8753 = vpack.c.b16 %v8752, %v8752
    %v8803 = vunpack.c.l.b16 %v8702
    %v8804 = vunpack.c.h.b16 %v8702
    %v8805 = vunpack.c.l.b16 %v8703
    %v8806 = vunpack.c.h.b16 %v8703
    %v8807 = vunpack.c.l.b16 %v8704
    %v8808 = vunpack.c.h.b16 %v8704
    %v8809 = vunpack.c.l.b16 %v8705
    %v8810 = vunpack.c.h.b16 %v8705
    %v8811 = vunpack.c.l.b16 %v8706
    %v8812 = vunpack.c.h.b16 %v8706
    %v8813 = vunpack.c.l.b16 %v8707
    %v8814 = vunpack.c.h.b16 %v8707
    %v8815 = vunpack.c.l.b16 %v8708
    %v8816 = vunpack.c.h.b16 %v8708
    %v8817 = vunpack.c.l.b16 %v8709
    %v8818 = vunpack.c.h.b16 %v8709
    %v8819 = vunpack.c.l.b16 %v8710
    %v8820 = vunpack.c.h.b16 %v8710
    %v8821 = vunpack.c.l.b16 %v8711
    %v8822 = vunpack.c.h.b16 %v8711
    %v8823 = vunpack.c.l.b16 %v8712
    %v8824 = vunpack.c.h.b16 %v8712
    %v8825 = vunpack.c.l.b16 %v8713
    %v8826 = vunpack.c.h.b16 %v8713
    %v8827 = vunpack.c.l.b16 %v8714
    %v8828 = vunpack.c.h.b16 %v8714
    %v8829 = vunpack.c.l.b16 %v8715
    %v8830 = vunpack.c.h.b16 %v8715
    %v8831 = vunpack.c.l.b16 %v8716
    %v8832 = vunpack.c.h.b16 %v8716
    %v8833 = vunpack.c.l.b16 %v8717
    %v8834 = vunpack.c.h.b16 %v8717
    %v8835 = vunpack.c.l.b16 %v8718
    %v8836 = vunpack.c.h.b16 %v8718
    %v8837 = vunpack.c.l.b16 %v8719
    %v8838 = vunpack.c.h.b16 %v8719
    %v8839 = vunpack.c.l.b16 %v8720
    %v8840 = vunpack.c.h.b16 %v8720
    %v8841 = vunpack.c.l.b16 %v8721
    %v8842 = vunpack.c.h.b16 %v8721
    %v8843 = vunpack.c.l.b16 %v8722
    %v8844 = vunpack.c.h.b16 %v8722
    %v8845 = vunpack.c.l.b16 %v8723
    %v8846 = vunpack.c.h.b16 %v8723
    %v8847 = vunpack.c.l.b16 %v8724
    %v8848 = vunpack.c.h.b16 %v8724
    %v8849 = vunpack.c.l.b16 %v8725
    %v8850 = vunpack.c.h.b16 %v8725
    %v8851 = vunpack.c.l.b16 %v8726
    %v8852 = vunpack.c.h.b16 %v8726
    %v8853 = vunpack.c.l.b16 %v8727
    %v8854 = vunpack.c.h.b16 %v8727
    %v8855 = vunpack.c.l.b16 %v8728
    %v8856 = vunpack.c.h.b16 %v8728
    %v8857 = vunpack.c.l.b16 %v8729
    %v8858 = vunpack.c.h.b16 %v8729
    %v8859 = vunpack.c.l.b16 %v8730
    %v8860 = vunpack.c.h.b16 %v8730
    %v8861 = vunpack.c.l.b16 %v8731
    %v8862 = vunpack.c.h.b16 %v8731
    %v8863 = vunpack.c.l.b16 %v8732
    %v8864 = vunpack.c.h.b16 %v8732
    %v8865 = vunpack.c.l.b16 %v8733
    %v8866 = vunpack.c.h.b16 %v8733
    %v8867 = vunpack.c.l.b16 %v8734
    %v8868 = vunpack.c.h.b16 %v8734
    %v8869 = vunpack.c.l.b16 %v8735
    %v8870 = vunpack.c.h.b16 %v8735
    %v8871 = vunpack.c.l.b16 %v8736
    %v8872 = vunpack.c.h.b16 %v8736
    %v8873 = vunpack.c.l.b16 %v8737
    %v8874 = vunpack.c.h.b16 %v8737
    %v8875 = vunpack.c.l.b16 %v8738
    %v8876 = vunpack.c.h.b16 %v8738
    %v8877 = vunpack.c.l.b16 %v8739
    %v8878 = vunpack.c.h.b16 %v8739
    %v8879 = vunpack.c.l.b16 %v8740
    %v8880 = vunpack.c.h.b16 %v8740
    %v8881 = vunpack.c.l.b16 %v8741
    %v8882 = vunpack.c.h.b16 %v8741
    %v8883 = vunpack.c.l.b16 %v8742
    %v8884 = vunpack.c.h.b16 %v8742
    %v8885 = vunpack.c.l.b16 %v8743
    %v8886 = vunpack.c.h.b16 %v8743
    %v8887 = vunpack.c.l.b16 %v8744
    %v8888 = vunpack.c.h.b16 %v8744
    %v8889 = vunpack.c.l.b16 %v8745
    %v8890 = vunpack.c.h.b16 %v8745
    %v8891 = vunpack.c.l.b16 %v8746
    %v8892 = vunpack.c.h.b16 %v8746
    %v8893 = vunpack.c.l.b16 %v8747
    %v8894 = vunpack.c.h.b16 %v8747
    %v8895 = vunpack.c.l.b16 %v8748
    %v8896 = vunpack.c.h.b16 %v8748
    %v8897 = vunpack.c.l.b16 %v8749
    %v8898 = vunpack.c.h.b16 %v8749
    %v8899 = vpack.c.b16 %v8809, %v8803
    %v8900 = vpack.c.b16 %v8810, %v8804
    %v8901 = vpack.c.b16 %v8811, %v8805
    %v8902 = vpack.c.b16 %v8812, %v8806
    %v8903 = vpack.c.b16 %v8813, %v8807
    %v8904 = vpack.c.b16 %v8814, %v8808
    %v8905 = vpack.c.b16 %v8821, %v8815
    %v8906 = vpack.c.b16 %v8822, %v8816
    %v8907 = vpack.c.b16 %v8823, %v8817
    %v8908 = vpack.c.b16 %v8824, %v8818
    %v8909 = vpack.c.b16 %v8825, %v8819
    %v8910 = vpack.c.b16 %v8826, %v8820
    %v8911 = vpack.c.b16 %v8833, %v8827
    %v8912 = vpack.c.b16 %v8834, %v8828
    %v8913 = vpack.c.b16 %v8835, %v8829
    %v8914 = vpack.c.b16 %v8836, %v8830
    %v8915 = vpack.c.b16 %v8837, %v8831
    %v8916 = vpack.c.b16 %v8838, %v8832
    %v8917 = vpack.c.b16 %v8845, %v8839
    %v8918 = vpack.c.b16 %v8846, %v8840
    %v8919 = vpack.c.b16 %v8847, %v8841
    %v8920 = vpack.c.b16 %v8848, %v8842
    %v8921 = vpack.c.b16 %v8849, %v8843
    %v8922 = vpack.c.b16 %v8850, %v8844
    %v8923 = vpack.c.b16 %v8857, %v8851
    %v8924 = vpack.c.b16 %v8858, %v8852
    %v8925 = vpack.c.b16 %v8859, %v8853
    %v8926 = vpack.c.b16 %v8860, %v8854
    %v8927 = vpack.c.b16 %v8861, %v8855
    %v8928 = vpack.c.b16 %v8862, %v8856
    %v8929 = vpack.c.b16 %v8869, %v8863
    %v8930 = vpack.c.b16 %v8870, %v8864
    %v8931 = vpack.c.b16 %v8871, %v8865
    %v8932 = vpack.c.b16 %v8872, %v8866
    %v8933 = vpack.c.b16 %v8873, %v8867
    %v8934 = vpack.c.b16 %v8874, %v8868
    %v8935 = vpack.c.b16 %v8881, %v8875
    %v8936 = vpack.c.b16 %v8882, %v8876
    %v8937 = vpack.c.b16 %v8883, %v8877
    %v8938 = vpack.c.b16 %v8884, %v8878
    %v8939 = vpack.c.b16 %v8885, %v8879
    %v8940 = vpack.c.b16 %v8886, %v8880
    %v8941 = vpack.c.b16 %v8893, %v8887
    %v8942 = vpack.c.b16 %v8894, %v8888
    %v8943 = vpack.c.b16 %v8895, %v8889
    %v8944 = vpack.c.b16 %v8896, %v8890
    %v8945 = vpack.c.b16 %v8897, %v8891
    %v8946 = vpack.c.b16 %v8898, %v8892
    %8995 = vmatpush.bf16.msra.mxu0 %v8941
    %8996 = vmatpush.bf16.msra.mxu0 %v8935
    %8997 = vmatpush.bf16.msra.mxu0 %v8929
    %8998 = vmatpush.bf16.msra.mxu0 %v8923
    %8999 = vmatpush.bf16.msra.mxu0 %v8917
    %9000 = vmatpush.bf16.msra.mxu0 %v8911
    %9001 = vmatpush.bf16.msra.mxu0 %v8905
    %9002 = vmatpush.bf16.msra.mxu0 %v8899
    %9003 = vmatmul.bf16.gmra.mxu0 %v8753
    %v9004 = vpop.f32.mrf.mxu0
    %v9005 = vadd.f32 0.0, %v9004
    %v9006 = vpop.f32.mrf.mxu0
    %9007 = vdwg.mxu0
    %9008 = vmatpush.bf16.msra.mxu0 %v8942
    %9009 = vmatpush.bf16.msra.mxu0 %v8936
    %9010 = vmatpush.bf16.msra.mxu0 %v8930
    %9011 = vmatpush.bf16.msra.mxu0 %v8924
    %9012 = vmatpush.bf16.msra.mxu0 %v8918
    %9013 = vmatpush.bf16.msra.mxu0 %v8912
    %9014 = vmatpush.bf16.msra.mxu0 %v8906
    %9015 = vmatpush.bf16.msra.mxu0 %v8900
    %9016 = vmatmul.bf16.gmra.mxu0 %v8753
    %v9017 = vpop.f32.mrf.mxu0
    %v9018 = vadd.f32 0.0, %v9017
    %v9019 = vpop.f32.mrf.mxu0
    %9020 = vdwg.mxu0
    %9021 = vmatpush.bf16.msra.mxu0 %v8943
    %9022 = vmatpush.bf16.msra.mxu0 %v8937
    %9023 = vmatpush.bf16.msra.mxu0 %v8931
    %9024 = vmatpush.bf16.msra.mxu0 %v8925
    %9025 = vmatpush.bf16.msra.mxu0 %v8919
    %9026 = vmatpush.bf16.msra.mxu0 %v8913
    %9027 = vmatpush.bf16.msra.mxu0 %v8907
    %9028 = vmatpush.bf16.msra.mxu0 %v8901
    %9029 = vmatmul.bf16.gmra.mxu0 %v8753
    %v9030 = vpop.f32.mrf.mxu0
    %v9031 = vadd.f32 0.0, %v9030
    %v9032 = vpop.f32.mrf.mxu0
    %9033 = vdwg.mxu0
    %9034 = vmatpush.bf16.msra.mxu0 %v8944
    %9035 = vmatpush.bf16.msra.mxu0 %v8938
    %9036 = vmatpush.bf16.msra.mxu0 %v8932
    %9037 = vmatpush.bf16.msra.mxu0 %v8926
    %9038 = vmatpush.bf16.msra.mxu0 %v8920
    %9039 = vmatpush.bf16.msra.mxu0 %v8914
    %9040 = vmatpush.bf16.msra.mxu0 %v8908
    %9041 = vmatpush.bf16.msra.mxu0 %v8902
    %9042 = vmatmul.bf16.gmra.mxu0 %v8753
    %v9043 = vpop.f32.mrf.mxu0
    %v9044 = vadd.f32 0.0, %v9043
    %v9045 = vpop.f32.mrf.mxu0
    %9046 = vdwg.mxu0
    %9047 = vmatpush.bf16.msra.mxu0 %v8945
    %9048 = vmatpush.bf16.msra.mxu0 %v8939
    %9049 = vmatpush.bf16.msra.mxu0 %v8933
    %9050 = vmatpush.bf16.msra.mxu0 %v8927
    %9051 = vmatpush.bf16.msra.mxu0 %v8921
    %9052 = vmatpush.bf16.msra.mxu0 %v8915
    %9053 = vmatpush.bf16.msra.mxu0 %v8909
    %9054 = vmatpush.bf16.msra.mxu0 %v8903
    %9055 = vmatmul.bf16.gmra.mxu0 %v8753
    %v9056 = vpop.f32.mrf.mxu0
    %v9057 = vadd.f32 0.0, %v9056
    %v9058 = vpop.f32.mrf.mxu0
    %9059 = vdwg.mxu0
    %9060 = vmatpush.bf16.msra.mxu0 %v8946
    %9061 = vmatpush.bf16.msra.mxu0 %v8940
    %9062 = vmatpush.bf16.msra.mxu0 %v8934
    %9063 = vmatpush.bf16.msra.mxu0 %v8928
    %9064 = vmatpush.bf16.msra.mxu0 %v8922
    %9065 = vmatpush.bf16.msra.mxu0 %v8916
    %9066 = vmatpush.bf16.msra.mxu0 %v8910
    %9067 = vmatpush.bf16.msra.mxu0 %v8904
    %9068 = vmatmul.bf16.gmra.mxu0 %v8753
    %v9069 = vpop.f32.mrf.mxu0
    %v9070 = vadd.f32 0.0, %v9069
    %v9071 = vpop.f32.mrf.mxu0
    %9072 = vdwg.mxu0
    %v9073 = vadd.f32 %v8695, %v9005
    %v9074 = vadd.f32 %v8696, %v9018
    %v9075 = vadd.f32 %v8697, %v9031
    %v9076 = vadd.f32 %v8698, %v9044
    %v9077 = vadd.f32 %v8699, %v9057
    %v9078 = vadd.f32 %v8700, %v9070
    %s9079 = scalar_lea.vmem [#allocation2], 8448
    %v9080 = vld [vmem:[%s9079] sm:$0xff]
    %v9081 = vld [vmem:[%s9079 + $0x8] sm:$0xff]
    %v9082 = vld [vmem:[%s9079 + $0x10] sm:$0xff]
    %v9083 = vld [vmem:[%s9079 + $0x18] sm:$0xff]
    %v9084 = vld [vmem:[%s9079 + $0x20] sm:$0xff]
    %v9085 = vld [vmem:[%s9079 + $0x28] sm:$0xff]
    %v9086 = vld [vmem:[%s9079 + $0x30] sm:$0xff]
    %v9087 = vld [vmem:[%s9079 + $0x38] sm:$0xff]
    %v9088 = vld [vmem:[%s9079 + $0x40] sm:$0xff]
    %v9089 = vld [vmem:[%s9079 + $0x48] sm:$0xff]
    %v9090 = vld [vmem:[%s9079 + $0x50] sm:$0xff]
    %v9091 = vld [vmem:[%s9079 + $0x58] sm:$0xff]
    %v9092 = vld [vmem:[%s9079 + $0x60] sm:$0xff]
    %v9093 = vld [vmem:[%s9079 + $0x68] sm:$0xff]
    %v9094 = vld [vmem:[%s9079 + $0x70] sm:$0xff]
    %v9095 = vld [vmem:[%s9079 + $0x78] sm:$0xff]
    %v9096 = vld [vmem:[%s9079 + $0x80] sm:$0xff]
    %v9097 = vld [vmem:[%s9079 + $0x88] sm:$0xff]
    %v9098 = vld [vmem:[%s9079 + $0x90] sm:$0xff]
    %v9099 = vld [vmem:[%s9079 + $0x98] sm:$0xff]
    %v9100 = vld [vmem:[%s9079 + $0xa0] sm:$0xff]
    %v9101 = vld [vmem:[%s9079 + $0xa8] sm:$0xff]
    %v9102 = vld [vmem:[%s9079 + $0xb0] sm:$0xff]
    %v9103 = vld [vmem:[%s9079 + $0xb8] sm:$0xff]
    %v9104 = vld [vmem:[%s9079 + $0xc0] sm:$0xff]
    %v9105 = vld [vmem:[%s9079 + $0xc8] sm:$0xff]
    %v9106 = vld [vmem:[%s9079 + $0xd0] sm:$0xff]
    %v9107 = vld [vmem:[%s9079 + $0xd8] sm:$0xff]
    %v9108 = vld [vmem:[%s9079 + $0xe0] sm:$0xff]
    %v9109 = vld [vmem:[%s9079 + $0xe8] sm:$0xff]
    %v9110 = vld [vmem:[%s9079 + $0xf0] sm:$0xff]
    %v9111 = vld [vmem:[%s9079 + $0xf8] sm:$0xff]
    %v9112 = vld [vmem:[%s9079 + $0x100] sm:$0xff]
    %v9113 = vld [vmem:[%s9079 + $0x108] sm:$0xff]
    %v9114 = vld [vmem:[%s9079 + $0x110] sm:$0xff]
    %v9115 = vld [vmem:[%s9079 + $0x118] sm:$0xff]
    %v9116 = vld [vmem:[%s9079 + $0x120] sm:$0xff]
    %v9117 = vld [vmem:[%s9079 + $0x128] sm:$0xff]
    %v9118 = vld [vmem:[%s9079 + $0x130] sm:$0xff]
    %v9119 = vld [vmem:[%s9079 + $0x138] sm:$0xff]
    %v9120 = vld [vmem:[%s9079 + $0x140] sm:$0xff]
    %v9121 = vld [vmem:[%s9079 + $0x148] sm:$0xff]
    %v9122 = vld [vmem:[%s9079 + $0x150] sm:$0xff]
    %v9123 = vld [vmem:[%s9079 + $0x158] sm:$0xff]
    %v9124 = vld [vmem:[%s9079 + $0x160] sm:$0xff]
    %v9125 = vld [vmem:[%s9079 + $0x168] sm:$0xff]
    %v9126 = vld [vmem:[%s9079 + $0x170] sm:$0xff]
    %v9127 = vld [vmem:[%s9079 + $0x178] sm:$0xff]
    %v9128 = vrot.slane %v6860, 6
    %v9129 = vrot.slane %v6861, 5
    %v9130 = vsel %vm863, %v9129, %v9128
    %v9131 = vpack.c.b16 %v9130, %v9130
    %v9181 = vunpack.c.l.b16 %v9080
    %v9182 = vunpack.c.h.b16 %v9080
    %v9183 = vunpack.c.l.b16 %v9081
    %v9184 = vunpack.c.h.b16 %v9081
    %v9185 = vunpack.c.l.b16 %v9082
    %v9186 = vunpack.c.h.b16 %v9082
    %v9187 = vunpack.c.l.b16 %v9083
    %v9188 = vunpack.c.h.b16 %v9083
    %v9189 = vunpack.c.l.b16 %v9084
    %v9190 = vunpack.c.h.b16 %v9084
    %v9191 = vunpack.c.l.b16 %v9085
    %v9192 = vunpack.c.h.b16 %v9085
    %v9193 = vunpack.c.l.b16 %v9086
    %v9194 = vunpack.c.h.b16 %v9086
    %v9195 = vunpack.c.l.b16 %v9087
    %v9196 = vunpack.c.h.b16 %v9087
    %v9197 = vunpack.c.l.b16 %v9088
    %v9198 = vunpack.c.h.b16 %v9088
    %v9199 = vunpack.c.l.b16 %v9089
    %v9200 = vunpack.c.h.b16 %v9089
    %v9201 = vunpack.c.l.b16 %v9090
    %v9202 = vunpack.c.h.b16 %v9090
    %v9203 = vunpack.c.l.b16 %v9091
    %v9204 = vunpack.c.h.b16 %v9091
    %v9205 = vunpack.c.l.b16 %v9092
    %v9206 = vunpack.c.h.b16 %v9092
    %v9207 = vunpack.c.l.b16 %v9093
    %v9208 = vunpack.c.h.b16 %v9093
    %v9209 = vunpack.c.l.b16 %v9094
    %v9210 = vunpack.c.h.b16 %v9094
    %v9211 = vunpack.c.l.b16 %v9095
    %v9212 = vunpack.c.h.b16 %v9095
    %v9213 = vunpack.c.l.b16 %v9096
    %v9214 = vunpack.c.h.b16 %v9096
    %v9215 = vunpack.c.l.b16 %v9097
    %v9216 = vunpack.c.h.b16 %v9097
    %v9217 = vunpack.c.l.b16 %v9098
    %v9218 = vunpack.c.h.b16 %v9098
    %v9219 = vunpack.c.l.b16 %v9099
    %v9220 = vunpack.c.h.b16 %v9099
    %v9221 = vunpack.c.l.b16 %v9100
    %v9222 = vunpack.c.h.b16 %v9100
    %v9223 = vunpack.c.l.b16 %v9101
    %v9224 = vunpack.c.h.b16 %v9101
    %v9225 = vunpack.c.l.b16 %v9102
    %v9226 = vunpack.c.h.b16 %v9102
    %v9227 = vunpack.c.l.b16 %v9103
    %v9228 = vunpack.c.h.b16 %v9103
    %v9229 = vunpack.c.l.b16 %v9104
    %v9230 = vunpack.c.h.b16 %v9104
    %v9231 = vunpack.c.l.b16 %v9105
    %v9232 = vunpack.c.h.b16 %v9105
    %v9233 = vunpack.c.l.b16 %v9106
    %v9234 = vunpack.c.h.b16 %v9106
    %v9235 = vunpack.c.l.b16 %v9107
    %v9236 = vunpack.c.h.b16 %v9107
    %v9237 = vunpack.c.l.b16 %v9108
    %v9238 = vunpack.c.h.b16 %v9108
    %v9239 = vunpack.c.l.b16 %v9109
    %v9240 = vunpack.c.h.b16 %v9109
    %v9241 = vunpack.c.l.b16 %v9110
    %v9242 = vunpack.c.h.b16 %v9110
    %v9243 = vunpack.c.l.b16 %v9111
    %v9244 = vunpack.c.h.b16 %v9111
    %v9245 = vunpack.c.l.b16 %v9112
    %v9246 = vunpack.c.h.b16 %v9112
    %v9247 = vunpack.c.l.b16 %v9113
    %v9248 = vunpack.c.h.b16 %v9113
    %v9249 = vunpack.c.l.b16 %v9114
    %v9250 = vunpack.c.h.b16 %v9114
    %v9251 = vunpack.c.l.b16 %v9115
    %v9252 = vunpack.c.h.b16 %v9115
    %v9253 = vunpack.c.l.b16 %v9116
    %v9254 = vunpack.c.h.b16 %v9116
    %v9255 = vunpack.c.l.b16 %v9117
    %v9256 = vunpack.c.h.b16 %v9117
    %v9257 = vunpack.c.l.b16 %v9118
    %v9258 = vunpack.c.h.b16 %v9118
    %v9259 = vunpack.c.l.b16 %v9119
    %v9260 = vunpack.c.h.b16 %v9119
    %v9261 = vunpack.c.l.b16 %v9120
    %v9262 = vunpack.c.h.b16 %v9120
    %v9263 = vunpack.c.l.b16 %v9121
    %v9264 = vunpack.c.h.b16 %v9121
    %v9265 = vunpack.c.l.b16 %v9122
    %v9266 = vunpack.c.h.b16 %v9122
    %v9267 = vunpack.c.l.b16 %v9123
    %v9268 = vunpack.c.h.b16 %v9123
    %v9269 = vunpack.c.l.b16 %v9124
    %v9270 = vunpack.c.h.b16 %v9124
    %v9271 = vunpack.c.l.b16 %v9125
    %v9272 = vunpack.c.h.b16 %v9125
    %v9273 = vunpack.c.l.b16 %v9126
    %v9274 = vunpack.c.h.b16 %v9126
    %v9275 = vunpack.c.l.b16 %v9127
    %v9276 = vunpack.c.h.b16 %v9127
    %v9277 = vpack.c.b16 %v9187, %v9181
    %v9278 = vpack.c.b16 %v9188, %v9182
    %v9279 = vpack.c.b16 %v9189, %v9183
    %v9280 = vpack.c.b16 %v9190, %v9184
    %v9281 = vpack.c.b16 %v9191, %v9185
    %v9282 = vpack.c.b16 %v9192, %v9186
    %v9283 = vpack.c.b16 %v9199, %v9193
    %v9284 = vpack.c.b16 %v9200, %v9194
    %v9285 = vpack.c.b16 %v9201, %v9195
    %v9286 = vpack.c.b16 %v9202, %v9196
    %v9287 = vpack.c.b16 %v9203, %v9197
    %v9288 = vpack.c.b16 %v9204, %v9198
    %v9289 = vpack.c.b16 %v9211, %v9205
    %v9290 = vpack.c.b16 %v9212, %v9206
    %v9291 = vpack.c.b16 %v9213, %v9207
    %v9292 = vpack.c.b16 %v9214, %v9208
    %v9293 = vpack.c.b16 %v9215, %v9209
    %v9294 = vpack.c.b16 %v9216, %v9210
    %v9295 = vpack.c.b16 %v9223, %v9217
    %v9296 = vpack.c.b16 %v9224, %v9218
    %v9297 = vpack.c.b16 %v9225, %v9219
    %v9298 = vpack.c.b16 %v9226, %v9220
    %v9299 = vpack.c.b16 %v9227, %v9221
    %v9300 = vpack.c.b16 %v9228, %v9222
    %v9301 = vpack.c.b16 %v9235, %v9229
    %v9302 = vpack.c.b16 %v9236, %v9230
    %v9303 = vpack.c.b16 %v9237, %v9231
    %v9304 = vpack.c.b16 %v9238, %v9232
    %v9305 = vpack.c.b16 %v9239, %v9233
    %v9306 = vpack.c.b16 %v9240, %v9234
    %v9307 = vpack.c.b16 %v9247, %v9241
    %v9308 = vpack.c.b16 %v9248, %v9242
    %v9309 = vpack.c.b16 %v9249, %v9243
    %v9310 = vpack.c.b16 %v9250, %v9244
    %v9311 = vpack.c.b16 %v9251, %v9245
    %v9312 = vpack.c.b16 %v9252, %v9246
    %v9313 = vpack.c.b16 %v9259, %v9253
    %v9314 = vpack.c.b16 %v9260, %v9254
    %v9315 = vpack.c.b16 %v9261, %v9255
    %v9316 = vpack.c.b16 %v9262, %v9256
    %v9317 = vpack.c.b16 %v9263, %v9257
    %v9318 = vpack.c.b16 %v9264, %v9258
    %v9319 = vpack.c.b16 %v9271, %v9265
    %v9320 = vpack.c.b16 %v9272, %v9266
    %v9321 = vpack.c.b16 %v9273, %v9267
    %v9322 = vpack.c.b16 %v9274, %v9268
    %v9323 = vpack.c.b16 %v9275, %v9269
    %v9324 = vpack.c.b16 %v9276, %v9270
    %9373 = vmatpush.bf16.msra.mxu0 %v9319
    %9374 = vmatpush.bf16.msra.mxu0 %v9313
    %9375 = vmatpush.bf16.msra.mxu0 %v9307
    %9376 = vmatpush.bf16.msra.mxu0 %v9301
    %9377 = vmatpush.bf16.msra.mxu0 %v9295
    %9378 = vmatpush.bf16.msra.mxu0 %v9289
    %9379 = vmatpush.bf16.msra.mxu0 %v9283
    %9380 = vmatpush.bf16.msra.mxu0 %v9277
    %9381 = vmatmul.bf16.gmra.mxu0 %v9131
    %v9382 = vpop.f32.mrf.mxu0
    %v9383 = vadd.f32 0.0, %v9382
    %v9384 = vpop.f32.mrf.mxu0
    %9385 = vdwg.mxu0
    %9386 = vmatpush.bf16.msra.mxu0 %v9320
    %9387 = vmatpush.bf16.msra.mxu0 %v9314
    %9388 = vmatpush.bf16.msra.mxu0 %v9308
    %9389 = vmatpush.bf16.msra.mxu0 %v9302
    %9390 = vmatpush.bf16.msra.mxu0 %v9296
    %9391 = vmatpush.bf16.msra.mxu0 %v9290
    %9392 = vmatpush.bf16.msra.mxu0 %v9284
    %9393 = vmatpush.bf16.msra.mxu0 %v9278
    %9394 = vmatmul.bf16.gmra.mxu0 %v9131
    %v9395 = vpop.f32.mrf.mxu0
    %v9396 = vadd.f32 0.0, %v9395
    %v9397 = vpop.f32.mrf.mxu0
    %9398 = vdwg.mxu0
    %9399 = vmatpush.bf16.msra.mxu0 %v9321
    %9400 = vmatpush.bf16.msra.mxu0 %v9315
    %9401 = vmatpush.bf16.msra.mxu0 %v9309
    %9402 = vmatpush.bf16.msra.mxu0 %v9303
    %9403 = vmatpush.bf16.msra.mxu0 %v9297
    %9404 = vmatpush.bf16.msra.mxu0 %v9291
    %9405 = vmatpush.bf16.msra.mxu0 %v9285
    %9406 = vmatpush.bf16.msra.mxu0 %v9279
    %9407 = vmatmul.bf16.gmra.mxu0 %v9131
    %v9408 = vpop.f32.mrf.mxu0
    %v9409 = vadd.f32 0.0, %v9408
    %v9410 = vpop.f32.mrf.mxu0
    %9411 = vdwg.mxu0
    %9412 = vmatpush.bf16.msra.mxu0 %v9322
    %9413 = vmatpush.bf16.msra.mxu0 %v9316
    %9414 = vmatpush.bf16.msra.mxu0 %v9310
    %9415 = vmatpush.bf16.msra.mxu0 %v9304
    %9416 = vmatpush.bf16.msra.mxu0 %v9298
    %9417 = vmatpush.bf16.msra.mxu0 %v9292
    %9418 = vmatpush.bf16.msra.mxu0 %v9286
    %9419 = vmatpush.bf16.msra.mxu0 %v9280
    %9420 = vmatmul.bf16.gmra.mxu0 %v9131
    %v9421 = vpop.f32.mrf.mxu0
    %v9422 = vadd.f32 0.0, %v9421
    %v9423 = vpop.f32.mrf.mxu0
    %9424 = vdwg.mxu0
    %9425 = vmatpush.bf16.msra.mxu0 %v9323
    %9426 = vmatpush.bf16.msra.mxu0 %v9317
    %9427 = vmatpush.bf16.msra.mxu0 %v9311
    %9428 = vmatpush.bf16.msra.mxu0 %v9305
    %9429 = vmatpush.bf16.msra.mxu0 %v9299
    %9430 = vmatpush.bf16.msra.mxu0 %v9293
    %9431 = vmatpush.bf16.msra.mxu0 %v9287
    %9432 = vmatpush.bf16.msra.mxu0 %v9281
    %9433 = vmatmul.bf16.gmra.mxu0 %v9131
    %v9434 = vpop.f32.mrf.mxu0
    %v9435 = vadd.f32 0.0, %v9434
    %v9436 = vpop.f32.mrf.mxu0
    %9437 = vdwg.mxu0
    %9438 = vmatpush.bf16.msra.mxu0 %v9324
    %9439 = vmatpush.bf16.msra.mxu0 %v9318
    %9440 = vmatpush.bf16.msra.mxu0 %v9312
    %9441 = vmatpush.bf16.msra.mxu0 %v9306
    %9442 = vmatpush.bf16.msra.mxu0 %v9300
    %9443 = vmatpush.bf16.msra.mxu0 %v9294
    %9444 = vmatpush.bf16.msra.mxu0 %v9288
    %9445 = vmatpush.bf16.msra.mxu0 %v9282
    %9446 = vmatmul.bf16.gmra.mxu0 %v9131
    %v9447 = vpop.f32.mrf.mxu0
    %v9448 = vadd.f32 0.0, %v9447
    %v9449 = vpop.f32.mrf.mxu0
    %9450 = vdwg.mxu0
    %v9451 = vadd.f32 %v9073, %v9383
    %v9452 = vadd.f32 %v9074, %v9396
    %v9453 = vadd.f32 %v9075, %v9409
    %v9454 = vadd.f32 %v9076, %v9422
    %v9455 = vadd.f32 %v9077, %v9435
    %v9456 = vadd.f32 %v9078, %v9448
    %s9457 = scalar_lea.vmem [#allocation2], 8832
    %v9458 = vld [vmem:[%s9457] sm:$0xff]
    %v9459 = vld [vmem:[%s9457 + $0x8] sm:$0xff]
    %v9460 = vld [vmem:[%s9457 + $0x10] sm:$0xff]
    %v9461 = vld [vmem:[%s9457 + $0x18] sm:$0xff]
    %v9462 = vld [vmem:[%s9457 + $0x20] sm:$0xff]
    %v9463 = vld [vmem:[%s9457 + $0x28] sm:$0xff]
    %v9464 = vld [vmem:[%s9457 + $0x30] sm:$0xff]
    %v9465 = vld [vmem:[%s9457 + $0x38] sm:$0xff]
    %v9466 = vld [vmem:[%s9457 + $0x40] sm:$0xff]
    %v9467 = vld [vmem:[%s9457 + $0x48] sm:$0xff]
    %v9468 = vld [vmem:[%s9457 + $0x50] sm:$0xff]
    %v9469 = vld [vmem:[%s9457 + $0x58] sm:$0xff]
    %v9470 = vld [vmem:[%s9457 + $0x60] sm:$0xff]
    %v9471 = vld [vmem:[%s9457 + $0x68] sm:$0xff]
    %v9472 = vld [vmem:[%s9457 + $0x70] sm:$0xff]
    %v9473 = vld [vmem:[%s9457 + $0x78] sm:$0xff]
    %v9474 = vld [vmem:[%s9457 + $0x80] sm:$0xff]
    %v9475 = vld [vmem:[%s9457 + $0x88] sm:$0xff]
    %v9476 = vld [vmem:[%s9457 + $0x90] sm:$0xff]
    %v9477 = vld [vmem:[%s9457 + $0x98] sm:$0xff]
    %v9478 = vld [vmem:[%s9457 + $0xa0] sm:$0xff]
    %v9479 = vld [vmem:[%s9457 + $0xa8] sm:$0xff]
    %v9480 = vld [vmem:[%s9457 + $0xb0] sm:$0xff]
    %v9481 = vld [vmem:[%s9457 + $0xb8] sm:$0xff]
    %v9482 = vld [vmem:[%s9457 + $0xc0] sm:$0xff]
    %v9483 = vld [vmem:[%s9457 + $0xc8] sm:$0xff]
    %v9484 = vld [vmem:[%s9457 + $0xd0] sm:$0xff]
    %v9485 = vld [vmem:[%s9457 + $0xd8] sm:$0xff]
    %v9486 = vld [vmem:[%s9457 + $0xe0] sm:$0xff]
    %v9487 = vld [vmem:[%s9457 + $0xe8] sm:$0xff]
    %v9488 = vld [vmem:[%s9457 + $0xf0] sm:$0xff]
    %v9489 = vld [vmem:[%s9457 + $0xf8] sm:$0xff]
    %v9490 = vld [vmem:[%s9457 + $0x100] sm:$0xff]
    %v9491 = vld [vmem:[%s9457 + $0x108] sm:$0xff]
    %v9492 = vld [vmem:[%s9457 + $0x110] sm:$0xff]
    %v9493 = vld [vmem:[%s9457 + $0x118] sm:$0xff]
    %v9494 = vld [vmem:[%s9457 + $0x120] sm:$0xff]
    %v9495 = vld [vmem:[%s9457 + $0x128] sm:$0xff]
    %v9496 = vld [vmem:[%s9457 + $0x130] sm:$0xff]
    %v9497 = vld [vmem:[%s9457 + $0x138] sm:$0xff]
    %v9498 = vld [vmem:[%s9457 + $0x140] sm:$0xff]
    %v9499 = vld [vmem:[%s9457 + $0x148] sm:$0xff]
    %v9500 = vld [vmem:[%s9457 + $0x150] sm:$0xff]
    %v9501 = vld [vmem:[%s9457 + $0x158] sm:$0xff]
    %v9502 = vld [vmem:[%s9457 + $0x160] sm:$0xff]
    %v9503 = vld [vmem:[%s9457 + $0x168] sm:$0xff]
    %v9504 = vld [vmem:[%s9457 + $0x170] sm:$0xff]
    %v9505 = vld [vmem:[%s9457 + $0x178] sm:$0xff]
    %v9506 = vrot.slane %v6860, 7
    %v9507 = vrot.slane %v6861, 6
    %v9508 = vsel %vm863, %v9507, %v9506
    %v9509 = vpack.c.b16 %v9508, %v9508
    %v9559 = vunpack.c.l.b16 %v9458
    %v9560 = vunpack.c.h.b16 %v9458
    %v9561 = vunpack.c.l.b16 %v9459
    %v9562 = vunpack.c.h.b16 %v9459
    %v9563 = vunpack.c.l.b16 %v9460
    %v9564 = vunpack.c.h.b16 %v9460
    %v9565 = vunpack.c.l.b16 %v9461
    %v9566 = vunpack.c.h.b16 %v9461
    %v9567 = vunpack.c.l.b16 %v9462
    %v9568 = vunpack.c.h.b16 %v9462
    %v9569 = vunpack.c.l.b16 %v9463
    %v9570 = vunpack.c.h.b16 %v9463
    %v9571 = vunpack.c.l.b16 %v9464
    %v9572 = vunpack.c.h.b16 %v9464
    %v9573 = vunpack.c.l.b16 %v9465
    %v9574 = vunpack.c.h.b16 %v9465
    %v9575 = vunpack.c.l.b16 %v9466
    %v9576 = vunpack.c.h.b16 %v9466
    %v9577 = vunpack.c.l.b16 %v9467
    %v9578 = vunpack.c.h.b16 %v9467
    %v9579 = vunpack.c.l.b16 %v9468
    %v9580 = vunpack.c.h.b16 %v9468
    %v9581 = vunpack.c.l.b16 %v9469
    %v9582 = vunpack.c.h.b16 %v9469
    %v9583 = vunpack.c.l.b16 %v9470
    %v9584 = vunpack.c.h.b16 %v9470
    %v9585 = vunpack.c.l.b16 %v9471
    %v9586 = vunpack.c.h.b16 %v9471
    %v9587 = vunpack.c.l.b16 %v9472
    %v9588 = vunpack.c.h.b16 %v9472
    %v9589 = vunpack.c.l.b16 %v9473
    %v9590 = vunpack.c.h.b16 %v9473
    %v9591 = vunpack.c.l.b16 %v9474
    %v9592 = vunpack.c.h.b16 %v9474
    %v9593 = vunpack.c.l.b16 %v9475
    %v9594 = vunpack.c.h.b16 %v9475
    %v9595 = vunpack.c.l.b16 %v9476
    %v9596 = vunpack.c.h.b16 %v9476
    %v9597 = vunpack.c.l.b16 %v9477
    %v9598 = vunpack.c.h.b16 %v9477
    %v9599 = vunpack.c.l.b16 %v9478
    %v9600 = vunpack.c.h.b16 %v9478
    %v9601 = vunpack.c.l.b16 %v9479
    %v9602 = vunpack.c.h.b16 %v9479
    %v9603 = vunpack.c.l.b16 %v9480
    %v9604 = vunpack.c.h.b16 %v9480
    %v9605 = vunpack.c.l.b16 %v9481
    %v9606 = vunpack.c.h.b16 %v9481
    %v9607 = vunpack.c.l.b16 %v9482
    %v9608 = vunpack.c.h.b16 %v9482
    %v9609 = vunpack.c.l.b16 %v9483
    %v9610 = vunpack.c.h.b16 %v9483
    %v9611 = vunpack.c.l.b16 %v9484
    %v9612 = vunpack.c.h.b16 %v9484
    %v9613 = vunpack.c.l.b16 %v9485
    %v9614 = vunpack.c.h.b16 %v9485
    %v9615 = vunpack.c.l.b16 %v9486
    %v9616 = vunpack.c.h.b16 %v9486
    %v9617 = vunpack.c.l.b16 %v9487
    %v9618 = vunpack.c.h.b16 %v9487
    %v9619 = vunpack.c.l.b16 %v9488
    %v9620 = vunpack.c.h.b16 %v9488
    %v9621 = vunpack.c.l.b16 %v9489
    %v9622 = vunpack.c.h.b16 %v9489
    %v9623 = vunpack.c.l.b16 %v9490
    %v9624 = vunpack.c.h.b16 %v9490
    %v9625 = vunpack.c.l.b16 %v9491
    %v9626 = vunpack.c.h.b16 %v9491
    %v9627 = vunpack.c.l.b16 %v9492
    %v9628 = vunpack.c.h.b16 %v9492
    %v9629 = vunpack.c.l.b16 %v9493
    %v9630 = vunpack.c.h.b16 %v9493
    %v9631 = vunpack.c.l.b16 %v9494
    %v9632 = vunpack.c.h.b16 %v9494
    %v9633 = vunpack.c.l.b16 %v9495
    %v9634 = vunpack.c.h.b16 %v9495
    %v9635 = vunpack.c.l.b16 %v9496
    %v9636 = vunpack.c.h.b16 %v9496
    %v9637 = vunpack.c.l.b16 %v9497
    %v9638 = vunpack.c.h.b16 %v9497
    %v9639 = vunpack.c.l.b16 %v9498
    %v9640 = vunpack.c.h.b16 %v9498
    %v9641 = vunpack.c.l.b16 %v9499
    %v9642 = vunpack.c.h.b16 %v9499
    %v9643 = vunpack.c.l.b16 %v9500
    %v9644 = vunpack.c.h.b16 %v9500
    %v9645 = vunpack.c.l.b16 %v9501
    %v9646 = vunpack.c.h.b16 %v9501
    %v9647 = vunpack.c.l.b16 %v9502
    %v9648 = vunpack.c.h.b16 %v9502
    %v9649 = vunpack.c.l.b16 %v9503
    %v9650 = vunpack.c.h.b16 %v9503
    %v9651 = vunpack.c.l.b16 %v9504
    %v9652 = vunpack.c.h.b16 %v9504
    %v9653 = vunpack.c.l.b16 %v9505
    %v9654 = vunpack.c.h.b16 %v9505
    %v9655 = vpack.c.b16 %v9565, %v9559
    %v9656 = vpack.c.b16 %v9566, %v9560
    %v9657 = vpack.c.b16 %v9567, %v9561
    %v9658 = vpack.c.b16 %v9568, %v9562
    %v9659 = vpack.c.b16 %v9569, %v9563
    %v9660 = vpack.c.b16 %v9570, %v9564
    %v9661 = vpack.c.b16 %v9577, %v9571
    %v9662 = vpack.c.b16 %v9578, %v9572
    %v9663 = vpack.c.b16 %v9579, %v9573
    %v9664 = vpack.c.b16 %v9580, %v9574
    %v9665 = vpack.c.b16 %v9581, %v9575
    %v9666 = vpack.c.b16 %v9582, %v9576
    %v9667 = vpack.c.b16 %v9589, %v9583
    %v9668 = vpack.c.b16 %v9590, %v9584
    %v9669 = vpack.c.b16 %v9591, %v9585
    %v9670 = vpack.c.b16 %v9592, %v9586
    %v9671 = vpack.c.b16 %v9593, %v9587
    %v9672 = vpack.c.b16 %v9594, %v9588
    %v9673 = vpack.c.b16 %v9601, %v9595
    %v9674 = vpack.c.b16 %v9602, %v9596
    %v9675 = vpack.c.b16 %v9603, %v9597
    %v9676 = vpack.c.b16 %v9604, %v9598
    %v9677 = vpack.c.b16 %v9605, %v9599
    %v9678 = vpack.c.b16 %v9606, %v9600
    %v9679 = vpack.c.b16 %v9613, %v9607
    %v9680 = vpack.c.b16 %v9614, %v9608
    %v9681 = vpack.c.b16 %v9615, %v9609
    %v9682 = vpack.c.b16 %v9616, %v9610
    %v9683 = vpack.c.b16 %v9617, %v9611
    %v9684 = vpack.c.b16 %v9618, %v9612
    %v9685 = vpack.c.b16 %v9625, %v9619
    %v9686 = vpack.c.b16 %v9626, %v9620
    %v9687 = vpack.c.b16 %v9627, %v9621
    %v9688 = vpack.c.b16 %v9628, %v9622
    %v9689 = vpack.c.b16 %v9629, %v9623
    %v9690 = vpack.c.b16 %v9630, %v9624
    %v9691 = vpack.c.b16 %v9637, %v9631
    %v9692 = vpack.c.b16 %v9638, %v9632
    %v9693 = vpack.c.b16 %v9639, %v9633
    %v9694 = vpack.c.b16 %v9640, %v9634
    %v9695 = vpack.c.b16 %v9641, %v9635
    %v9696 = vpack.c.b16 %v9642, %v9636
    %v9697 = vpack.c.b16 %v9649, %v9643
    %v9698 = vpack.c.b16 %v9650, %v9644
    %v9699 = vpack.c.b16 %v9651, %v9645
    %v9700 = vpack.c.b16 %v9652, %v9646
    %v9701 = vpack.c.b16 %v9653, %v9647
    %v9702 = vpack.c.b16 %v9654, %v9648
    %9751 = vmatpush.bf16.msra.mxu0 %v9697
    %9752 = vmatpush.bf16.msra.mxu0 %v9691
    %9753 = vmatpush.bf16.msra.mxu0 %v9685
    %9754 = vmatpush.bf16.msra.mxu0 %v9679
    %9755 = vmatpush.bf16.msra.mxu0 %v9673
    %9756 = vmatpush.bf16.msra.mxu0 %v9667
    %9757 = vmatpush.bf16.msra.mxu0 %v9661
    %9758 = vmatpush.bf16.msra.mxu0 %v9655
    %9759 = vmatmul.bf16.gmra.mxu0 %v9509
    %v9760 = vpop.f32.mrf.mxu0
    %v9761 = vadd.f32 0.0, %v9760
    %v9762 = vpop.f32.mrf.mxu0
    %9763 = vdwg.mxu0
    %9764 = vmatpush.bf16.msra.mxu0 %v9698
    %9765 = vmatpush.bf16.msra.mxu0 %v9692
    %9766 = vmatpush.bf16.msra.mxu0 %v9686
    %9767 = vmatpush.bf16.msra.mxu0 %v9680
    %9768 = vmatpush.bf16.msra.mxu0 %v9674
    %9769 = vmatpush.bf16.msra.mxu0 %v9668
    %9770 = vmatpush.bf16.msra.mxu0 %v9662
    %9771 = vmatpush.bf16.msra.mxu0 %v9656
    %9772 = vmatmul.bf16.gmra.mxu0 %v9509
    %v9773 = vpop.f32.mrf.mxu0
    %v9774 = vadd.f32 0.0, %v9773
    %v9775 = vpop.f32.mrf.mxu0
    %9776 = vdwg.mxu0
    %9777 = vmatpush.bf16.msra.mxu0 %v9699
    %9778 = vmatpush.bf16.msra.mxu0 %v9693
    %9779 = vmatpush.bf16.msra.mxu0 %v9687
    %9780 = vmatpush.bf16.msra.mxu0 %v9681
    %9781 = vmatpush.bf16.msra.mxu0 %v9675
    %9782 = vmatpush.bf16.msra.mxu0 %v9669
    %9783 = vmatpush.bf16.msra.mxu0 %v9663
    %9784 = vmatpush.bf16.msra.mxu0 %v9657
    %9785 = vmatmul.bf16.gmra.mxu0 %v9509
    %v9786 = vpop.f32.mrf.mxu0
    %v9787 = vadd.f32 0.0, %v9786
    %v9788 = vpop.f32.mrf.mxu0
    %9789 = vdwg.mxu0
    %9790 = vmatpush.bf16.msra.mxu0 %v9700
    %9791 = vmatpush.bf16.msra.mxu0 %v9694
    %9792 = vmatpush.bf16.msra.mxu0 %v9688
    %9793 = vmatpush.bf16.msra.mxu0 %v9682
    %9794 = vmatpush.bf16.msra.mxu0 %v9676
    %9795 = vmatpush.bf16.msra.mxu0 %v9670
    %9796 = vmatpush.bf16.msra.mxu0 %v9664
    %9797 = vmatpush.bf16.msra.mxu0 %v9658
    %9798 = vmatmul.bf16.gmra.mxu0 %v9509
    %v9799 = vpop.f32.mrf.mxu0
    %v9800 = vadd.f32 0.0, %v9799
    %v9801 = vpop.f32.mrf.mxu0
    %9802 = vdwg.mxu0
    %9803 = vmatpush.bf16.msra.mxu0 %v9701
    %9804 = vmatpush.bf16.msra.mxu0 %v9695
    %9805 = vmatpush.bf16.msra.mxu0 %v9689
    %9806 = vmatpush.bf16.msra.mxu0 %v9683
    %9807 = vmatpush.bf16.msra.mxu0 %v9677
    %9808 = vmatpush.bf16.msra.mxu0 %v9671
    %9809 = vmatpush.bf16.msra.mxu0 %v9665
    %9810 = vmatpush.bf16.msra.mxu0 %v9659
    %9811 = vmatmul.bf16.gmra.mxu0 %v9509
    %v9812 = vpop.f32.mrf.mxu0
    %v9813 = vadd.f32 0.0, %v9812
    %v9814 = vpop.f32.mrf.mxu0
    %9815 = vdwg.mxu0
    %9816 = vmatpush.bf16.msra.mxu0 %v9702
    %9817 = vmatpush.bf16.msra.mxu0 %v9696
    %9818 = vmatpush.bf16.msra.mxu0 %v9690
    %9819 = vmatpush.bf16.msra.mxu0 %v9684
    %9820 = vmatpush.bf16.msra.mxu0 %v9678
    %9821 = vmatpush.bf16.msra.mxu0 %v9672
    %9822 = vmatpush.bf16.msra.mxu0 %v9666
    %9823 = vmatpush.bf16.msra.mxu0 %v9660
    %9824 = vmatmul.bf16.gmra.mxu0 %v9509
    %v9825 = vpop.f32.mrf.mxu0
    %v9826 = vadd.f32 0.0, %v9825
    %v9827 = vpop.f32.mrf.mxu0
    %9828 = vdwg.mxu0
    %v9829 = vadd.f32 %v9451, %v9761
    %v9830 = vadd.f32 %v9452, %v9774
    %v9831 = vadd.f32 %v9453, %v9787
    %v9832 = vadd.f32 %v9454, %v9800
    %v9833 = vadd.f32 %v9455, %v9813
    %v9834 = vadd.f32 %v9456, %v9826
    %s9835 = scalar_lea.vmem [#allocation2], 9216
    %v9836 = vld [vmem:[%s9835] sm:$0xff]
    %v9837 = vld [vmem:[%s9835 + $0x8] sm:$0xff]
    %v9838 = vld [vmem:[%s9835 + $0x10] sm:$0xff]
    %v9839 = vld [vmem:[%s9835 + $0x18] sm:$0xff]
    %v9840 = vld [vmem:[%s9835 + $0x20] sm:$0xff]
    %v9841 = vld [vmem:[%s9835 + $0x28] sm:$0xff]
    %v9842 = vld [vmem:[%s9835 + $0x30] sm:$0xff]
    %v9843 = vld [vmem:[%s9835 + $0x38] sm:$0xff]
    %v9844 = vld [vmem:[%s9835 + $0x40] sm:$0xff]
    %v9845 = vld [vmem:[%s9835 + $0x48] sm:$0xff]
    %v9846 = vld [vmem:[%s9835 + $0x50] sm:$0xff]
    %v9847 = vld [vmem:[%s9835 + $0x58] sm:$0xff]
    %v9848 = vld [vmem:[%s9835 + $0x60] sm:$0xff]
    %v9849 = vld [vmem:[%s9835 + $0x68] sm:$0xff]
    %v9850 = vld [vmem:[%s9835 + $0x70] sm:$0xff]
    %v9851 = vld [vmem:[%s9835 + $0x78] sm:$0xff]
    %v9852 = vld [vmem:[%s9835 + $0x80] sm:$0xff]
    %v9853 = vld [vmem:[%s9835 + $0x88] sm:$0xff]
    %v9854 = vld [vmem:[%s9835 + $0x90] sm:$0xff]
    %v9855 = vld [vmem:[%s9835 + $0x98] sm:$0xff]
    %v9856 = vld [vmem:[%s9835 + $0xa0] sm:$0xff]
    %v9857 = vld [vmem:[%s9835 + $0xa8] sm:$0xff]
    %v9858 = vld [vmem:[%s9835 + $0xb0] sm:$0xff]
    %v9859 = vld [vmem:[%s9835 + $0xb8] sm:$0xff]
    %v9860 = vld [vmem:[%s9835 + $0xc0] sm:$0xff]
    %v9861 = vld [vmem:[%s9835 + $0xc8] sm:$0xff]
    %v9862 = vld [vmem:[%s9835 + $0xd0] sm:$0xff]
    %v9863 = vld [vmem:[%s9835 + $0xd8] sm:$0xff]
    %v9864 = vld [vmem:[%s9835 + $0xe0] sm:$0xff]
    %v9865 = vld [vmem:[%s9835 + $0xe8] sm:$0xff]
    %v9866 = vld [vmem:[%s9835 + $0xf0] sm:$0xff]
    %v9867 = vld [vmem:[%s9835 + $0xf8] sm:$0xff]
    %v9868 = vld [vmem:[%s9835 + $0x100] sm:$0xff]
    %v9869 = vld [vmem:[%s9835 + $0x108] sm:$0xff]
    %v9870 = vld [vmem:[%s9835 + $0x110] sm:$0xff]
    %v9871 = vld [vmem:[%s9835 + $0x118] sm:$0xff]
    %v9872 = vld [vmem:[%s9835 + $0x120] sm:$0xff]
    %v9873 = vld [vmem:[%s9835 + $0x128] sm:$0xff]
    %v9874 = vld [vmem:[%s9835 + $0x130] sm:$0xff]
    %v9875 = vld [vmem:[%s9835 + $0x138] sm:$0xff]
    %v9876 = vld [vmem:[%s9835 + $0x140] sm:$0xff]
    %v9877 = vld [vmem:[%s9835 + $0x148] sm:$0xff]
    %v9878 = vld [vmem:[%s9835 + $0x150] sm:$0xff]
    %v9879 = vld [vmem:[%s9835 + $0x158] sm:$0xff]
    %v9880 = vld [vmem:[%s9835 + $0x160] sm:$0xff]
    %v9881 = vld [vmem:[%s9835 + $0x168] sm:$0xff]
    %v9882 = vld [vmem:[%s9835 + $0x170] sm:$0xff]
    %v9883 = vld [vmem:[%s9835 + $0x178] sm:$0xff]
    %v9886 = vunpack.c.l.b16 %v466
    %v9887 = vunpack.c.l.b16 %v751
    %v9888 = vpack.c.b16 %v9886, %v9886
    %v9889 = vpack.c.b16 %v9887, %v9887
    %v9890 = vunpack.c.l.b16 %v9888
    %v9891 = vunpack.c.l.b16 %v9889
    %v9892 = vrot.slane %v9891, 7
    %v9893 = vsel %vm863, %v9892, %v9890
    %v9894 = vpack.c.b16 %v9893, %v9893
    %v9944 = vunpack.c.l.b16 %v9836
    %v9945 = vunpack.c.h.b16 %v9836
    %v9946 = vunpack.c.l.b16 %v9837
    %v9947 = vunpack.c.h.b16 %v9837
    %v9948 = vunpack.c.l.b16 %v9838
    %v9949 = vunpack.c.h.b16 %v9838
    %v9950 = vunpack.c.l.b16 %v9839
    %v9951 = vunpack.c.h.b16 %v9839
    %v9952 = vunpack.c.l.b16 %v9840
    %v9953 = vunpack.c.h.b16 %v9840
    %v9954 = vunpack.c.l.b16 %v9841
    %v9955 = vunpack.c.h.b16 %v9841
    %v9956 = vunpack.c.l.b16 %v9842
    %v9957 = vunpack.c.h.b16 %v9842
    %v9958 = vunpack.c.l.b16 %v9843
    %v9959 = vunpack.c.h.b16 %v9843
    %v9960 = vunpack.c.l.b16 %v9844
    %v9961 = vunpack.c.h.b16 %v9844
    %v9962 = vunpack.c.l.b16 %v9845
    %v9963 = vunpack.c.h.b16 %v9845
    %v9964 = vunpack.c.l.b16 %v9846
    %v9965 = vunpack.c.h.b16 %v9846
    %v9966 = vunpack.c.l.b16 %v9847
    %v9967 = vunpack.c.h.b16 %v9847
    %v9968 = vunpack.c.l.b16 %v9848
    %v9969 = vunpack.c.h.b16 %v9848
    %v9970 = vunpack.c.l.b16 %v9849
    %v9971 = vunpack.c.h.b16 %v9849
    %v9972 = vunpack.c.l.b16 %v9850
    %v9973 = vunpack.c.h.b16 %v9850
    %v9974 = vunpack.c.l.b16 %v9851
    %v9975 = vunpack.c.h.b16 %v9851
    %v9976 = vunpack.c.l.b16 %v9852
    %v9977 = vunpack.c.h.b16 %v9852
    %v9978 = vunpack.c.l.b16 %v9853
    %v9979 = vunpack.c.h.b16 %v9853
    %v9980 = vunpack.c.l.b16 %v9854
    %v9981 = vunpack.c.h.b16 %v9854
    %v9982 = vunpack.c.l.b16 %v9855
    %v9983 = vunpack.c.h.b16 %v9855
    %v9984 = vunpack.c.l.b16 %v9856
    %v9985 = vunpack.c.h.b16 %v9856
    %v9986 = vunpack.c.l.b16 %v9857
    %v9987 = vunpack.c.h.b16 %v9857
    %v9988 = vunpack.c.l.b16 %v9858
    %v9989 = vunpack.c.h.b16 %v9858
    %v9990 = vunpack.c.l.b16 %v9859
    %v9991 = vunpack.c.h.b16 %v9859
    %v9992 = vunpack.c.l.b16 %v9860
    %v9993 = vunpack.c.h.b16 %v9860
    %v9994 = vunpack.c.l.b16 %v9861
    %v9995 = vunpack.c.h.b16 %v9861
    %v9996 = vunpack.c.l.b16 %v9862
    %v9997 = vunpack.c.h.b16 %v9862
    %v9998 = vunpack.c.l.b16 %v9863
    %v9999 = vunpack.c.h.b16 %v9863
    %v10000 = vunpack.c.l.b16 %v9864
    %v10001 = vunpack.c.h.b16 %v9864
    %v10002 = vunpack.c.l.b16 %v9865
    %v10003 = vunpack.c.h.b16 %v9865
    %v10004 = vunpack.c.l.b16 %v9866
    %v10005 = vunpack.c.h.b16 %v9866
    %v10006 = vunpack.c.l.b16 %v9867
    %v10007 = vunpack.c.h.b16 %v9867
    %v10008 = vunpack.c.l.b16 %v9868
    %v10009 = vunpack.c.h.b16 %v9868
    %v10010 = vunpack.c.l.b16 %v9869
    %v10011 = vunpack.c.h.b16 %v9869
    %v10012 = vunpack.c.l.b16 %v9870
    %v10013 = vunpack.c.h.b16 %v9870
    %v10014 = vunpack.c.l.b16 %v9871
    %v10015 = vunpack.c.h.b16 %v9871
    %v10016 = vunpack.c.l.b16 %v9872
    %v10017 = vunpack.c.h.b16 %v9872
    %v10018 = vunpack.c.l.b16 %v9873
    %v10019 = vunpack.c.h.b16 %v9873
    %v10020 = vunpack.c.l.b16 %v9874
    %v10021 = vunpack.c.h.b16 %v9874
    %v10022 = vunpack.c.l.b16 %v9875
    %v10023 = vunpack.c.h.b16 %v9875
    %v10024 = vunpack.c.l.b16 %v9876
    %v10025 = vunpack.c.h.b16 %v9876
    %v10026 = vunpack.c.l.b16 %v9877
    %v10027 = vunpack.c.h.b16 %v9877
    %v10028 = vunpack.c.l.b16 %v9878
    %v10029 = vunpack.c.h.b16 %v9878
    %v10030 = vunpack.c.l.b16 %v9879
    %v10031 = vunpack.c.h.b16 %v9879
    %v10032 = vunpack.c.l.b16 %v9880
    %v10033 = vunpack.c.h.b16 %v9880
    %v10034 = vunpack.c.l.b16 %v9881
    %v10035 = vunpack.c.h.b16 %v9881
    %v10036 = vunpack.c.l.b16 %v9882
    %v10037 = vunpack.c.h.b16 %v9882
    %v10038 = vunpack.c.l.b16 %v9883
    %v10039 = vunpack.c.h.b16 %v9883
    %v10040 = vpack.c.b16 %v9950, %v9944
    %v10041 = vpack.c.b16 %v9951, %v9945
    %v10042 = vpack.c.b16 %v9952, %v9946
    %v10043 = vpack.c.b16 %v9953, %v9947
    %v10044 = vpack.c.b16 %v9954, %v9948
    %v10045 = vpack.c.b16 %v9955, %v9949
    %v10046 = vpack.c.b16 %v9962, %v9956
    %v10047 = vpack.c.b16 %v9963, %v9957
    %v10048 = vpack.c.b16 %v9964, %v9958
    %v10049 = vpack.c.b16 %v9965, %v9959
    %v10050 = vpack.c.b16 %v9966, %v9960
    %v10051 = vpack.c.b16 %v9967, %v9961
    %v10052 = vpack.c.b16 %v9974, %v9968
    %v10053 = vpack.c.b16 %v9975, %v9969
    %v10054 = vpack.c.b16 %v9976, %v9970
    %v10055 = vpack.c.b16 %v9977, %v9971
    %v10056 = vpack.c.b16 %v9978, %v9972
    %v10057 = vpack.c.b16 %v9979, %v9973
    %v10058 = vpack.c.b16 %v9986, %v9980
    %v10059 = vpack.c.b16 %v9987, %v9981
    %v10060 = vpack.c.b16 %v9988, %v9982
    %v10061 = vpack.c.b16 %v9989, %v9983
    %v10062 = vpack.c.b16 %v9990, %v9984
    %v10063 = vpack.c.b16 %v9991, %v9985
    %v10064 = vpack.c.b16 %v9998, %v9992
    %v10065 = vpack.c.b16 %v9999, %v9993
    %v10066 = vpack.c.b16 %v10000, %v9994
    %v10067 = vpack.c.b16 %v10001, %v9995
    %v10068 = vpack.c.b16 %v10002, %v9996
    %v10069 = vpack.c.b16 %v10003, %v9997
    %v10070 = vpack.c.b16 %v10010, %v10004
    %v10071 = vpack.c.b16 %v10011, %v10005
    %v10072 = vpack.c.b16 %v10012, %v10006
    %v10073 = vpack.c.b16 %v10013, %v10007
    %v10074 = vpack.c.b16 %v10014, %v10008
    %v10075 = vpack.c.b16 %v10015, %v10009
    %v10076 = vpack.c.b16 %v10022, %v10016
    %v10077 = vpack.c.b16 %v10023, %v10017
    %v10078 = vpack.c.b16 %v10024, %v10018
    %v10079 = vpack.c.b16 %v10025, %v10019
    %v10080 = vpack.c.b16 %v10026, %v10020
    %v10081 = vpack.c.b16 %v10027, %v10021
    %v10082 = vpack.c.b16 %v10034, %v10028
    %v10083 = vpack.c.b16 %v10035, %v10029
    %v10084 = vpack.c.b16 %v10036, %v10030
    %v10085 = vpack.c.b16 %v10037, %v10031
    %v10086 = vpack.c.b16 %v10038, %v10032
    %v10087 = vpack.c.b16 %v10039, %v10033
    %10136 = vmatpush.bf16.msra.mxu0 %v10082
    %10137 = vmatpush.bf16.msra.mxu0 %v10076
    %10138 = vmatpush.bf16.msra.mxu0 %v10070
    %10139 = vmatpush.bf16.msra.mxu0 %v10064
    %10140 = vmatpush.bf16.msra.mxu0 %v10058
    %10141 = vmatpush.bf16.msra.mxu0 %v10052
    %10142 = vmatpush.bf16.msra.mxu0 %v10046
    %10143 = vmatpush.bf16.msra.mxu0 %v10040
    %10144 = vmatmul.bf16.gmra.mxu0 %v9894
    %v10145 = vpop.f32.mrf.mxu0
    %v10146 = vadd.f32 0.0, %v10145
    %v10147 = vpop.f32.mrf.mxu0
    %10148 = vdwg.mxu0
    %10149 = vmatpush.bf16.msra.mxu0 %v10083
    %10150 = vmatpush.bf16.msra.mxu0 %v10077
    %10151 = vmatpush.bf16.msra.mxu0 %v10071
    %10152 = vmatpush.bf16.msra.mxu0 %v10065
    %10153 = vmatpush.bf16.msra.mxu0 %v10059
    %10154 = vmatpush.bf16.msra.mxu0 %v10053
    %10155 = vmatpush.bf16.msra.mxu0 %v10047
    %10156 = vmatpush.bf16.msra.mxu0 %v10041
    %10157 = vmatmul.bf16.gmra.mxu0 %v9894
    %v10158 = vpop.f32.mrf.mxu0
    %v10159 = vadd.f32 0.0, %v10158
    %v10160 = vpop.f32.mrf.mxu0
    %10161 = vdwg.mxu0
    %10162 = vmatpush.bf16.msra.mxu0 %v10084
    %10163 = vmatpush.bf16.msra.mxu0 %v10078
    %10164 = vmatpush.bf16.msra.mxu0 %v10072
    %10165 = vmatpush.bf16.msra.mxu0 %v10066
    %10166 = vmatpush.bf16.msra.mxu0 %v10060
    %10167 = vmatpush.bf16.msra.mxu0 %v10054
    %10168 = vmatpush.bf16.msra.mxu0 %v10048
    %10169 = vmatpush.bf16.msra.mxu0 %v10042
    %10170 = vmatmul.bf16.gmra.mxu0 %v9894
    %v10171 = vpop.f32.mrf.mxu0
    %v10172 = vadd.f32 0.0, %v10171
    %v10173 = vpop.f32.mrf.mxu0
    %10174 = vdwg.mxu0
    %10175 = vmatpush.bf16.msra.mxu0 %v10085
    %10176 = vmatpush.bf16.msra.mxu0 %v10079
    %10177 = vmatpush.bf16.msra.mxu0 %v10073
    %10178 = vmatpush.bf16.msra.mxu0 %v10067
    %10179 = vmatpush.bf16.msra.mxu0 %v10061
    %10180 = vmatpush.bf16.msra.mxu0 %v10055
    %10181 = vmatpush.bf16.msra.mxu0 %v10049
    %10182 = vmatpush.bf16.msra.mxu0 %v10043
    %10183 = vmatmul.bf16.gmra.mxu0 %v9894
    %v10184 = vpop.f32.mrf.mxu0
    %v10185 = vadd.f32 0.0, %v10184
    %v10186 = vpop.f32.mrf.mxu0
    %10187 = vdwg.mxu0
    %10188 = vmatpush.bf16.msra.mxu0 %v10086
    %10189 = vmatpush.bf16.msra.mxu0 %v10080
    %10190 = vmatpush.bf16.msra.mxu0 %v10074
    %10191 = vmatpush.bf16.msra.mxu0 %v10068
    %10192 = vmatpush.bf16.msra.mxu0 %v10062
    %10193 = vmatpush.bf16.msra.mxu0 %v10056
    %10194 = vmatpush.bf16.msra.mxu0 %v10050
    %10195 = vmatpush.bf16.msra.mxu0 %v10044
    %10196 = vmatmul.bf16.gmra.mxu0 %v9894
    %v10197 = vpop.f32.mrf.mxu0
    %v10198 = vadd.f32 0.0, %v10197
    %v10199 = vpop.f32.mrf.mxu0
    %10200 = vdwg.mxu0
    %10201 = vmatpush.bf16.msra.mxu0 %v10087
    %10202 = vmatpush.bf16.msra.mxu0 %v10081
    %10203 = vmatpush.bf16.msra.mxu0 %v10075
    %10204 = vmatpush.bf16.msra.mxu0 %v10069
    %10205 = vmatpush.bf16.msra.mxu0 %v10063
    %10206 = vmatpush.bf16.msra.mxu0 %v10057
    %10207 = vmatpush.bf16.msra.mxu0 %v10051
    %10208 = vmatpush.bf16.msra.mxu0 %v10045
    %10209 = vmatmul.bf16.gmra.mxu0 %v9894
    %v10210 = vpop.f32.mrf.mxu0
    %v10211 = vadd.f32 0.0, %v10210
    %v10212 = vpop.f32.mrf.mxu0
    %10213 = vdwg.mxu0
    %v10214 = vadd.f32 %v9829, %v10146
    %v10215 = vadd.f32 %v9830, %v10159
    %v10216 = vadd.f32 %v9831, %v10172
    %v10217 = vadd.f32 %v9832, %v10185
    %v10218 = vadd.f32 %v9833, %v10198
    %v10219 = vadd.f32 %v9834, %v10211
    %v10220 = vld [vmem:[#allocation10] sm:$0x3f]
    %v10222 = vperm.slane %v10220, 0
    %v10223 = vperm.slane %v10220, 1
    %v10224 = vperm.slane %v10220, 2
    %v10225 = vperm.slane %v10220, 3
    %v10226 = vperm.slane %v10220, 4
    %v10227 = vperm.slane %v10220, 5
    %v10234 = vadd.f32 %v10214, %v10222
    %v10235 = vadd.f32 %v10215, %v10223
    %v10236 = vadd.f32 %v10216, %v10224
    %v10237 = vadd.f32 %v10217, %v10225
    %v10238 = vadd.f32 %v10218, %v10226
    %v10239 = vadd.f32 %v10219, %v10227
    %v10240 = vmax.f32 %v10234, 0.0
    %v10241 = vmax.f32 %v10235, 0.0
    %v10242 = vmax.f32 %v10236, 0.0
    %v10243 = vmax.f32 %v10237, 0.0
    %v10244 = vmax.f32 %v10238, 0.0
    %v10245 = vmax.f32 %v10239, 0.0
    %v10246 = vpack.c.bf16 %v10240, %v10240
    %v10247 = vpack.c.bf16 %v10241, %v10241
    %v10248 = vpack.c.bf16 %v10242, %v10242
    %v10249 = vpack.c.bf16 %v10243, %v10243
    %v10250 = vpack.c.bf16 %v10244, %v10244
    %v10251 = vpack.c.bf16 %v10245, %v10245
    %v10252 = vld [vmem:[#allocation12] sm:$0xf]
    %v10253 = vld [vmem:[#allocation12 + $0x4] sm:$0xf]
    %v10254 = vld [vmem:[#allocation12 + $0x8] sm:$0xf]
    %v10255 = vld [vmem:[#allocation12 + $0xc] sm:$0xf]
    %v10256 = vld [vmem:[#allocation12 + $0x10] sm:$0xf]
    %v10257 = vld [vmem:[#allocation12 + $0x14] sm:$0xf]
    %v10258 = vld [vmem:[#allocation12 + $0x18] sm:$0xf]
    %v10259 = vld [vmem:[#allocation12 + $0x1c] sm:$0xf]
    %v10260 = vld [vmem:[#allocation12 + $0x20] sm:$0xf]
    %v10261 = vld [vmem:[#allocation12 + $0x24] sm:$0xf]
    %v10262 = vld [vmem:[#allocation12 + $0x28] sm:$0xf]
    %v10263 = vld [vmem:[#allocation12 + $0x2c] sm:$0xf]
    %v10264 = vld [vmem:[#allocation12 + $0x30] sm:$0xf]
    %v10265 = vld [vmem:[#allocation12 + $0x34] sm:$0xf]
    %v10266 = vld [vmem:[#allocation12 + $0x38] sm:$0xf]
    %v10267 = vld [vmem:[#allocation12 + $0x3c] sm:$0xf]
    %v10268 = vld [vmem:[#allocation12 + $0x40] sm:$0xf]
    %v10269 = vld [vmem:[#allocation12 + $0x44] sm:$0xf]
    %v10270 = vld [vmem:[#allocation12 + $0x48] sm:$0xf]
    %v10271 = vld [vmem:[#allocation12 + $0x4c] sm:$0xf]
    %v10272 = vld [vmem:[#allocation12 + $0x50] sm:$0xf]
    %v10273 = vld [vmem:[#allocation12 + $0x54] sm:$0xf]
    %v10274 = vld [vmem:[#allocation12 + $0x58] sm:$0xf]
    %v10275 = vld [vmem:[#allocation12 + $0x5c] sm:$0xf]
    %v10276 = vld [vmem:[#allocation12 + $0x60] sm:$0xf]
    %v10277 = vld [vmem:[#allocation12 + $0x64] sm:$0xf]
    %v10278 = vld [vmem:[#allocation12 + $0x68] sm:$0xf]
    %v10279 = vld [vmem:[#allocation12 + $0x6c] sm:$0xf]
    %v10280 = vld [vmem:[#allocation12 + $0x70] sm:$0xf]
    %v10281 = vld [vmem:[#allocation12 + $0x74] sm:$0xf]
    %v10282 = vld [vmem:[#allocation12 + $0x78] sm:$0xf]
    %v10283 = vld [vmem:[#allocation12 + $0x7c] sm:$0xf]
    %v10284 = vld [vmem:[#allocation12 + $0x80] sm:$0xf]
    %v10285 = vld [vmem:[#allocation12 + $0x84] sm:$0xf]
    %v10286 = vld [vmem:[#allocation12 + $0x88] sm:$0xf]
    %v10287 = vld [vmem:[#allocation12 + $0x8c] sm:$0xf]
    %v10288 = vld [vmem:[#allocation12 + $0x90] sm:$0xf]
    %v10289 = vld [vmem:[#allocation12 + $0x94] sm:$0xf]
    %v10290 = vld [vmem:[#allocation12 + $0x98] sm:$0xf]
    %v10291 = vld [vmem:[#allocation12 + $0x9c] sm:$0xf]
    %v10292 = vld [vmem:[#allocation12 + $0xa0] sm:$0xf]
    %v10293 = vld [vmem:[#allocation12 + $0xa4] sm:$0xf]
    %v10294 = vld [vmem:[#allocation12 + $0xa8] sm:$0xf]
    %v10295 = vld [vmem:[#allocation12 + $0xac] sm:$0xf]
    %v10296 = vld [vmem:[#allocation12 + $0xb0] sm:$0xf]
    %v10297 = vld [vmem:[#allocation12 + $0xb4] sm:$0xf]
    %v10298 = vld [vmem:[#allocation12 + $0xb8] sm:$0xf]
    %v10299 = vld [vmem:[#allocation12 + $0xbc] sm:$0xf]
    %v10300 = vld [vmem:[#allocation12 + $0xc0] sm:$0xf]
    %v10301 = vld [vmem:[#allocation12 + $0xc4] sm:$0xf]
    %v10302 = vld [vmem:[#allocation12 + $0xc8] sm:$0xf]
    %v10303 = vld [vmem:[#allocation12 + $0xcc] sm:$0xf]
    %v10304 = vld [vmem:[#allocation12 + $0xd0] sm:$0xf]
    %v10305 = vld [vmem:[#allocation12 + $0xd4] sm:$0xf]
    %v10306 = vld [vmem:[#allocation12 + $0xd8] sm:$0xf]
    %v10307 = vld [vmem:[#allocation12 + $0xdc] sm:$0xf]
    %v10308 = vld [vmem:[#allocation12 + $0xe0] sm:$0xf]
    %v10309 = vld [vmem:[#allocation12 + $0xe4] sm:$0xf]
    %v10310 = vld [vmem:[#allocation12 + $0xe8] sm:$0xf]
    %v10311 = vld [vmem:[#allocation12 + $0xec] sm:$0xf]
    %v10312 = vld [vmem:[#allocation12 + $0xf0] sm:$0xf]
    %v10313 = vld [vmem:[#allocation12 + $0xf4] sm:$0xf]
    %v10314 = vld [vmem:[#allocation12 + $0xf8] sm:$0xf]
    %v10315 = vld [vmem:[#allocation12 + $0xfc] sm:$0xf]
    %v10316 = vld [vmem:[#allocation12 + $0x100] sm:$0xf]
    %v10317 = vld [vmem:[#allocation12 + $0x104] sm:$0xf]
    %v10318 = vld [vmem:[#allocation12 + $0x108] sm:$0xf]
    %v10319 = vld [vmem:[#allocation12 + $0x10c] sm:$0xf]
    %v10320 = vld [vmem:[#allocation12 + $0x110] sm:$0xf]
    %v10321 = vld [vmem:[#allocation12 + $0x114] sm:$0xf]
    %v10322 = vld [vmem:[#allocation12 + $0x118] sm:$0xf]
    %v10323 = vld [vmem:[#allocation12 + $0x11c] sm:$0xf]
    %v10324 = vld [vmem:[#allocation12 + $0x120] sm:$0xf]
    %v10325 = vld [vmem:[#allocation12 + $0x124] sm:$0xf]
    %v10326 = vld [vmem:[#allocation12 + $0x128] sm:$0xf]
    %v10327 = vld [vmem:[#allocation12 + $0x12c] sm:$0xf]
    %v10328 = vld [vmem:[#allocation12 + $0x130] sm:$0xf]
    %v10329 = vld [vmem:[#allocation12 + $0x134] sm:$0xf]
    %v10330 = vld [vmem:[#allocation12 + $0x138] sm:$0xf]
    %v10331 = vld [vmem:[#allocation12 + $0x13c] sm:$0xf]
    %v10332 = vld [vmem:[#allocation12 + $0x140] sm:$0xf]
    %v10333 = vld [vmem:[#allocation12 + $0x144] sm:$0xf]
    %v10334 = vld [vmem:[#allocation12 + $0x148] sm:$0xf]
    %v10335 = vld [vmem:[#allocation12 + $0x14c] sm:$0xf]
    %v10336 = vld [vmem:[#allocation12 + $0x150] sm:$0xf]
    %v10337 = vld [vmem:[#allocation12 + $0x154] sm:$0xf]
    %v10338 = vld [vmem:[#allocation12 + $0x158] sm:$0xf]
    %v10339 = vld [vmem:[#allocation12 + $0x15c] sm:$0xf]
    %v10340 = vld [vmem:[#allocation12 + $0x160] sm:$0xf]
    %v10341 = vld [vmem:[#allocation12 + $0x164] sm:$0xf]
    %v10342 = vld [vmem:[#allocation12 + $0x168] sm:$0xf]
    %v10343 = vld [vmem:[#allocation12 + $0x16c] sm:$0xf]
    %v10344 = vld [vmem:[#allocation12 + $0x170] sm:$0xf]
    %v10345 = vld [vmem:[#allocation12 + $0x174] sm:$0xf]
    %v10346 = vld [vmem:[#allocation12 + $0x178] sm:$0xf]
    %v10347 = vld [vmem:[#allocation12 + $0x17c] sm:$0xf]
    %v10348 = vld [vmem:[#allocation13] sm:$0x1]
    %v10350 = vperm.slane %v10348, 0
    %v10448 = vunpack.c.l.b16 %v10252
    %v10449 = vunpack.c.l.b16 %v10253
    %v10450 = vunpack.c.l.b16 %v10254
    %v10451 = vunpack.c.l.b16 %v10255
    %v10452 = vunpack.c.l.b16 %v10256
    %v10453 = vunpack.c.l.b16 %v10257
    %v10454 = vunpack.c.l.b16 %v10258
    %v10455 = vunpack.c.l.b16 %v10259
    %v10456 = vunpack.c.l.b16 %v10260
    %v10457 = vunpack.c.l.b16 %v10261
    %v10458 = vunpack.c.l.b16 %v10262
    %v10459 = vunpack.c.l.b16 %v10263
    %v10460 = vunpack.c.l.b16 %v10264
    %v10461 = vunpack.c.l.b16 %v10265
    %v10462 = vunpack.c.l.b16 %v10266
    %v10463 = vunpack.c.l.b16 %v10267
    %v10464 = vunpack.c.l.b16 %v10268
    %v10465 = vunpack.c.l.b16 %v10269
    %v10466 = vunpack.c.l.b16 %v10270
    %v10467 = vunpack.c.l.b16 %v10271
    %v10468 = vunpack.c.l.b16 %v10272
    %v10469 = vunpack.c.l.b16 %v10273
    %v10470 = vunpack.c.l.b16 %v10274
    %v10471 = vunpack.c.l.b16 %v10275
    %v10472 = vunpack.c.l.b16 %v10276
    %v10473 = vunpack.c.l.b16 %v10277
    %v10474 = vunpack.c.l.b16 %v10278
    %v10475 = vunpack.c.l.b16 %v10279
    %v10476 = vunpack.c.l.b16 %v10280
    %v10477 = vunpack.c.l.b16 %v10281
    %v10478 = vunpack.c.l.b16 %v10282
    %v10479 = vunpack.c.l.b16 %v10283
    %v10480 = vunpack.c.l.b16 %v10284
    %v10481 = vunpack.c.l.b16 %v10285
    %v10482 = vunpack.c.l.b16 %v10286
    %v10483 = vunpack.c.l.b16 %v10287
    %v10484 = vunpack.c.l.b16 %v10288
    %v10485 = vunpack.c.l.b16 %v10289
    %v10486 = vunpack.c.l.b16 %v10290
    %v10487 = vunpack.c.l.b16 %v10291
    %v10488 = vunpack.c.l.b16 %v10292
    %v10489 = vunpack.c.l.b16 %v10293
    %v10490 = vunpack.c.l.b16 %v10294
    %v10491 = vunpack.c.l.b16 %v10295
    %v10492 = vunpack.c.l.b16 %v10296
    %v10493 = vunpack.c.l.b16 %v10297
    %v10494 = vunpack.c.l.b16 %v10298
    %v10495 = vunpack.c.l.b16 %v10299
    %v10496 = vunpack.c.l.b16 %v10300
    %v10497 = vunpack.c.l.b16 %v10301
    %v10498 = vunpack.c.l.b16 %v10302
    %v10499 = vunpack.c.l.b16 %v10303
    %v10500 = vunpack.c.l.b16 %v10304
    %v10501 = vunpack.c.l.b16 %v10305
    %v10502 = vunpack.c.l.b16 %v10306
    %v10503 = vunpack.c.l.b16 %v10307
    %v10504 = vunpack.c.l.b16 %v10308
    %v10505 = vunpack.c.l.b16 %v10309
    %v10506 = vunpack.c.l.b16 %v10310
    %v10507 = vunpack.c.l.b16 %v10311
    %v10508 = vunpack.c.l.b16 %v10312
    %v10509 = vunpack.c.l.b16 %v10313
    %v10510 = vunpack.c.l.b16 %v10314
    %v10511 = vunpack.c.l.b16 %v10315
    %v10512 = vunpack.c.l.b16 %v10316
    %v10513 = vunpack.c.l.b16 %v10317
    %v10514 = vunpack.c.l.b16 %v10318
    %v10515 = vunpack.c.l.b16 %v10319
    %v10516 = vunpack.c.l.b16 %v10320
    %v10517 = vunpack.c.l.b16 %v10321
    %v10518 = vunpack.c.l.b16 %v10322
    %v10519 = vunpack.c.l.b16 %v10323
    %v10520 = vunpack.c.l.b16 %v10324
    %v10521 = vunpack.c.l.b16 %v10325
    %v10522 = vunpack.c.l.b16 %v10326
    %v10523 = vunpack.c.l.b16 %v10327
    %v10524 = vunpack.c.l.b16 %v10328
    %v10525 = vunpack.c.l.b16 %v10329
    %v10526 = vunpack.c.l.b16 %v10330
    %v10527 = vunpack.c.l.b16 %v10331
    %v10528 = vunpack.c.l.b16 %v10332
    %v10529 = vunpack.c.l.b16 %v10333
    %v10530 = vunpack.c.l.b16 %v10334
    %v10531 = vunpack.c.l.b16 %v10335
    %v10532 = vunpack.c.l.b16 %v10336
    %v10533 = vunpack.c.l.b16 %v10337
    %v10534 = vunpack.c.l.b16 %v10338
    %v10535 = vunpack.c.l.b16 %v10339
    %v10536 = vunpack.c.l.b16 %v10340
    %v10537 = vunpack.c.l.b16 %v10341
    %v10538 = vunpack.c.l.b16 %v10342
    %v10539 = vunpack.c.l.b16 %v10343
    %v10540 = vunpack.c.l.b16 %v10344
    %v10541 = vunpack.c.l.b16 %v10345
    %v10542 = vunpack.c.l.b16 %v10346
    %v10543 = vunpack.c.l.b16 %v10347
    %v10544 = vpack.c.b16 %v10449, %v10448
    %v10545 = vpack.c.b16 %v10451, %v10450
    %v10546 = vpack.c.b16 %v10453, %v10452
    %v10547 = vpack.c.b16 %v10455, %v10454
    %v10548 = vpack.c.b16 %v10457, %v10456
    %v10549 = vpack.c.b16 %v10459, %v10458
    %v10550 = vpack.c.b16 %v10461, %v10460
    %v10551 = vpack.c.b16 %v10463, %v10462
    %v10552 = vpack.c.b16 %v10465, %v10464
    %v10553 = vpack.c.b16 %v10467, %v10466
    %v10554 = vpack.c.b16 %v10469, %v10468
    %v10555 = vpack.c.b16 %v10471, %v10470
    %v10556 = vpack.c.b16 %v10473, %v10472
    %v10557 = vpack.c.b16 %v10475, %v10474
    %v10558 = vpack.c.b16 %v10477, %v10476
    %v10559 = vpack.c.b16 %v10479, %v10478
    %v10560 = vpack.c.b16 %v10481, %v10480
    %v10561 = vpack.c.b16 %v10483, %v10482
    %v10562 = vpack.c.b16 %v10485, %v10484
    %v10563 = vpack.c.b16 %v10487, %v10486
    %v10564 = vpack.c.b16 %v10489, %v10488
    %v10565 = vpack.c.b16 %v10491, %v10490
    %v10566 = vpack.c.b16 %v10493, %v10492
    %v10567 = vpack.c.b16 %v10495, %v10494
    %v10568 = vpack.c.b16 %v10497, %v10496
    %v10569 = vpack.c.b16 %v10499, %v10498
    %v10570 = vpack.c.b16 %v10501, %v10500
    %v10571 = vpack.c.b16 %v10503, %v10502
    %v10572 = vpack.c.b16 %v10505, %v10504
    %v10573 = vpack.c.b16 %v10507, %v10506
    %v10574 = vpack.c.b16 %v10509, %v10508
    %v10575 = vpack.c.b16 %v10511, %v10510
    %v10576 = vpack.c.b16 %v10513, %v10512
    %v10577 = vpack.c.b16 %v10515, %v10514
    %v10578 = vpack.c.b16 %v10517, %v10516
    %v10579 = vpack.c.b16 %v10519, %v10518
    %v10580 = vpack.c.b16 %v10521, %v10520
    %v10581 = vpack.c.b16 %v10523, %v10522
    %v10582 = vpack.c.b16 %v10525, %v10524
    %v10583 = vpack.c.b16 %v10527, %v10526
    %v10584 = vpack.c.b16 %v10529, %v10528
    %v10585 = vpack.c.b16 %v10531, %v10530
    %v10586 = vpack.c.b16 %v10533, %v10532
    %v10587 = vpack.c.b16 %v10535, %v10534
    %v10588 = vpack.c.b16 %v10537, %v10536
    %v10589 = vpack.c.b16 %v10539, %v10538
    %v10590 = vpack.c.b16 %v10541, %v10540
    %v10591 = vpack.c.b16 %v10543, %v10542
    %10640 = vmatpush.bf16.msra.mxu0 %v10551
    %10641 = vmatpush.bf16.msra.mxu0 %v10550
    %10642 = vmatpush.bf16.msra.mxu0 %v10549
    %10643 = vmatpush.bf16.msra.mxu0 %v10548
    %10644 = vmatpush.bf16.msra.mxu0 %v10547
    %10645 = vmatpush.bf16.msra.mxu0 %v10546
    %10646 = vmatpush.bf16.msra.mxu0 %v10545
    %10647 = vmatpush.bf16.msra.mxu0 %v10544
    %10648 = vmatmul.bf16.gmra.mxu0 %v10246
    %v10649 = vpop.f32.mrf.mxu0
    %v10650 = vadd.f32 %v10350, %v10649
    %v10651 = vpop.f32.mrf.mxu0
    %10652 = vdwg.mxu0
    %10653 = vmatpush.bf16.msra.mxu0 %v10559
    %10654 = vmatpush.bf16.msra.mxu0 %v10558
    %10655 = vmatpush.bf16.msra.mxu0 %v10557
    %10656 = vmatpush.bf16.msra.mxu0 %v10556
    %10657 = vmatpush.bf16.msra.mxu0 %v10555
    %10658 = vmatpush.bf16.msra.mxu0 %v10554
    %10659 = vmatpush.bf16.msra.mxu0 %v10553
    %10660 = vmatpush.bf16.msra.mxu0 %v10552
    %10661 = vmatmul.bf16.gmra.mxu0 %v10247
    %v10662 = vpop.f32.mrf.mxu0
    %v10663 = vadd.f32 %v10650, %v10662
    %v10664 = vpop.f32.mrf.mxu0
    %10665 = vdwg.mxu0
    %10666 = vmatpush.bf16.msra.mxu0 %v10567
    %10667 = vmatpush.bf16.msra.mxu0 %v10566
    %10668 = vmatpush.bf16.msra.mxu0 %v10565
    %10669 = vmatpush.bf16.msra.mxu0 %v10564
    %10670 = vmatpush.bf16.msra.mxu0 %v10563
    %10671 = vmatpush.bf16.msra.mxu0 %v10562
    %10672 = vmatpush.bf16.msra.mxu0 %v10561
    %10673 = vmatpush.bf16.msra.mxu0 %v10560
    %10674 = vmatmul.bf16.gmra.mxu0 %v10248
    %v10675 = vpop.f32.mrf.mxu0
    %v10676 = vadd.f32 %v10663, %v10675
    %v10677 = vpop.f32.mrf.mxu0
    %10678 = vdwg.mxu0
    %10679 = vmatpush.bf16.msra.mxu0 %v10575
    %10680 = vmatpush.bf16.msra.mxu0 %v10574
    %10681 = vmatpush.bf16.msra.mxu0 %v10573
    %10682 = vmatpush.bf16.msra.mxu0 %v10572
    %10683 = vmatpush.bf16.msra.mxu0 %v10571
    %10684 = vmatpush.bf16.msra.mxu0 %v10570
    %10685 = vmatpush.bf16.msra.mxu0 %v10569
    %10686 = vmatpush.bf16.msra.mxu0 %v10568
    %10687 = vmatmul.bf16.gmra.mxu0 %v10249
    %v10688 = vpop.f32.mrf.mxu0
    %v10689 = vadd.f32 %v10676, %v10688
    %v10690 = vpop.f32.mrf.mxu0
    %10691 = vdwg.mxu0
    %10692 = vmatpush.bf16.msra.mxu0 %v10583
    %10693 = vmatpush.bf16.msra.mxu0 %v10582
    %10694 = vmatpush.bf16.msra.mxu0 %v10581
    %10695 = vmatpush.bf16.msra.mxu0 %v10580
    %10696 = vmatpush.bf16.msra.mxu0 %v10579
    %10697 = vmatpush.bf16.msra.mxu0 %v10578
    %10698 = vmatpush.bf16.msra.mxu0 %v10577
    %10699 = vmatpush.bf16.msra.mxu0 %v10576
    %10700 = vmatmul.bf16.gmra.mxu0 %v10250
    %v10701 = vpop.f32.mrf.mxu0
    %v10702 = vadd.f32 %v10689, %v10701
    %v10703 = vpop.f32.mrf.mxu0
    %10704 = vdwg.mxu0
    %10705 = vmatpush.bf16.msra.mxu0 %v10591
    %10706 = vmatpush.bf16.msra.mxu0 %v10590
    %10707 = vmatpush.bf16.msra.mxu0 %v10589
    %10708 = vmatpush.bf16.msra.mxu0 %v10588
    %10709 = vmatpush.bf16.msra.mxu0 %v10587
    %10710 = vmatpush.bf16.msra.mxu0 %v10586
    %10711 = vmatpush.bf16.msra.mxu0 %v10585
    %10712 = vmatpush.bf16.msra.mxu0 %v10584
    %10713 = vmatmul.bf16.gmra.mxu0 %v10251
    %v10714 = vpop.f32.mrf.mxu0
    %v10715 = vadd.f32 %v10702, %v10714
    %v10716 = vpop.f32.mrf.mxu0
    %10717 = vdwg.mxu0
    %10718 = vst [vmem:[#allocation15] sm:$0x3] %v10715
    // Predicated region
    $region58: #{forward.1} parent=1 // pred_check
      _
    $region59: #{forward.1} parent=1 // pred_check_branch
      %10720 = sbr.rel (0) target = $region61
    $region60: #{forward.1} parent=1 // pred_region
      %10722 = vsyncadd [#allocation6], 0
      %s10724 = sshll.u32 [#allocation15], 4
      %s10725 = int_to_ptr.vmem [resolvable:$true] %s10724
      %s10726 = sshll.u32 %s8, 4
      %s10727 = int_to_ptr.hbm [resolvable:$true] %s10726
      %10729 = dma.vmem_to_hbm [thread:$0]  %s10725, 32, %s10727, [#allocation6]
    $region61: #{forward.1} parent=1 // pred_fallthru
      _
    // Predicated region
    $region62: #{forward.1} parent=1 // pred_check
      _
    $region63: #{forward.1} parent=1 // pred_check_branch
      %10731 = sbr.rel (0) target = $region65
    $region64: #{forward.1} parent=1 // pred_region
      %10733 = dma.done [#allocation6], 32
    $region65: #{forward.1} parent=1 // pred_fallthru
      _
    %10734 = vsyncpa [#allocation5], 1
    %10735 = vsyncpa [#allocation8], 1
    %10736 = vsyncpa [#allocation11], 1
    %10737 = vsyncpa [#allocation14], 1
    %10738 = vsyncpa [#allocation6], 1
  %10739 = vsyncmov [#allocation3]
  %s10740 = vpop.sfrf %10739
  %p10741 = scmp.eq.s32.totalorder %s10740, 0
  %p10742 = pneg %p10741
  %10744 = shalt.err (%p10742)

</llo_original>
